<compile_context>
chip_gen: v7x
topology: tpu7x:2x2x1
jax: 0.10.0
libtpu: 0.0.40
codegen_flags: <defaults>
</compile_context>

<pallas_src>
import jax
import jax.numpy as jnp
from jax.experimental import pallas as pl
from jax.experimental.pallas import tpu as pltpu


# ---------------------------------------------------------------------------
# Kernel 1: fused per-point MLP stack + global max-pool
# ---------------------------------------------------------------------------
def _point_mlp_maxpool_kernel(x_ref,
                              w1, b1, w2, b2, w3, b3, w4, b4, w5, b5,
                              o_ref):
    # o_ref block is resident across the point-tile (reduction) axis.
    @pl.when(pl.program_id(1) == 0)
    def _():
        o_ref[...] = jnp.full_like(o_ref, -jnp.inf)

    def layer(h, w_ref, b_ref):
        y = jnp.dot(h.astype(w_ref.dtype), w_ref[...],
                    preferred_element_type=jnp.float32)
        return jnp.maximum(y + b_ref[...], 0.0)        # f32 epilogue

    h = x_ref[0]                # (tm, 3) f32, channels-last
    h = layer(h, w1, b1)        # (tm, 64)
    h = layer(h, w2, b2)        # (tm, 64)
    h = layer(h, w3, b3)        # (tm, 64)
    h = layer(h, w4, b4)        # (tm, 128)
    h = layer(h, w5, b5)        # (tm, 1024)  (bf16 weight, f32 acc)

    tile_max = jnp.max(h, axis=0)                      # (1024,)
    o_ref[...] = jnp.maximum(o_ref[...], tile_max[None, None, :])


def point_mlp_maxpool(pts, conv, tm=512):
    """pts: (B, N, 3) channels-last f32 -> (B, 1024) global-max features."""
    B, N, Cin = pts.shape
    if N % tm != 0:
        tm = N
    Cout = conv["c5"]["w"].shape[1]

    args = [pts]
    in_specs = [pl.BlockSpec((1, tm, Cin), lambda b, i: (b, i, 0))]
    for name in ("c1", "c2", "c3", "c4", "c5"):
        w, bias = conv[name]["w"], conv[name]["b"]
        in_specs.append(pl.BlockSpec(w.shape, lambda b, i: (0, 0)))      # weights resident
        in_specs.append(pl.BlockSpec(bias.shape, lambda b, i: (0, 0)))
        args += [w, bias]

    out = pl.pallas_call(
        _point_mlp_maxpool_kernel,
        out_shape=jax.ShapeDtypeStruct((B, 1, Cout), jnp.float32),
        grid_spec=pltpu.PrefetchScalarGridSpec(
            num_scalar_prefetch=0,
            grid=(B, N // tm),
            in_specs=in_specs,
            out_specs=pl.BlockSpec((1, 1, Cout), lambda b, i: (b, 0, 0)),
        ),
        compiler_params=pltpu.CompilerParams(
            dimension_semantics=("parallel", "arbitrary")),
    )(*args)
    return out.reshape(B, Cout)


# ---------------------------------------------------------------------------
# Kernel 2: fused FC head  (Linear+BN+ReLU, Linear+BN+[Dropout]+ReLU, Linear) + LogSoftmax
# ---------------------------------------------------------------------------
def _fc_head_kernel(g_ref, w1, b1, w2, b2, w3, b3, o_ref):
    def layer(h, w_ref, b_ref, relu):
        y = jnp.dot(h.astype(w_ref.dtype), w_ref[...],
                    preferred_element_type=jnp.float32) + b_ref[...]
        return jnp.maximum(y, 0.0) if relu else y

    h = g_ref[...]                        # (B, 1024) f32
    h = layer(h, w1, b1, True)            # (B, 512)
    h = layer(h, w2, b2, True)            # (B, 256)   Dropout(0.3) == identity in eval
    y = layer(h, w3, b3, False)           # (B, classes)

    m = jnp.max(y, axis=-1, keepdims=True)
    z = y - m
    o_ref[...] = (z - jnp.log(jnp.sum(jnp.exp(z), axis=-1, keepdims=True))
                  ).astype(o_ref.dtype)


def fc_head(g, fc):
    """g: (B, 1024) -> log-probs (B, classes)."""
    B, F = g.shape
    classes = fc["fc3"]["w"].shape[1]

    args = [g]
    in_specs = [pl.BlockSpec((B, F), lambda i: (0, 0))]
    for name in ("fc1", "fc2", "fc3"):
        w, bias = fc[name]["w"], fc[name]["b"]
        in_specs.append(pl.BlockSpec(w.shape, lambda i: (0, 0)))
        in_specs.append(pl.BlockSpec(bias.shape, lambda i: (0, 0)))
        args += [w, bias]

    return pl.pallas_call(
        _fc_head_kernel,
        out_shape=jax.ShapeDtypeStruct((B, classes), jnp.float32),
        grid_spec=pltpu.PrefetchScalarGridSpec(
            num_scalar_prefetch=0,
            grid=(1,),
            in_specs=in_specs,
            out_specs=pl.BlockSpec((B, classes), lambda i: (0, 0)),
        ),
        compiler_params=pltpu.CompilerParams(dimension_semantics=("arbitrary",)),
    )(*args)


# ---------------------------------------------------------------------------
# Parameter init (deterministic, synthetic) with eval-mode BN folded into W / bias
# ---------------------------------------------------------------------------
def _init_layer(key, cin, cout, bn=True, dtype=jnp.float32):
    ks = jax.random.split(key, 6)
    w = jax.random.normal(ks[0], (cin, cout), jnp.float32) / jnp.sqrt(float(cin))
    b = 0.05 * jax.random.normal(ks[1], (cout,), jnp.float32)
    if bn:
        gamma = 1.0 + 0.1 * jax.random.normal(ks[2], (cout,), jnp.float32)
        beta = 0.05 * jax.random.normal(ks[3], (cout,), jnp.float32)
        mean = 0.05 * jax.random.normal(ks[4], (cout,), jnp.float32)
        var = 1.0 + 0.1 * jax.random.uniform(ks[5], (cout,), jnp.float32)
        s = gamma / jnp.sqrt(var + 1e-5)
        w_eff = w * s[None, :]              # fold BN scale into the weight columns
        shift = beta + s * (b - mean)       # fold conv/linear bias + BN shift
    else:
        w_eff = w
        shift = b
    return {"w": w_eff.astype(dtype), "b": shift.reshape(1, cout).astype(jnp.float32)}


def init_params(key, classes=40):
    k = jax.random.split(key, 8)
    conv = {
        "c1": _init_layer(k[0], 3, 64),
        "c2": _init_layer(k[1], 64, 64),
        "c3": _init_layer(k[2], 64, 64),
        "c4": _init_layer(k[3], 64, 128),
        "c5": _init_layer(k[4], 128, 1024, dtype=jnp.bfloat16),   # heavy layer in bf16
    }
    fc = {
        "fc1": _init_layer(k[5], 1024, 512, dtype=jnp.bfloat16),  # heavy layer in bf16
        "fc2": _init_layer(k[6], 512, 256),
        "fc3": _init_layer(k[7], 256, classes, bn=False),
    }
    return {"conv": conv, "fc": fc}


# ---------------------------------------------------------------------------
# Forward pass (mirrors PointNetBasic.forward, eval mode)
# ---------------------------------------------------------------------------
def pointnet_basic_forward(params, x):
    """x: (B, 3, N) float32 (PyTorch NCW).  Returns log-probs (B, classes)."""
    B, C, N = x.shape
    assert C == 3 and N == 1024   # MaxPool1d(1024) + Linear(1024, 512) require N == 1024
    pts = jnp.transpose(x, (0, 2, 1))                 # (B, N, 3) channels-last (24 KiB)
    g = point_mlp_maxpool(pts, params["conv"])        # fused conv stack + global max
    return fc_head(g, params["fc"])                   # fused FC head + log-softmax


# ---------------------------------------------------------------------------
# Pure-JAX reference (same folded params, same dtypes) for a correctness check
# ---------------------------------------------------------------------------
def reference_forward(params, x):
    pts = jnp.transpose(x, (0, 2, 1)).astype(jnp.float32)   # (B, N, 3)
    h = pts
    for name in ("c1", "c2", "c3", "c4", "c5"):
        w, b = params["conv"][name]["w"], params["conv"][name]["b"]
        h = jnp.maximum(jnp.einsum("bnc,cd->bnd", h.astype(w.dtype), w,
                                   preferred_element_type=jnp.float32) + b, 0.0)
    g = jnp.max(h, axis=1)                                   # (B, 1024)
    for name, relu in (("fc1", True), ("fc2", True), ("fc3", False)):
        w, b = params["fc"][name]["w"], params["fc"][name]["b"]
        g = jnp.dot(g.astype(w.dtype), w, preferred_element_type=jnp.float32) + b
        if relu:
            g = jnp.maximum(g, 0.0)
    m = jnp.max(g, axis=-1, keepdims=True)
    z = g - m
    return z - jnp.log(jnp.sum(jnp.exp(z), axis=-1, keepdims=True))


if __name__ == "__main__":
    key = jax.random.PRNGKey(0)
    kx, kp = jax.random.split(key)
    B, N, classes = 2, 1024, 40
    x = jax.random.normal(kx, (B, 3, N), jnp.float32)
    params = init_params(kp, classes)

    fwd = jax.jit(pointnet_basic_forward)
    logp = fwd(params, x)
    jax.block_until_ready(logp)

    assert logp.shape == (B, classes)
    assert bool(jnp.all(jnp.isfinite(logp)))
    # rows of exp(log_probs) must sum to 1
    assert bool(jnp.all(jnp.abs(jnp.sum(jnp.exp(logp), axis=-1) - 1.0) < 1e-3))
    # match the pure-JAX reference (same folded/bf16 params)
    ref = reference_forward(params, x)
    assert bool(jnp.allclose(logp, ref, atol=1e-2, rtol=1e-2))
    print("KERNEL_OK")
</pallas_src>

<mosaic_0001>
module attributes {stable_mosaic.version = 11 : i64} {
  func.func @_point_mlp_maxpool_kernel(%arg0: i32, %arg1: i32, %arg2: memref<1x512x3xf32, #tpu.memory_space<vmem>>, %arg3: memref<3x64xf32, #tpu.memory_space<vmem>>, %arg4: memref<1x64xf32, #tpu.memory_space<vmem>>, %arg5: memref<64x64xf32, #tpu.memory_space<vmem>>, %arg6: memref<1x64xf32, #tpu.memory_space<vmem>>, %arg7: memref<64x64xf32, #tpu.memory_space<vmem>>, %arg8: memref<1x64xf32, #tpu.memory_space<vmem>>, %arg9: memref<64x128xf32, #tpu.memory_space<vmem>>, %arg10: memref<1x128xf32, #tpu.memory_space<vmem>>, %arg11: memref<128x1024xbf16, #tpu.memory_space<vmem>>, %arg12: memref<1x1024xf32, #tpu.memory_space<vmem>>, %arg13: memref<1x1x1024xf32, #tpu.memory_space<vmem>>) attributes {dimension_semantics = [#tpu.dimension_semantics<parallel>, #tpu.dimension_semantics<arbitrary>], iteration_bounds = array<i64: 2, 2>, scalar_prefetch = 0 : i64, scratch_operands = 0 : i64, tpu.core_type = #tpu.core_type<tc>, window_params = [{transform_indices = @transform_0, window_bounds = array<i64: 1, 512, 3>}, {pipeline_mode = #tpu.pipeline_mode<synchronous>, transform_indices = @transform_1, window_bounds = array<i64: 3, 64>}, {pipeline_mode = #tpu.pipeline_mode<synchronous>, transform_indices = @transform_2, window_bounds = array<i64: 1, 64>}, {pipeline_mode = #tpu.pipeline_mode<synchronous>, transform_indices = @transform_3, window_bounds = array<i64: 64, 64>}, {pipeline_mode = #tpu.pipeline_mode<synchronous>, transform_indices = @transform_4, window_bounds = array<i64: 1, 64>}, {pipeline_mode = #tpu.pipeline_mode<synchronous>, transform_indices = @transform_5, window_bounds = array<i64: 64, 64>}, {pipeline_mode = #tpu.pipeline_mode<synchronous>, transform_indices = @transform_6, window_bounds = array<i64: 1, 64>}, {pipeline_mode = #tpu.pipeline_mode<synchronous>, transform_indices = @transform_7, window_bounds = array<i64: 64, 128>}, {pipeline_mode = #tpu.pipeline_mode<synchronous>, transform_indices = @transform_8, window_bounds = array<i64: 1, 128>}, {pipeline_mode = #tpu.pipeline_mode<synchronous>, transform_indices = @transform_9, window_bounds = array<i64: 128, 1024>}, {pipeline_mode = #tpu.pipeline_mode<synchronous>, transform_indices = @transform_10, window_bounds = array<i64: 1, 1024>}, {transform_indices = @transform_11, window_bounds = array<i64: 1, 1, 1024>}]} {
    %c0_i32 = arith.constant 0 : i32
    %0 = arith.cmpi eq, %arg1, %c0_i32 : i32
    %1 = arith.extui %0 : i1 to i32
    %c0_i32_0 = arith.constant 0 : i32
    %2 = arith.cmpi ne, %1, %c0_i32_0 : i32
    scf.if %2 {
      %cst_39 = arith.constant 0xFF800000 : f32
      %46 = vector.broadcast %cst_39 : f32 to vector<1x1x1024xf32>
      %c0_40 = arith.constant 0 : index
      %c0_41 = arith.constant 0 : index
      %c0_42 = arith.constant 0 : index
      %47 = vector.load %arg13[%c0_40, %c0_41, %c0_42] : memref<1x1x1024xf32, #tpu.memory_space<vmem>>, vector<1x1x1024xf32>
      tpu.vector_store %arg13[%c0_40, %c0_41, %c0_42], %46 {strides = array<i32>} : memref<1x1x1024xf32, #tpu.memory_space<vmem>>, vector<1x1x1024xf32>,
    } else {
    }
    %c0 = arith.constant 0 : index
    %c0_1 = arith.constant 0 : index
    %c0_2 = arith.constant 0 : index
    %3 = vector.load %arg2[%c0, %c0_1, %c0_2] : memref<1x512x3xf32, #tpu.memory_space<vmem>>, vector<1x512x3xf32>
    %4 = vector.shape_cast %3 : vector<1x512x3xf32> to vector<512x3xf32>
    %c0_3 = arith.constant 0 : index
    %c0_4 = arith.constant 0 : index
    %5 = vector.load %arg3[%c0_3, %c0_4] : memref<3x64xf32, #tpu.memory_space<vmem>>, vector<3x64xf32>
    %cst = arith.constant dense<0.000000e+00> : vector<512x64xf32>
    %6 = tpu.matmul %4, %5, %cst {dimension_numbers = #tpu.dot_dimension_numbers<[1], [0], [0], [1], [0, 0, 1, 1], [], []>} : vector<512x3xf32>, vector<3x64xf32>, vector<512x64xf32> -> vector<512x64xf32>
    %c0_5 = arith.constant 0 : index
    %c0_6 = arith.constant 0 : index
    %7 = vector.load %arg4[%c0_5, %c0_6] : memref<1x64xf32, #tpu.memory_space<vmem>>, vector<1x64xf32>
    %8 = vector.broadcast %7 : vector<1x64xf32> to vector<512x64xf32>
    %9 = arith.addf %6, %8 : vector<512x64xf32>
    %cst_7 = arith.constant 0.000000e+00 : f32
    %10 = vector.broadcast %cst_7 : f32 to vector<512x64xf32>
    %11 = arith.maximumf %9, %10 : vector<512x64xf32>
    %c0_8 = arith.constant 0 : index
    %c0_9 = arith.constant 0 : index
    %12 = vector.load %arg5[%c0_8, %c0_9] : memref<64x64xf32, #tpu.memory_space<vmem>>, vector<64x64xf32>
    %cst_10 = arith.constant dense<0.000000e+00> : vector<512x64xf32>
    %13 = tpu.matmul %11, %12, %cst_10 {dimension_numbers = #tpu.dot_dimension_numbers<[1], [0], [0], [1], [0, 0, 1, 1], [], []>} : vector<512x64xf32>, vector<64x64xf32>, vector<512x64xf32> -> vector<512x64xf32>
    %c0_11 = arith.constant 0 : index
    %c0_12 = arith.constant 0 : index
    %14 = vector.load %arg6[%c0_11, %c0_12] : memref<1x64xf32, #tpu.memory_space<vmem>>, vector<1x64xf32>
    %15 = vector.broadcast %14 : vector<1x64xf32> to vector<512x64xf32>
    %16 = arith.addf %13, %15 : vector<512x64xf32>
    %cst_13 = arith.constant 0.000000e+00 : f32
    %17 = vector.broadcast %cst_13 : f32 to vector<512x64xf32>
    %18 = arith.maximumf %16, %17 : vector<512x64xf32>
    %c0_14 = arith.constant 0 : index
    %c0_15 = arith.constant 0 : index
    %19 = vector.load %arg7[%c0_14, %c0_15] : memref<64x64xf32, #tpu.memory_space<vmem>>, vector<64x64xf32>
    %cst_16 = arith.constant dense<0.000000e+00> : vector<512x64xf32>
    %20 = tpu.matmul %18, %19, %cst_16 {dimension_numbers = #tpu.dot_dimension_numbers<[1], [0], [0], [1], [0, 0, 1, 1], [], []>} : vector<512x64xf32>, vector<64x64xf32>, vector<512x64xf32> -> vector<512x64xf32>
    %c0_17 = arith.constant 0 : index
    %c0_18 = arith.constant 0 : index
    %21 = vector.load %arg8[%c0_17, %c0_18] : memref<1x64xf32, #tpu.memory_space<vmem>>, vector<1x64xf32>
    %22 = vector.broadcast %21 : vector<1x64xf32> to vector<512x64xf32>
    %23 = arith.addf %20, %22 : vector<512x64xf32>
    %cst_19 = arith.constant 0.000000e+00 : f32
    %24 = vector.broadcast %cst_19 : f32 to vector<512x64xf32>
    %25 = arith.maximumf %23, %24 : vector<512x64xf32>
    %c0_20 = arith.constant 0 : index
    %c0_21 = arith.constant 0 : index
    %26 = vector.load %arg9[%c0_20, %c0_21] : memref<64x128xf32, #tpu.memory_space<vmem>>, vector<64x128xf32>
    %cst_22 = arith.constant dense<0.000000e+00> : vector<512x128xf32>
    %27 = tpu.matmul %25, %26, %cst_22 {dimension_numbers = #tpu.dot_dimension_numbers<[1], [0], [0], [1], [0, 0, 1, 1], [], []>} : vector<512x64xf32>, vector<64x128xf32>, vector<512x128xf32> -> vector<512x128xf32>
    %c0_23 = arith.constant 0 : index
    %c0_24 = arith.constant 0 : index
    %28 = vector.load %arg10[%c0_23, %c0_24] : memref<1x128xf32, #tpu.memory_space<vmem>>, vector<1x128xf32>
    %29 = vector.broadcast %28 : vector<1x128xf32> to vector<512x128xf32>
    %30 = arith.addf %27, %29 : vector<512x128xf32>
    %cst_25 = arith.constant 0.000000e+00 : f32
    %31 = vector.broadcast %cst_25 : f32 to vector<512x128xf32>
    %32 = arith.maximumf %30, %31 : vector<512x128xf32>
    %33 = arith.truncf %32 : vector<512x128xf32> to vector<512x128xbf16>
    %c0_26 = arith.constant 0 : index
    %c0_27 = arith.constant 0 : index
    %34 = vector.load %arg11[%c0_26, %c0_27] : memref<128x1024xbf16, #tpu.memory_space<vmem>>, vector<128x1024xbf16>
    %cst_28 = arith.constant dense<0.000000e+00> : vector<512x1024xf32>
    %35 = tpu.matmul %33, %34, %cst_28 {dimension_numbers = #tpu.dot_dimension_numbers<[1], [0], [0], [1], [0, 0, 1, 1], [], []>} : vector<512x128xbf16>, vector<128x1024xbf16>, vector<512x1024xf32> -> vector<512x1024xf32>
    %c0_29 = arith.constant 0 : index
    %c0_30 = arith.constant 0 : index
    %36 = vector.load %arg12[%c0_29, %c0_30] : memref<1x1024xf32, #tpu.memory_space<vmem>>, vector<1x1024xf32>
    %37 = vector.broadcast %36 : vector<1x1024xf32> to vector<512x1024xf32>
    %38 = arith.addf %35, %37 : vector<512x1024xf32>
    %cst_31 = arith.constant 0.000000e+00 : f32
    %39 = vector.broadcast %cst_31 : f32 to vector<512x1024xf32>
    %40 = arith.maximumf %38, %39 : vector<512x1024xf32>
    %cst_32 = arith.constant dense<0xFF800000> : vector<1024xf32>
    %41 = vector.multi_reduction <maximumf>, %40, %cst_32 [0] : vector<512x1024xf32> to vector<1024xf32>
    %c0_33 = arith.constant 0 : index
    %c0_34 = arith.constant 0 : index
    %c0_35 = arith.constant 0 : index
    %42 = vector.load %arg13[%c0_33, %c0_34, %c0_35] : memref<1x1x1024xf32, #tpu.memory_space<vmem>>, vector<1x1x1024xf32>
    %43 = vector.shape_cast %41 : vector<1024xf32> to vector<1x1x1024xf32>
    %44 = arith.maximumf %42, %43 : vector<1x1x1024xf32>
    %c0_36 = arith.constant 0 : index
    %c0_37 = arith.constant 0 : index
    %c0_38 = arith.constant 0 : index
    %45 = vector.load %arg13[%c0_36, %c0_37, %c0_38] : memref<1x1x1024xf32, #tpu.memory_space<vmem>>, vector<1x1x1024xf32>
    tpu.vector_store %arg13[%c0_36, %c0_37, %c0_38], %44 {strides = array<i32>} : memref<1x1x1024xf32, #tpu.memory_space<vmem>>, vector<1x1x1024xf32>,
    return
  }
  func.func @transform_0(%arg0: i32, %arg1: i32) -> (i32, i32, i32) {
    %c0_i32 = arith.constant 0 : i32
    %c0_i32_0 = arith.constant 0 : i32
    return %arg0, %arg1, %c0_i32 : i32, i32, i32
  }
  func.func @transform_1(%arg0: i32, %arg1: i32) -> (i32, i32) {
    %c0_i32 = arith.constant 0 : i32
    %c0_i32_0 = arith.constant 0 : i32
    %c0_i32_1 = arith.constant 0 : i32
    return %c0_i32, %c0_i32_0 : i32, i32
  }
  func.func @transform_2(%arg0: i32, %arg1: i32) -> (i32, i32) {
    %c0_i32 = arith.constant 0 : i32
    %c0_i32_0 = arith.constant 0 : i32
    %c0_i32_1 = arith.constant 0 : i32
    return %c0_i32, %c0_i32_0 : i32, i32
  }
  func.func @transform_3(%arg0: i32, %arg1: i32) -> (i32, i32) {
    %c0_i32 = arith.constant 0 : i32
    %c0_i32_0 = arith.constant 0 : i32
    %c0_i32_1 = arith.constant 0 : i32
    return %c0_i32, %c0_i32_0 : i32, i32
  }
  func.func @transform_4(%arg0: i32, %arg1: i32) -> (i32, i32) {
    %c0_i32 = arith.constant 0 : i32
    %c0_i32_0 = arith.constant 0 : i32
    %c0_i32_1 = arith.constant 0 : i32
    return %c0_i32, %c0_i32_0 : i32, i32
  }
  func.func @transform_5(%arg0: i32, %arg1: i32) -> (i32, i32) {
    %c0_i32 = arith.constant 0 : i32
    %c0_i32_0 = arith.constant 0 : i32
    %c0_i32_1 = arith.constant 0 : i32
    return %c0_i32, %c0_i32_0 : i32, i32
  }
  func.func @transform_6(%arg0: i32, %arg1: i32) -> (i32, i32) {
    %c0_i32 = arith.constant 0 : i32
    %c0_i32_0 = arith.constant 0 : i32
    %c0_i32_1 = arith.constant 0 : i32
    return %c0_i32, %c0_i32_0 : i32, i32
  }
  func.func @transform_7(%arg0: i32, %arg1: i32) -> (i32, i32) {
    %c0_i32 = arith.constant 0 : i32
    %c0_i32_0 = arith.constant 0 : i32
    %c0_i32_1 = arith.constant 0 : i32
    return %c0_i32, %c0_i32_0 : i32, i32
  }
  func.func @transform_8(%arg0: i32, %arg1: i32) -> (i32, i32) {
    %c0_i32 = arith.constant 0 : i32
    %c0_i32_0 = arith.constant 0 : i32
    %c0_i32_1 = arith.constant 0 : i32
    return %c0_i32, %c0_i32_0 : i32, i32
  }
  func.func @transform_9(%arg0: i32, %arg1: i32) -> (i32, i32) {
    %c0_i32 = arith.constant 0 : i32
    %c0_i32_0 = arith.constant 0 : i32
    %c0_i32_1 = arith.constant 0 : i32
    return %c0_i32, %c0_i32_0 : i32, i32
  }
  func.func @transform_10(%arg0: i32, %arg1: i32) -> (i32, i32) {
    %c0_i32 = arith.constant 0 : i32
    %c0_i32_0 = arith.constant 0 : i32
    %c0_i32_1 = arith.constant 0 : i32
    return %c0_i32, %c0_i32_0 : i32, i32
  }
  func.func @transform_11(%arg0: i32, %arg1: i32) -> (i32, i32, i32) {
    %c0_i32 = arith.constant 0 : i32
    %c0_i32_0 = arith.constant 0 : i32
    %c0_i32_1 = arith.constant 0 : i32
    return %arg0, %c0_i32, %c0_i32_0 : i32, i32, i32
  }
}

module attributes {stable_mosaic.version = 11 : i64} {
  func.func @_fc_head_kernel(%arg0: i32, %arg1: memref<2x1024xf32, #tpu.memory_space<vmem>>, %arg2: memref<1024x512xbf16, #tpu.memory_space<vmem>>, %arg3: memref<1x512xf32, #tpu.memory_space<vmem>>, %arg4: memref<512x256xf32, #tpu.memory_space<vmem>>, %arg5: memref<1x256xf32, #tpu.memory_space<vmem>>, %arg6: memref<256x40xf32, #tpu.memory_space<vmem>>, %arg7: memref<1x40xf32, #tpu.memory_space<vmem>>, %arg8: memref<2x40xf32, #tpu.memory_space<vmem>>) attributes {dimension_semantics = [#tpu.dimension_semantics<arbitrary>], iteration_bounds = array<i64: 1>, scalar_prefetch = 0 : i64, scratch_operands = 0 : i64, tpu.core_type = #tpu.core_type<tc>, window_params = [{pipeline_mode = #tpu.pipeline_mode<synchronous>, transform_indices = @transform_0, window_bounds = array<i64: 2, 1024>}, {pipeline_mode = #tpu.pipeline_mode<synchronous>, transform_indices = @transform_1, window_bounds = array<i64: 1024, 512>}, {pipeline_mode = #tpu.pipeline_mode<synchronous>, transform_indices = @transform_2, window_bounds = array<i64: 1, 512>}, {pipeline_mode = #tpu.pipeline_mode<synchronous>, transform_indices = @transform_3, window_bounds = array<i64: 512, 256>}, {pipeline_mode = #tpu.pipeline_mode<synchronous>, transform_indices = @transform_4, window_bounds = array<i64: 1, 256>}, {pipeline_mode = #tpu.pipeline_mode<synchronous>, transform_indices = @transform_5, window_bounds = array<i64: 256, 40>}, {pipeline_mode = #tpu.pipeline_mode<synchronous>, transform_indices = @transform_6, window_bounds = array<i64: 1, 40>}, {pipeline_mode = #tpu.pipeline_mode<synchronous>, transform_indices = @transform_7, window_bounds = array<i64: 2, 40>}]} {
    %c0 = arith.constant 0 : index
    %c0_0 = arith.constant 0 : index
    %0 = vector.load %arg1[%c0, %c0_0] : memref<2x1024xf32, #tpu.memory_space<vmem>>, vector<2x1024xf32>
    %1 = arith.truncf %0 : vector<2x1024xf32> to vector<2x1024xbf16>
    %c0_1 = arith.constant 0 : index
    %c0_2 = arith.constant 0 : index
    %2 = vector.load %arg2[%c0_1, %c0_2] : memref<1024x512xbf16, #tpu.memory_space<vmem>>, vector<1024x512xbf16>
    %cst = arith.constant dense<0.000000e+00> : vector<2x512xf32>
    %3 = tpu.matmul %1, %2, %cst {dimension_numbers = #tpu.dot_dimension_numbers<[1], [0], [0], [1], [0, 0, 1, 1], [], []>} : vector<2x1024xbf16>, vector<1024x512xbf16>, vector<2x512xf32> -> vector<2x512xf32>
    %c0_3 = arith.constant 0 : index
    %c0_4 = arith.constant 0 : index
    %4 = vector.load %arg3[%c0_3, %c0_4] : memref<1x512xf32, #tpu.memory_space<vmem>>, vector<1x512xf32>
    %5 = vector.broadcast %4 : vector<1x512xf32> to vector<2x512xf32>
    %6 = arith.addf %3, %5 : vector<2x512xf32>
    %cst_5 = arith.constant 0.000000e+00 : f32
    %7 = vector.broadcast %cst_5 : f32 to vector<2x512xf32>
    %8 = arith.maximumf %6, %7 : vector<2x512xf32>
    %c0_6 = arith.constant 0 : index
    %c0_7 = arith.constant 0 : index
    %9 = vector.load %arg4[%c0_6, %c0_7] : memref<512x256xf32, #tpu.memory_space<vmem>>, vector<512x256xf32>
    %cst_8 = arith.constant dense<0.000000e+00> : vector<2x256xf32>
    %10 = tpu.matmul %8, %9, %cst_8 {dimension_numbers = #tpu.dot_dimension_numbers<[1], [0], [0], [1], [0, 0, 1, 1], [], []>} : vector<2x512xf32>, vector<512x256xf32>, vector<2x256xf32> -> vector<2x256xf32>
    %c0_9 = arith.constant 0 : index
    %c0_10 = arith.constant 0 : index
    %11 = vector.load %arg5[%c0_9, %c0_10] : memref<1x256xf32, #tpu.memory_space<vmem>>, vector<1x256xf32>
    %12 = vector.broadcast %11 : vector<1x256xf32> to vector<2x256xf32>
    %13 = arith.addf %10, %12 : vector<2x256xf32>
    %cst_11 = arith.constant 0.000000e+00 : f32
    %14 = vector.broadcast %cst_11 : f32 to vector<2x256xf32>
    %15 = arith.maximumf %13, %14 : vector<2x256xf32>
    %c0_12 = arith.constant 0 : index
    %c0_13 = arith.constant 0 : index
    %16 = vector.load %arg6[%c0_12, %c0_13] : memref<256x40xf32, #tpu.memory_space<vmem>>, vector<256x40xf32>
    %cst_14 = arith.constant dense<0.000000e+00> : vector<2x40xf32>
    %17 = tpu.matmul %15, %16, %cst_14 {dimension_numbers = #tpu.dot_dimension_numbers<[1], [0], [0], [1], [0, 0, 1, 1], [], []>} : vector<2x256xf32>, vector<256x40xf32>, vector<2x40xf32> -> vector<2x40xf32>
    %c0_15 = arith.constant 0 : index
    %c0_16 = arith.constant 0 : index
    %18 = vector.load %arg7[%c0_15, %c0_16] : memref<1x40xf32, #tpu.memory_space<vmem>>, vector<1x40xf32>
    %19 = vector.broadcast %18 : vector<1x40xf32> to vector<2x40xf32>
    %20 = arith.addf %17, %19 : vector<2x40xf32>
    %cst_17 = arith.constant dense<0xFF800000> : vector<2xf32>
    %21 = vector.multi_reduction <maximumf>, %20, %cst_17 [1] : vector<2x40xf32> to vector<2xf32>
    %22 = vector.shape_cast %21 : vector<2xf32> to vector<2x1xf32>
    %23 = vector.broadcast %22 : vector<2x1xf32> to vector<2x40xf32>
    %24 = arith.subf %20, %23 : vector<2x40xf32>
    %25 = math.exp %24 : vector<2x40xf32>
    %cst_18 = arith.constant dense<0.000000e+00> : vector<2xf32>
    %26 = vector.multi_reduction <add>, %25, %cst_18 [1] : vector<2x40xf32> to vector<2xf32>
    %27 = vector.shape_cast %26 : vector<2xf32> to vector<2x1xf32>
    %28 = math.log %27 : vector<2x1xf32>
    %29 = vector.broadcast %28 : vector<2x1xf32> to vector<2x40xf32>
    %30 = arith.subf %24, %29 : vector<2x40xf32>
    %c0_19 = arith.constant 0 : index
    %c0_20 = arith.constant 0 : index
    %31 = vector.load %arg8[%c0_19, %c0_20] : memref<2x40xf32, #tpu.memory_space<vmem>>, vector<2x40xf32>
    tpu.vector_store %arg8[%c0_19, %c0_20], %30 {strides = array<i32>} : memref<2x40xf32, #tpu.memory_space<vmem>>, vector<2x40xf32>,
    return
  }
  func.func @transform_0(%arg0: i32) -> (i32, i32) {
    %c0_i32 = arith.constant 0 : i32
    %c0_i32_0 = arith.constant 0 : i32
    %c0_i32_1 = arith.constant 0 : i32
    return %c0_i32, %c0_i32_0 : i32, i32
  }
  func.func @transform_1(%arg0: i32) -> (i32, i32) {
    %c0_i32 = arith.constant 0 : i32
    %c0_i32_0 = arith.constant 0 : i32
    %c0_i32_1 = arith.constant 0 : i32
    return %c0_i32, %c0_i32_0 : i32, i32
  }
  func.func @transform_2(%arg0: i32) -> (i32, i32) {
    %c0_i32 = arith.constant 0 : i32
    %c0_i32_0 = arith.constant 0 : i32
    %c0_i32_1 = arith.constant 0 : i32
    return %c0_i32, %c0_i32_0 : i32, i32
  }
  func.func @transform_3(%arg0: i32) -> (i32, i32) {
    %c0_i32 = arith.constant 0 : i32
    %c0_i32_0 = arith.constant 0 : i32
    %c0_i32_1 = arith.constant 0 : i32
    return %c0_i32, %c0_i32_0 : i32, i32
  }
  func.func @transform_4(%arg0: i32) -> (i32, i32) {
    %c0_i32 = arith.constant 0 : i32
    %c0_i32_0 = arith.constant 0 : i32
    %c0_i32_1 = arith.constant 0 : i32
    return %c0_i32, %c0_i32_0 : i32, i32
  }
  func.func @transform_5(%arg0: i32) -> (i32, i32) {
    %c0_i32 = arith.constant 0 : i32
    %c0_i32_0 = arith.constant 0 : i32
    %c0_i32_1 = arith.constant 0 : i32
    return %c0_i32, %c0_i32_0 : i32, i32
  }
  func.func @transform_6(%arg0: i32) -> (i32, i32) {
    %c0_i32 = arith.constant 0 : i32
    %c0_i32_0 = arith.constant 0 : i32
    %c0_i32_1 = arith.constant 0 : i32
    return %c0_i32, %c0_i32_0 : i32, i32
  }
  func.func @transform_7(%arg0: i32) -> (i32, i32) {
    %c0_i32 = arith.constant 0 : i32
    %c0_i32_0 = arith.constant 0 : i32
    %c0_i32_1 = arith.constant 0 : i32
    return %c0_i32, %c0_i32_0 : i32, i32
  }
}

</mosaic_0001>

<llo_original>
// kernel: pointnet_basic_forward.3
$region0: #{pointnet_basic_forward.3}
  #allocation0 [shape = 'u32[]', space=smem, size = 0x4, offset = 0x4, fixed_abs, tag = 'smem constant byte address 0x4 - core index']
  #allocation1 [shape = 'u32[144,128]{1,0:T(1,128)}', space=vmem, size = 0x12000, scoped, tag = 'internal scratch']
  %s0 = inlined_call_operand.vmem [shape: f32[2,1024], index: 0, kind: input, shape index: {}]
  %s1 = inlined_call_operand.vmem [shape: bf16[1024,512], index: 1, kind: input, shape index: {}]
  %s2 = inlined_call_operand.vmem [shape: f32[1,512], index: 2, kind: input, shape index: {}]
  %s3 = inlined_call_operand.vmem [shape: f32[512,256], index: 3, kind: input, shape index: {}]
  %s4 = inlined_call_operand.vmem [shape: f32[1,256], index: 4, kind: input, shape index: {}]
  %s5 = inlined_call_operand.vmem [shape: f32[256,40], index: 5, kind: input, shape index: {}]
  %s6 = inlined_call_operand.vmem [shape: f32[1,40], index: 6, kind: input, shape index: {}]
  %s7 = inlined_call_operand.hbm [shape: f32[2,40], index: 7, kind: output, shape index: {}]
  %s8 = sld [smem:[#allocation0]]
  $region38: #{pointnet_basic_forward.3} parent=0
    _
  %s10 = ssub.s32 1, %s8
  %s11 = scalar_select 0, %s10, %s8
  $region1: #{pointnet_basic_forward.3} parent=0
    #allocation2 [shape = 'u8[1024]{0}', space=vmem, size = 0x400, scoped, tag = 'output window, operand 0, single buffered']
    #allocation3 [shape = 's32[1]{0}', space=sflag, size = 0x4, scoped, tag = 'scoped memory for pointnet_basic_forward.3']
    %12 = vsyncpa [#allocation3], 0
    // Predicated region
    $region2: #{pointnet_basic_forward.3} parent=1 // pred_check
      _
    $region3: #{pointnet_basic_forward.3} parent=1 // pred_check_branch
      %14 = sbr.rel (0) target = $region5
    $region4: #{pointnet_basic_forward.3} parent=1 // pred_region
      _
    $region5: #{pointnet_basic_forward.3} parent=1 // pred_fallthru
      _
    // Predicated region
    $region6: #{pointnet_basic_forward.3} parent=1 // pred_check
      _
    $region7: #{pointnet_basic_forward.3} parent=1 // pred_check_branch
      %16 = sbr.rel (0) target = $region9
    $region8: #{pointnet_basic_forward.3} parent=1 // pred_region
      _
    $region9: #{pointnet_basic_forward.3} parent=1 // pred_fallthru
      _
    // Predicated region
    $region10: #{pointnet_basic_forward.3} parent=1 // pred_check
      _
    $region11: #{pointnet_basic_forward.3} parent=1 // pred_check_branch
      %18 = sbr.rel (0) target = $region13
    $region12: #{pointnet_basic_forward.3} parent=1 // pred_region
      _
    $region13: #{pointnet_basic_forward.3} parent=1 // pred_fallthru
      _
    // Predicated region
    $region14: #{pointnet_basic_forward.3} parent=1 // pred_check
      _
    $region15: #{pointnet_basic_forward.3} parent=1 // pred_check_branch
      %20 = sbr.rel (0) target = $region17
    $region16: #{pointnet_basic_forward.3} parent=1 // pred_region
      _
    $region17: #{pointnet_basic_forward.3} parent=1 // pred_fallthru
      _
    // Predicated region
    $region18: #{pointnet_basic_forward.3} parent=1 // pred_check
      _
    $region19: #{pointnet_basic_forward.3} parent=1 // pred_check_branch
      %22 = sbr.rel (0) target = $region21
    $region20: #{pointnet_basic_forward.3} parent=1 // pred_region
      _
    $region21: #{pointnet_basic_forward.3} parent=1 // pred_fallthru
      _
    // Predicated region
    $region22: #{pointnet_basic_forward.3} parent=1 // pred_check
      _
    $region23: #{pointnet_basic_forward.3} parent=1 // pred_check_branch
      %24 = sbr.rel (0) target = $region25
    $region24: #{pointnet_basic_forward.3} parent=1 // pred_region
      _
    $region25: #{pointnet_basic_forward.3} parent=1 // pred_fallthru
      _
    // Predicated region
    $region26: #{pointnet_basic_forward.3} parent=1 // pred_check
      _
    $region27: #{pointnet_basic_forward.3} parent=1 // pred_check_branch
      %26 = sbr.rel (0) target = $region29
    $region28: #{pointnet_basic_forward.3} parent=1 // pred_region
      _
    $region29: #{pointnet_basic_forward.3} parent=1 // pred_fallthru
      _
    %v27 = vld [vmem:[%s0] sm:$0xff]
    %v28 = vld [vmem:[%s0 + $0x8] sm:$0xff]
    %v31 = vcombine.high %v27, %v27
    %v33 = vunpack.c.l.s4 1983009808
    %v34 = vunpack.c.0.s8 %v33
    %v35 = vlaneseq
    %v36 = vshrl.u32 %v35, 7
    %v37 = vsub.s32 %v34, %v36
    %v38 = vrot.slane %v27, %v37
    %v40 = vunpack.c.l.s4 1983009808
    %v41 = vunpack.c.0.s8 %v40
    %v42 = vlaneseq
    %v43 = vshrl.u32 %v42, 7
    %v44 = vsub.s32 %v41, %v43
    %v45 = vrot.slane %v31, %v44
    %v46 = vcombine.high %v38, %v38
    %v47 = vcombine.high %v45, %v45
    %v48 = vcombine.high %v28, %v28
    %v50 = vunpack.c.l.s4 1983009808
    %v51 = vunpack.c.0.s8 %v50
    %v52 = vlaneseq
    %v53 = vshrl.u32 %v52, 7
    %v54 = vsub.s32 %v51, %v53
    %v55 = vrot.slane %v28, %v54
    %v57 = vunpack.c.l.s4 1983009808
    %v58 = vunpack.c.0.s8 %v57
    %v59 = vlaneseq
    %v60 = vshrl.u32 %v59, 7
    %v61 = vsub.s32 %v58, %v60
    %v62 = vrot.slane %v48, %v61
    %v63 = vcombine.high %v55, %v55
    %v64 = vcombine.high %v62, %v62
    %v73 = vpack.c.bf16 %v38, %v38
    %v74 = vpack.c.bf16 %v46, %v46
    %v75 = vpack.c.bf16 %v45, %v45
    %v76 = vpack.c.bf16 %v47, %v47
    %v77 = vpack.c.bf16 %v55, %v55
    %v78 = vpack.c.bf16 %v63, %v63
    %v79 = vpack.c.bf16 %v62, %v62
    %v80 = vpack.c.bf16 %v64, %v64
    %v81 = vld [vmem:[%s1] sm:$0xff]
    %v82 = vld [vmem:[%s1 + $0x8] sm:$0xff]
    %v83 = vld [vmem:[%s1 + $0x10] sm:$0xff]
    %v84 = vld [vmem:[%s1 + $0x18] sm:$0xff]
    %v85 = vld [vmem:[%s1 + $0x20] sm:$0xff]
    %v86 = vld [vmem:[%s1 + $0x28] sm:$0xff]
    %v87 = vld [vmem:[%s1 + $0x30] sm:$0xff]
    %v88 = vld [vmem:[%s1 + $0x38] sm:$0xff]
    %v89 = vld [vmem:[%s1 + $0x40] sm:$0xff]
    %v90 = vld [vmem:[%s1 + $0x48] sm:$0xff]
    %v91 = vld [vmem:[%s1 + $0x50] sm:$0xff]
    %v92 = vld [vmem:[%s1 + $0x58] sm:$0xff]
    %v93 = vld [vmem:[%s1 + $0x60] sm:$0xff]
    %v94 = vld [vmem:[%s1 + $0x68] sm:$0xff]
    %v95 = vld [vmem:[%s1 + $0x70] sm:$0xff]
    %v96 = vld [vmem:[%s1 + $0x78] sm:$0xff]
    %v97 = vld [vmem:[%s1 + $0x80] sm:$0xff]
    %v98 = vld [vmem:[%s1 + $0x88] sm:$0xff]
    %v99 = vld [vmem:[%s1 + $0x90] sm:$0xff]
    %v100 = vld [vmem:[%s1 + $0x98] sm:$0xff]
    %v101 = vld [vmem:[%s1 + $0xa0] sm:$0xff]
    %v102 = vld [vmem:[%s1 + $0xa8] sm:$0xff]
    %v103 = vld [vmem:[%s1 + $0xb0] sm:$0xff]
    %v104 = vld [vmem:[%s1 + $0xb8] sm:$0xff]
    %v105 = vld [vmem:[%s1 + $0xc0] sm:$0xff]
    %v106 = vld [vmem:[%s1 + $0xc8] sm:$0xff]
    %v107 = vld [vmem:[%s1 + $0xd0] sm:$0xff]
    %v108 = vld [vmem:[%s1 + $0xd8] sm:$0xff]
    %v109 = vld [vmem:[%s1 + $0xe0] sm:$0xff]
    %v110 = vld [vmem:[%s1 + $0xe8] sm:$0xff]
    %v111 = vld [vmem:[%s1 + $0xf0] sm:$0xff]
    %v112 = vld [vmem:[%s1 + $0xf8] sm:$0xff]
    %v113 = vld [vmem:[%s1 + $0x100] sm:$0xff]
    %v114 = vld [vmem:[%s1 + $0x108] sm:$0xff]
    %v115 = vld [vmem:[%s1 + $0x110] sm:$0xff]
    %v116 = vld [vmem:[%s1 + $0x118] sm:$0xff]
    %v117 = vld [vmem:[%s1 + $0x120] sm:$0xff]
    %v118 = vld [vmem:[%s1 + $0x128] sm:$0xff]
    %v119 = vld [vmem:[%s1 + $0x130] sm:$0xff]
    %v120 = vld [vmem:[%s1 + $0x138] sm:$0xff]
    %v121 = vld [vmem:[%s1 + $0x140] sm:$0xff]
    %v122 = vld [vmem:[%s1 + $0x148] sm:$0xff]
    %v123 = vld [vmem:[%s1 + $0x150] sm:$0xff]
    %v124 = vld [vmem:[%s1 + $0x158] sm:$0xff]
    %v125 = vld [vmem:[%s1 + $0x160] sm:$0xff]
    %v126 = vld [vmem:[%s1 + $0x168] sm:$0xff]
    %v127 = vld [vmem:[%s1 + $0x170] sm:$0xff]
    %v128 = vld [vmem:[%s1 + $0x178] sm:$0xff]
    %v129 = vld [vmem:[%s1 + $0x180] sm:$0xff]
    %v130 = vld [vmem:[%s1 + $0x188] sm:$0xff]
    %v131 = vld [vmem:[%s1 + $0x190] sm:$0xff]
    %v132 = vld [vmem:[%s1 + $0x198] sm:$0xff]
    %v133 = vld [vmem:[%s1 + $0x1a0] sm:$0xff]
    %v134 = vld [vmem:[%s1 + $0x1a8] sm:$0xff]
    %v135 = vld [vmem:[%s1 + $0x1b0] sm:$0xff]
    %v136 = vld [vmem:[%s1 + $0x1b8] sm:$0xff]
    %v137 = vld [vmem:[%s1 + $0x1c0] sm:$0xff]
    %v138 = vld [vmem:[%s1 + $0x1c8] sm:$0xff]
    %v139 = vld [vmem:[%s1 + $0x1d0] sm:$0xff]
    %v140 = vld [vmem:[%s1 + $0x1d8] sm:$0xff]
    %v141 = vld [vmem:[%s1 + $0x1e0] sm:$0xff]
    %v142 = vld [vmem:[%s1 + $0x1e8] sm:$0xff]
    %v143 = vld [vmem:[%s1 + $0x1f0] sm:$0xff]
    %v144 = vld [vmem:[%s1 + $0x1f8] sm:$0xff]
    %v145 = vld [vmem:[%s1 + $0x200] sm:$0xff]
    %v146 = vld [vmem:[%s1 + $0x208] sm:$0xff]
    %v147 = vld [vmem:[%s1 + $0x210] sm:$0xff]
    %v148 = vld [vmem:[%s1 + $0x218] sm:$0xff]
    %v149 = vld [vmem:[%s1 + $0x220] sm:$0xff]
    %v150 = vld [vmem:[%s1 + $0x228] sm:$0xff]
    %v151 = vld [vmem:[%s1 + $0x230] sm:$0xff]
    %v152 = vld [vmem:[%s1 + $0x238] sm:$0xff]
    %v153 = vld [vmem:[%s1 + $0x240] sm:$0xff]
    %v154 = vld [vmem:[%s1 + $0x248] sm:$0xff]
    %v155 = vld [vmem:[%s1 + $0x250] sm:$0xff]
    %v156 = vld [vmem:[%s1 + $0x258] sm:$0xff]
    %v157 = vld [vmem:[%s1 + $0x260] sm:$0xff]
    %v158 = vld [vmem:[%s1 + $0x268] sm:$0xff]
    %v159 = vld [vmem:[%s1 + $0x270] sm:$0xff]
    %v160 = vld [vmem:[%s1 + $0x278] sm:$0xff]
    %v161 = vld [vmem:[%s1 + $0x280] sm:$0xff]
    %v162 = vld [vmem:[%s1 + $0x288] sm:$0xff]
    %v163 = vld [vmem:[%s1 + $0x290] sm:$0xff]
    %v164 = vld [vmem:[%s1 + $0x298] sm:$0xff]
    %v165 = vld [vmem:[%s1 + $0x2a0] sm:$0xff]
    %v166 = vld [vmem:[%s1 + $0x2a8] sm:$0xff]
    %v167 = vld [vmem:[%s1 + $0x2b0] sm:$0xff]
    %v168 = vld [vmem:[%s1 + $0x2b8] sm:$0xff]
    %v169 = vld [vmem:[%s1 + $0x2c0] sm:$0xff]
    %v170 = vld [vmem:[%s1 + $0x2c8] sm:$0xff]
    %v171 = vld [vmem:[%s1 + $0x2d0] sm:$0xff]
    %v172 = vld [vmem:[%s1 + $0x2d8] sm:$0xff]
    %v173 = vld [vmem:[%s1 + $0x2e0] sm:$0xff]
    %v174 = vld [vmem:[%s1 + $0x2e8] sm:$0xff]
    %v175 = vld [vmem:[%s1 + $0x2f0] sm:$0xff]
    %v176 = vld [vmem:[%s1 + $0x2f8] sm:$0xff]
    %v177 = vld [vmem:[%s1 + $0x300] sm:$0xff]
    %v178 = vld [vmem:[%s1 + $0x308] sm:$0xff]
    %v179 = vld [vmem:[%s1 + $0x310] sm:$0xff]
    %v180 = vld [vmem:[%s1 + $0x318] sm:$0xff]
    %v181 = vld [vmem:[%s1 + $0x320] sm:$0xff]
    %v182 = vld [vmem:[%s1 + $0x328] sm:$0xff]
    %v183 = vld [vmem:[%s1 + $0x330] sm:$0xff]
    %v184 = vld [vmem:[%s1 + $0x338] sm:$0xff]
    %v185 = vld [vmem:[%s1 + $0x340] sm:$0xff]
    %v186 = vld [vmem:[%s1 + $0x348] sm:$0xff]
    %v187 = vld [vmem:[%s1 + $0x350] sm:$0xff]
    %v188 = vld [vmem:[%s1 + $0x358] sm:$0xff]
    %v189 = vld [vmem:[%s1 + $0x360] sm:$0xff]
    %v190 = vld [vmem:[%s1 + $0x368] sm:$0xff]
    %v191 = vld [vmem:[%s1 + $0x370] sm:$0xff]
    %v192 = vld [vmem:[%s1 + $0x378] sm:$0xff]
    %v193 = vld [vmem:[%s1 + $0x380] sm:$0xff]
    %v194 = vld [vmem:[%s1 + $0x388] sm:$0xff]
    %v195 = vld [vmem:[%s1 + $0x390] sm:$0xff]
    %v196 = vld [vmem:[%s1 + $0x398] sm:$0xff]
    %v197 = vld [vmem:[%s1 + $0x3a0] sm:$0xff]
    %v198 = vld [vmem:[%s1 + $0x3a8] sm:$0xff]
    %v199 = vld [vmem:[%s1 + $0x3b0] sm:$0xff]
    %v200 = vld [vmem:[%s1 + $0x3b8] sm:$0xff]
    %v201 = vld [vmem:[%s1 + $0x3c0] sm:$0xff]
    %v202 = vld [vmem:[%s1 + $0x3c8] sm:$0xff]
    %v203 = vld [vmem:[%s1 + $0x3d0] sm:$0xff]
    %v204 = vld [vmem:[%s1 + $0x3d8] sm:$0xff]
    %v205 = vld [vmem:[%s1 + $0x3e0] sm:$0xff]
    %v206 = vld [vmem:[%s1 + $0x3e8] sm:$0xff]
    %v207 = vld [vmem:[%s1 + $0x3f0] sm:$0xff]
    %v208 = vld [vmem:[%s1 + $0x3f8] sm:$0xff]
    %v209 = vld [vmem:[%s1 + $0x400] sm:$0xff]
    %v210 = vld [vmem:[%s1 + $0x408] sm:$0xff]
    %v211 = vld [vmem:[%s1 + $0x410] sm:$0xff]
    %v212 = vld [vmem:[%s1 + $0x418] sm:$0xff]
    %v213 = vld [vmem:[%s1 + $0x420] sm:$0xff]
    %v214 = vld [vmem:[%s1 + $0x428] sm:$0xff]
    %v215 = vld [vmem:[%s1 + $0x430] sm:$0xff]
    %v216 = vld [vmem:[%s1 + $0x438] sm:$0xff]
    %v217 = vld [vmem:[%s1 + $0x440] sm:$0xff]
    %v218 = vld [vmem:[%s1 + $0x448] sm:$0xff]
    %v219 = vld [vmem:[%s1 + $0x450] sm:$0xff]
    %v220 = vld [vmem:[%s1 + $0x458] sm:$0xff]
    %v221 = vld [vmem:[%s1 + $0x460] sm:$0xff]
    %v222 = vld [vmem:[%s1 + $0x468] sm:$0xff]
    %v223 = vld [vmem:[%s1 + $0x470] sm:$0xff]
    %v224 = vld [vmem:[%s1 + $0x478] sm:$0xff]
    %v225 = vld [vmem:[%s1 + $0x480] sm:$0xff]
    %v226 = vld [vmem:[%s1 + $0x488] sm:$0xff]
    %v227 = vld [vmem:[%s1 + $0x490] sm:$0xff]
    %v228 = vld [vmem:[%s1 + $0x498] sm:$0xff]
    %v229 = vld [vmem:[%s1 + $0x4a0] sm:$0xff]
    %v230 = vld [vmem:[%s1 + $0x4a8] sm:$0xff]
    %v231 = vld [vmem:[%s1 + $0x4b0] sm:$0xff]
    %v232 = vld [vmem:[%s1 + $0x4b8] sm:$0xff]
    %v233 = vld [vmem:[%s1 + $0x4c0] sm:$0xff]
    %v234 = vld [vmem:[%s1 + $0x4c8] sm:$0xff]
    %v235 = vld [vmem:[%s1 + $0x4d0] sm:$0xff]
    %v236 = vld [vmem:[%s1 + $0x4d8] sm:$0xff]
    %v237 = vld [vmem:[%s1 + $0x4e0] sm:$0xff]
    %v238 = vld [vmem:[%s1 + $0x4e8] sm:$0xff]
    %v239 = vld [vmem:[%s1 + $0x4f0] sm:$0xff]
    %v240 = vld [vmem:[%s1 + $0x4f8] sm:$0xff]
    %v241 = vld [vmem:[%s1 + $0x500] sm:$0xff]
    %v242 = vld [vmem:[%s1 + $0x508] sm:$0xff]
    %v243 = vld [vmem:[%s1 + $0x510] sm:$0xff]
    %v244 = vld [vmem:[%s1 + $0x518] sm:$0xff]
    %v245 = vld [vmem:[%s1 + $0x520] sm:$0xff]
    %v246 = vld [vmem:[%s1 + $0x528] sm:$0xff]
    %v247 = vld [vmem:[%s1 + $0x530] sm:$0xff]
    %v248 = vld [vmem:[%s1 + $0x538] sm:$0xff]
    %v249 = vld [vmem:[%s1 + $0x540] sm:$0xff]
    %v250 = vld [vmem:[%s1 + $0x548] sm:$0xff]
    %v251 = vld [vmem:[%s1 + $0x550] sm:$0xff]
    %v252 = vld [vmem:[%s1 + $0x558] sm:$0xff]
    %v253 = vld [vmem:[%s1 + $0x560] sm:$0xff]
    %v254 = vld [vmem:[%s1 + $0x568] sm:$0xff]
    %v255 = vld [vmem:[%s1 + $0x570] sm:$0xff]
    %v256 = vld [vmem:[%s1 + $0x578] sm:$0xff]
    %v257 = vld [vmem:[%s1 + $0x580] sm:$0xff]
    %v258 = vld [vmem:[%s1 + $0x588] sm:$0xff]
    %v259 = vld [vmem:[%s1 + $0x590] sm:$0xff]
    %v260 = vld [vmem:[%s1 + $0x598] sm:$0xff]
    %v261 = vld [vmem:[%s1 + $0x5a0] sm:$0xff]
    %v262 = vld [vmem:[%s1 + $0x5a8] sm:$0xff]
    %v263 = vld [vmem:[%s1 + $0x5b0] sm:$0xff]
    %v264 = vld [vmem:[%s1 + $0x5b8] sm:$0xff]
    %v265 = vld [vmem:[%s1 + $0x5c0] sm:$0xff]
    %v266 = vld [vmem:[%s1 + $0x5c8] sm:$0xff]
    %v267 = vld [vmem:[%s1 + $0x5d0] sm:$0xff]
    %v268 = vld [vmem:[%s1 + $0x5d8] sm:$0xff]
    %v269 = vld [vmem:[%s1 + $0x5e0] sm:$0xff]
    %v270 = vld [vmem:[%s1 + $0x5e8] sm:$0xff]
    %v271 = vld [vmem:[%s1 + $0x5f0] sm:$0xff]
    %v272 = vld [vmem:[%s1 + $0x5f8] sm:$0xff]
    %v273 = vld [vmem:[%s1 + $0x600] sm:$0xff]
    %v274 = vld [vmem:[%s1 + $0x608] sm:$0xff]
    %v275 = vld [vmem:[%s1 + $0x610] sm:$0xff]
    %v276 = vld [vmem:[%s1 + $0x618] sm:$0xff]
    %v277 = vld [vmem:[%s1 + $0x620] sm:$0xff]
    %v278 = vld [vmem:[%s1 + $0x628] sm:$0xff]
    %v279 = vld [vmem:[%s1 + $0x630] sm:$0xff]
    %v280 = vld [vmem:[%s1 + $0x638] sm:$0xff]
    %v281 = vld [vmem:[%s1 + $0x640] sm:$0xff]
    %v282 = vld [vmem:[%s1 + $0x648] sm:$0xff]
    %v283 = vld [vmem:[%s1 + $0x650] sm:$0xff]
    %v284 = vld [vmem:[%s1 + $0x658] sm:$0xff]
    %v285 = vld [vmem:[%s1 + $0x660] sm:$0xff]
    %v286 = vld [vmem:[%s1 + $0x668] sm:$0xff]
    %v287 = vld [vmem:[%s1 + $0x670] sm:$0xff]
    %v288 = vld [vmem:[%s1 + $0x678] sm:$0xff]
    %v289 = vld [vmem:[%s1 + $0x680] sm:$0xff]
    %v290 = vld [vmem:[%s1 + $0x688] sm:$0xff]
    %v291 = vld [vmem:[%s1 + $0x690] sm:$0xff]
    %v292 = vld [vmem:[%s1 + $0x698] sm:$0xff]
    %v293 = vld [vmem:[%s1 + $0x6a0] sm:$0xff]
    %v294 = vld [vmem:[%s1 + $0x6a8] sm:$0xff]
    %v295 = vld [vmem:[%s1 + $0x6b0] sm:$0xff]
    %v296 = vld [vmem:[%s1 + $0x6b8] sm:$0xff]
    %v297 = vld [vmem:[%s1 + $0x6c0] sm:$0xff]
    %v298 = vld [vmem:[%s1 + $0x6c8] sm:$0xff]
    %v299 = vld [vmem:[%s1 + $0x6d0] sm:$0xff]
    %v300 = vld [vmem:[%s1 + $0x6d8] sm:$0xff]
    %v301 = vld [vmem:[%s1 + $0x6e0] sm:$0xff]
    %v302 = vld [vmem:[%s1 + $0x6e8] sm:$0xff]
    %v303 = vld [vmem:[%s1 + $0x6f0] sm:$0xff]
    %v304 = vld [vmem:[%s1 + $0x6f8] sm:$0xff]
    %v305 = vld [vmem:[%s1 + $0x700] sm:$0xff]
    %v306 = vld [vmem:[%s1 + $0x708] sm:$0xff]
    %v307 = vld [vmem:[%s1 + $0x710] sm:$0xff]
    %v308 = vld [vmem:[%s1 + $0x718] sm:$0xff]
    %v309 = vld [vmem:[%s1 + $0x720] sm:$0xff]
    %v310 = vld [vmem:[%s1 + $0x728] sm:$0xff]
    %v311 = vld [vmem:[%s1 + $0x730] sm:$0xff]
    %v312 = vld [vmem:[%s1 + $0x738] sm:$0xff]
    %v313 = vld [vmem:[%s1 + $0x740] sm:$0xff]
    %v314 = vld [vmem:[%s1 + $0x748] sm:$0xff]
    %v315 = vld [vmem:[%s1 + $0x750] sm:$0xff]
    %v316 = vld [vmem:[%s1 + $0x758] sm:$0xff]
    %v317 = vld [vmem:[%s1 + $0x760] sm:$0xff]
    %v318 = vld [vmem:[%s1 + $0x768] sm:$0xff]
    %v319 = vld [vmem:[%s1 + $0x770] sm:$0xff]
    %v320 = vld [vmem:[%s1 + $0x778] sm:$0xff]
    %v321 = vld [vmem:[%s1 + $0x780] sm:$0xff]
    %v322 = vld [vmem:[%s1 + $0x788] sm:$0xff]
    %v323 = vld [vmem:[%s1 + $0x790] sm:$0xff]
    %v324 = vld [vmem:[%s1 + $0x798] sm:$0xff]
    %v325 = vld [vmem:[%s1 + $0x7a0] sm:$0xff]
    %v326 = vld [vmem:[%s1 + $0x7a8] sm:$0xff]
    %v327 = vld [vmem:[%s1 + $0x7b0] sm:$0xff]
    %v328 = vld [vmem:[%s1 + $0x7b8] sm:$0xff]
    %v329 = vld [vmem:[%s1 + $0x7c0] sm:$0xff]
    %v330 = vld [vmem:[%s1 + $0x7c8] sm:$0xff]
    %v331 = vld [vmem:[%s1 + $0x7d0] sm:$0xff]
    %v332 = vld [vmem:[%s1 + $0x7d8] sm:$0xff]
    %v333 = vld [vmem:[%s1 + $0x7e0] sm:$0xff]
    %v334 = vld [vmem:[%s1 + $0x7e8] sm:$0xff]
    %v335 = vld [vmem:[%s1 + $0x7f0] sm:$0xff]
    %v336 = vld [vmem:[%s1 + $0x7f8] sm:$0xff]
    %v337 = vld [vmem:[%s2] sm:$0xf]
    %v339 = vlaneseq
    %v340 = vshrl.u32 %v339, 7
    %v341 = vsub.s32 0, %v340
    %v342 = vrot.slane %v337, %v341
    %v343 = vlaneseq
    %v344 = vshrl.u32 %v343, 7
    %v345 = vsub.s32 1, %v344
    %v346 = vrot.slane %v337, %v345
    %v347 = vlaneseq
    %v348 = vshrl.u32 %v347, 7
    %v349 = vsub.s32 2, %v348
    %v350 = vrot.slane %v337, %v349
    %v351 = vlaneseq
    %v352 = vshrl.u32 %v351, 7
    %v353 = vsub.s32 3, %v352
    %v354 = vrot.slane %v337, %v353
    %v615 = vunpack.c.l.b16 %v81
    %v616 = vunpack.c.h.b16 %v81
    %v617 = vunpack.c.l.b16 %v82
    %v618 = vunpack.c.h.b16 %v82
    %v619 = vunpack.c.l.b16 %v83
    %v620 = vunpack.c.h.b16 %v83
    %v621 = vunpack.c.l.b16 %v84
    %v622 = vunpack.c.h.b16 %v84
    %v623 = vunpack.c.l.b16 %v85
    %v624 = vunpack.c.h.b16 %v85
    %v625 = vunpack.c.l.b16 %v86
    %v626 = vunpack.c.h.b16 %v86
    %v627 = vunpack.c.l.b16 %v87
    %v628 = vunpack.c.h.b16 %v87
    %v629 = vunpack.c.l.b16 %v88
    %v630 = vunpack.c.h.b16 %v88
    %v631 = vunpack.c.l.b16 %v89
    %v632 = vunpack.c.h.b16 %v89
    %v633 = vunpack.c.l.b16 %v90
    %v634 = vunpack.c.h.b16 %v90
    %v635 = vunpack.c.l.b16 %v91
    %v636 = vunpack.c.h.b16 %v91
    %v637 = vunpack.c.l.b16 %v92
    %v638 = vunpack.c.h.b16 %v92
    %v639 = vunpack.c.l.b16 %v93
    %v640 = vunpack.c.h.b16 %v93
    %v641 = vunpack.c.l.b16 %v94
    %v642 = vunpack.c.h.b16 %v94
    %v643 = vunpack.c.l.b16 %v95
    %v644 = vunpack.c.h.b16 %v95
    %v645 = vunpack.c.l.b16 %v96
    %v646 = vunpack.c.h.b16 %v96
    %v647 = vunpack.c.l.b16 %v97
    %v648 = vunpack.c.h.b16 %v97
    %v649 = vunpack.c.l.b16 %v98
    %v650 = vunpack.c.h.b16 %v98
    %v651 = vunpack.c.l.b16 %v99
    %v652 = vunpack.c.h.b16 %v99
    %v653 = vunpack.c.l.b16 %v100
    %v654 = vunpack.c.h.b16 %v100
    %v655 = vunpack.c.l.b16 %v101
    %v656 = vunpack.c.h.b16 %v101
    %v657 = vunpack.c.l.b16 %v102
    %v658 = vunpack.c.h.b16 %v102
    %v659 = vunpack.c.l.b16 %v103
    %v660 = vunpack.c.h.b16 %v103
    %v661 = vunpack.c.l.b16 %v104
    %v662 = vunpack.c.h.b16 %v104
    %v663 = vunpack.c.l.b16 %v105
    %v664 = vunpack.c.h.b16 %v105
    %v665 = vunpack.c.l.b16 %v106
    %v666 = vunpack.c.h.b16 %v106
    %v667 = vunpack.c.l.b16 %v107
    %v668 = vunpack.c.h.b16 %v107
    %v669 = vunpack.c.l.b16 %v108
    %v670 = vunpack.c.h.b16 %v108
    %v671 = vunpack.c.l.b16 %v109
    %v672 = vunpack.c.h.b16 %v109
    %v673 = vunpack.c.l.b16 %v110
    %v674 = vunpack.c.h.b16 %v110
    %v675 = vunpack.c.l.b16 %v111
    %v676 = vunpack.c.h.b16 %v111
    %v677 = vunpack.c.l.b16 %v112
    %v678 = vunpack.c.h.b16 %v112
    %v679 = vunpack.c.l.b16 %v113
    %v680 = vunpack.c.h.b16 %v113
    %v681 = vunpack.c.l.b16 %v114
    %v682 = vunpack.c.h.b16 %v114
    %v683 = vunpack.c.l.b16 %v115
    %v684 = vunpack.c.h.b16 %v115
    %v685 = vunpack.c.l.b16 %v116
    %v686 = vunpack.c.h.b16 %v116
    %v687 = vunpack.c.l.b16 %v117
    %v688 = vunpack.c.h.b16 %v117
    %v689 = vunpack.c.l.b16 %v118
    %v690 = vunpack.c.h.b16 %v118
    %v691 = vunpack.c.l.b16 %v119
    %v692 = vunpack.c.h.b16 %v119
    %v693 = vunpack.c.l.b16 %v120
    %v694 = vunpack.c.h.b16 %v120
    %v695 = vunpack.c.l.b16 %v121
    %v696 = vunpack.c.h.b16 %v121
    %v697 = vunpack.c.l.b16 %v122
    %v698 = vunpack.c.h.b16 %v122
    %v699 = vunpack.c.l.b16 %v123
    %v700 = vunpack.c.h.b16 %v123
    %v701 = vunpack.c.l.b16 %v124
    %v702 = vunpack.c.h.b16 %v124
    %v703 = vunpack.c.l.b16 %v125
    %v704 = vunpack.c.h.b16 %v125
    %v705 = vunpack.c.l.b16 %v126
    %v706 = vunpack.c.h.b16 %v126
    %v707 = vunpack.c.l.b16 %v127
    %v708 = vunpack.c.h.b16 %v127
    %v709 = vunpack.c.l.b16 %v128
    %v710 = vunpack.c.h.b16 %v128
    %v711 = vunpack.c.l.b16 %v129
    %v712 = vunpack.c.h.b16 %v129
    %v713 = vunpack.c.l.b16 %v130
    %v714 = vunpack.c.h.b16 %v130
    %v715 = vunpack.c.l.b16 %v131
    %v716 = vunpack.c.h.b16 %v131
    %v717 = vunpack.c.l.b16 %v132
    %v718 = vunpack.c.h.b16 %v132
    %v719 = vunpack.c.l.b16 %v133
    %v720 = vunpack.c.h.b16 %v133
    %v721 = vunpack.c.l.b16 %v134
    %v722 = vunpack.c.h.b16 %v134
    %v723 = vunpack.c.l.b16 %v135
    %v724 = vunpack.c.h.b16 %v135
    %v725 = vunpack.c.l.b16 %v136
    %v726 = vunpack.c.h.b16 %v136
    %v727 = vunpack.c.l.b16 %v137
    %v728 = vunpack.c.h.b16 %v137
    %v729 = vunpack.c.l.b16 %v138
    %v730 = vunpack.c.h.b16 %v138
    %v731 = vunpack.c.l.b16 %v139
    %v732 = vunpack.c.h.b16 %v139
    %v733 = vunpack.c.l.b16 %v140
    %v734 = vunpack.c.h.b16 %v140
    %v735 = vunpack.c.l.b16 %v141
    %v736 = vunpack.c.h.b16 %v141
    %v737 = vunpack.c.l.b16 %v142
    %v738 = vunpack.c.h.b16 %v142
    %v739 = vunpack.c.l.b16 %v143
    %v740 = vunpack.c.h.b16 %v143
    %v741 = vunpack.c.l.b16 %v144
    %v742 = vunpack.c.h.b16 %v144
    %v743 = vunpack.c.l.b16 %v145
    %v744 = vunpack.c.h.b16 %v145
    %v745 = vunpack.c.l.b16 %v146
    %v746 = vunpack.c.h.b16 %v146
    %v747 = vunpack.c.l.b16 %v147
    %v748 = vunpack.c.h.b16 %v147
    %v749 = vunpack.c.l.b16 %v148
    %v750 = vunpack.c.h.b16 %v148
    %v751 = vunpack.c.l.b16 %v149
    %v752 = vunpack.c.h.b16 %v149
    %v753 = vunpack.c.l.b16 %v150
    %v754 = vunpack.c.h.b16 %v150
    %v755 = vunpack.c.l.b16 %v151
    %v756 = vunpack.c.h.b16 %v151
    %v757 = vunpack.c.l.b16 %v152
    %v758 = vunpack.c.h.b16 %v152
    %v759 = vunpack.c.l.b16 %v153
    %v760 = vunpack.c.h.b16 %v153
    %v761 = vunpack.c.l.b16 %v154
    %v762 = vunpack.c.h.b16 %v154
    %v763 = vunpack.c.l.b16 %v155
    %v764 = vunpack.c.h.b16 %v155
    %v765 = vunpack.c.l.b16 %v156
    %v766 = vunpack.c.h.b16 %v156
    %v767 = vunpack.c.l.b16 %v157
    %v768 = vunpack.c.h.b16 %v157
    %v769 = vunpack.c.l.b16 %v158
    %v770 = vunpack.c.h.b16 %v158
    %v771 = vunpack.c.l.b16 %v159
    %v772 = vunpack.c.h.b16 %v159
    %v773 = vunpack.c.l.b16 %v160
    %v774 = vunpack.c.h.b16 %v160
    %v775 = vunpack.c.l.b16 %v161
    %v776 = vunpack.c.h.b16 %v161
    %v777 = vunpack.c.l.b16 %v162
    %v778 = vunpack.c.h.b16 %v162
    %v779 = vunpack.c.l.b16 %v163
    %v780 = vunpack.c.h.b16 %v163
    %v781 = vunpack.c.l.b16 %v164
    %v782 = vunpack.c.h.b16 %v164
    %v783 = vunpack.c.l.b16 %v165
    %v784 = vunpack.c.h.b16 %v165
    %v785 = vunpack.c.l.b16 %v166
    %v786 = vunpack.c.h.b16 %v166
    %v787 = vunpack.c.l.b16 %v167
    %v788 = vunpack.c.h.b16 %v167
    %v789 = vunpack.c.l.b16 %v168
    %v790 = vunpack.c.h.b16 %v168
    %v791 = vunpack.c.l.b16 %v169
    %v792 = vunpack.c.h.b16 %v169
    %v793 = vunpack.c.l.b16 %v170
    %v794 = vunpack.c.h.b16 %v170
    %v795 = vunpack.c.l.b16 %v171
    %v796 = vunpack.c.h.b16 %v171
    %v797 = vunpack.c.l.b16 %v172
    %v798 = vunpack.c.h.b16 %v172
    %v799 = vunpack.c.l.b16 %v173
    %v800 = vunpack.c.h.b16 %v173
    %v801 = vunpack.c.l.b16 %v174
    %v802 = vunpack.c.h.b16 %v174
    %v803 = vunpack.c.l.b16 %v175
    %v804 = vunpack.c.h.b16 %v175
    %v805 = vunpack.c.l.b16 %v176
    %v806 = vunpack.c.h.b16 %v176
    %v807 = vunpack.c.l.b16 %v177
    %v808 = vunpack.c.h.b16 %v177
    %v809 = vunpack.c.l.b16 %v178
    %v810 = vunpack.c.h.b16 %v178
    %v811 = vunpack.c.l.b16 %v179
    %v812 = vunpack.c.h.b16 %v179
    %v813 = vunpack.c.l.b16 %v180
    %v814 = vunpack.c.h.b16 %v180
    %v815 = vunpack.c.l.b16 %v181
    %v816 = vunpack.c.h.b16 %v181
    %v817 = vunpack.c.l.b16 %v182
    %v818 = vunpack.c.h.b16 %v182
    %v819 = vunpack.c.l.b16 %v183
    %v820 = vunpack.c.h.b16 %v183
    %v821 = vunpack.c.l.b16 %v184
    %v822 = vunpack.c.h.b16 %v184
    %v823 = vunpack.c.l.b16 %v185
    %v824 = vunpack.c.h.b16 %v185
    %v825 = vunpack.c.l.b16 %v186
    %v826 = vunpack.c.h.b16 %v186
    %v827 = vunpack.c.l.b16 %v187
    %v828 = vunpack.c.h.b16 %v187
    %v829 = vunpack.c.l.b16 %v188
    %v830 = vunpack.c.h.b16 %v188
    %v831 = vunpack.c.l.b16 %v189
    %v832 = vunpack.c.h.b16 %v189
    %v833 = vunpack.c.l.b16 %v190
    %v834 = vunpack.c.h.b16 %v190
    %v835 = vunpack.c.l.b16 %v191
    %v836 = vunpack.c.h.b16 %v191
    %v837 = vunpack.c.l.b16 %v192
    %v838 = vunpack.c.h.b16 %v192
    %v839 = vunpack.c.l.b16 %v193
    %v840 = vunpack.c.h.b16 %v193
    %v841 = vunpack.c.l.b16 %v194
    %v842 = vunpack.c.h.b16 %v194
    %v843 = vunpack.c.l.b16 %v195
    %v844 = vunpack.c.h.b16 %v195
    %v845 = vunpack.c.l.b16 %v196
    %v846 = vunpack.c.h.b16 %v196
    %v847 = vunpack.c.l.b16 %v197
    %v848 = vunpack.c.h.b16 %v197
    %v849 = vunpack.c.l.b16 %v198
    %v850 = vunpack.c.h.b16 %v198
    %v851 = vunpack.c.l.b16 %v199
    %v852 = vunpack.c.h.b16 %v199
    %v853 = vunpack.c.l.b16 %v200
    %v854 = vunpack.c.h.b16 %v200
    %v855 = vunpack.c.l.b16 %v201
    %v856 = vunpack.c.h.b16 %v201
    %v857 = vunpack.c.l.b16 %v202
    %v858 = vunpack.c.h.b16 %v202
    %v859 = vunpack.c.l.b16 %v203
    %v860 = vunpack.c.h.b16 %v203
    %v861 = vunpack.c.l.b16 %v204
    %v862 = vunpack.c.h.b16 %v204
    %v863 = vunpack.c.l.b16 %v205
    %v864 = vunpack.c.h.b16 %v205
    %v865 = vunpack.c.l.b16 %v206
    %v866 = vunpack.c.h.b16 %v206
    %v867 = vunpack.c.l.b16 %v207
    %v868 = vunpack.c.h.b16 %v207
    %v869 = vunpack.c.l.b16 %v208
    %v870 = vunpack.c.h.b16 %v208
    %v871 = vunpack.c.l.b16 %v209
    %v872 = vunpack.c.h.b16 %v209
    %v873 = vunpack.c.l.b16 %v210
    %v874 = vunpack.c.h.b16 %v210
    %v875 = vunpack.c.l.b16 %v211
    %v876 = vunpack.c.h.b16 %v211
    %v877 = vunpack.c.l.b16 %v212
    %v878 = vunpack.c.h.b16 %v212
    %v879 = vunpack.c.l.b16 %v213
    %v880 = vunpack.c.h.b16 %v213
    %v881 = vunpack.c.l.b16 %v214
    %v882 = vunpack.c.h.b16 %v214
    %v883 = vunpack.c.l.b16 %v215
    %v884 = vunpack.c.h.b16 %v215
    %v885 = vunpack.c.l.b16 %v216
    %v886 = vunpack.c.h.b16 %v216
    %v887 = vunpack.c.l.b16 %v217
    %v888 = vunpack.c.h.b16 %v217
    %v889 = vunpack.c.l.b16 %v218
    %v890 = vunpack.c.h.b16 %v218
    %v891 = vunpack.c.l.b16 %v219
    %v892 = vunpack.c.h.b16 %v219
    %v893 = vunpack.c.l.b16 %v220
    %v894 = vunpack.c.h.b16 %v220
    %v895 = vunpack.c.l.b16 %v221
    %v896 = vunpack.c.h.b16 %v221
    %v897 = vunpack.c.l.b16 %v222
    %v898 = vunpack.c.h.b16 %v222
    %v899 = vunpack.c.l.b16 %v223
    %v900 = vunpack.c.h.b16 %v223
    %v901 = vunpack.c.l.b16 %v224
    %v902 = vunpack.c.h.b16 %v224
    %v903 = vunpack.c.l.b16 %v225
    %v904 = vunpack.c.h.b16 %v225
    %v905 = vunpack.c.l.b16 %v226
    %v906 = vunpack.c.h.b16 %v226
    %v907 = vunpack.c.l.b16 %v227
    %v908 = vunpack.c.h.b16 %v227
    %v909 = vunpack.c.l.b16 %v228
    %v910 = vunpack.c.h.b16 %v228
    %v911 = vunpack.c.l.b16 %v229
    %v912 = vunpack.c.h.b16 %v229
    %v913 = vunpack.c.l.b16 %v230
    %v914 = vunpack.c.h.b16 %v230
    %v915 = vunpack.c.l.b16 %v231
    %v916 = vunpack.c.h.b16 %v231
    %v917 = vunpack.c.l.b16 %v232
    %v918 = vunpack.c.h.b16 %v232
    %v919 = vunpack.c.l.b16 %v233
    %v920 = vunpack.c.h.b16 %v233
    %v921 = vunpack.c.l.b16 %v234
    %v922 = vunpack.c.h.b16 %v234
    %v923 = vunpack.c.l.b16 %v235
    %v924 = vunpack.c.h.b16 %v235
    %v925 = vunpack.c.l.b16 %v236
    %v926 = vunpack.c.h.b16 %v236
    %v927 = vunpack.c.l.b16 %v237
    %v928 = vunpack.c.h.b16 %v237
    %v929 = vunpack.c.l.b16 %v238
    %v930 = vunpack.c.h.b16 %v238
    %v931 = vunpack.c.l.b16 %v239
    %v932 = vunpack.c.h.b16 %v239
    %v933 = vunpack.c.l.b16 %v240
    %v934 = vunpack.c.h.b16 %v240
    %v935 = vunpack.c.l.b16 %v241
    %v936 = vunpack.c.h.b16 %v241
    %v937 = vunpack.c.l.b16 %v242
    %v938 = vunpack.c.h.b16 %v242
    %v939 = vunpack.c.l.b16 %v243
    %v940 = vunpack.c.h.b16 %v243
    %v941 = vunpack.c.l.b16 %v244
    %v942 = vunpack.c.h.b16 %v244
    %v943 = vunpack.c.l.b16 %v245
    %v944 = vunpack.c.h.b16 %v245
    %v945 = vunpack.c.l.b16 %v246
    %v946 = vunpack.c.h.b16 %v246
    %v947 = vunpack.c.l.b16 %v247
    %v948 = vunpack.c.h.b16 %v247
    %v949 = vunpack.c.l.b16 %v248
    %v950 = vunpack.c.h.b16 %v248
    %v951 = vunpack.c.l.b16 %v249
    %v952 = vunpack.c.h.b16 %v249
    %v953 = vunpack.c.l.b16 %v250
    %v954 = vunpack.c.h.b16 %v250
    %v955 = vunpack.c.l.b16 %v251
    %v956 = vunpack.c.h.b16 %v251
    %v957 = vunpack.c.l.b16 %v252
    %v958 = vunpack.c.h.b16 %v252
    %v959 = vunpack.c.l.b16 %v253
    %v960 = vunpack.c.h.b16 %v253
    %v961 = vunpack.c.l.b16 %v254
    %v962 = vunpack.c.h.b16 %v254
    %v963 = vunpack.c.l.b16 %v255
    %v964 = vunpack.c.h.b16 %v255
    %v965 = vunpack.c.l.b16 %v256
    %v966 = vunpack.c.h.b16 %v256
    %v967 = vunpack.c.l.b16 %v257
    %v968 = vunpack.c.h.b16 %v257
    %v969 = vunpack.c.l.b16 %v258
    %v970 = vunpack.c.h.b16 %v258
    %v971 = vunpack.c.l.b16 %v259
    %v972 = vunpack.c.h.b16 %v259
    %v973 = vunpack.c.l.b16 %v260
    %v974 = vunpack.c.h.b16 %v260
    %v975 = vunpack.c.l.b16 %v261
    %v976 = vunpack.c.h.b16 %v261
    %v977 = vunpack.c.l.b16 %v262
    %v978 = vunpack.c.h.b16 %v262
    %v979 = vunpack.c.l.b16 %v263
    %v980 = vunpack.c.h.b16 %v263
    %v981 = vunpack.c.l.b16 %v264
    %v982 = vunpack.c.h.b16 %v264
    %v983 = vunpack.c.l.b16 %v265
    %v984 = vunpack.c.h.b16 %v265
    %v985 = vunpack.c.l.b16 %v266
    %v986 = vunpack.c.h.b16 %v266
    %v987 = vunpack.c.l.b16 %v267
    %v988 = vunpack.c.h.b16 %v267
    %v989 = vunpack.c.l.b16 %v268
    %v990 = vunpack.c.h.b16 %v268
    %v991 = vunpack.c.l.b16 %v269
    %v992 = vunpack.c.h.b16 %v269
    %v993 = vunpack.c.l.b16 %v270
    %v994 = vunpack.c.h.b16 %v270
    %v995 = vunpack.c.l.b16 %v271
    %v996 = vunpack.c.h.b16 %v271
    %v997 = vunpack.c.l.b16 %v272
    %v998 = vunpack.c.h.b16 %v272
    %v999 = vunpack.c.l.b16 %v273
    %v1000 = vunpack.c.h.b16 %v273
    %v1001 = vunpack.c.l.b16 %v274
    %v1002 = vunpack.c.h.b16 %v274
    %v1003 = vunpack.c.l.b16 %v275
    %v1004 = vunpack.c.h.b16 %v275
    %v1005 = vunpack.c.l.b16 %v276
    %v1006 = vunpack.c.h.b16 %v276
    %v1007 = vunpack.c.l.b16 %v277
    %v1008 = vunpack.c.h.b16 %v277
    %v1009 = vunpack.c.l.b16 %v278
    %v1010 = vunpack.c.h.b16 %v278
    %v1011 = vunpack.c.l.b16 %v279
    %v1012 = vunpack.c.h.b16 %v279
    %v1013 = vunpack.c.l.b16 %v280
    %v1014 = vunpack.c.h.b16 %v280
    %v1015 = vunpack.c.l.b16 %v281
    %v1016 = vunpack.c.h.b16 %v281
    %v1017 = vunpack.c.l.b16 %v282
    %v1018 = vunpack.c.h.b16 %v282
    %v1019 = vunpack.c.l.b16 %v283
    %v1020 = vunpack.c.h.b16 %v283
    %v1021 = vunpack.c.l.b16 %v284
    %v1022 = vunpack.c.h.b16 %v284
    %v1023 = vunpack.c.l.b16 %v285
    %v1024 = vunpack.c.h.b16 %v285
    %v1025 = vunpack.c.l.b16 %v286
    %v1026 = vunpack.c.h.b16 %v286
    %v1027 = vunpack.c.l.b16 %v287
    %v1028 = vunpack.c.h.b16 %v287
    %v1029 = vunpack.c.l.b16 %v288
    %v1030 = vunpack.c.h.b16 %v288
    %v1031 = vunpack.c.l.b16 %v289
    %v1032 = vunpack.c.h.b16 %v289
    %v1033 = vunpack.c.l.b16 %v290
    %v1034 = vunpack.c.h.b16 %v290
    %v1035 = vunpack.c.l.b16 %v291
    %v1036 = vunpack.c.h.b16 %v291
    %v1037 = vunpack.c.l.b16 %v292
    %v1038 = vunpack.c.h.b16 %v292
    %v1039 = vunpack.c.l.b16 %v293
    %v1040 = vunpack.c.h.b16 %v293
    %v1041 = vunpack.c.l.b16 %v294
    %v1042 = vunpack.c.h.b16 %v294
    %v1043 = vunpack.c.l.b16 %v295
    %v1044 = vunpack.c.h.b16 %v295
    %v1045 = vunpack.c.l.b16 %v296
    %v1046 = vunpack.c.h.b16 %v296
    %v1047 = vunpack.c.l.b16 %v297
    %v1048 = vunpack.c.h.b16 %v297
    %v1049 = vunpack.c.l.b16 %v298
    %v1050 = vunpack.c.h.b16 %v298
    %v1051 = vunpack.c.l.b16 %v299
    %v1052 = vunpack.c.h.b16 %v299
    %v1053 = vunpack.c.l.b16 %v300
    %v1054 = vunpack.c.h.b16 %v300
    %v1055 = vunpack.c.l.b16 %v301
    %v1056 = vunpack.c.h.b16 %v301
    %v1057 = vunpack.c.l.b16 %v302
    %v1058 = vunpack.c.h.b16 %v302
    %v1059 = vunpack.c.l.b16 %v303
    %v1060 = vunpack.c.h.b16 %v303
    %v1061 = vunpack.c.l.b16 %v304
    %v1062 = vunpack.c.h.b16 %v304
    %v1063 = vunpack.c.l.b16 %v305
    %v1064 = vunpack.c.h.b16 %v305
    %v1065 = vunpack.c.l.b16 %v306
    %v1066 = vunpack.c.h.b16 %v306
    %v1067 = vunpack.c.l.b16 %v307
    %v1068 = vunpack.c.h.b16 %v307
    %v1069 = vunpack.c.l.b16 %v308
    %v1070 = vunpack.c.h.b16 %v308
    %v1071 = vunpack.c.l.b16 %v309
    %v1072 = vunpack.c.h.b16 %v309
    %v1073 = vunpack.c.l.b16 %v310
    %v1074 = vunpack.c.h.b16 %v310
    %v1075 = vunpack.c.l.b16 %v311
    %v1076 = vunpack.c.h.b16 %v311
    %v1077 = vunpack.c.l.b16 %v312
    %v1078 = vunpack.c.h.b16 %v312
    %v1079 = vunpack.c.l.b16 %v313
    %v1080 = vunpack.c.h.b16 %v313
    %v1081 = vunpack.c.l.b16 %v314
    %v1082 = vunpack.c.h.b16 %v314
    %v1083 = vunpack.c.l.b16 %v315
    %v1084 = vunpack.c.h.b16 %v315
    %v1085 = vunpack.c.l.b16 %v316
    %v1086 = vunpack.c.h.b16 %v316
    %v1087 = vunpack.c.l.b16 %v317
    %v1088 = vunpack.c.h.b16 %v317
    %v1089 = vunpack.c.l.b16 %v318
    %v1090 = vunpack.c.h.b16 %v318
    %v1091 = vunpack.c.l.b16 %v319
    %v1092 = vunpack.c.h.b16 %v319
    %v1093 = vunpack.c.l.b16 %v320
    %v1094 = vunpack.c.h.b16 %v320
    %v1095 = vunpack.c.l.b16 %v321
    %v1096 = vunpack.c.h.b16 %v321
    %v1097 = vunpack.c.l.b16 %v322
    %v1098 = vunpack.c.h.b16 %v322
    %v1099 = vunpack.c.l.b16 %v323
    %v1100 = vunpack.c.h.b16 %v323
    %v1101 = vunpack.c.l.b16 %v324
    %v1102 = vunpack.c.h.b16 %v324
    %v1103 = vunpack.c.l.b16 %v325
    %v1104 = vunpack.c.h.b16 %v325
    %v1105 = vunpack.c.l.b16 %v326
    %v1106 = vunpack.c.h.b16 %v326
    %v1107 = vunpack.c.l.b16 %v327
    %v1108 = vunpack.c.h.b16 %v327
    %v1109 = vunpack.c.l.b16 %v328
    %v1110 = vunpack.c.h.b16 %v328
    %v1111 = vunpack.c.l.b16 %v329
    %v1112 = vunpack.c.h.b16 %v329
    %v1113 = vunpack.c.l.b16 %v330
    %v1114 = vunpack.c.h.b16 %v330
    %v1115 = vunpack.c.l.b16 %v331
    %v1116 = vunpack.c.h.b16 %v331
    %v1117 = vunpack.c.l.b16 %v332
    %v1118 = vunpack.c.h.b16 %v332
    %v1119 = vunpack.c.l.b16 %v333
    %v1120 = vunpack.c.h.b16 %v333
    %v1121 = vunpack.c.l.b16 %v334
    %v1122 = vunpack.c.h.b16 %v334
    %v1123 = vunpack.c.l.b16 %v335
    %v1124 = vunpack.c.h.b16 %v335
    %v1125 = vunpack.c.l.b16 %v336
    %v1126 = vunpack.c.h.b16 %v336
    %v1127 = vpack.c.b16 %v619, %v615
    %v1128 = vpack.c.b16 %v620, %v616
    %v1129 = vpack.c.b16 %v621, %v617
    %v1130 = vpack.c.b16 %v622, %v618
    %v1131 = vpack.c.b16 %v627, %v623
    %v1132 = vpack.c.b16 %v628, %v624
    %v1133 = vpack.c.b16 %v629, %v625
    %v1134 = vpack.c.b16 %v630, %v626
    %v1135 = vpack.c.b16 %v635, %v631
    %v1136 = vpack.c.b16 %v636, %v632
    %v1137 = vpack.c.b16 %v637, %v633
    %v1138 = vpack.c.b16 %v638, %v634
    %v1139 = vpack.c.b16 %v643, %v639
    %v1140 = vpack.c.b16 %v644, %v640
    %v1141 = vpack.c.b16 %v645, %v641
    %v1142 = vpack.c.b16 %v646, %v642
    %v1143 = vpack.c.b16 %v651, %v647
    %v1144 = vpack.c.b16 %v652, %v648
    %v1145 = vpack.c.b16 %v653, %v649
    %v1146 = vpack.c.b16 %v654, %v650
    %v1147 = vpack.c.b16 %v659, %v655
    %v1148 = vpack.c.b16 %v660, %v656
    %v1149 = vpack.c.b16 %v661, %v657
    %v1150 = vpack.c.b16 %v662, %v658
    %v1151 = vpack.c.b16 %v667, %v663
    %v1152 = vpack.c.b16 %v668, %v664
    %v1153 = vpack.c.b16 %v669, %v665
    %v1154 = vpack.c.b16 %v670, %v666
    %v1155 = vpack.c.b16 %v675, %v671
    %v1156 = vpack.c.b16 %v676, %v672
    %v1157 = vpack.c.b16 %v677, %v673
    %v1158 = vpack.c.b16 %v678, %v674
    %v1159 = vpack.c.b16 %v683, %v679
    %v1160 = vpack.c.b16 %v684, %v680
    %v1161 = vpack.c.b16 %v685, %v681
    %v1162 = vpack.c.b16 %v686, %v682
    %v1163 = vpack.c.b16 %v691, %v687
    %v1164 = vpack.c.b16 %v692, %v688
    %v1165 = vpack.c.b16 %v693, %v689
    %v1166 = vpack.c.b16 %v694, %v690
    %v1167 = vpack.c.b16 %v699, %v695
    %v1168 = vpack.c.b16 %v700, %v696
    %v1169 = vpack.c.b16 %v701, %v697
    %v1170 = vpack.c.b16 %v702, %v698
    %v1171 = vpack.c.b16 %v707, %v703
    %v1172 = vpack.c.b16 %v708, %v704
    %v1173 = vpack.c.b16 %v709, %v705
    %v1174 = vpack.c.b16 %v710, %v706
    %v1175 = vpack.c.b16 %v715, %v711
    %v1176 = vpack.c.b16 %v716, %v712
    %v1177 = vpack.c.b16 %v717, %v713
    %v1178 = vpack.c.b16 %v718, %v714
    %v1179 = vpack.c.b16 %v723, %v719
    %v1180 = vpack.c.b16 %v724, %v720
    %v1181 = vpack.c.b16 %v725, %v721
    %v1182 = vpack.c.b16 %v726, %v722
    %v1183 = vpack.c.b16 %v731, %v727
    %v1184 = vpack.c.b16 %v732, %v728
    %v1185 = vpack.c.b16 %v733, %v729
    %v1186 = vpack.c.b16 %v734, %v730
    %v1187 = vpack.c.b16 %v739, %v735
    %v1188 = vpack.c.b16 %v740, %v736
    %v1189 = vpack.c.b16 %v741, %v737
    %v1190 = vpack.c.b16 %v742, %v738
    %v1191 = vpack.c.b16 %v747, %v743
    %v1192 = vpack.c.b16 %v748, %v744
    %v1193 = vpack.c.b16 %v749, %v745
    %v1194 = vpack.c.b16 %v750, %v746
    %v1195 = vpack.c.b16 %v755, %v751
    %v1196 = vpack.c.b16 %v756, %v752
    %v1197 = vpack.c.b16 %v757, %v753
    %v1198 = vpack.c.b16 %v758, %v754
    %v1199 = vpack.c.b16 %v763, %v759
    %v1200 = vpack.c.b16 %v764, %v760
    %v1201 = vpack.c.b16 %v765, %v761
    %v1202 = vpack.c.b16 %v766, %v762
    %v1203 = vpack.c.b16 %v771, %v767
    %v1204 = vpack.c.b16 %v772, %v768
    %v1205 = vpack.c.b16 %v773, %v769
    %v1206 = vpack.c.b16 %v774, %v770
    %v1207 = vpack.c.b16 %v779, %v775
    %v1208 = vpack.c.b16 %v780, %v776
    %v1209 = vpack.c.b16 %v781, %v777
    %v1210 = vpack.c.b16 %v782, %v778
    %v1211 = vpack.c.b16 %v787, %v783
    %v1212 = vpack.c.b16 %v788, %v784
    %v1213 = vpack.c.b16 %v789, %v785
    %v1214 = vpack.c.b16 %v790, %v786
    %v1215 = vpack.c.b16 %v795, %v791
    %v1216 = vpack.c.b16 %v796, %v792
    %v1217 = vpack.c.b16 %v797, %v793
    %v1218 = vpack.c.b16 %v798, %v794
    %v1219 = vpack.c.b16 %v803, %v799
    %v1220 = vpack.c.b16 %v804, %v800
    %v1221 = vpack.c.b16 %v805, %v801
    %v1222 = vpack.c.b16 %v806, %v802
    %v1223 = vpack.c.b16 %v811, %v807
    %v1224 = vpack.c.b16 %v812, %v808
    %v1225 = vpack.c.b16 %v813, %v809
    %v1226 = vpack.c.b16 %v814, %v810
    %v1227 = vpack.c.b16 %v819, %v815
    %v1228 = vpack.c.b16 %v820, %v816
    %v1229 = vpack.c.b16 %v821, %v817
    %v1230 = vpack.c.b16 %v822, %v818
    %v1231 = vpack.c.b16 %v827, %v823
    %v1232 = vpack.c.b16 %v828, %v824
    %v1233 = vpack.c.b16 %v829, %v825
    %v1234 = vpack.c.b16 %v830, %v826
    %v1235 = vpack.c.b16 %v835, %v831
    %v1236 = vpack.c.b16 %v836, %v832
    %v1237 = vpack.c.b16 %v837, %v833
    %v1238 = vpack.c.b16 %v838, %v834
    %v1239 = vpack.c.b16 %v843, %v839
    %v1240 = vpack.c.b16 %v844, %v840
    %v1241 = vpack.c.b16 %v845, %v841
    %v1242 = vpack.c.b16 %v846, %v842
    %v1243 = vpack.c.b16 %v851, %v847
    %v1244 = vpack.c.b16 %v852, %v848
    %v1245 = vpack.c.b16 %v853, %v849
    %v1246 = vpack.c.b16 %v854, %v850
    %v1247 = vpack.c.b16 %v859, %v855
    %v1248 = vpack.c.b16 %v860, %v856
    %v1249 = vpack.c.b16 %v861, %v857
    %v1250 = vpack.c.b16 %v862, %v858
    %v1251 = vpack.c.b16 %v867, %v863
    %v1252 = vpack.c.b16 %v868, %v864
    %v1253 = vpack.c.b16 %v869, %v865
    %v1254 = vpack.c.b16 %v870, %v866
    %v1255 = vpack.c.b16 %v875, %v871
    %v1256 = vpack.c.b16 %v876, %v872
    %v1257 = vpack.c.b16 %v877, %v873
    %v1258 = vpack.c.b16 %v878, %v874
    %v1259 = vpack.c.b16 %v883, %v879
    %v1260 = vpack.c.b16 %v884, %v880
    %v1261 = vpack.c.b16 %v885, %v881
    %v1262 = vpack.c.b16 %v886, %v882
    %v1263 = vpack.c.b16 %v891, %v887
    %v1264 = vpack.c.b16 %v892, %v888
    %v1265 = vpack.c.b16 %v893, %v889
    %v1266 = vpack.c.b16 %v894, %v890
    %v1267 = vpack.c.b16 %v899, %v895
    %v1268 = vpack.c.b16 %v900, %v896
    %v1269 = vpack.c.b16 %v901, %v897
    %v1270 = vpack.c.b16 %v902, %v898
    %v1271 = vpack.c.b16 %v907, %v903
    %v1272 = vpack.c.b16 %v908, %v904
    %v1273 = vpack.c.b16 %v909, %v905
    %v1274 = vpack.c.b16 %v910, %v906
    %v1275 = vpack.c.b16 %v915, %v911
    %v1276 = vpack.c.b16 %v916, %v912
    %v1277 = vpack.c.b16 %v917, %v913
    %v1278 = vpack.c.b16 %v918, %v914
    %v1279 = vpack.c.b16 %v923, %v919
    %v1280 = vpack.c.b16 %v924, %v920
    %v1281 = vpack.c.b16 %v925, %v921
    %v1282 = vpack.c.b16 %v926, %v922
    %v1283 = vpack.c.b16 %v931, %v927
    %v1284 = vpack.c.b16 %v932, %v928
    %v1285 = vpack.c.b16 %v933, %v929
    %v1286 = vpack.c.b16 %v934, %v930
    %v1287 = vpack.c.b16 %v939, %v935
    %v1288 = vpack.c.b16 %v940, %v936
    %v1289 = vpack.c.b16 %v941, %v937
    %v1290 = vpack.c.b16 %v942, %v938
    %v1291 = vpack.c.b16 %v947, %v943
    %v1292 = vpack.c.b16 %v948, %v944
    %v1293 = vpack.c.b16 %v949, %v945
    %v1294 = vpack.c.b16 %v950, %v946
    %v1295 = vpack.c.b16 %v955, %v951
    %v1296 = vpack.c.b16 %v956, %v952
    %v1297 = vpack.c.b16 %v957, %v953
    %v1298 = vpack.c.b16 %v958, %v954
    %v1299 = vpack.c.b16 %v963, %v959
    %v1300 = vpack.c.b16 %v964, %v960
    %v1301 = vpack.c.b16 %v965, %v961
    %v1302 = vpack.c.b16 %v966, %v962
    %v1303 = vpack.c.b16 %v971, %v967
    %v1304 = vpack.c.b16 %v972, %v968
    %v1305 = vpack.c.b16 %v973, %v969
    %v1306 = vpack.c.b16 %v974, %v970
    %v1307 = vpack.c.b16 %v979, %v975
    %v1308 = vpack.c.b16 %v980, %v976
    %v1309 = vpack.c.b16 %v981, %v977
    %v1310 = vpack.c.b16 %v982, %v978
    %v1311 = vpack.c.b16 %v987, %v983
    %v1312 = vpack.c.b16 %v988, %v984
    %v1313 = vpack.c.b16 %v989, %v985
    %v1314 = vpack.c.b16 %v990, %v986
    %v1315 = vpack.c.b16 %v995, %v991
    %v1316 = vpack.c.b16 %v996, %v992
    %v1317 = vpack.c.b16 %v997, %v993
    %v1318 = vpack.c.b16 %v998, %v994
    %v1319 = vpack.c.b16 %v1003, %v999
    %v1320 = vpack.c.b16 %v1004, %v1000
    %v1321 = vpack.c.b16 %v1005, %v1001
    %v1322 = vpack.c.b16 %v1006, %v1002
    %v1323 = vpack.c.b16 %v1011, %v1007
    %v1324 = vpack.c.b16 %v1012, %v1008
    %v1325 = vpack.c.b16 %v1013, %v1009
    %v1326 = vpack.c.b16 %v1014, %v1010
    %v1327 = vpack.c.b16 %v1019, %v1015
    %v1328 = vpack.c.b16 %v1020, %v1016
    %v1329 = vpack.c.b16 %v1021, %v1017
    %v1330 = vpack.c.b16 %v1022, %v1018
    %v1331 = vpack.c.b16 %v1027, %v1023
    %v1332 = vpack.c.b16 %v1028, %v1024
    %v1333 = vpack.c.b16 %v1029, %v1025
    %v1334 = vpack.c.b16 %v1030, %v1026
    %v1335 = vpack.c.b16 %v1035, %v1031
    %v1336 = vpack.c.b16 %v1036, %v1032
    %v1337 = vpack.c.b16 %v1037, %v1033
    %v1338 = vpack.c.b16 %v1038, %v1034
    %v1339 = vpack.c.b16 %v1043, %v1039
    %v1340 = vpack.c.b16 %v1044, %v1040
    %v1341 = vpack.c.b16 %v1045, %v1041
    %v1342 = vpack.c.b16 %v1046, %v1042
    %v1343 = vpack.c.b16 %v1051, %v1047
    %v1344 = vpack.c.b16 %v1052, %v1048
    %v1345 = vpack.c.b16 %v1053, %v1049
    %v1346 = vpack.c.b16 %v1054, %v1050
    %v1347 = vpack.c.b16 %v1059, %v1055
    %v1348 = vpack.c.b16 %v1060, %v1056
    %v1349 = vpack.c.b16 %v1061, %v1057
    %v1350 = vpack.c.b16 %v1062, %v1058
    %v1351 = vpack.c.b16 %v1067, %v1063
    %v1352 = vpack.c.b16 %v1068, %v1064
    %v1353 = vpack.c.b16 %v1069, %v1065
    %v1354 = vpack.c.b16 %v1070, %v1066
    %v1355 = vpack.c.b16 %v1075, %v1071
    %v1356 = vpack.c.b16 %v1076, %v1072
    %v1357 = vpack.c.b16 %v1077, %v1073
    %v1358 = vpack.c.b16 %v1078, %v1074
    %v1359 = vpack.c.b16 %v1083, %v1079
    %v1360 = vpack.c.b16 %v1084, %v1080
    %v1361 = vpack.c.b16 %v1085, %v1081
    %v1362 = vpack.c.b16 %v1086, %v1082
    %v1363 = vpack.c.b16 %v1091, %v1087
    %v1364 = vpack.c.b16 %v1092, %v1088
    %v1365 = vpack.c.b16 %v1093, %v1089
    %v1366 = vpack.c.b16 %v1094, %v1090
    %v1367 = vpack.c.b16 %v1099, %v1095
    %v1368 = vpack.c.b16 %v1100, %v1096
    %v1369 = vpack.c.b16 %v1101, %v1097
    %v1370 = vpack.c.b16 %v1102, %v1098
    %v1371 = vpack.c.b16 %v1107, %v1103
    %v1372 = vpack.c.b16 %v1108, %v1104
    %v1373 = vpack.c.b16 %v1109, %v1105
    %v1374 = vpack.c.b16 %v1110, %v1106
    %v1375 = vpack.c.b16 %v1115, %v1111
    %v1376 = vpack.c.b16 %v1116, %v1112
    %v1377 = vpack.c.b16 %v1117, %v1113
    %v1378 = vpack.c.b16 %v1118, %v1114
    %v1379 = vpack.c.b16 %v1123, %v1119
    %v1380 = vpack.c.b16 %v1124, %v1120
    %v1381 = vpack.c.b16 %v1125, %v1121
    %v1382 = vpack.c.b16 %v1126, %v1122
    %1639 = vmatprep.subr.bf16.mxu0 %v1128
    %1640 = vmatpush1.bf16.msra.mxu0 %v1127
    %1641 = vmatprep.subr.bf16.mxu0 %v1132
    %1642 = vmatpush1.bf16.msra.mxu0 %v1131
    %1643 = vmatprep.subr.bf16.mxu0 %v1136
    %1644 = vmatpush1.bf16.msra.mxu0 %v1135
    %1645 = vmatprep.subr.bf16.mxu0 %v1140
    %1646 = vmatpush1.bf16.msra.mxu0 %v1139
    %1647 = vmatprep.subr.bf16.mxu0 %v1144
    %1648 = vmatpush1.bf16.msra.mxu0 %v1143
    %1649 = vmatprep.subr.bf16.mxu0 %v1148
    %1650 = vmatpush1.bf16.msra.mxu0 %v1147
    %1651 = vmatprep.subr.bf16.mxu0 %v1152
    %1652 = vmatpush1.bf16.msra.mxu0 %v1151
    %1653 = vmatprep.subr.bf16.mxu0 %v1156
    %1654 = vmatpush1.bf16.msra.mxu0 %v1155
    %1655 = vmatprep.subr.bf16.mxu0 %v1160
    %1656 = vmatpush1.bf16.msra.mxu0 %v1159
    %1657 = vmatprep.subr.bf16.mxu0 %v1164
    %1658 = vmatpush1.bf16.msra.mxu0 %v1163
    %1659 = vmatprep.subr.bf16.mxu0 %v1168
    %1660 = vmatpush1.bf16.msra.mxu0 %v1167
    %1661 = vmatprep.subr.bf16.mxu0 %v1172
    %1662 = vmatpush1.bf16.msra.mxu0 %v1171
    %1663 = vmatprep.subr.bf16.mxu0 %v1176
    %1664 = vmatpush1.bf16.msra.mxu0 %v1175
    %1665 = vmatprep.subr.bf16.mxu0 %v1180
    %1666 = vmatpush1.bf16.msra.mxu0 %v1179
    %1667 = vmatprep.subr.bf16.mxu0 %v1184
    %1668 = vmatpush1.bf16.msra.mxu0 %v1183
    %1669 = vmatprep.subr.bf16.mxu0 %v1188
    %1670 = vmatpush1.bf16.msra.mxu0 %v1187
    %1671 = vmatprep.mubr.bf16.mxu0 %v74
    %1672 = vmatmul.mubr.bf16.gmra.mrb[0].mxu0 %v73
    %v1673 = vpop.f32.mrb[0].mxu0
    %v1674 = vadd.f32 %v342, %v1673
    %v1675 = vpop.f32.mrb[0].mxu0
    %v1676 = vadd.f32 %v346, %v1675
    %v1677 = vpop.f32.mrb[0].mxu0
    %v1678 = vpop.f32.mrb[0].mxu0
    %1679 = vdwg.mxu0
    %1680 = vmatprep.subr.bf16.mxu0 %v1192
    %1681 = vmatpush1.bf16.msra.mxu0 %v1191
    %1682 = vmatprep.subr.bf16.mxu0 %v1196
    %1683 = vmatpush1.bf16.msra.mxu0 %v1195
    %1684 = vmatprep.subr.bf16.mxu0 %v1200
    %1685 = vmatpush1.bf16.msra.mxu0 %v1199
    %1686 = vmatprep.subr.bf16.mxu0 %v1204
    %1687 = vmatpush1.bf16.msra.mxu0 %v1203
    %1688 = vmatprep.subr.bf16.mxu0 %v1208
    %1689 = vmatpush1.bf16.msra.mxu0 %v1207
    %1690 = vmatprep.subr.bf16.mxu0 %v1212
    %1691 = vmatpush1.bf16.msra.mxu0 %v1211
    %1692 = vmatprep.subr.bf16.mxu0 %v1216
    %1693 = vmatpush1.bf16.msra.mxu0 %v1215
    %1694 = vmatprep.subr.bf16.mxu0 %v1220
    %1695 = vmatpush1.bf16.msra.mxu0 %v1219
    %1696 = vmatprep.subr.bf16.mxu0 %v1224
    %1697 = vmatpush1.bf16.msra.mxu0 %v1223
    %1698 = vmatprep.subr.bf16.mxu0 %v1228
    %1699 = vmatpush1.bf16.msra.mxu0 %v1227
    %1700 = vmatprep.subr.bf16.mxu0 %v1232
    %1701 = vmatpush1.bf16.msra.mxu0 %v1231
    %1702 = vmatprep.subr.bf16.mxu0 %v1236
    %1703 = vmatpush1.bf16.msra.mxu0 %v1235
    %1704 = vmatprep.subr.bf16.mxu0 %v1240
    %1705 = vmatpush1.bf16.msra.mxu0 %v1239
    %1706 = vmatprep.subr.bf16.mxu0 %v1244
    %1707 = vmatpush1.bf16.msra.mxu0 %v1243
    %1708 = vmatprep.subr.bf16.mxu0 %v1248
    %1709 = vmatpush1.bf16.msra.mxu0 %v1247
    %1710 = vmatprep.subr.bf16.mxu0 %v1252
    %1711 = vmatpush1.bf16.msra.mxu0 %v1251
    %1712 = vmatprep.mubr.bf16.mxu0 %v76
    %1713 = vmatmul.mubr.bf16.gmra.mrb[0].mxu0 %v75
    %v1714 = vpop.f32.mrb[0].mxu0
    %v1715 = vadd.f32 %v1674, %v1714
    %v1716 = vpop.f32.mrb[0].mxu0
    %v1717 = vadd.f32 %v1676, %v1716
    %v1718 = vpop.f32.mrb[0].mxu0
    %v1719 = vpop.f32.mrb[0].mxu0
    %1720 = vdwg.mxu0
    %1721 = vmatprep.subr.bf16.mxu0 %v1256
    %1722 = vmatpush1.bf16.msra.mxu0 %v1255
    %1723 = vmatprep.subr.bf16.mxu0 %v1260
    %1724 = vmatpush1.bf16.msra.mxu0 %v1259
    %1725 = vmatprep.subr.bf16.mxu0 %v1264
    %1726 = vmatpush1.bf16.msra.mxu0 %v1263
    %1727 = vmatprep.subr.bf16.mxu0 %v1268
    %1728 = vmatpush1.bf16.msra.mxu0 %v1267
    %1729 = vmatprep.subr.bf16.mxu0 %v1272
    %1730 = vmatpush1.bf16.msra.mxu0 %v1271
    %1731 = vmatprep.subr.bf16.mxu0 %v1276
    %1732 = vmatpush1.bf16.msra.mxu0 %v1275
    %1733 = vmatprep.subr.bf16.mxu0 %v1280
    %1734 = vmatpush1.bf16.msra.mxu0 %v1279
    %1735 = vmatprep.subr.bf16.mxu0 %v1284
    %1736 = vmatpush1.bf16.msra.mxu0 %v1283
    %1737 = vmatprep.subr.bf16.mxu0 %v1288
    %1738 = vmatpush1.bf16.msra.mxu0 %v1287
    %1739 = vmatprep.subr.bf16.mxu0 %v1292
    %1740 = vmatpush1.bf16.msra.mxu0 %v1291
    %1741 = vmatprep.subr.bf16.mxu0 %v1296
    %1742 = vmatpush1.bf16.msra.mxu0 %v1295
    %1743 = vmatprep.subr.bf16.mxu0 %v1300
    %1744 = vmatpush1.bf16.msra.mxu0 %v1299
    %1745 = vmatprep.subr.bf16.mxu0 %v1304
    %1746 = vmatpush1.bf16.msra.mxu0 %v1303
    %1747 = vmatprep.subr.bf16.mxu0 %v1308
    %1748 = vmatpush1.bf16.msra.mxu0 %v1307
    %1749 = vmatprep.subr.bf16.mxu0 %v1312
    %1750 = vmatpush1.bf16.msra.mxu0 %v1311
    %1751 = vmatprep.subr.bf16.mxu0 %v1316
    %1752 = vmatpush1.bf16.msra.mxu0 %v1315
    %1753 = vmatprep.mubr.bf16.mxu0 %v78
    %1754 = vmatmul.mubr.bf16.gmra.mrb[0].mxu0 %v77
    %v1755 = vpop.f32.mrb[0].mxu0
    %v1756 = vadd.f32 %v1715, %v1755
    %v1757 = vpop.f32.mrb[0].mxu0
    %v1758 = vadd.f32 %v1717, %v1757
    %v1759 = vpop.f32.mrb[0].mxu0
    %v1760 = vpop.f32.mrb[0].mxu0
    %1761 = vdwg.mxu0
    %1762 = vmatprep.subr.bf16.mxu0 %v1320
    %1763 = vmatpush1.bf16.msra.mxu0 %v1319
    %1764 = vmatprep.subr.bf16.mxu0 %v1324
    %1765 = vmatpush1.bf16.msra.mxu0 %v1323
    %1766 = vmatprep.subr.bf16.mxu0 %v1328
    %1767 = vmatpush1.bf16.msra.mxu0 %v1327
    %1768 = vmatprep.subr.bf16.mxu0 %v1332
    %1769 = vmatpush1.bf16.msra.mxu0 %v1331
    %1770 = vmatprep.subr.bf16.mxu0 %v1336
    %1771 = vmatpush1.bf16.msra.mxu0 %v1335
    %1772 = vmatprep.subr.bf16.mxu0 %v1340
    %1773 = vmatpush1.bf16.msra.mxu0 %v1339
    %1774 = vmatprep.subr.bf16.mxu0 %v1344
    %1775 = vmatpush1.bf16.msra.mxu0 %v1343
    %1776 = vmatprep.subr.bf16.mxu0 %v1348
    %1777 = vmatpush1.bf16.msra.mxu0 %v1347
    %1778 = vmatprep.subr.bf16.mxu0 %v1352
    %1779 = vmatpush1.bf16.msra.mxu0 %v1351
    %1780 = vmatprep.subr.bf16.mxu0 %v1356
    %1781 = vmatpush1.bf16.msra.mxu0 %v1355
    %1782 = vmatprep.subr.bf16.mxu0 %v1360
    %1783 = vmatpush1.bf16.msra.mxu0 %v1359
    %1784 = vmatprep.subr.bf16.mxu0 %v1364
    %1785 = vmatpush1.bf16.msra.mxu0 %v1363
    %1786 = vmatprep.subr.bf16.mxu0 %v1368
    %1787 = vmatpush1.bf16.msra.mxu0 %v1367
    %1788 = vmatprep.subr.bf16.mxu0 %v1372
    %1789 = vmatpush1.bf16.msra.mxu0 %v1371
    %1790 = vmatprep.subr.bf16.mxu0 %v1376
    %1791 = vmatpush1.bf16.msra.mxu0 %v1375
    %1792 = vmatprep.subr.bf16.mxu0 %v1380
    %1793 = vmatpush1.bf16.msra.mxu0 %v1379
    %1794 = vmatprep.mubr.bf16.mxu0 %v80
    %1795 = vmatmul.mubr.bf16.gmra.mrb[0].mxu0 %v79
    %v1796 = vpop.f32.mrb[0].mxu0
    %v1797 = vadd.f32 %v1756, %v1796
    %v1798 = vpop.f32.mrb[0].mxu0
    %v1799 = vadd.f32 %v1758, %v1798
    %v1800 = vpop.f32.mrb[0].mxu0
    %v1801 = vpop.f32.mrb[0].mxu0
    %1802 = vdwg.mxu0
    %1803 = vmatprep.subr.bf16.mxu0 %v1130
    %1804 = vmatpush1.bf16.msra.mxu0 %v1129
    %1805 = vmatprep.subr.bf16.mxu0 %v1134
    %1806 = vmatpush1.bf16.msra.mxu0 %v1133
    %1807 = vmatprep.subr.bf16.mxu0 %v1138
    %1808 = vmatpush1.bf16.msra.mxu0 %v1137
    %1809 = vmatprep.subr.bf16.mxu0 %v1142
    %1810 = vmatpush1.bf16.msra.mxu0 %v1141
    %1811 = vmatprep.subr.bf16.mxu0 %v1146
    %1812 = vmatpush1.bf16.msra.mxu0 %v1145
    %1813 = vmatprep.subr.bf16.mxu0 %v1150
    %1814 = vmatpush1.bf16.msra.mxu0 %v1149
    %1815 = vmatprep.subr.bf16.mxu0 %v1154
    %1816 = vmatpush1.bf16.msra.mxu0 %v1153
    %1817 = vmatprep.subr.bf16.mxu0 %v1158
    %1818 = vmatpush1.bf16.msra.mxu0 %v1157
    %1819 = vmatprep.subr.bf16.mxu0 %v1162
    %1820 = vmatpush1.bf16.msra.mxu0 %v1161
    %1821 = vmatprep.subr.bf16.mxu0 %v1166
    %1822 = vmatpush1.bf16.msra.mxu0 %v1165
    %1823 = vmatprep.subr.bf16.mxu0 %v1170
    %1824 = vmatpush1.bf16.msra.mxu0 %v1169
    %1825 = vmatprep.subr.bf16.mxu0 %v1174
    %1826 = vmatpush1.bf16.msra.mxu0 %v1173
    %1827 = vmatprep.subr.bf16.mxu0 %v1178
    %1828 = vmatpush1.bf16.msra.mxu0 %v1177
    %1829 = vmatprep.subr.bf16.mxu0 %v1182
    %1830 = vmatpush1.bf16.msra.mxu0 %v1181
    %1831 = vmatprep.subr.bf16.mxu0 %v1186
    %1832 = vmatpush1.bf16.msra.mxu0 %v1185
    %1833 = vmatprep.subr.bf16.mxu0 %v1190
    %1834 = vmatpush1.bf16.msra.mxu0 %v1189
    %1835 = vmatprep.mubr.bf16.mxu0 %v74
    %1836 = vmatmul.mubr.bf16.gmra.mrb[0].mxu0 %v73
    %v1837 = vpop.f32.mrb[0].mxu0
    %v1838 = vadd.f32 %v350, %v1837
    %v1839 = vpop.f32.mrb[0].mxu0
    %v1840 = vadd.f32 %v354, %v1839
    %v1841 = vpop.f32.mrb[0].mxu0
    %v1842 = vpop.f32.mrb[0].mxu0
    %1843 = vdwg.mxu0
    %1844 = vmatprep.subr.bf16.mxu0 %v1194
    %1845 = vmatpush1.bf16.msra.mxu0 %v1193
    %1846 = vmatprep.subr.bf16.mxu0 %v1198
    %1847 = vmatpush1.bf16.msra.mxu0 %v1197
    %1848 = vmatprep.subr.bf16.mxu0 %v1202
    %1849 = vmatpush1.bf16.msra.mxu0 %v1201
    %1850 = vmatprep.subr.bf16.mxu0 %v1206
    %1851 = vmatpush1.bf16.msra.mxu0 %v1205
    %1852 = vmatprep.subr.bf16.mxu0 %v1210
    %1853 = vmatpush1.bf16.msra.mxu0 %v1209
    %1854 = vmatprep.subr.bf16.mxu0 %v1214
    %1855 = vmatpush1.bf16.msra.mxu0 %v1213
    %1856 = vmatprep.subr.bf16.mxu0 %v1218
    %1857 = vmatpush1.bf16.msra.mxu0 %v1217
    %1858 = vmatprep.subr.bf16.mxu0 %v1222
    %1859 = vmatpush1.bf16.msra.mxu0 %v1221
    %1860 = vmatprep.subr.bf16.mxu0 %v1226
    %1861 = vmatpush1.bf16.msra.mxu0 %v1225
    %1862 = vmatprep.subr.bf16.mxu0 %v1230
    %1863 = vmatpush1.bf16.msra.mxu0 %v1229
    %1864 = vmatprep.subr.bf16.mxu0 %v1234
    %1865 = vmatpush1.bf16.msra.mxu0 %v1233
    %1866 = vmatprep.subr.bf16.mxu0 %v1238
    %1867 = vmatpush1.bf16.msra.mxu0 %v1237
    %1868 = vmatprep.subr.bf16.mxu0 %v1242
    %1869 = vmatpush1.bf16.msra.mxu0 %v1241
    %1870 = vmatprep.subr.bf16.mxu0 %v1246
    %1871 = vmatpush1.bf16.msra.mxu0 %v1245
    %1872 = vmatprep.subr.bf16.mxu0 %v1250
    %1873 = vmatpush1.bf16.msra.mxu0 %v1249
    %1874 = vmatprep.subr.bf16.mxu0 %v1254
    %1875 = vmatpush1.bf16.msra.mxu0 %v1253
    %1876 = vmatprep.mubr.bf16.mxu0 %v76
    %1877 = vmatmul.mubr.bf16.gmra.mrb[0].mxu0 %v75
    %v1878 = vpop.f32.mrb[0].mxu0
    %v1879 = vadd.f32 %v1838, %v1878
    %v1880 = vpop.f32.mrb[0].mxu0
    %v1881 = vadd.f32 %v1840, %v1880
    %v1882 = vpop.f32.mrb[0].mxu0
    %v1883 = vpop.f32.mrb[0].mxu0
    %1884 = vdwg.mxu0
    %1885 = vmatprep.subr.bf16.mxu0 %v1258
    %1886 = vmatpush1.bf16.msra.mxu0 %v1257
    %1887 = vmatprep.subr.bf16.mxu0 %v1262
    %1888 = vmatpush1.bf16.msra.mxu0 %v1261
    %1889 = vmatprep.subr.bf16.mxu0 %v1266
    %1890 = vmatpush1.bf16.msra.mxu0 %v1265
    %1891 = vmatprep.subr.bf16.mxu0 %v1270
    %1892 = vmatpush1.bf16.msra.mxu0 %v1269
    %1893 = vmatprep.subr.bf16.mxu0 %v1274
    %1894 = vmatpush1.bf16.msra.mxu0 %v1273
    %1895 = vmatprep.subr.bf16.mxu0 %v1278
    %1896 = vmatpush1.bf16.msra.mxu0 %v1277
    %1897 = vmatprep.subr.bf16.mxu0 %v1282
    %1898 = vmatpush1.bf16.msra.mxu0 %v1281
    %1899 = vmatprep.subr.bf16.mxu0 %v1286
    %1900 = vmatpush1.bf16.msra.mxu0 %v1285
    %1901 = vmatprep.subr.bf16.mxu0 %v1290
    %1902 = vmatpush1.bf16.msra.mxu0 %v1289
    %1903 = vmatprep.subr.bf16.mxu0 %v1294
    %1904 = vmatpush1.bf16.msra.mxu0 %v1293
    %1905 = vmatprep.subr.bf16.mxu0 %v1298
    %1906 = vmatpush1.bf16.msra.mxu0 %v1297
    %1907 = vmatprep.subr.bf16.mxu0 %v1302
    %1908 = vmatpush1.bf16.msra.mxu0 %v1301
    %1909 = vmatprep.subr.bf16.mxu0 %v1306
    %1910 = vmatpush1.bf16.msra.mxu0 %v1305
    %1911 = vmatprep.subr.bf16.mxu0 %v1310
    %1912 = vmatpush1.bf16.msra.mxu0 %v1309
    %1913 = vmatprep.subr.bf16.mxu0 %v1314
    %1914 = vmatpush1.bf16.msra.mxu0 %v1313
    %1915 = vmatprep.subr.bf16.mxu0 %v1318
    %1916 = vmatpush1.bf16.msra.mxu0 %v1317
    %1917 = vmatprep.mubr.bf16.mxu0 %v78
    %1918 = vmatmul.mubr.bf16.gmra.mrb[0].mxu0 %v77
    %v1919 = vpop.f32.mrb[0].mxu0
    %v1920 = vadd.f32 %v1879, %v1919
    %v1921 = vpop.f32.mrb[0].mxu0
    %v1922 = vadd.f32 %v1881, %v1921
    %v1923 = vpop.f32.mrb[0].mxu0
    %v1924 = vpop.f32.mrb[0].mxu0
    %1925 = vdwg.mxu0
    %1926 = vmatprep.subr.bf16.mxu0 %v1322
    %1927 = vmatpush1.bf16.msra.mxu0 %v1321
    %1928 = vmatprep.subr.bf16.mxu0 %v1326
    %1929 = vmatpush1.bf16.msra.mxu0 %v1325
    %1930 = vmatprep.subr.bf16.mxu0 %v1330
    %1931 = vmatpush1.bf16.msra.mxu0 %v1329
    %1932 = vmatprep.subr.bf16.mxu0 %v1334
    %1933 = vmatpush1.bf16.msra.mxu0 %v1333
    %1934 = vmatprep.subr.bf16.mxu0 %v1338
    %1935 = vmatpush1.bf16.msra.mxu0 %v1337
    %1936 = vmatprep.subr.bf16.mxu0 %v1342
    %1937 = vmatpush1.bf16.msra.mxu0 %v1341
    %1938 = vmatprep.subr.bf16.mxu0 %v1346
    %1939 = vmatpush1.bf16.msra.mxu0 %v1345
    %1940 = vmatprep.subr.bf16.mxu0 %v1350
    %1941 = vmatpush1.bf16.msra.mxu0 %v1349
    %1942 = vmatprep.subr.bf16.mxu0 %v1354
    %1943 = vmatpush1.bf16.msra.mxu0 %v1353
    %1944 = vmatprep.subr.bf16.mxu0 %v1358
    %1945 = vmatpush1.bf16.msra.mxu0 %v1357
    %1946 = vmatprep.subr.bf16.mxu0 %v1362
    %1947 = vmatpush1.bf16.msra.mxu0 %v1361
    %1948 = vmatprep.subr.bf16.mxu0 %v1366
    %1949 = vmatpush1.bf16.msra.mxu0 %v1365
    %1950 = vmatprep.subr.bf16.mxu0 %v1370
    %1951 = vmatpush1.bf16.msra.mxu0 %v1369
    %1952 = vmatprep.subr.bf16.mxu0 %v1374
    %1953 = vmatpush1.bf16.msra.mxu0 %v1373
    %1954 = vmatprep.subr.bf16.mxu0 %v1378
    %1955 = vmatpush1.bf16.msra.mxu0 %v1377
    %1956 = vmatprep.subr.bf16.mxu0 %v1382
    %1957 = vmatpush1.bf16.msra.mxu0 %v1381
    %1958 = vmatprep.mubr.bf16.mxu0 %v80
    %1959 = vmatmul.mubr.bf16.gmra.mrb[0].mxu0 %v79
    %v1960 = vpop.f32.mrb[0].mxu0
    %v1961 = vadd.f32 %v1920, %v1960
    %v1962 = vpop.f32.mrb[0].mxu0
    %v1963 = vadd.f32 %v1922, %v1962
    %v1964 = vpop.f32.mrb[0].mxu0
    %v1965 = vpop.f32.mrb[0].mxu0
    %1966 = vdwg.mxu0
    %v1967 = vmax.f32 %v1797, 0.0
    %v1968 = vmax.f32 %v1799, 0.0
    %v1969 = vmax.f32 %v1961, 0.0
    %v1970 = vmax.f32 %v1963, 0.0
    %v1971 = vld [vmem:[%s3] sm:$0xff]
    %v1972 = vld [vmem:[%s3 + $0x8] sm:$0xff]
    %v1973 = vld [vmem:[%s3 + $0x10] sm:$0xff]
    %v1974 = vld [vmem:[%s3 + $0x18] sm:$0xff]
    %v1975 = vld [vmem:[%s3 + $0x20] sm:$0xff]
    %v1976 = vld [vmem:[%s3 + $0x28] sm:$0xff]
    %v1977 = vld [vmem:[%s3 + $0x30] sm:$0xff]
    %v1978 = vld [vmem:[%s3 + $0x38] sm:$0xff]
    %v1979 = vld [vmem:[%s3 + $0x40] sm:$0xff]
    %v1980 = vld [vmem:[%s3 + $0x48] sm:$0xff]
    %v1981 = vld [vmem:[%s3 + $0x50] sm:$0xff]
    %v1982 = vld [vmem:[%s3 + $0x58] sm:$0xff]
    %v1983 = vld [vmem:[%s3 + $0x60] sm:$0xff]
    %v1984 = vld [vmem:[%s3 + $0x68] sm:$0xff]
    %v1985 = vld [vmem:[%s3 + $0x70] sm:$0xff]
    %v1986 = vld [vmem:[%s3 + $0x78] sm:$0xff]
    %v1987 = vld [vmem:[%s3 + $0x80] sm:$0xff]
    %v1988 = vld [vmem:[%s3 + $0x88] sm:$0xff]
    %v1989 = vld [vmem:[%s3 + $0x90] sm:$0xff]
    %v1990 = vld [vmem:[%s3 + $0x98] sm:$0xff]
    %v1991 = vld [vmem:[%s3 + $0xa0] sm:$0xff]
    %v1992 = vld [vmem:[%s3 + $0xa8] sm:$0xff]
    %v1993 = vld [vmem:[%s3 + $0xb0] sm:$0xff]
    %v1994 = vld [vmem:[%s3 + $0xb8] sm:$0xff]
    %v1995 = vld [vmem:[%s3 + $0xc0] sm:$0xff]
    %v1996 = vld [vmem:[%s3 + $0xc8] sm:$0xff]
    %v1997 = vld [vmem:[%s3 + $0xd0] sm:$0xff]
    %v1998 = vld [vmem:[%s3 + $0xd8] sm:$0xff]
    %v1999 = vld [vmem:[%s3 + $0xe0] sm:$0xff]
    %v2000 = vld [vmem:[%s3 + $0xe8] sm:$0xff]
    %v2001 = vld [vmem:[%s3 + $0xf0] sm:$0xff]
    %v2002 = vld [vmem:[%s3 + $0xf8] sm:$0xff]
    %v2003 = vld [vmem:[%s3 + $0x100] sm:$0xff]
    %v2004 = vld [vmem:[%s3 + $0x108] sm:$0xff]
    %v2005 = vld [vmem:[%s3 + $0x110] sm:$0xff]
    %v2006 = vld [vmem:[%s3 + $0x118] sm:$0xff]
    %v2007 = vld [vmem:[%s3 + $0x120] sm:$0xff]
    %v2008 = vld [vmem:[%s3 + $0x128] sm:$0xff]
    %v2009 = vld [vmem:[%s3 + $0x130] sm:$0xff]
    %v2010 = vld [vmem:[%s3 + $0x138] sm:$0xff]
    %v2011 = vld [vmem:[%s3 + $0x140] sm:$0xff]
    %v2012 = vld [vmem:[%s3 + $0x148] sm:$0xff]
    %v2013 = vld [vmem:[%s3 + $0x150] sm:$0xff]
    %v2014 = vld [vmem:[%s3 + $0x158] sm:$0xff]
    %v2015 = vld [vmem:[%s3 + $0x160] sm:$0xff]
    %v2016 = vld [vmem:[%s3 + $0x168] sm:$0xff]
    %v2017 = vld [vmem:[%s3 + $0x170] sm:$0xff]
    %v2018 = vld [vmem:[%s3 + $0x178] sm:$0xff]
    %v2019 = vld [vmem:[%s3 + $0x180] sm:$0xff]
    %v2020 = vld [vmem:[%s3 + $0x188] sm:$0xff]
    %v2021 = vld [vmem:[%s3 + $0x190] sm:$0xff]
    %v2022 = vld [vmem:[%s3 + $0x198] sm:$0xff]
    %v2023 = vld [vmem:[%s3 + $0x1a0] sm:$0xff]
    %v2024 = vld [vmem:[%s3 + $0x1a8] sm:$0xff]
    %v2025 = vld [vmem:[%s3 + $0x1b0] sm:$0xff]
    %v2026 = vld [vmem:[%s3 + $0x1b8] sm:$0xff]
    %v2027 = vld [vmem:[%s3 + $0x1c0] sm:$0xff]
    %v2028 = vld [vmem:[%s3 + $0x1c8] sm:$0xff]
    %v2029 = vld [vmem:[%s3 + $0x1d0] sm:$0xff]
    %v2030 = vld [vmem:[%s3 + $0x1d8] sm:$0xff]
    %v2031 = vld [vmem:[%s3 + $0x1e0] sm:$0xff]
    %v2032 = vld [vmem:[%s3 + $0x1e8] sm:$0xff]
    %v2033 = vld [vmem:[%s3 + $0x1f0] sm:$0xff]
    %v2034 = vld [vmem:[%s3 + $0x1f8] sm:$0xff]
    %v2035 = vld [vmem:[%s3 + $0x200] sm:$0xff]
    %v2036 = vld [vmem:[%s3 + $0x208] sm:$0xff]
    %v2037 = vld [vmem:[%s3 + $0x210] sm:$0xff]
    %v2038 = vld [vmem:[%s3 + $0x218] sm:$0xff]
    %v2039 = vld [vmem:[%s3 + $0x220] sm:$0xff]
    %v2040 = vld [vmem:[%s3 + $0x228] sm:$0xff]
    %v2041 = vld [vmem:[%s3 + $0x230] sm:$0xff]
    %v2042 = vld [vmem:[%s3 + $0x238] sm:$0xff]
    %v2043 = vld [vmem:[%s3 + $0x240] sm:$0xff]
    %v2044 = vld [vmem:[%s3 + $0x248] sm:$0xff]
    %v2045 = vld [vmem:[%s3 + $0x250] sm:$0xff]
    %v2046 = vld [vmem:[%s3 + $0x258] sm:$0xff]
    %v2047 = vld [vmem:[%s3 + $0x260] sm:$0xff]
    %v2048 = vld [vmem:[%s3 + $0x268] sm:$0xff]
    %v2049 = vld [vmem:[%s3 + $0x270] sm:$0xff]
    %v2050 = vld [vmem:[%s3 + $0x278] sm:$0xff]
    %v2051 = vld [vmem:[%s3 + $0x280] sm:$0xff]
    %v2052 = vld [vmem:[%s3 + $0x288] sm:$0xff]
    %v2053 = vld [vmem:[%s3 + $0x290] sm:$0xff]
    %v2054 = vld [vmem:[%s3 + $0x298] sm:$0xff]
    %v2055 = vld [vmem:[%s3 + $0x2a0] sm:$0xff]
    %v2056 = vld [vmem:[%s3 + $0x2a8] sm:$0xff]
    %v2057 = vld [vmem:[%s3 + $0x2b0] sm:$0xff]
    %v2058 = vld [vmem:[%s3 + $0x2b8] sm:$0xff]
    %v2059 = vld [vmem:[%s3 + $0x2c0] sm:$0xff]
    %v2060 = vld [vmem:[%s3 + $0x2c8] sm:$0xff]
    %v2061 = vld [vmem:[%s3 + $0x2d0] sm:$0xff]
    %v2062 = vld [vmem:[%s3 + $0x2d8] sm:$0xff]
    %v2063 = vld [vmem:[%s3 + $0x2e0] sm:$0xff]
    %v2064 = vld [vmem:[%s3 + $0x2e8] sm:$0xff]
    %v2065 = vld [vmem:[%s3 + $0x2f0] sm:$0xff]
    %v2066 = vld [vmem:[%s3 + $0x2f8] sm:$0xff]
    %v2067 = vld [vmem:[%s3 + $0x300] sm:$0xff]
    %v2068 = vld [vmem:[%s3 + $0x308] sm:$0xff]
    %v2069 = vld [vmem:[%s3 + $0x310] sm:$0xff]
    %v2070 = vld [vmem:[%s3 + $0x318] sm:$0xff]
    %v2071 = vld [vmem:[%s3 + $0x320] sm:$0xff]
    %v2072 = vld [vmem:[%s3 + $0x328] sm:$0xff]
    %v2073 = vld [vmem:[%s3 + $0x330] sm:$0xff]
    %v2074 = vld [vmem:[%s3 + $0x338] sm:$0xff]
    %v2075 = vld [vmem:[%s3 + $0x340] sm:$0xff]
    %v2076 = vld [vmem:[%s3 + $0x348] sm:$0xff]
    %v2077 = vld [vmem:[%s3 + $0x350] sm:$0xff]
    %v2078 = vld [vmem:[%s3 + $0x358] sm:$0xff]
    %v2079 = vld [vmem:[%s3 + $0x360] sm:$0xff]
    %v2080 = vld [vmem:[%s3 + $0x368] sm:$0xff]
    %v2081 = vld [vmem:[%s3 + $0x370] sm:$0xff]
    %v2082 = vld [vmem:[%s3 + $0x378] sm:$0xff]
    %v2083 = vld [vmem:[%s3 + $0x380] sm:$0xff]
    %v2084 = vld [vmem:[%s3 + $0x388] sm:$0xff]
    %v2085 = vld [vmem:[%s3 + $0x390] sm:$0xff]
    %v2086 = vld [vmem:[%s3 + $0x398] sm:$0xff]
    %v2087 = vld [vmem:[%s3 + $0x3a0] sm:$0xff]
    %v2088 = vld [vmem:[%s3 + $0x3a8] sm:$0xff]
    %v2089 = vld [vmem:[%s3 + $0x3b0] sm:$0xff]
    %v2090 = vld [vmem:[%s3 + $0x3b8] sm:$0xff]
    %v2091 = vld [vmem:[%s3 + $0x3c0] sm:$0xff]
    %v2092 = vld [vmem:[%s3 + $0x3c8] sm:$0xff]
    %v2093 = vld [vmem:[%s3 + $0x3d0] sm:$0xff]
    %v2094 = vld [vmem:[%s3 + $0x3d8] sm:$0xff]
    %v2095 = vld [vmem:[%s3 + $0x3e0] sm:$0xff]
    %v2096 = vld [vmem:[%s3 + $0x3e8] sm:$0xff]
    %v2097 = vld [vmem:[%s3 + $0x3f0] sm:$0xff]
    %v2098 = vld [vmem:[%s3 + $0x3f8] sm:$0xff]
    %v2099 = vld [vmem:[%s4] sm:$0x3]
    %v2101 = vlaneseq
    %v2102 = vshrl.u32 %v2101, 7
    %v2103 = vsub.s32 0, %v2102
    %v2104 = vrot.slane %v2099, %v2103
    %v2105 = vlaneseq
    %v2106 = vshrl.u32 %v2105, 7
    %v2107 = vsub.s32 1, %v2106
    %v2108 = vrot.slane %v2099, %v2107
    %2111 = vmatprep.subr.mxu0 %v1972
    %2112 = vmatpush1.msra.mxu0 %v1971
    %2113 = vmatprep.subr.mxu0 %v1974
    %2114 = vmatpush1.msra.mxu0 %v1973
    %2115 = vmatprep.subr.mxu0 %v1976
    %2116 = vmatpush1.msra.mxu0 %v1975
    %2117 = vmatprep.subr.mxu0 %v1978
    %2118 = vmatpush1.msra.mxu0 %v1977
    %2119 = vmatprep.subr.mxu0 %v1980
    %2120 = vmatpush1.msra.mxu0 %v1979
    %2121 = vmatprep.subr.mxu0 %v1982
    %2122 = vmatpush1.msra.mxu0 %v1981
    %2123 = vmatprep.subr.mxu0 %v1984
    %2124 = vmatpush1.msra.mxu0 %v1983
    %2125 = vmatprep.subr.mxu0 %v1986
    %2126 = vmatpush1.msra.mxu0 %v1985
    %2127 = vmatprep.subr.mxu0 %v1988
    %2128 = vmatpush1.msra.mxu0 %v1987
    %2129 = vmatprep.subr.mxu0 %v1990
    %2130 = vmatpush1.msra.mxu0 %v1989
    %2131 = vmatprep.subr.mxu0 %v1992
    %2132 = vmatpush1.msra.mxu0 %v1991
    %2133 = vmatprep.subr.mxu0 %v1994
    %2134 = vmatpush1.msra.mxu0 %v1993
    %2135 = vmatprep.subr.mxu0 %v1996
    %2136 = vmatpush1.msra.mxu0 %v1995
    %2137 = vmatprep.subr.mxu0 %v1998
    %2138 = vmatpush1.msra.mxu0 %v1997
    %2139 = vmatprep.subr.mxu0 %v2000
    %2140 = vmatpush1.msra.mxu0 %v1999
    %2141 = vmatprep.subr.mxu0 %v2002
    %2142 = vmatpush1.msra.mxu0 %v2001
    %2143 = vmatprep.subr.mxu0 %v2004
    %2144 = vmatpush1.msra.mxu0 %v2003
    %2145 = vmatprep.subr.mxu0 %v2006
    %2146 = vmatpush1.msra.mxu0 %v2005
    %2147 = vmatprep.subr.mxu0 %v2008
    %2148 = vmatpush1.msra.mxu0 %v2007
    %2149 = vmatprep.subr.mxu0 %v2010
    %2150 = vmatpush1.msra.mxu0 %v2009
    %2151 = vmatprep.subr.mxu0 %v2012
    %2152 = vmatpush1.msra.mxu0 %v2011
    %2153 = vmatprep.subr.mxu0 %v2014
    %2154 = vmatpush1.msra.mxu0 %v2013
    %2155 = vmatprep.subr.mxu0 %v2016
    %2156 = vmatpush1.msra.mxu0 %v2015
    %2157 = vmatprep.subr.mxu0 %v2018
    %2158 = vmatpush1.msra.mxu0 %v2017
    %2159 = vmatprep.subr.mxu0 %v2020
    %2160 = vmatpush1.msra.mxu0 %v2019
    %2161 = vmatprep.subr.mxu0 %v2022
    %2162 = vmatpush1.msra.mxu0 %v2021
    %2163 = vmatprep.subr.mxu0 %v2024
    %2164 = vmatpush1.msra.mxu0 %v2023
    %2165 = vmatprep.subr.mxu0 %v2026
    %2166 = vmatpush1.msra.mxu0 %v2025
    %2167 = vmatprep.subr.mxu0 %v2028
    %2168 = vmatpush1.msra.mxu0 %v2027
    %2169 = vmatprep.subr.mxu0 %v2030
    %2170 = vmatpush1.msra.mxu0 %v2029
    %2171 = vmatprep.subr.mxu0 %v2032
    %2172 = vmatpush1.msra.mxu0 %v2031
    %2173 = vmatprep.subr.mxu0 %v2034
    %2174 = vmatpush1.msra.mxu0 %v2033
    %2175 = vmatprep.mubr.f32.mxu0 %v1968
    %2176 = vmatmul.mubr.f32.gmra.mrb[0].mxu0 %v1967
    %v2177 = vpop.f32.mrb[0].mxu0
    %v2178 = vadd.f32 %v2104, %v2177
    %v2179 = vpop.f32.mrb[0].mxu0
    %v2180 = vadd.f32 %v2108, %v2179
    %2181 = vdwg.mxu0
    %2182 = vmatprep.subr.mxu0 %v2036
    %2183 = vmatpush1.msra.mxu0 %v2035
    %2184 = vmatprep.subr.mxu0 %v2038
    %2185 = vmatpush1.msra.mxu0 %v2037
    %2186 = vmatprep.subr.mxu0 %v2040
    %2187 = vmatpush1.msra.mxu0 %v2039
    %2188 = vmatprep.subr.mxu0 %v2042
    %2189 = vmatpush1.msra.mxu0 %v2041
    %2190 = vmatprep.subr.mxu0 %v2044
    %2191 = vmatpush1.msra.mxu0 %v2043
    %2192 = vmatprep.subr.mxu0 %v2046
    %2193 = vmatpush1.msra.mxu0 %v2045
    %2194 = vmatprep.subr.mxu0 %v2048
    %2195 = vmatpush1.msra.mxu0 %v2047
    %2196 = vmatprep.subr.mxu0 %v2050
    %2197 = vmatpush1.msra.mxu0 %v2049
    %2198 = vmatprep.subr.mxu0 %v2052
    %2199 = vmatpush1.msra.mxu0 %v2051
    %2200 = vmatprep.subr.mxu0 %v2054
    %2201 = vmatpush1.msra.mxu0 %v2053
    %2202 = vmatprep.subr.mxu0 %v2056
    %2203 = vmatpush1.msra.mxu0 %v2055
    %2204 = vmatprep.subr.mxu0 %v2058
    %2205 = vmatpush1.msra.mxu0 %v2057
    %2206 = vmatprep.subr.mxu0 %v2060
    %2207 = vmatpush1.msra.mxu0 %v2059
    %2208 = vmatprep.subr.mxu0 %v2062
    %2209 = vmatpush1.msra.mxu0 %v2061
    %2210 = vmatprep.subr.mxu0 %v2064
    %2211 = vmatpush1.msra.mxu0 %v2063
    %2212 = vmatprep.subr.mxu0 %v2066
    %2213 = vmatpush1.msra.mxu0 %v2065
    %2214 = vmatprep.subr.mxu0 %v2068
    %2215 = vmatpush1.msra.mxu0 %v2067
    %2216 = vmatprep.subr.mxu0 %v2070
    %2217 = vmatpush1.msra.mxu0 %v2069
    %2218 = vmatprep.subr.mxu0 %v2072
    %2219 = vmatpush1.msra.mxu0 %v2071
    %2220 = vmatprep.subr.mxu0 %v2074
    %2221 = vmatpush1.msra.mxu0 %v2073
    %2222 = vmatprep.subr.mxu0 %v2076
    %2223 = vmatpush1.msra.mxu0 %v2075
    %2224 = vmatprep.subr.mxu0 %v2078
    %2225 = vmatpush1.msra.mxu0 %v2077
    %2226 = vmatprep.subr.mxu0 %v2080
    %2227 = vmatpush1.msra.mxu0 %v2079
    %2228 = vmatprep.subr.mxu0 %v2082
    %2229 = vmatpush1.msra.mxu0 %v2081
    %2230 = vmatprep.subr.mxu0 %v2084
    %2231 = vmatpush1.msra.mxu0 %v2083
    %2232 = vmatprep.subr.mxu0 %v2086
    %2233 = vmatpush1.msra.mxu0 %v2085
    %2234 = vmatprep.subr.mxu0 %v2088
    %2235 = vmatpush1.msra.mxu0 %v2087
    %2236 = vmatprep.subr.mxu0 %v2090
    %2237 = vmatpush1.msra.mxu0 %v2089
    %2238 = vmatprep.subr.mxu0 %v2092
    %2239 = vmatpush1.msra.mxu0 %v2091
    %2240 = vmatprep.subr.mxu0 %v2094
    %2241 = vmatpush1.msra.mxu0 %v2093
    %2242 = vmatprep.subr.mxu0 %v2096
    %2243 = vmatpush1.msra.mxu0 %v2095
    %2244 = vmatprep.subr.mxu0 %v2098
    %2245 = vmatpush1.msra.mxu0 %v2097
    %2246 = vmatprep.mubr.f32.mxu0 %v1970
    %2247 = vmatmul.mubr.f32.gmra.mrb[0].mxu0 %v1969
    %v2248 = vpop.f32.mrb[0].mxu0
    %v2249 = vadd.f32 %v2178, %v2248
    %v2250 = vpop.f32.mrb[0].mxu0
    %v2251 = vadd.f32 %v2180, %v2250
    %2252 = vdwg.mxu0
    %v2253 = vmax.f32 %v2249, 0.0
    %v2254 = vmax.f32 %v2251, 0.0
    %v2255 = vld [vmem:[%s5] sm:$0xff]
    %v2256 = vld [vmem:[%s5 + $0x8] sm:$0xff]
    %v2257 = vld [vmem:[%s5 + $0x10] sm:$0xff]
    %v2258 = vld [vmem:[%s5 + $0x18] sm:$0xff]
    %v2259 = vld [vmem:[%s5 + $0x20] sm:$0xff]
    %v2260 = vld [vmem:[%s5 + $0x28] sm:$0xff]
    %v2261 = vld [vmem:[%s5 + $0x30] sm:$0xff]
    %v2262 = vld [vmem:[%s5 + $0x38] sm:$0xff]
    %v2263 = vld [vmem:[%s5 + $0x40] sm:$0xff]
    %v2264 = vld [vmem:[%s5 + $0x48] sm:$0xff]
    %v2265 = vld [vmem:[%s5 + $0x50] sm:$0xff]
    %v2266 = vld [vmem:[%s5 + $0x58] sm:$0xff]
    %v2267 = vld [vmem:[%s5 + $0x60] sm:$0xff]
    %v2268 = vld [vmem:[%s5 + $0x68] sm:$0xff]
    %v2269 = vld [vmem:[%s5 + $0x70] sm:$0xff]
    %v2270 = vld [vmem:[%s5 + $0x78] sm:$0xff]
    %v2271 = vld [vmem:[%s5 + $0x80] sm:$0xff]
    %v2272 = vld [vmem:[%s5 + $0x88] sm:$0xff]
    %v2273 = vld [vmem:[%s5 + $0x90] sm:$0xff]
    %v2274 = vld [vmem:[%s5 + $0x98] sm:$0xff]
    %v2275 = vld [vmem:[%s5 + $0xa0] sm:$0xff]
    %v2276 = vld [vmem:[%s5 + $0xa8] sm:$0xff]
    %v2277 = vld [vmem:[%s5 + $0xb0] sm:$0xff]
    %v2278 = vld [vmem:[%s5 + $0xb8] sm:$0xff]
    %v2279 = vld [vmem:[%s5 + $0xc0] sm:$0xff]
    %v2280 = vld [vmem:[%s5 + $0xc8] sm:$0xff]
    %v2281 = vld [vmem:[%s5 + $0xd0] sm:$0xff]
    %v2282 = vld [vmem:[%s5 + $0xd8] sm:$0xff]
    %v2283 = vld [vmem:[%s5 + $0xe0] sm:$0xff]
    %v2284 = vld [vmem:[%s5 + $0xe8] sm:$0xff]
    %v2285 = vld [vmem:[%s5 + $0xf0] sm:$0xff]
    %v2286 = vld [vmem:[%s5 + $0xf8] sm:$0xff]
    %v2287 = vld [vmem:[%s6] sm:$0x1]
    %v2289 = vlaneseq
    %v2290 = vshrl.u32 %v2289, 7
    %v2291 = vsub.s32 0, %v2290
    %v2292 = vrot.slane %v2287, %v2291
    %2294 = vmatprep.subr.mxu0 0.0
    %2295 = vmatpush1.msra.mxu0 %v2255
    %2296 = vmatprep.subr.mxu0 0.0
    %2297 = vmatpush1.msra.mxu0 %v2256
    %2298 = vmatprep.subr.mxu0 0.0
    %2299 = vmatpush1.msra.mxu0 %v2257
    %2300 = vmatprep.subr.mxu0 0.0
    %2301 = vmatpush1.msra.mxu0 %v2258
    %2302 = vmatprep.subr.mxu0 0.0
    %2303 = vmatpush1.msra.mxu0 %v2259
    %2304 = vmatprep.subr.mxu0 0.0
    %2305 = vmatpush1.msra.mxu0 %v2260
    %2306 = vmatprep.subr.mxu0 0.0
    %2307 = vmatpush1.msra.mxu0 %v2261
    %2308 = vmatprep.subr.mxu0 0.0
    %2309 = vmatpush1.msra.mxu0 %v2262
    %2310 = vmatprep.subr.mxu0 0.0
    %2311 = vmatpush1.msra.mxu0 %v2263
    %2312 = vmatprep.subr.mxu0 0.0
    %2313 = vmatpush1.msra.mxu0 %v2264
    %2314 = vmatprep.subr.mxu0 0.0
    %2315 = vmatpush1.msra.mxu0 %v2265
    %2316 = vmatprep.subr.mxu0 0.0
    %2317 = vmatpush1.msra.mxu0 %v2266
    %2318 = vmatprep.subr.mxu0 0.0
    %2319 = vmatpush1.msra.mxu0 %v2267
    %2320 = vmatprep.subr.mxu0 0.0
    %2321 = vmatpush1.msra.mxu0 %v2268
    %2322 = vmatprep.subr.mxu0 0.0
    %2323 = vmatpush1.msra.mxu0 %v2269
    %2324 = vmatprep.subr.mxu0 0.0
    %2325 = vmatpush1.msra.mxu0 %v2270
    %2326 = vmatprep.subr.mxu0 0.0
    %2327 = vmatpush1.msra.mxu0 %v2271
    %2328 = vmatprep.subr.mxu0 0.0
    %2329 = vmatpush1.msra.mxu0 %v2272
    %2330 = vmatprep.subr.mxu0 0.0
    %2331 = vmatpush1.msra.mxu0 %v2273
    %2332 = vmatprep.subr.mxu0 0.0
    %2333 = vmatpush1.msra.mxu0 %v2274
    %2334 = vmatprep.subr.mxu0 0.0
    %2335 = vmatpush1.msra.mxu0 %v2275
    %2336 = vmatprep.subr.mxu0 0.0
    %2337 = vmatpush1.msra.mxu0 %v2276
    %2338 = vmatprep.subr.mxu0 0.0
    %2339 = vmatpush1.msra.mxu0 %v2277
    %2340 = vmatprep.subr.mxu0 0.0
    %2341 = vmatpush1.msra.mxu0 %v2278
    %2342 = vmatprep.subr.mxu0 0.0
    %2343 = vmatpush1.msra.mxu0 %v2279
    %2344 = vmatprep.subr.mxu0 0.0
    %2345 = vmatpush1.msra.mxu0 %v2280
    %2346 = vmatprep.subr.mxu0 0.0
    %2347 = vmatpush1.msra.mxu0 %v2281
    %2348 = vmatprep.subr.mxu0 0.0
    %2349 = vmatpush1.msra.mxu0 %v2282
    %2350 = vmatprep.subr.mxu0 0.0
    %2351 = vmatpush1.msra.mxu0 %v2283
    %2352 = vmatprep.subr.mxu0 0.0
    %2353 = vmatpush1.msra.mxu0 %v2284
    %2354 = vmatprep.subr.mxu0 0.0
    %2355 = vmatpush1.msra.mxu0 %v2285
    %2356 = vmatprep.subr.mxu0 0.0
    %2357 = vmatpush1.msra.mxu0 %v2286
    %2358 = vmatprep.mubr.f32.mxu0 %v2254
    %2359 = vmatmul.mubr.f32.gmra.mrb[0].mxu0 %v2253
    %v2360 = vpop.f32.mrb[0].mxu0
    %v2361 = vadd.f32 %v2292, %v2360
    %v2362 = vpop.f32.mrb[0].mxu0
    %2363 = vdwg.mxu0
    %vm2364 = vcmask 320512
    %v2365 = vsel %vm2364, %v2361, -inf
    %2366 = vmax.xlane.f32.xlu0 %v2365
    %v2367 = vpop.xlane.xlu0 %2366
    %v2368 = vsub.f32 %v2361, %v2367
    %v2369 = vmul.f32 %v2368, 1.442695
    %v2370 = vpow.pop %v2369
    %v2371 = vsel %vm2364, %v2370, 0.0
    %2372 = vadd.xlane.f32.xlu0 %v2371
    %v2373 = vpop.xlane.xlu0 %2372
    %v2374 = vlog2.pop %v2373
    %v2375 = vmul.f32 %v2374, 0.6931472
    %v2376 = vsub.f32 %v2368, %v2375
    %2377 = vst.msk [vmem:[#allocation2] sm:$0x3] %vm2364, %v2376
    // Predicated region
    $region30: #{pointnet_basic_forward.3} parent=1 // pred_check
      _
    $region31: #{pointnet_basic_forward.3} parent=1 // pred_check_branch
      %2379 = sbr.rel (0) target = $region33
    $region32: #{pointnet_basic_forward.3} parent=1 // pred_region
      %s2381 = ssub.s32 32, 32
      %2382 = vsyncadd [#allocation3], %s2381
      %s2384 = sshll.u32 [#allocation2], 4
      %s2385 = int_to_ptr.vmem [resolvable:$true] %s2384
      %2387 = dma.vmem_to_hbm [thread:$0]  %s2385, 32, %s7, [#allocation3]
    $region33: #{pointnet_basic_forward.3} parent=1 // pred_fallthru
      _
    // Predicated region
    $region34: #{pointnet_basic_forward.3} parent=1 // pred_check
      _
    $region35: #{pointnet_basic_forward.3} parent=1 // pred_check_branch
      %2389 = sbr.rel (0) target = $region37
    $region36: #{pointnet_basic_forward.3} parent=1 // pred_region
      %2390 = dma.done [#allocation3], 32
    $region37: #{pointnet_basic_forward.3} parent=1 // pred_fallthru
      _
    %2391 = vsyncpa [#allocation3], 1

// kernel: pointnet_basic_forward.2
$region0: #{pointnet_basic_forward.2}
  #allocation0 [shape = 'u32[]', space=smem, size = 0x4, offset = 0x4, fixed_abs, tag = 'smem constant byte address 0x4 - core index']
  #allocation1 [shape = 'u32[144,128]{1,0:T(1,128)}', space=vmem, size = 0x12000, scoped, tag = 'internal scratch']
  %s0 = inlined_call_operand.vmem [shape: f32[2,1024,3], index: 0, kind: input, shape index: {}]
  %s1 = inlined_call_operand.vmem [shape: f32[3,64], index: 1, kind: input, shape index: {}]
  %s2 = inlined_call_operand.vmem [shape: f32[1,64], index: 2, kind: input, shape index: {}]
  %s3 = inlined_call_operand.vmem [shape: f32[64,64], index: 3, kind: input, shape index: {}]
  %s4 = inlined_call_operand.vmem [shape: f32[1,64], index: 4, kind: input, shape index: {}]
  %s5 = inlined_call_operand.vmem [shape: f32[64,64], index: 5, kind: input, shape index: {}]
  %s6 = inlined_call_operand.vmem [shape: f32[1,64], index: 6, kind: input, shape index: {}]
  %s7 = inlined_call_operand.vmem [shape: f32[64,128], index: 7, kind: input, shape index: {}]
  %s8 = inlined_call_operand.vmem [shape: f32[1,128], index: 8, kind: input, shape index: {}]
  %s9 = inlined_call_operand.vmem [shape: bf16[128,1024], index: 9, kind: input, shape index: {}]
  %s10 = inlined_call_operand.vmem [shape: f32[1,1024], index: 10, kind: input, shape index: {}]
  %s11 = inlined_call_operand.vmem [shape: f32[2,1,1024], index: 11, kind: output, shape index: {}]
  %s12 = sld [smem:[#allocation0]]
  $region81: #{pointnet_basic_forward.2} parent=0
    _
  %s14 = ssub.s32 1, %s12
  %s15 = scalar_select 0, %s14, %s12
  loop: start=0, step=1, limit=6
  $region2: #{pointnet_basic_forward.2} parent=0 // loop_pre_header
    _
  $region3: #{pointnet_basic_forward.2} parent=0 // loop_header
    %s17 = sphi 0, %s21
    %p18 = scmp.ge.s32.totalorder %s17, 6
    %s24 = sphi 0, %s36
    %s25 = sphi 0, %s32
    %s26 = sphi 0, %s24
    %s27 = sphi 0, %s25
    %s28 = sphi 0, %s26
    %s29 = sphi 0, %s27
    %s41 = sphi 0, %s43
    %s44 = sphi 0, %s41
    %s45 = sphi 0, %s44
    %s61 = sphi 0, %s45
    %s65 = sphi 0, %s65
    %s67 = sphi 0, %s65
    %s68 = sphi 0, %s67
    %s82 = sphi 0, %s68
    %s86 = sphi 0, %s86
    %s88 = sphi 0, %s86
    %s89 = sphi 0, %s88
    %s103 = sphi 0, %s89
    %s107 = sphi 0, %s107
    %s109 = sphi 0, %s107
    %s110 = sphi 0, %s109
    %s124 = sphi 0, %s110
    %s128 = sphi 0, %s128
    %s130 = sphi 0, %s128
    %s131 = sphi 0, %s130
    %s145 = sphi 0, %s131
    %s149 = sphi 0, %s149
    %s151 = sphi 0, %s149
    %s152 = sphi 0, %s151
    %s166 = sphi 0, %s152
    %s170 = sphi 0, %s170
    %s172 = sphi 0, %s170
    %s173 = sphi 0, %s172
    %s187 = sphi 0, %s173
    %s191 = sphi 0, %s191
    %s193 = sphi 0, %s191
    %s194 = sphi 0, %s193
    %s208 = sphi 0, %s194
    %s212 = sphi 0, %s212
    %s214 = sphi 0, %s212
    %s215 = sphi 0, %s214
    %s229 = sphi 0, %s215
    %s233 = sphi 0, %s233
    %s235 = sphi 0, %s233
    %s236 = sphi 0, %s235
    %s250 = sphi 0, %s236
    %s254 = sphi 0, %s254
    %s256 = sphi 0, %s254
    %s257 = sphi 0, %s256
    %s271 = sphi 0, %s257
    %s277 = sphi 0, %s279
    %s280 = sphi 0, %s277
    %s281 = sphi 0, %s280
    %s297 = sphi 0, %s281
  $region4: #{pointnet_basic_forward.2} parent=0 // loop_header_branch
    %20 = sbr.rel (%p18) target = $region8
  $region5: #{pointnet_basic_forward.2} parent=0 // loop_body
    %s22 = ssub.s32 %s17, 1
    %s23 = ssub.s32 %s17, 2
    %s30 = sadd.s32 1, %s25
    %p31 = scmp.ge.s32.totalorder %s30, 2
    %s32 = scalar_select %p31, 0, %s30
    %s33 = sadd.s32 1, %s24
    %s34 = scalar_select %p31, %s33, %s24
    %p35 = scmp.ge.s32.totalorder %s34, 2
    %s36 = scalar_select %p35, 0, %s34
    %s37 = ssub.s32 %s24, %s36
    %s38 = ssub.s32 %s25, %s32
    %s39 = sor.u32 %s37, %s38
    %p40 = scmp.eq.s32.totalorder %s39, 0
    %s42 = sadd.s32 %s41, 1
    %s43 = scalar_select %p40, %s41, %s42
    %p46 = pneg %p40
    %p47 = scmp.eq.s32.totalorder %s17, 3
    %p48 = por %p46, %p47
    %p49 = scmp.ne.s32.totalorder %s41, %s44
    %p50 = scmp.eq.s32.totalorder %s17, 0
    %p51 = por %p49, %p50
    %p52 = scmp.ne.s32.totalorder %s41, %s44
    %p53 = scmp.eq.s32.totalorder %s22, 3
    %p54 = por %p52, %p53
    %p55 = scmp.ne.s32.totalorder %s44, %s45
    %p56 = scmp.eq.s32.totalorder %s22, 0
    %p57 = por %p55, %p56
    %p58 = scmp.ne.s32.totalorder %s44, %s45
    %p59 = scmp.eq.s32.totalorder %s23, 3
    %p60 = por %p58, %p59
    %p62 = scmp.ne.s32.totalorder %s45, %s61
    %p63 = scmp.eq.s32.totalorder %s23, 0
    %p64 = por %p62, %p63
    %s66 = sadd.s32 %s65, 1
    %p69 = scmp.eq.s32.totalorder %s17, 3
    %p70 = scmp.ne.s32.totalorder %s65, %s67
    %p71 = scmp.eq.s32.totalorder %s17, 0
    %p72 = por %p70, %p71
    %p73 = scmp.ne.s32.totalorder %s65, %s67
    %p74 = scmp.eq.s32.totalorder %s22, 3
    %p75 = por %p73, %p74
    %p76 = scmp.ne.s32.totalorder %s67, %s68
    %p77 = scmp.eq.s32.totalorder %s22, 0
    %p78 = por %p76, %p77
    %p79 = scmp.ne.s32.totalorder %s67, %s68
    %p80 = scmp.eq.s32.totalorder %s23, 3
    %p81 = por %p79, %p80
    %p83 = scmp.ne.s32.totalorder %s68, %s82
    %p84 = scmp.eq.s32.totalorder %s23, 0
    %p85 = por %p83, %p84
    %s87 = sadd.s32 %s86, 1
    %p90 = scmp.eq.s32.totalorder %s17, 3
    %p91 = scmp.ne.s32.totalorder %s86, %s88
    %p92 = scmp.eq.s32.totalorder %s17, 0
    %p93 = por %p91, %p92
    %p94 = scmp.ne.s32.totalorder %s86, %s88
    %p95 = scmp.eq.s32.totalorder %s22, 3
    %p96 = por %p94, %p95
    %p97 = scmp.ne.s32.totalorder %s88, %s89
    %p98 = scmp.eq.s32.totalorder %s22, 0
    %p99 = por %p97, %p98
    %p100 = scmp.ne.s32.totalorder %s88, %s89
    %p101 = scmp.eq.s32.totalorder %s23, 3
    %p102 = por %p100, %p101
    %p104 = scmp.ne.s32.totalorder %s89, %s103
    %p105 = scmp.eq.s32.totalorder %s23, 0
    %p106 = por %p104, %p105
    %s108 = sadd.s32 %s107, 1
    %p111 = scmp.eq.s32.totalorder %s17, 3
    %p112 = scmp.ne.s32.totalorder %s107, %s109
    %p113 = scmp.eq.s32.totalorder %s17, 0
    %p114 = por %p112, %p113
    %p115 = scmp.ne.s32.totalorder %s107, %s109
    %p116 = scmp.eq.s32.totalorder %s22, 3
    %p117 = por %p115, %p116
    %p118 = scmp.ne.s32.totalorder %s109, %s110
    %p119 = scmp.eq.s32.totalorder %s22, 0
    %p120 = por %p118, %p119
    %p121 = scmp.ne.s32.totalorder %s109, %s110
    %p122 = scmp.eq.s32.totalorder %s23, 3
    %p123 = por %p121, %p122
    %p125 = scmp.ne.s32.totalorder %s110, %s124
    %p126 = scmp.eq.s32.totalorder %s23, 0
    %p127 = por %p125, %p126
    %s129 = sadd.s32 %s128, 1
    %p132 = scmp.eq.s32.totalorder %s17, 3
    %p133 = scmp.ne.s32.totalorder %s128, %s130
    %p134 = scmp.eq.s32.totalorder %s17, 0
    %p135 = por %p133, %p134
    %p136 = scmp.ne.s32.totalorder %s128, %s130
    %p137 = scmp.eq.s32.totalorder %s22, 3
    %p138 = por %p136, %p137
    %p139 = scmp.ne.s32.totalorder %s130, %s131
    %p140 = scmp.eq.s32.totalorder %s22, 0
    %p141 = por %p139, %p140
    %p142 = scmp.ne.s32.totalorder %s130, %s131
    %p143 = scmp.eq.s32.totalorder %s23, 3
    %p144 = por %p142, %p143
    %p146 = scmp.ne.s32.totalorder %s131, %s145
    %p147 = scmp.eq.s32.totalorder %s23, 0
    %p148 = por %p146, %p147
    %s150 = sadd.s32 %s149, 1
    %p153 = scmp.eq.s32.totalorder %s17, 3
    %p154 = scmp.ne.s32.totalorder %s149, %s151
    %p155 = scmp.eq.s32.totalorder %s17, 0
    %p156 = por %p154, %p155
    %p157 = scmp.ne.s32.totalorder %s149, %s151
    %p158 = scmp.eq.s32.totalorder %s22, 3
    %p159 = por %p157, %p158
    %p160 = scmp.ne.s32.totalorder %s151, %s152
    %p161 = scmp.eq.s32.totalorder %s22, 0
    %p162 = por %p160, %p161
    %p163 = scmp.ne.s32.totalorder %s151, %s152
    %p164 = scmp.eq.s32.totalorder %s23, 3
    %p165 = por %p163, %p164
    %p167 = scmp.ne.s32.totalorder %s152, %s166
    %p168 = scmp.eq.s32.totalorder %s23, 0
    %p169 = por %p167, %p168
    %s171 = sadd.s32 %s170, 1
    %p174 = scmp.eq.s32.totalorder %s17, 3
    %p175 = scmp.ne.s32.totalorder %s170, %s172
    %p176 = scmp.eq.s32.totalorder %s17, 0
    %p177 = por %p175, %p176
    %p178 = scmp.ne.s32.totalorder %s170, %s172
    %p179 = scmp.eq.s32.totalorder %s22, 3
    %p180 = por %p178, %p179
    %p181 = scmp.ne.s32.totalorder %s172, %s173
    %p182 = scmp.eq.s32.totalorder %s22, 0
    %p183 = por %p181, %p182
    %p184 = scmp.ne.s32.totalorder %s172, %s173
    %p185 = scmp.eq.s32.totalorder %s23, 3
    %p186 = por %p184, %p185
    %p188 = scmp.ne.s32.totalorder %s173, %s187
    %p189 = scmp.eq.s32.totalorder %s23, 0
    %p190 = por %p188, %p189
    %s192 = sadd.s32 %s191, 1
    %p195 = scmp.eq.s32.totalorder %s17, 3
    %p196 = scmp.ne.s32.totalorder %s191, %s193
    %p197 = scmp.eq.s32.totalorder %s17, 0
    %p198 = por %p196, %p197
    %p199 = scmp.ne.s32.totalorder %s191, %s193
    %p200 = scmp.eq.s32.totalorder %s22, 3
    %p201 = por %p199, %p200
    %p202 = scmp.ne.s32.totalorder %s193, %s194
    %p203 = scmp.eq.s32.totalorder %s22, 0
    %p204 = por %p202, %p203
    %p205 = scmp.ne.s32.totalorder %s193, %s194
    %p206 = scmp.eq.s32.totalorder %s23, 3
    %p207 = por %p205, %p206
    %p209 = scmp.ne.s32.totalorder %s194, %s208
    %p210 = scmp.eq.s32.totalorder %s23, 0
    %p211 = por %p209, %p210
    %s213 = sadd.s32 %s212, 1
    %p216 = scmp.eq.s32.totalorder %s17, 3
    %p217 = scmp.ne.s32.totalorder %s212, %s214
    %p218 = scmp.eq.s32.totalorder %s17, 0
    %p219 = por %p217, %p218
    %p220 = scmp.ne.s32.totalorder %s212, %s214
    %p221 = scmp.eq.s32.totalorder %s22, 3
    %p222 = por %p220, %p221
    %p223 = scmp.ne.s32.totalorder %s214, %s215
    %p224 = scmp.eq.s32.totalorder %s22, 0
    %p225 = por %p223, %p224
    %p226 = scmp.ne.s32.totalorder %s214, %s215
    %p227 = scmp.eq.s32.totalorder %s23, 3
    %p228 = por %p226, %p227
    %p230 = scmp.ne.s32.totalorder %s215, %s229
    %p231 = scmp.eq.s32.totalorder %s23, 0
    %p232 = por %p230, %p231
    %s234 = sadd.s32 %s233, 1
    %p237 = scmp.eq.s32.totalorder %s17, 3
    %p238 = scmp.ne.s32.totalorder %s233, %s235
    %p239 = scmp.eq.s32.totalorder %s17, 0
    %p240 = por %p238, %p239
    %p241 = scmp.ne.s32.totalorder %s233, %s235
    %p242 = scmp.eq.s32.totalorder %s22, 3
    %p243 = por %p241, %p242
    %p244 = scmp.ne.s32.totalorder %s235, %s236
    %p245 = scmp.eq.s32.totalorder %s22, 0
    %p246 = por %p244, %p245
    %p247 = scmp.ne.s32.totalorder %s235, %s236
    %p248 = scmp.eq.s32.totalorder %s23, 3
    %p249 = por %p247, %p248
    %p251 = scmp.ne.s32.totalorder %s236, %s250
    %p252 = scmp.eq.s32.totalorder %s23, 0
    %p253 = por %p251, %p252
    %s255 = sadd.s32 %s254, 1
    %p258 = scmp.eq.s32.totalorder %s17, 3
    %p259 = scmp.ne.s32.totalorder %s254, %s256
    %p260 = scmp.eq.s32.totalorder %s17, 0
    %p261 = por %p259, %p260
    %p262 = scmp.ne.s32.totalorder %s254, %s256
    %p263 = scmp.eq.s32.totalorder %s22, 3
    %p264 = por %p262, %p263
    %p265 = scmp.ne.s32.totalorder %s256, %s257
    %p266 = scmp.eq.s32.totalorder %s22, 0
    %p267 = por %p265, %p266
    %p268 = scmp.ne.s32.totalorder %s256, %s257
    %p269 = scmp.eq.s32.totalorder %s23, 3
    %p270 = por %p268, %p269
    %p272 = scmp.ne.s32.totalorder %s257, %s271
    %p273 = scmp.eq.s32.totalorder %s23, 0
    %p274 = por %p272, %p273
    %s275 = ssub.s32 %s24, %s36
    %p276 = scmp.eq.s32.totalorder %s275, 0
    %s278 = sadd.s32 %s277, 1
    %s279 = scalar_select %p276, %s277, %s278
    %p282 = pneg %p276
    %p283 = scmp.eq.s32.totalorder %s17, 3
    %p284 = por %p282, %p283
    %p285 = scmp.ne.s32.totalorder %s277, %s280
    %p286 = scmp.eq.s32.totalorder %s17, 0
    %p287 = por %p285, %p286
    %p288 = scmp.ne.s32.totalorder %s277, %s280
    %p289 = scmp.eq.s32.totalorder %s22, 3
    %p290 = por %p288, %p289
    %p291 = scmp.ne.s32.totalorder %s280, %s281
    %p292 = scmp.eq.s32.totalorder %s22, 0
    %p293 = por %p291, %p292
    %p294 = scmp.ne.s32.totalorder %s280, %s281
    %p295 = scmp.eq.s32.totalorder %s23, 3
    %p296 = por %p294, %p295
    %p298 = scmp.ne.s32.totalorder %s281, %s297
    %p299 = scmp.eq.s32.totalorder %s23, 0
    %p300 = por %p298, %p299
    %p301 = scmp.le.s32.totalorder 1, %s17
    %p302 = scmp.lt.s32.totalorder %s17, 5
    %p303 = pnand %p301, %p302
    %p304 = pneg %p303
    // Predicated region
    $region9: #{pointnet_basic_forward.2} parent=5 // pred_check
      _
    $region10: #{pointnet_basic_forward.2} parent=5 // pred_check_branch
      %306 = sbr.rel (%p303) target = $region12
    $region11: #{pointnet_basic_forward.2} parent=5 // pred_region
      %s307 = ssub.s32 %s17, 1
      // Predicated region
      $region13: #{pointnet_basic_forward.2} parent=11 // pred_check
        %p308 = pneg %p78
      $region14: #{pointnet_basic_forward.2} parent=11 // pred_check_branch
        %310 = sbr.rel (%p308) target = $region16
      $region15: #{pointnet_basic_forward.2} parent=11 // pred_region
        _
      $region16: #{pointnet_basic_forward.2} parent=11 // pred_fallthru
        _
      // Predicated region
      $region17: #{pointnet_basic_forward.2} parent=11 // pred_check
        %p311 = pneg %p99
      $region18: #{pointnet_basic_forward.2} parent=11 // pred_check_branch
        %313 = sbr.rel (%p311) target = $region20
      $region19: #{pointnet_basic_forward.2} parent=11 // pred_region
        _
      $region20: #{pointnet_basic_forward.2} parent=11 // pred_fallthru
        _
      // Predicated region
      $region21: #{pointnet_basic_forward.2} parent=11 // pred_check
        %p314 = pneg %p120
      $region22: #{pointnet_basic_forward.2} parent=11 // pred_check_branch
        %316 = sbr.rel (%p314) target = $region24
      $region23: #{pointnet_basic_forward.2} parent=11 // pred_region
        _
      $region24: #{pointnet_basic_forward.2} parent=11 // pred_fallthru
        _
      // Predicated region
      $region25: #{pointnet_basic_forward.2} parent=11 // pred_check
        %p317 = pneg %p141
      $region26: #{pointnet_basic_forward.2} parent=11 // pred_check_branch
        %319 = sbr.rel (%p317) target = $region28
      $region27: #{pointnet_basic_forward.2} parent=11 // pred_region
        _
      $region28: #{pointnet_basic_forward.2} parent=11 // pred_fallthru
        _
      // Predicated region
      $region29: #{pointnet_basic_forward.2} parent=11 // pred_check
        %p320 = pneg %p162
      $region30: #{pointnet_basic_forward.2} parent=11 // pred_check_branch
        %322 = sbr.rel (%p320) target = $region32
      $region31: #{pointnet_basic_forward.2} parent=11 // pred_region
        _
      $region32: #{pointnet_basic_forward.2} parent=11 // pred_fallthru
        _
      // Predicated region
      $region33: #{pointnet_basic_forward.2} parent=11 // pred_check
        %p323 = pneg %p183
      $region34: #{pointnet_basic_forward.2} parent=11 // pred_check_branch
        %325 = sbr.rel (%p323) target = $region36
      $region35: #{pointnet_basic_forward.2} parent=11 // pred_region
        _
      $region36: #{pointnet_basic_forward.2} parent=11 // pred_fallthru
        _
      // Predicated region
      $region37: #{pointnet_basic_forward.2} parent=11 // pred_check
        %p326 = pneg %p204
      $region38: #{pointnet_basic_forward.2} parent=11 // pred_check_branch
        %328 = sbr.rel (%p326) target = $region40
      $region39: #{pointnet_basic_forward.2} parent=11 // pred_region
        _
      $region40: #{pointnet_basic_forward.2} parent=11 // pred_fallthru
        _
      // Predicated region
      $region41: #{pointnet_basic_forward.2} parent=11 // pred_check
        %p329 = pneg %p225
      $region42: #{pointnet_basic_forward.2} parent=11 // pred_check_branch
        %331 = sbr.rel (%p329) target = $region44
      $region43: #{pointnet_basic_forward.2} parent=11 // pred_region
        _
      $region44: #{pointnet_basic_forward.2} parent=11 // pred_fallthru
        _
      // Predicated region
      $region45: #{pointnet_basic_forward.2} parent=11 // pred_check
        %p332 = pneg %p246
      $region46: #{pointnet_basic_forward.2} parent=11 // pred_check_branch
        %334 = sbr.rel (%p332) target = $region48
      $region47: #{pointnet_basic_forward.2} parent=11 // pred_region
        _
      $region48: #{pointnet_basic_forward.2} parent=11 // pred_fallthru
        _
      // Predicated region
      $region49: #{pointnet_basic_forward.2} parent=11 // pred_check
        %p335 = pneg %p267
      $region50: #{pointnet_basic_forward.2} parent=11 // pred_check_branch
        %337 = sbr.rel (%p335) target = $region52
      $region51: #{pointnet_basic_forward.2} parent=11 // pred_region
        _
      $region52: #{pointnet_basic_forward.2} parent=11 // pred_fallthru
        _
    $region12: #{pointnet_basic_forward.2} parent=5 // pred_fallthru
      _
    %p338 = scmp.lt.s32.totalorder %s17, 4
    // Predicated region
    $region53: #{pointnet_basic_forward.2} parent=5 // pred_check
      %p339 = pneg %p338
    $region54: #{pointnet_basic_forward.2} parent=5 // pred_check_branch
      %341 = sbr.rel (%p339) target = $region56
    $region55: #{pointnet_basic_forward.2} parent=5 // pred_region
      // Predicated region
      $region57: #{pointnet_basic_forward.2} parent=55 // pred_check
        %p342 = pneg %p51
      $region58: #{pointnet_basic_forward.2} parent=55 // pred_check_branch
        %344 = sbr.rel (%p342) target = $region60
      $region59: #{pointnet_basic_forward.2} parent=55 // pred_region
        %s345 = smul.u32 64, %s25
        %p346 = scmp.lt.s32.totalorder %s24, 1
        %s347 = scalar_select %p346, %s24, 1
        %p348 = scmp.lt.s32.totalorder %s345, 127
        %s349 = scalar_select %p348, %s345, 127
        %s350 = smul.addr %s347, 128
        %s351 = sadd.s32 %s349, %s350
        %s352 = smul.addr %s351, 8
        %s353 = scalar_lea.vmem %s0, %s352
        %s354 = smul.u32 64, %s25
      $region60: #{pointnet_basic_forward.2} parent=55 // pred_fallthru
        _
    $region56: #{pointnet_basic_forward.2} parent=5 // pred_fallthru
      _
    %p355 = scmp.le.s32.totalorder 1, %s17
    %p356 = scmp.lt.s32.totalorder %s17, 5
    %p357 = pnand %p355, %p356
    %p358 = pneg %p357
    // Predicated region
    $region61: #{pointnet_basic_forward.2} parent=5 // pred_check
      _
    $region62: #{pointnet_basic_forward.2} parent=5 // pred_check_branch
      %360 = sbr.rel (%p357) target = $region64
    $region63: #{pointnet_basic_forward.2} parent=5 // pred_region
      %s361 = ssub.s32 %s17, 1
      %s362 = smul.u32 64, %s27
      %p363 = scmp.lt.s32.totalorder %s26, 1
      %s364 = scalar_select %p363, %s26, 1
      %p365 = scmp.lt.s32.totalorder %s362, 127
      %s366 = scalar_select %p365, %s362, 127
      %s367 = smul.addr %s364, 128
      %s368 = sadd.s32 %s366, %s367
      %s369 = smul.addr %s368, 8
      %s370 = scalar_lea.vmem %s0, %s369
      %p371 = pneg %p57
      %p372 = pneg %p54
      %p373 = pneg %p78
      %p374 = pneg %p75
      %p375 = pneg %p99
      %p376 = pneg %p96
      %p377 = pneg %p120
      %p378 = pneg %p117
      %p379 = pneg %p141
      %p380 = pneg %p138
      %p381 = pneg %p162
      %p382 = pneg %p159
      %p383 = pneg %p183
      %p384 = pneg %p180
      %p385 = pneg %p204
      %p386 = pneg %p201
      %p387 = pneg %p225
      %p388 = pneg %p222
      %p389 = pneg %p246
      %p390 = pneg %p243
      %p391 = pneg %p267
      %p392 = pneg %p264
      %p393 = pneg %p293
      %p394 = pneg %p290
      %p395 = scmp.lt.s32.totalorder %s26, 1
      %s396 = scalar_select %p395, %s26, 1
      %s397 = smul.addr %s396, 8
      %s398 = scalar_lea.vmem %s11, %s397
      %s399 = smul.u32 64, %s27
      %p400 = scmp.lt.s32.totalorder %s26, 1
      %s401 = scalar_select %p400, %s26, 1
      %p402 = scmp.lt.s32.totalorder %s399, 127
      %s403 = scalar_select %p402, %s399, 127
      %s404 = smul.addr %s401, 128
      %s405 = sadd.s32 %s403, %s404
      %s406 = smul.addr %s405, 8
      %s407 = scalar_lea.vmem %s0, %s406
      %s408 = smul.u32 64, %s27
      %p409 = scmp.lt.s32.totalorder %s26, 1
      %s410 = scalar_select %p409, %s26, 1
      %s411 = smul.addr %s410, 8
      %s412 = scalar_lea.vmem %s11, %s411
      %p414 = scmp.eq.s32.totalorder %s27, 0
      // Predicated region
      $region65: #{pointnet_basic_forward.2} parent=63 // pred_check
        %p415 = pneg %p414
      $region66: #{pointnet_basic_forward.2} parent=63 // pred_check_branch
        %417 = sbr.rel (%p415) target = $region68
      $region67: #{pointnet_basic_forward.2} parent=63 // pred_region
        %418 = vst [vmem:[%s412] sm:$0xff] -inf
      $region68: #{pointnet_basic_forward.2} parent=63 // pred_fallthru
        _
      %v419 = vld [vmem:[%s407] sm:$0xff]
      %v420 = vld [vmem:[%s407 + $0x8] sm:$0xff]
      %v421 = vld [vmem:[%s407 + $0x10] sm:$0xff]
      %v422 = vld [vmem:[%s407 + $0x18] sm:$0xff]
      %v423 = vld [vmem:[%s407 + $0x20] sm:$0xff]
      %v424 = vld [vmem:[%s407 + $0x28] sm:$0xff]
      %v425 = vld [vmem:[%s407 + $0x30] sm:$0xff]
      %v426 = vld [vmem:[%s407 + $0x38] sm:$0xff]
      %v427 = vld [vmem:[%s407 + $0x40] sm:$0xff]
      %v428 = vld [vmem:[%s407 + $0x48] sm:$0xff]
      %v429 = vld [vmem:[%s407 + $0x50] sm:$0xff]
      %v430 = vld [vmem:[%s407 + $0x58] sm:$0xff]
      %v431 = vld [vmem:[%s407 + $0x60] sm:$0xff]
      %v432 = vld [vmem:[%s407 + $0x68] sm:$0xff]
      %v433 = vld [vmem:[%s407 + $0x70] sm:$0xff]
      %v434 = vld [vmem:[%s407 + $0x78] sm:$0xff]
      %v435 = vld [vmem:[%s407 + $0x80] sm:$0xff]
      %v436 = vld [vmem:[%s407 + $0x88] sm:$0xff]
      %v437 = vld [vmem:[%s407 + $0x90] sm:$0xff]
      %v438 = vld [vmem:[%s407 + $0x98] sm:$0xff]
      %v439 = vld [vmem:[%s407 + $0xa0] sm:$0xff]
      %v440 = vld [vmem:[%s407 + $0xa8] sm:$0xff]
      %v441 = vld [vmem:[%s407 + $0xb0] sm:$0xff]
      %v442 = vld [vmem:[%s407 + $0xb8] sm:$0xff]
      %v443 = vld [vmem:[%s407 + $0xc0] sm:$0xff]
      %v444 = vld [vmem:[%s407 + $0xc8] sm:$0xff]
      %v445 = vld [vmem:[%s407 + $0xd0] sm:$0xff]
      %v446 = vld [vmem:[%s407 + $0xd8] sm:$0xff]
      %v447 = vld [vmem:[%s407 + $0xe0] sm:$0xff]
      %v448 = vld [vmem:[%s407 + $0xe8] sm:$0xff]
      %v449 = vld [vmem:[%s407 + $0xf0] sm:$0xff]
      %v450 = vld [vmem:[%s407 + $0xf8] sm:$0xff]
      %v451 = vld [vmem:[%s407 + $0x100] sm:$0xff]
      %v452 = vld [vmem:[%s407 + $0x108] sm:$0xff]
      %v453 = vld [vmem:[%s407 + $0x110] sm:$0xff]
      %v454 = vld [vmem:[%s407 + $0x118] sm:$0xff]
      %v455 = vld [vmem:[%s407 + $0x120] sm:$0xff]
      %v456 = vld [vmem:[%s407 + $0x128] sm:$0xff]
      %v457 = vld [vmem:[%s407 + $0x130] sm:$0xff]
      %v458 = vld [vmem:[%s407 + $0x138] sm:$0xff]
      %v459 = vld [vmem:[%s407 + $0x140] sm:$0xff]
      %v460 = vld [vmem:[%s407 + $0x148] sm:$0xff]
      %v461 = vld [vmem:[%s407 + $0x150] sm:$0xff]
      %v462 = vld [vmem:[%s407 + $0x158] sm:$0xff]
      %v463 = vld [vmem:[%s407 + $0x160] sm:$0xff]
      %v464 = vld [vmem:[%s407 + $0x168] sm:$0xff]
      %v465 = vld [vmem:[%s407 + $0x170] sm:$0xff]
      %v466 = vld [vmem:[%s407 + $0x178] sm:$0xff]
      %v467 = vld [vmem:[%s407 + $0x180] sm:$0xff]
      %v468 = vld [vmem:[%s407 + $0x188] sm:$0xff]
      %v469 = vld [vmem:[%s407 + $0x190] sm:$0xff]
      %v470 = vld [vmem:[%s407 + $0x198] sm:$0xff]
      %v471 = vld [vmem:[%s407 + $0x1a0] sm:$0xff]
      %v472 = vld [vmem:[%s407 + $0x1a8] sm:$0xff]
      %v473 = vld [vmem:[%s407 + $0x1b0] sm:$0xff]
      %v474 = vld [vmem:[%s407 + $0x1b8] sm:$0xff]
      %v475 = vld [vmem:[%s407 + $0x1c0] sm:$0xff]
      %v476 = vld [vmem:[%s407 + $0x1c8] sm:$0xff]
      %v477 = vld [vmem:[%s407 + $0x1d0] sm:$0xff]
      %v478 = vld [vmem:[%s407 + $0x1d8] sm:$0xff]
      %v479 = vld [vmem:[%s407 + $0x1e0] sm:$0xff]
      %v480 = vld [vmem:[%s407 + $0x1e8] sm:$0xff]
      %v481 = vld [vmem:[%s407 + $0x1f0] sm:$0xff]
      %v482 = vld [vmem:[%s407 + $0x1f8] sm:$0xff]
      %v483 = vld [vmem:[%s1] sm:$0x7]
      %v484 = vld [vmem:[%s2] sm:$0x1]
      %v486 = vlaneseq
      %v487 = vshrl.u32 %v486, 7
      %v488 = vsub.s32 0, %v487
      %v489 = vrot.slane %v484, %v488
      %vm491 = vcmask 23552
      %v493 = vsel %vm491, %v419, 0
      %v496 = vsel %vm491, %v420, 0
      %v499 = vsel %vm491, %v421, 0
      %v502 = vsel %vm491, %v422, 0
      %v505 = vsel %vm491, %v423, 0
      %v508 = vsel %vm491, %v424, 0
      %v511 = vsel %vm491, %v425, 0
      %v514 = vsel %vm491, %v426, 0
      %v517 = vsel %vm491, %v427, 0
      %v520 = vsel %vm491, %v428, 0
      %v523 = vsel %vm491, %v429, 0
      %v526 = vsel %vm491, %v430, 0
      %v529 = vsel %vm491, %v431, 0
      %v532 = vsel %vm491, %v432, 0
      %v535 = vsel %vm491, %v433, 0
      %v538 = vsel %vm491, %v434, 0
      %v541 = vsel %vm491, %v435, 0
      %v544 = vsel %vm491, %v436, 0
      %v547 = vsel %vm491, %v437, 0
      %v550 = vsel %vm491, %v438, 0
      %v553 = vsel %vm491, %v439, 0
      %v556 = vsel %vm491, %v440, 0
      %v559 = vsel %vm491, %v441, 0
      %v562 = vsel %vm491, %v442, 0
      %v565 = vsel %vm491, %v443, 0
      %v568 = vsel %vm491, %v444, 0
      %v571 = vsel %vm491, %v445, 0
      %v574 = vsel %vm491, %v446, 0
      %v577 = vsel %vm491, %v447, 0
      %v580 = vsel %vm491, %v448, 0
      %v583 = vsel %vm491, %v449, 0
      %v586 = vsel %vm491, %v450, 0
      %v589 = vsel %vm491, %v451, 0
      %v592 = vsel %vm491, %v452, 0
      %v595 = vsel %vm491, %v453, 0
      %v598 = vsel %vm491, %v454, 0
      %v601 = vsel %vm491, %v455, 0
      %v604 = vsel %vm491, %v456, 0
      %v607 = vsel %vm491, %v457, 0
      %v610 = vsel %vm491, %v458, 0
      %v613 = vsel %vm491, %v459, 0
      %v616 = vsel %vm491, %v460, 0
      %v619 = vsel %vm491, %v461, 0
      %v622 = vsel %vm491, %v462, 0
      %v625 = vsel %vm491, %v463, 0
      %v628 = vsel %vm491, %v464, 0
      %v631 = vsel %vm491, %v465, 0
      %v634 = vsel %vm491, %v466, 0
      %v637 = vsel %vm491, %v467, 0
      %v640 = vsel %vm491, %v468, 0
      %v643 = vsel %vm491, %v469, 0
      %v646 = vsel %vm491, %v470, 0
      %v649 = vsel %vm491, %v471, 0
      %v652 = vsel %vm491, %v472, 0
      %v655 = vsel %vm491, %v473, 0
      %v658 = vsel %vm491, %v474, 0
      %v661 = vsel %vm491, %v475, 0
      %v664 = vsel %vm491, %v476, 0
      %v667 = vsel %vm491, %v477, 0
      %v670 = vsel %vm491, %v478, 0
      %v673 = vsel %vm491, %v479, 0
      %v676 = vsel %vm491, %v480, 0
      %v679 = vsel %vm491, %v481, 0
      %v682 = vsel %vm491, %v482, 0
      %vm684 = vcmask 1042432
      %v686 = vsel %vm684, %v483, 0
      %688 = vmatprep.subr.mxu0 0.0
      %689 = vmatpush1.msra.mxu0 %v686
      %690 = vmatprep.subr.mxu0 0.0
      %691 = vmatpush1.msra.mxu0 0.0
      %692 = vmatprep.subr.mxu0 0.0
      %693 = vmatpush1.msra.mxu0 0.0
      %694 = vmatprep.subr.mxu0 0.0
      %695 = vmatpush1.msra.mxu0 0.0
      %696 = vmatprep.subr.mxu0 0.0
      %697 = vmatpush1.msra.mxu0 0.0
      %698 = vmatprep.subr.mxu0 0.0
      %699 = vmatpush1.msra.mxu0 0.0
      %700 = vmatprep.subr.mxu0 0.0
      %701 = vmatpush1.msra.mxu0 0.0
      %702 = vmatprep.subr.mxu0 0.0
      %703 = vmatpush1.msra.mxu0 0.0
      %704 = vmatprep.subr.mxu0 0.0
      %705 = vmatpush1.msra.mxu0 0.0
      %706 = vmatprep.subr.mxu0 0.0
      %707 = vmatpush1.msra.mxu0 0.0
      %708 = vmatprep.subr.mxu0 0.0
      %709 = vmatpush1.msra.mxu0 0.0
      %710 = vmatprep.subr.mxu0 0.0
      %711 = vmatpush1.msra.mxu0 0.0
      %712 = vmatprep.subr.mxu0 0.0
      %713 = vmatpush1.msra.mxu0 0.0
      %714 = vmatprep.subr.mxu0 0.0
      %715 = vmatpush1.msra.mxu0 0.0
      %716 = vmatprep.subr.mxu0 0.0
      %717 = vmatpush1.msra.mxu0 0.0
      %718 = vmatprep.subr.mxu0 0.0
      %719 = vmatpush1.msra.mxu0 0.0
      %720 = vmatprep.subr.mxu0 0.0
      %721 = vmatpush1.msra.mxu0 0.0
      %722 = vmatprep.subr.mxu0 0.0
      %723 = vmatpush1.msra.mxu0 0.0
      %724 = vmatprep.subr.mxu0 0.0
      %725 = vmatpush1.msra.mxu0 0.0
      %726 = vmatprep.subr.mxu0 0.0
      %727 = vmatpush1.msra.mxu0 0.0
      %728 = vmatprep.subr.mxu0 0.0
      %729 = vmatpush1.msra.mxu0 0.0
      %730 = vmatprep.subr.mxu0 0.0
      %731 = vmatpush1.msra.mxu0 0.0
      %732 = vmatprep.subr.mxu0 0.0
      %733 = vmatpush1.msra.mxu0 0.0
      %734 = vmatprep.subr.mxu0 0.0
      %735 = vmatpush1.msra.mxu0 0.0
      %736 = vmatprep.subr.mxu0 0.0
      %737 = vmatpush1.msra.mxu0 0.0
      %738 = vmatprep.subr.mxu0 0.0
      %739 = vmatpush1.msra.mxu0 0.0
      %740 = vmatprep.subr.mxu0 0.0
      %741 = vmatpush1.msra.mxu0 0.0
      %742 = vmatprep.subr.mxu0 0.0
      %743 = vmatpush1.msra.mxu0 0.0
      %744 = vmatprep.subr.mxu0 0.0
      %745 = vmatpush1.msra.mxu0 0.0
      %746 = vmatprep.subr.mxu0 0.0
      %747 = vmatpush1.msra.mxu0 0.0
      %748 = vmatprep.subr.mxu0 0.0
      %749 = vmatpush1.msra.mxu0 0.0
      %750 = vmatprep.subr.mxu0 0.0
      %751 = vmatpush1.msra.mxu0 0.0
      %752 = vmatprep.mubr.f32.mxu0 0.0
      %753 = vmatmul.mubr.f32.gmra.mrb[0].mxu0 %v493
      %v754 = vpop.f32.mrb[0].mxu0
      %v755 = vadd.f32 %v489, %v754
      %v756 = vpop.f32.mrb[0].mxu0
      %757 = vmatprep.mubr.f32.mxu0 0.0
      %758 = vmatmul.mubr.f32.gmra.mrb[0].mxu0 %v496
      %v759 = vpop.f32.mrb[0].mxu0
      %v760 = vadd.f32 %v489, %v759
      %v761 = vpop.f32.mrb[0].mxu0
      %762 = vmatprep.mubr.f32.mxu0 0.0
      %763 = vmatmul.mubr.f32.gmra.mrb[0].mxu0 %v499
      %v764 = vpop.f32.mrb[0].mxu0
      %v765 = vadd.f32 %v489, %v764
      %v766 = vpop.f32.mrb[0].mxu0
      %767 = vmatprep.mubr.f32.mxu0 0.0
      %768 = vmatmul.mubr.f32.gmra.mrb[0].mxu0 %v502
      %v769 = vpop.f32.mrb[0].mxu0
      %v770 = vadd.f32 %v489, %v769
      %v771 = vpop.f32.mrb[0].mxu0
      %772 = vmatprep.mubr.f32.mxu0 0.0
      %773 = vmatmul.mubr.f32.gmra.mrb[0].mxu0 %v505
      %v774 = vpop.f32.mrb[0].mxu0
      %v775 = vadd.f32 %v489, %v774
      %v776 = vpop.f32.mrb[0].mxu0
      %777 = vmatprep.mubr.f32.mxu0 0.0
      %778 = vmatmul.mubr.f32.gmra.mrb[0].mxu0 %v508
      %v779 = vpop.f32.mrb[0].mxu0
      %v780 = vadd.f32 %v489, %v779
      %v781 = vpop.f32.mrb[0].mxu0
      %782 = vmatprep.mubr.f32.mxu0 0.0
      %783 = vmatmul.mubr.f32.gmra.mrb[0].mxu0 %v511
      %v784 = vpop.f32.mrb[0].mxu0
      %v785 = vadd.f32 %v489, %v784
      %v786 = vpop.f32.mrb[0].mxu0
      %787 = vmatprep.mubr.f32.mxu0 0.0
      %788 = vmatmul.mubr.f32.gmra.mrb[0].mxu0 %v514
      %v789 = vpop.f32.mrb[0].mxu0
      %v790 = vadd.f32 %v489, %v789
      %v791 = vpop.f32.mrb[0].mxu0
      %792 = vmatprep.mubr.f32.mxu0 0.0
      %793 = vmatmul.mubr.f32.gmra.mrb[0].mxu0 %v517
      %v794 = vpop.f32.mrb[0].mxu0
      %v795 = vadd.f32 %v489, %v794
      %v796 = vpop.f32.mrb[0].mxu0
      %797 = vmatprep.mubr.f32.mxu0 0.0
      %798 = vmatmul.mubr.f32.gmra.mrb[0].mxu0 %v520
      %v799 = vpop.f32.mrb[0].mxu0
      %v800 = vadd.f32 %v489, %v799
      %v801 = vpop.f32.mrb[0].mxu0
      %802 = vmatprep.mubr.f32.mxu0 0.0
      %803 = vmatmul.mubr.f32.gmra.mrb[0].mxu0 %v523
      %v804 = vpop.f32.mrb[0].mxu0
      %v805 = vadd.f32 %v489, %v804
      %v806 = vpop.f32.mrb[0].mxu0
      %807 = vmatprep.mubr.f32.mxu0 0.0
      %808 = vmatmul.mubr.f32.gmra.mrb[0].mxu0 %v526
      %v809 = vpop.f32.mrb[0].mxu0
      %v810 = vadd.f32 %v489, %v809
      %v811 = vpop.f32.mrb[0].mxu0
      %812 = vmatprep.mubr.f32.mxu0 0.0
      %813 = vmatmul.mubr.f32.gmra.mrb[0].mxu0 %v529
      %v814 = vpop.f32.mrb[0].mxu0
      %v815 = vadd.f32 %v489, %v814
      %v816 = vpop.f32.mrb[0].mxu0
      %817 = vmatprep.mubr.f32.mxu0 0.0
      %818 = vmatmul.mubr.f32.gmra.mrb[0].mxu0 %v532
      %v819 = vpop.f32.mrb[0].mxu0
      %v820 = vadd.f32 %v489, %v819
      %v821 = vpop.f32.mrb[0].mxu0
      %822 = vmatprep.mubr.f32.mxu0 0.0
      %823 = vmatmul.mubr.f32.gmra.mrb[0].mxu0 %v535
      %v824 = vpop.f32.mrb[0].mxu0
      %v825 = vadd.f32 %v489, %v824
      %v826 = vpop.f32.mrb[0].mxu0
      %827 = vmatprep.mubr.f32.mxu0 0.0
      %828 = vmatmul.mubr.f32.gmra.mrb[0].mxu0 %v538
      %v829 = vpop.f32.mrb[0].mxu0
      %v830 = vadd.f32 %v489, %v829
      %v831 = vpop.f32.mrb[0].mxu0
      %832 = vmatprep.mubr.f32.mxu0 0.0
      %833 = vmatmul.mubr.f32.gmra.mrb[0].mxu0 %v541
      %v834 = vpop.f32.mrb[0].mxu0
      %v835 = vadd.f32 %v489, %v834
      %v836 = vpop.f32.mrb[0].mxu0
      %837 = vmatprep.mubr.f32.mxu0 0.0
      %838 = vmatmul.mubr.f32.gmra.mrb[0].mxu0 %v544
      %v839 = vpop.f32.mrb[0].mxu0
      %v840 = vadd.f32 %v489, %v839
      %v841 = vpop.f32.mrb[0].mxu0
      %842 = vmatprep.mubr.f32.mxu0 0.0
      %843 = vmatmul.mubr.f32.gmra.mrb[0].mxu0 %v547
      %v844 = vpop.f32.mrb[0].mxu0
      %v845 = vadd.f32 %v489, %v844
      %v846 = vpop.f32.mrb[0].mxu0
      %847 = vmatprep.mubr.f32.mxu0 0.0
      %848 = vmatmul.mubr.f32.gmra.mrb[0].mxu0 %v550
      %v849 = vpop.f32.mrb[0].mxu0
      %v850 = vadd.f32 %v489, %v849
      %v851 = vpop.f32.mrb[0].mxu0
      %852 = vmatprep.mubr.f32.mxu0 0.0
      %853 = vmatmul.mubr.f32.gmra.mrb[0].mxu0 %v553
      %v854 = vpop.f32.mrb[0].mxu0
      %v855 = vadd.f32 %v489, %v854
      %v856 = vpop.f32.mrb[0].mxu0
      %857 = vmatprep.mubr.f32.mxu0 0.0
      %858 = vmatmul.mubr.f32.gmra.mrb[0].mxu0 %v556
      %v859 = vpop.f32.mrb[0].mxu0
      %v860 = vadd.f32 %v489, %v859
      %v861 = vpop.f32.mrb[0].mxu0
      %862 = vmatprep.mubr.f32.mxu0 0.0
      %863 = vmatmul.mubr.f32.gmra.mrb[0].mxu0 %v559
      %v864 = vpop.f32.mrb[0].mxu0
      %v865 = vadd.f32 %v489, %v864
      %v866 = vpop.f32.mrb[0].mxu0
      %867 = vmatprep.mubr.f32.mxu0 0.0
      %868 = vmatmul.mubr.f32.gmra.mrb[0].mxu0 %v562
      %v869 = vpop.f32.mrb[0].mxu0
      %v870 = vadd.f32 %v489, %v869
      %v871 = vpop.f32.mrb[0].mxu0
      %872 = vmatprep.mubr.f32.mxu0 0.0
      %873 = vmatmul.mubr.f32.gmra.mrb[0].mxu0 %v565
      %v874 = vpop.f32.mrb[0].mxu0
      %v875 = vadd.f32 %v489, %v874
      %v876 = vpop.f32.mrb[0].mxu0
      %877 = vmatprep.mubr.f32.mxu0 0.0
      %878 = vmatmul.mubr.f32.gmra.mrb[0].mxu0 %v568
      %v879 = vpop.f32.mrb[0].mxu0
      %v880 = vadd.f32 %v489, %v879
      %v881 = vpop.f32.mrb[0].mxu0
      %882 = vmatprep.mubr.f32.mxu0 0.0
      %883 = vmatmul.mubr.f32.gmra.mrb[0].mxu0 %v571
      %v884 = vpop.f32.mrb[0].mxu0
      %v885 = vadd.f32 %v489, %v884
      %v886 = vpop.f32.mrb[0].mxu0
      %887 = vmatprep.mubr.f32.mxu0 0.0
      %888 = vmatmul.mubr.f32.gmra.mrb[0].mxu0 %v574
      %v889 = vpop.f32.mrb[0].mxu0
      %v890 = vadd.f32 %v489, %v889
      %v891 = vpop.f32.mrb[0].mxu0
      %892 = vmatprep.mubr.f32.mxu0 0.0
      %893 = vmatmul.mubr.f32.gmra.mrb[0].mxu0 %v577
      %v894 = vpop.f32.mrb[0].mxu0
      %v895 = vadd.f32 %v489, %v894
      %v896 = vpop.f32.mrb[0].mxu0
      %897 = vmatprep.mubr.f32.mxu0 0.0
      %898 = vmatmul.mubr.f32.gmra.mrb[0].mxu0 %v580
      %v899 = vpop.f32.mrb[0].mxu0
      %v900 = vadd.f32 %v489, %v899
      %v901 = vpop.f32.mrb[0].mxu0
      %902 = vmatprep.mubr.f32.mxu0 0.0
      %903 = vmatmul.mubr.f32.gmra.mrb[0].mxu0 %v583
      %v904 = vpop.f32.mrb[0].mxu0
      %v905 = vadd.f32 %v489, %v904
      %v906 = vpop.f32.mrb[0].mxu0
      %907 = vmatprep.mubr.f32.mxu0 0.0
      %908 = vmatmul.mubr.f32.gmra.mrb[0].mxu0 %v586
      %v909 = vpop.f32.mrb[0].mxu0
      %v910 = vadd.f32 %v489, %v909
      %v911 = vpop.f32.mrb[0].mxu0
      %912 = vmatprep.mubr.f32.mxu0 0.0
      %913 = vmatmul.mubr.f32.gmra.mrb[0].mxu0 %v589
      %v914 = vpop.f32.mrb[0].mxu0
      %v915 = vadd.f32 %v489, %v914
      %v916 = vpop.f32.mrb[0].mxu0
      %917 = vmatprep.mubr.f32.mxu0 0.0
      %918 = vmatmul.mubr.f32.gmra.mrb[0].mxu0 %v592
      %v919 = vpop.f32.mrb[0].mxu0
      %v920 = vadd.f32 %v489, %v919
      %v921 = vpop.f32.mrb[0].mxu0
      %922 = vmatprep.mubr.f32.mxu0 0.0
      %923 = vmatmul.mubr.f32.gmra.mrb[0].mxu0 %v595
      %v924 = vpop.f32.mrb[0].mxu0
      %v925 = vadd.f32 %v489, %v924
      %v926 = vpop.f32.mrb[0].mxu0
      %927 = vmatprep.mubr.f32.mxu0 0.0
      %928 = vmatmul.mubr.f32.gmra.mrb[0].mxu0 %v598
      %v929 = vpop.f32.mrb[0].mxu0
      %v930 = vadd.f32 %v489, %v929
      %v931 = vpop.f32.mrb[0].mxu0
      %932 = vmatprep.mubr.f32.mxu0 0.0
      %933 = vmatmul.mubr.f32.gmra.mrb[0].mxu0 %v601
      %v934 = vpop.f32.mrb[0].mxu0
      %v935 = vadd.f32 %v489, %v934
      %v936 = vpop.f32.mrb[0].mxu0
      %937 = vmatprep.mubr.f32.mxu0 0.0
      %938 = vmatmul.mubr.f32.gmra.mrb[0].mxu0 %v604
      %v939 = vpop.f32.mrb[0].mxu0
      %v940 = vadd.f32 %v489, %v939
      %v941 = vpop.f32.mrb[0].mxu0
      %942 = vmatprep.mubr.f32.mxu0 0.0
      %943 = vmatmul.mubr.f32.gmra.mrb[0].mxu0 %v607
      %v944 = vpop.f32.mrb[0].mxu0
      %v945 = vadd.f32 %v489, %v944
      %v946 = vpop.f32.mrb[0].mxu0
      %947 = vmatprep.mubr.f32.mxu0 0.0
      %948 = vmatmul.mubr.f32.gmra.mrb[0].mxu0 %v610
      %v949 = vpop.f32.mrb[0].mxu0
      %v950 = vadd.f32 %v489, %v949
      %v951 = vpop.f32.mrb[0].mxu0
      %952 = vmatprep.mubr.f32.mxu0 0.0
      %953 = vmatmul.mubr.f32.gmra.mrb[0].mxu0 %v613
      %v954 = vpop.f32.mrb[0].mxu0
      %v955 = vadd.f32 %v489, %v954
      %v956 = vpop.f32.mrb[0].mxu0
      %957 = vmatprep.mubr.f32.mxu0 0.0
      %958 = vmatmul.mubr.f32.gmra.mrb[0].mxu0 %v616
      %v959 = vpop.f32.mrb[0].mxu0
      %v960 = vadd.f32 %v489, %v959
      %v961 = vpop.f32.mrb[0].mxu0
      %962 = vmatprep.mubr.f32.mxu0 0.0
      %963 = vmatmul.mubr.f32.gmra.mrb[0].mxu0 %v619
      %v964 = vpop.f32.mrb[0].mxu0
      %v965 = vadd.f32 %v489, %v964
      %v966 = vpop.f32.mrb[0].mxu0
      %967 = vmatprep.mubr.f32.mxu0 0.0
      %968 = vmatmul.mubr.f32.gmra.mrb[0].mxu0 %v622
      %v969 = vpop.f32.mrb[0].mxu0
      %v970 = vadd.f32 %v489, %v969
      %v971 = vpop.f32.mrb[0].mxu0
      %972 = vmatprep.mubr.f32.mxu0 0.0
      %973 = vmatmul.mubr.f32.gmra.mrb[0].mxu0 %v625
      %v974 = vpop.f32.mrb[0].mxu0
      %v975 = vadd.f32 %v489, %v974
      %v976 = vpop.f32.mrb[0].mxu0
      %977 = vmatprep.mubr.f32.mxu0 0.0
      %978 = vmatmul.mubr.f32.gmra.mrb[0].mxu0 %v628
      %v979 = vpop.f32.mrb[0].mxu0
      %v980 = vadd.f32 %v489, %v979
      %v981 = vpop.f32.mrb[0].mxu0
      %982 = vmatprep.mubr.f32.mxu0 0.0
      %983 = vmatmul.mubr.f32.gmra.mrb[0].mxu0 %v631
      %v984 = vpop.f32.mrb[0].mxu0
      %v985 = vadd.f32 %v489, %v984
      %v986 = vpop.f32.mrb[0].mxu0
      %987 = vmatprep.mubr.f32.mxu0 0.0
      %988 = vmatmul.mubr.f32.gmra.mrb[0].mxu0 %v634
      %v989 = vpop.f32.mrb[0].mxu0
      %v990 = vadd.f32 %v489, %v989
      %v991 = vpop.f32.mrb[0].mxu0
      %992 = vmatprep.mubr.f32.mxu0 0.0
      %993 = vmatmul.mubr.f32.gmra.mrb[0].mxu0 %v637
      %v994 = vpop.f32.mrb[0].mxu0
      %v995 = vadd.f32 %v489, %v994
      %v996 = vpop.f32.mrb[0].mxu0
      %997 = vmatprep.mubr.f32.mxu0 0.0
      %998 = vmatmul.mubr.f32.gmra.mrb[0].mxu0 %v640
      %v999 = vpop.f32.mrb[0].mxu0
      %v1000 = vadd.f32 %v489, %v999
      %v1001 = vpop.f32.mrb[0].mxu0
      %1002 = vmatprep.mubr.f32.mxu0 0.0
      %1003 = vmatmul.mubr.f32.gmra.mrb[0].mxu0 %v643
      %v1004 = vpop.f32.mrb[0].mxu0
      %v1005 = vadd.f32 %v489, %v1004
      %v1006 = vpop.f32.mrb[0].mxu0
      %1007 = vmatprep.mubr.f32.mxu0 0.0
      %1008 = vmatmul.mubr.f32.gmra.mrb[0].mxu0 %v646
      %v1009 = vpop.f32.mrb[0].mxu0
      %v1010 = vadd.f32 %v489, %v1009
      %v1011 = vpop.f32.mrb[0].mxu0
      %1012 = vmatprep.mubr.f32.mxu0 0.0
      %1013 = vmatmul.mubr.f32.gmra.mrb[0].mxu0 %v649
      %v1014 = vpop.f32.mrb[0].mxu0
      %v1015 = vadd.f32 %v489, %v1014
      %v1016 = vpop.f32.mrb[0].mxu0
      %1017 = vmatprep.mubr.f32.mxu0 0.0
      %1018 = vmatmul.mubr.f32.gmra.mrb[0].mxu0 %v652
      %v1019 = vpop.f32.mrb[0].mxu0
      %v1020 = vadd.f32 %v489, %v1019
      %v1021 = vpop.f32.mrb[0].mxu0
      %1022 = vmatprep.mubr.f32.mxu0 0.0
      %1023 = vmatmul.mubr.f32.gmra.mrb[0].mxu0 %v655
      %v1024 = vpop.f32.mrb[0].mxu0
      %v1025 = vadd.f32 %v489, %v1024
      %v1026 = vpop.f32.mrb[0].mxu0
      %1027 = vmatprep.mubr.f32.mxu0 0.0
      %1028 = vmatmul.mubr.f32.gmra.mrb[0].mxu0 %v658
      %v1029 = vpop.f32.mrb[0].mxu0
      %v1030 = vadd.f32 %v489, %v1029
      %v1031 = vpop.f32.mrb[0].mxu0
      %1032 = vmatprep.mubr.f32.mxu0 0.0
      %1033 = vmatmul.mubr.f32.gmra.mrb[0].mxu0 %v661
      %v1034 = vpop.f32.mrb[0].mxu0
      %v1035 = vadd.f32 %v489, %v1034
      %v1036 = vpop.f32.mrb[0].mxu0
      %1037 = vmatprep.mubr.f32.mxu0 0.0
      %1038 = vmatmul.mubr.f32.gmra.mrb[0].mxu0 %v664
      %v1039 = vpop.f32.mrb[0].mxu0
      %v1040 = vadd.f32 %v489, %v1039
      %v1041 = vpop.f32.mrb[0].mxu0
      %1042 = vmatprep.mubr.f32.mxu0 0.0
      %1043 = vmatmul.mubr.f32.gmra.mrb[0].mxu0 %v667
      %v1044 = vpop.f32.mrb[0].mxu0
      %v1045 = vadd.f32 %v489, %v1044
      %v1046 = vpop.f32.mrb[0].mxu0
      %1047 = vmatprep.mubr.f32.mxu0 0.0
      %1048 = vmatmul.mubr.f32.gmra.mrb[0].mxu0 %v670
      %v1049 = vpop.f32.mrb[0].mxu0
      %v1050 = vadd.f32 %v489, %v1049
      %v1051 = vpop.f32.mrb[0].mxu0
      %1052 = vmatprep.mubr.f32.mxu0 0.0
      %1053 = vmatmul.mubr.f32.gmra.mrb[0].mxu0 %v673
      %v1054 = vpop.f32.mrb[0].mxu0
      %v1055 = vadd.f32 %v489, %v1054
      %v1056 = vpop.f32.mrb[0].mxu0
      %1057 = vmatprep.mubr.f32.mxu0 0.0
      %1058 = vmatmul.mubr.f32.gmra.mrb[0].mxu0 %v676
      %v1059 = vpop.f32.mrb[0].mxu0
      %v1060 = vadd.f32 %v489, %v1059
      %v1061 = vpop.f32.mrb[0].mxu0
      %1062 = vmatprep.mubr.f32.mxu0 0.0
      %1063 = vmatmul.mubr.f32.gmra.mrb[0].mxu0 %v679
      %v1064 = vpop.f32.mrb[0].mxu0
      %v1065 = vadd.f32 %v489, %v1064
      %v1066 = vpop.f32.mrb[0].mxu0
      %1067 = vmatprep.mubr.f32.mxu0 0.0
      %1068 = vmatmul.mubr.f32.gmra.mrb[0].mxu0 %v682
      %v1069 = vpop.f32.mrb[0].mxu0
      %v1070 = vadd.f32 %v489, %v1069
      %v1071 = vpop.f32.mrb[0].mxu0
      %1072 = vdwg.mxu0
      %v1073 = vmax.f32 %v755, 0.0
      %v1074 = vmax.f32 %v760, 0.0
      %v1075 = vmax.f32 %v765, 0.0
      %v1076 = vmax.f32 %v770, 0.0
      %v1077 = vmax.f32 %v775, 0.0
      %v1078 = vmax.f32 %v780, 0.0
      %v1079 = vmax.f32 %v785, 0.0
      %v1080 = vmax.f32 %v790, 0.0
      %v1081 = vmax.f32 %v795, 0.0
      %v1082 = vmax.f32 %v800, 0.0
      %v1083 = vmax.f32 %v805, 0.0
      %v1084 = vmax.f32 %v810, 0.0
      %v1085 = vmax.f32 %v815, 0.0
      %v1086 = vmax.f32 %v820, 0.0
      %v1087 = vmax.f32 %v825, 0.0
      %v1088 = vmax.f32 %v830, 0.0
      %v1089 = vmax.f32 %v835, 0.0
      %v1090 = vmax.f32 %v840, 0.0
      %v1091 = vmax.f32 %v845, 0.0
      %v1092 = vmax.f32 %v850, 0.0
      %v1093 = vmax.f32 %v855, 0.0
      %v1094 = vmax.f32 %v860, 0.0
      %v1095 = vmax.f32 %v865, 0.0
      %v1096 = vmax.f32 %v870, 0.0
      %v1097 = vmax.f32 %v875, 0.0
      %v1098 = vmax.f32 %v880, 0.0
      %v1099 = vmax.f32 %v885, 0.0
      %v1100 = vmax.f32 %v890, 0.0
      %v1101 = vmax.f32 %v895, 0.0
      %v1102 = vmax.f32 %v900, 0.0
      %v1103 = vmax.f32 %v905, 0.0
      %v1104 = vmax.f32 %v910, 0.0
      %v1105 = vmax.f32 %v915, 0.0
      %v1106 = vmax.f32 %v920, 0.0
      %v1107 = vmax.f32 %v925, 0.0
      %v1108 = vmax.f32 %v930, 0.0
      %v1109 = vmax.f32 %v935, 0.0
      %v1110 = vmax.f32 %v940, 0.0
      %v1111 = vmax.f32 %v945, 0.0
      %v1112 = vmax.f32 %v950, 0.0
      %v1113 = vmax.f32 %v955, 0.0
      %v1114 = vmax.f32 %v960, 0.0
      %v1115 = vmax.f32 %v965, 0.0
      %v1116 = vmax.f32 %v970, 0.0
      %v1117 = vmax.f32 %v975, 0.0
      %v1118 = vmax.f32 %v980, 0.0
      %v1119 = vmax.f32 %v985, 0.0
      %v1120 = vmax.f32 %v990, 0.0
      %v1121 = vmax.f32 %v995, 0.0
      %v1122 = vmax.f32 %v1000, 0.0
      %v1123 = vmax.f32 %v1005, 0.0
      %v1124 = vmax.f32 %v1010, 0.0
      %v1125 = vmax.f32 %v1015, 0.0
      %v1126 = vmax.f32 %v1020, 0.0
      %v1127 = vmax.f32 %v1025, 0.0
      %v1128 = vmax.f32 %v1030, 0.0
      %v1129 = vmax.f32 %v1035, 0.0
      %v1130 = vmax.f32 %v1040, 0.0
      %v1131 = vmax.f32 %v1045, 0.0
      %v1132 = vmax.f32 %v1050, 0.0
      %v1133 = vmax.f32 %v1055, 0.0
      %v1134 = vmax.f32 %v1060, 0.0
      %v1135 = vmax.f32 %v1065, 0.0
      %v1136 = vmax.f32 %v1070, 0.0
      %v1137 = vld [vmem:[%s3] sm:$0xff]
      %v1138 = vld [vmem:[%s3 + $0x8] sm:$0xff]
      %v1139 = vld [vmem:[%s3 + $0x10] sm:$0xff]
      %v1140 = vld [vmem:[%s3 + $0x18] sm:$0xff]
      %v1141 = vld [vmem:[%s3 + $0x20] sm:$0xff]
      %v1142 = vld [vmem:[%s3 + $0x28] sm:$0xff]
      %v1143 = vld [vmem:[%s3 + $0x30] sm:$0xff]
      %v1144 = vld [vmem:[%s3 + $0x38] sm:$0xff]
      %v1145 = vld [vmem:[%s4] sm:$0x1]
      %v1147 = vlaneseq
      %v1148 = vshrl.u32 %v1147, 7
      %v1149 = vsub.s32 0, %v1148
      %v1150 = vrot.slane %v1145, %v1149
      %vm1152 = vcmask 523264
      %v1154 = vsel %vm1152, %v1073, 0
      %v1157 = vsel %vm1152, %v1074, 0
      %v1160 = vsel %vm1152, %v1075, 0
      %v1163 = vsel %vm1152, %v1076, 0
      %v1166 = vsel %vm1152, %v1077, 0
      %v1169 = vsel %vm1152, %v1078, 0
      %v1172 = vsel %vm1152, %v1079, 0
      %v1175 = vsel %vm1152, %v1080, 0
      %v1178 = vsel %vm1152, %v1081, 0
      %v1181 = vsel %vm1152, %v1082, 0
      %v1184 = vsel %vm1152, %v1083, 0
      %v1187 = vsel %vm1152, %v1084, 0
      %v1190 = vsel %vm1152, %v1085, 0
      %v1193 = vsel %vm1152, %v1086, 0
      %v1196 = vsel %vm1152, %v1087, 0
      %v1199 = vsel %vm1152, %v1088, 0
      %v1202 = vsel %vm1152, %v1089, 0
      %v1205 = vsel %vm1152, %v1090, 0
      %v1208 = vsel %vm1152, %v1091, 0
      %v1211 = vsel %vm1152, %v1092, 0
      %v1214 = vsel %vm1152, %v1093, 0
      %v1217 = vsel %vm1152, %v1094, 0
      %v1220 = vsel %vm1152, %v1095, 0
      %v1223 = vsel %vm1152, %v1096, 0
      %v1226 = vsel %vm1152, %v1097, 0
      %v1229 = vsel %vm1152, %v1098, 0
      %v1232 = vsel %vm1152, %v1099, 0
      %v1235 = vsel %vm1152, %v1100, 0
      %v1238 = vsel %vm1152, %v1101, 0
      %v1241 = vsel %vm1152, %v1102, 0
      %v1244 = vsel %vm1152, %v1103, 0
      %v1247 = vsel %vm1152, %v1104, 0
      %v1250 = vsel %vm1152, %v1105, 0
      %v1253 = vsel %vm1152, %v1106, 0
      %v1256 = vsel %vm1152, %v1107, 0
      %v1259 = vsel %vm1152, %v1108, 0
      %v1262 = vsel %vm1152, %v1109, 0
      %v1265 = vsel %vm1152, %v1110, 0
      %v1268 = vsel %vm1152, %v1111, 0
      %v1271 = vsel %vm1152, %v1112, 0
      %v1274 = vsel %vm1152, %v1113, 0
      %v1277 = vsel %vm1152, %v1114, 0
      %v1280 = vsel %vm1152, %v1115, 0
      %v1283 = vsel %vm1152, %v1116, 0
      %v1286 = vsel %vm1152, %v1117, 0
      %v1289 = vsel %vm1152, %v1118, 0
      %v1292 = vsel %vm1152, %v1119, 0
      %v1295 = vsel %vm1152, %v1120, 0
      %v1298 = vsel %vm1152, %v1121, 0
      %v1301 = vsel %vm1152, %v1122, 0
      %v1304 = vsel %vm1152, %v1123, 0
      %v1307 = vsel %vm1152, %v1124, 0
      %v1310 = vsel %vm1152, %v1125, 0
      %v1313 = vsel %vm1152, %v1126, 0
      %v1316 = vsel %vm1152, %v1127, 0
      %v1319 = vsel %vm1152, %v1128, 0
      %v1322 = vsel %vm1152, %v1129, 0
      %v1325 = vsel %vm1152, %v1130, 0
      %v1328 = vsel %vm1152, %v1131, 0
      %v1331 = vsel %vm1152, %v1132, 0
      %v1334 = vsel %vm1152, %v1133, 0
      %v1337 = vsel %vm1152, %v1134, 0
      %v1340 = vsel %vm1152, %v1135, 0
      %v1343 = vsel %vm1152, %v1136, 0
      %1345 = vmatprep.subr.mxu0 0.0
      %1346 = vmatpush1.msra.mxu0 %v1137
      %1347 = vmatprep.subr.mxu0 0.0
      %1348 = vmatpush1.msra.mxu0 %v1138
      %1349 = vmatprep.subr.mxu0 0.0
      %1350 = vmatpush1.msra.mxu0 %v1139
      %1351 = vmatprep.subr.mxu0 0.0
      %1352 = vmatpush1.msra.mxu0 %v1140
      %1353 = vmatprep.subr.mxu0 0.0
      %1354 = vmatpush1.msra.mxu0 %v1141
      %1355 = vmatprep.subr.mxu0 0.0
      %1356 = vmatpush1.msra.mxu0 %v1142
      %1357 = vmatprep.subr.mxu0 0.0
      %1358 = vmatpush1.msra.mxu0 %v1143
      %1359 = vmatprep.subr.mxu0 0.0
      %1360 = vmatpush1.msra.mxu0 %v1144
      %1361 = vmatprep.subr.mxu0 0.0
      %1362 = vmatpush1.msra.mxu0 0.0
      %1363 = vmatprep.subr.mxu0 0.0
      %1364 = vmatpush1.msra.mxu0 0.0
      %1365 = vmatprep.subr.mxu0 0.0
      %1366 = vmatpush1.msra.mxu0 0.0
      %1367 = vmatprep.subr.mxu0 0.0
      %1368 = vmatpush1.msra.mxu0 0.0
      %1369 = vmatprep.subr.mxu0 0.0
      %1370 = vmatpush1.msra.mxu0 0.0
      %1371 = vmatprep.subr.mxu0 0.0
      %1372 = vmatpush1.msra.mxu0 0.0
      %1373 = vmatprep.subr.mxu0 0.0
      %1374 = vmatpush1.msra.mxu0 0.0
      %1375 = vmatprep.subr.mxu0 0.0
      %1376 = vmatpush1.msra.mxu0 0.0
      %1377 = vmatprep.subr.mxu0 0.0
      %1378 = vmatpush1.msra.mxu0 0.0
      %1379 = vmatprep.subr.mxu0 0.0
      %1380 = vmatpush1.msra.mxu0 0.0
      %1381 = vmatprep.subr.mxu0 0.0
      %1382 = vmatpush1.msra.mxu0 0.0
      %1383 = vmatprep.subr.mxu0 0.0
      %1384 = vmatpush1.msra.mxu0 0.0
      %1385 = vmatprep.subr.mxu0 0.0
      %1386 = vmatpush1.msra.mxu0 0.0
      %1387 = vmatprep.subr.mxu0 0.0
      %1388 = vmatpush1.msra.mxu0 0.0
      %1389 = vmatprep.subr.mxu0 0.0
      %1390 = vmatpush1.msra.mxu0 0.0
      %1391 = vmatprep.subr.mxu0 0.0
      %1392 = vmatpush1.msra.mxu0 0.0
      %1393 = vmatprep.subr.mxu0 0.0
      %1394 = vmatpush1.msra.mxu0 0.0
      %1395 = vmatprep.subr.mxu0 0.0
      %1396 = vmatpush1.msra.mxu0 0.0
      %1397 = vmatprep.subr.mxu0 0.0
      %1398 = vmatpush1.msra.mxu0 0.0
      %1399 = vmatprep.subr.mxu0 0.0
      %1400 = vmatpush1.msra.mxu0 0.0
      %1401 = vmatprep.subr.mxu0 0.0
      %1402 = vmatpush1.msra.mxu0 0.0
      %1403 = vmatprep.subr.mxu0 0.0
      %1404 = vmatpush1.msra.mxu0 0.0
      %1405 = vmatprep.subr.mxu0 0.0
      %1406 = vmatpush1.msra.mxu0 0.0
      %1407 = vmatprep.subr.mxu0 0.0
      %1408 = vmatpush1.msra.mxu0 0.0
      %1409 = vmatprep.mubr.f32.mxu0 0.0
      %1410 = vmatmul.mubr.f32.gmra.mrb[0].mxu0 %v1154
      %v1411 = vpop.f32.mrb[0].mxu0
      %v1412 = vadd.f32 %v1150, %v1411
      %v1413 = vpop.f32.mrb[0].mxu0
      %1414 = vmatprep.mubr.f32.mxu0 0.0
      %1415 = vmatmul.mubr.f32.gmra.mrb[0].mxu0 %v1157
      %v1416 = vpop.f32.mrb[0].mxu0
      %v1417 = vadd.f32 %v1150, %v1416
      %v1418 = vpop.f32.mrb[0].mxu0
      %1419 = vmatprep.mubr.f32.mxu0 0.0
      %1420 = vmatmul.mubr.f32.gmra.mrb[0].mxu0 %v1160
      %v1421 = vpop.f32.mrb[0].mxu0
      %v1422 = vadd.f32 %v1150, %v1421
      %v1423 = vpop.f32.mrb[0].mxu0
      %1424 = vmatprep.mubr.f32.mxu0 0.0
      %1425 = vmatmul.mubr.f32.gmra.mrb[0].mxu0 %v1163
      %v1426 = vpop.f32.mrb[0].mxu0
      %v1427 = vadd.f32 %v1150, %v1426
      %v1428 = vpop.f32.mrb[0].mxu0
      %1429 = vmatprep.mubr.f32.mxu0 0.0
      %1430 = vmatmul.mubr.f32.gmra.mrb[0].mxu0 %v1166
      %v1431 = vpop.f32.mrb[0].mxu0
      %v1432 = vadd.f32 %v1150, %v1431
      %v1433 = vpop.f32.mrb[0].mxu0
      %1434 = vmatprep.mubr.f32.mxu0 0.0
      %1435 = vmatmul.mubr.f32.gmra.mrb[0].mxu0 %v1169
      %v1436 = vpop.f32.mrb[0].mxu0
      %v1437 = vadd.f32 %v1150, %v1436
      %v1438 = vpop.f32.mrb[0].mxu0
      %1439 = vmatprep.mubr.f32.mxu0 0.0
      %1440 = vmatmul.mubr.f32.gmra.mrb[0].mxu0 %v1172
      %v1441 = vpop.f32.mrb[0].mxu0
      %v1442 = vadd.f32 %v1150, %v1441
      %v1443 = vpop.f32.mrb[0].mxu0
      %1444 = vmatprep.mubr.f32.mxu0 0.0
      %1445 = vmatmul.mubr.f32.gmra.mrb[0].mxu0 %v1175
      %v1446 = vpop.f32.mrb[0].mxu0
      %v1447 = vadd.f32 %v1150, %v1446
      %v1448 = vpop.f32.mrb[0].mxu0
      %1449 = vmatprep.mubr.f32.mxu0 0.0
      %1450 = vmatmul.mubr.f32.gmra.mrb[0].mxu0 %v1178
      %v1451 = vpop.f32.mrb[0].mxu0
      %v1452 = vadd.f32 %v1150, %v1451
      %v1453 = vpop.f32.mrb[0].mxu0
      %1454 = vmatprep.mubr.f32.mxu0 0.0
      %1455 = vmatmul.mubr.f32.gmra.mrb[0].mxu0 %v1181
      %v1456 = vpop.f32.mrb[0].mxu0
      %v1457 = vadd.f32 %v1150, %v1456
      %v1458 = vpop.f32.mrb[0].mxu0
      %1459 = vmatprep.mubr.f32.mxu0 0.0
      %1460 = vmatmul.mubr.f32.gmra.mrb[0].mxu0 %v1184
      %v1461 = vpop.f32.mrb[0].mxu0
      %v1462 = vadd.f32 %v1150, %v1461
      %v1463 = vpop.f32.mrb[0].mxu0
      %1464 = vmatprep.mubr.f32.mxu0 0.0
      %1465 = vmatmul.mubr.f32.gmra.mrb[0].mxu0 %v1187
      %v1466 = vpop.f32.mrb[0].mxu0
      %v1467 = vadd.f32 %v1150, %v1466
      %v1468 = vpop.f32.mrb[0].mxu0
      %1469 = vmatprep.mubr.f32.mxu0 0.0
      %1470 = vmatmul.mubr.f32.gmra.mrb[0].mxu0 %v1190
      %v1471 = vpop.f32.mrb[0].mxu0
      %v1472 = vadd.f32 %v1150, %v1471
      %v1473 = vpop.f32.mrb[0].mxu0
      %1474 = vmatprep.mubr.f32.mxu0 0.0
      %1475 = vmatmul.mubr.f32.gmra.mrb[0].mxu0 %v1193
      %v1476 = vpop.f32.mrb[0].mxu0
      %v1477 = vadd.f32 %v1150, %v1476
      %v1478 = vpop.f32.mrb[0].mxu0
      %1479 = vmatprep.mubr.f32.mxu0 0.0
      %1480 = vmatmul.mubr.f32.gmra.mrb[0].mxu0 %v1196
      %v1481 = vpop.f32.mrb[0].mxu0
      %v1482 = vadd.f32 %v1150, %v1481
      %v1483 = vpop.f32.mrb[0].mxu0
      %1484 = vmatprep.mubr.f32.mxu0 0.0
      %1485 = vmatmul.mubr.f32.gmra.mrb[0].mxu0 %v1199
      %v1486 = vpop.f32.mrb[0].mxu0
      %v1487 = vadd.f32 %v1150, %v1486
      %v1488 = vpop.f32.mrb[0].mxu0
      %1489 = vmatprep.mubr.f32.mxu0 0.0
      %1490 = vmatmul.mubr.f32.gmra.mrb[0].mxu0 %v1202
      %v1491 = vpop.f32.mrb[0].mxu0
      %v1492 = vadd.f32 %v1150, %v1491
      %v1493 = vpop.f32.mrb[0].mxu0
      %1494 = vmatprep.mubr.f32.mxu0 0.0
      %1495 = vmatmul.mubr.f32.gmra.mrb[0].mxu0 %v1205
      %v1496 = vpop.f32.mrb[0].mxu0
      %v1497 = vadd.f32 %v1150, %v1496
      %v1498 = vpop.f32.mrb[0].mxu0
      %1499 = vmatprep.mubr.f32.mxu0 0.0
      %1500 = vmatmul.mubr.f32.gmra.mrb[0].mxu0 %v1208
      %v1501 = vpop.f32.mrb[0].mxu0
      %v1502 = vadd.f32 %v1150, %v1501
      %v1503 = vpop.f32.mrb[0].mxu0
      %1504 = vmatprep.mubr.f32.mxu0 0.0
      %1505 = vmatmul.mubr.f32.gmra.mrb[0].mxu0 %v1211
      %v1506 = vpop.f32.mrb[0].mxu0
      %v1507 = vadd.f32 %v1150, %v1506
      %v1508 = vpop.f32.mrb[0].mxu0
      %1509 = vmatprep.mubr.f32.mxu0 0.0
      %1510 = vmatmul.mubr.f32.gmra.mrb[0].mxu0 %v1214
      %v1511 = vpop.f32.mrb[0].mxu0
      %v1512 = vadd.f32 %v1150, %v1511
      %v1513 = vpop.f32.mrb[0].mxu0
      %1514 = vmatprep.mubr.f32.mxu0 0.0
      %1515 = vmatmul.mubr.f32.gmra.mrb[0].mxu0 %v1217
      %v1516 = vpop.f32.mrb[0].mxu0
      %v1517 = vadd.f32 %v1150, %v1516
      %v1518 = vpop.f32.mrb[0].mxu0
      %1519 = vmatprep.mubr.f32.mxu0 0.0
      %1520 = vmatmul.mubr.f32.gmra.mrb[0].mxu0 %v1220
      %v1521 = vpop.f32.mrb[0].mxu0
      %v1522 = vadd.f32 %v1150, %v1521
      %v1523 = vpop.f32.mrb[0].mxu0
      %1524 = vmatprep.mubr.f32.mxu0 0.0
      %1525 = vmatmul.mubr.f32.gmra.mrb[0].mxu0 %v1223
      %v1526 = vpop.f32.mrb[0].mxu0
      %v1527 = vadd.f32 %v1150, %v1526
      %v1528 = vpop.f32.mrb[0].mxu0
      %1529 = vmatprep.mubr.f32.mxu0 0.0
      %1530 = vmatmul.mubr.f32.gmra.mrb[0].mxu0 %v1226
      %v1531 = vpop.f32.mrb[0].mxu0
      %v1532 = vadd.f32 %v1150, %v1531
      %v1533 = vpop.f32.mrb[0].mxu0
      %1534 = vmatprep.mubr.f32.mxu0 0.0
      %1535 = vmatmul.mubr.f32.gmra.mrb[0].mxu0 %v1229
      %v1536 = vpop.f32.mrb[0].mxu0
      %v1537 = vadd.f32 %v1150, %v1536
      %v1538 = vpop.f32.mrb[0].mxu0
      %1539 = vmatprep.mubr.f32.mxu0 0.0
      %1540 = vmatmul.mubr.f32.gmra.mrb[0].mxu0 %v1232
      %v1541 = vpop.f32.mrb[0].mxu0
      %v1542 = vadd.f32 %v1150, %v1541
      %v1543 = vpop.f32.mrb[0].mxu0
      %1544 = vmatprep.mubr.f32.mxu0 0.0
      %1545 = vmatmul.mubr.f32.gmra.mrb[0].mxu0 %v1235
      %v1546 = vpop.f32.mrb[0].mxu0
      %v1547 = vadd.f32 %v1150, %v1546
      %v1548 = vpop.f32.mrb[0].mxu0
      %1549 = vmatprep.mubr.f32.mxu0 0.0
      %1550 = vmatmul.mubr.f32.gmra.mrb[0].mxu0 %v1238
      %v1551 = vpop.f32.mrb[0].mxu0
      %v1552 = vadd.f32 %v1150, %v1551
      %v1553 = vpop.f32.mrb[0].mxu0
      %1554 = vmatprep.mubr.f32.mxu0 0.0
      %1555 = vmatmul.mubr.f32.gmra.mrb[0].mxu0 %v1241
      %v1556 = vpop.f32.mrb[0].mxu0
      %v1557 = vadd.f32 %v1150, %v1556
      %v1558 = vpop.f32.mrb[0].mxu0
      %1559 = vmatprep.mubr.f32.mxu0 0.0
      %1560 = vmatmul.mubr.f32.gmra.mrb[0].mxu0 %v1244
      %v1561 = vpop.f32.mrb[0].mxu0
      %v1562 = vadd.f32 %v1150, %v1561
      %v1563 = vpop.f32.mrb[0].mxu0
      %1564 = vmatprep.mubr.f32.mxu0 0.0
      %1565 = vmatmul.mubr.f32.gmra.mrb[0].mxu0 %v1247
      %v1566 = vpop.f32.mrb[0].mxu0
      %v1567 = vadd.f32 %v1150, %v1566
      %v1568 = vpop.f32.mrb[0].mxu0
      %1569 = vmatprep.mubr.f32.mxu0 0.0
      %1570 = vmatmul.mubr.f32.gmra.mrb[0].mxu0 %v1250
      %v1571 = vpop.f32.mrb[0].mxu0
      %v1572 = vadd.f32 %v1150, %v1571
      %v1573 = vpop.f32.mrb[0].mxu0
      %1574 = vmatprep.mubr.f32.mxu0 0.0
      %1575 = vmatmul.mubr.f32.gmra.mrb[0].mxu0 %v1253
      %v1576 = vpop.f32.mrb[0].mxu0
      %v1577 = vadd.f32 %v1150, %v1576
      %v1578 = vpop.f32.mrb[0].mxu0
      %1579 = vmatprep.mubr.f32.mxu0 0.0
      %1580 = vmatmul.mubr.f32.gmra.mrb[0].mxu0 %v1256
      %v1581 = vpop.f32.mrb[0].mxu0
      %v1582 = vadd.f32 %v1150, %v1581
      %v1583 = vpop.f32.mrb[0].mxu0
      %1584 = vmatprep.mubr.f32.mxu0 0.0
      %1585 = vmatmul.mubr.f32.gmra.mrb[0].mxu0 %v1259
      %v1586 = vpop.f32.mrb[0].mxu0
      %v1587 = vadd.f32 %v1150, %v1586
      %v1588 = vpop.f32.mrb[0].mxu0
      %1589 = vmatprep.mubr.f32.mxu0 0.0
      %1590 = vmatmul.mubr.f32.gmra.mrb[0].mxu0 %v1262
      %v1591 = vpop.f32.mrb[0].mxu0
      %v1592 = vadd.f32 %v1150, %v1591
      %v1593 = vpop.f32.mrb[0].mxu0
      %1594 = vmatprep.mubr.f32.mxu0 0.0
      %1595 = vmatmul.mubr.f32.gmra.mrb[0].mxu0 %v1265
      %v1596 = vpop.f32.mrb[0].mxu0
      %v1597 = vadd.f32 %v1150, %v1596
      %v1598 = vpop.f32.mrb[0].mxu0
      %1599 = vmatprep.mubr.f32.mxu0 0.0
      %1600 = vmatmul.mubr.f32.gmra.mrb[0].mxu0 %v1268
      %v1601 = vpop.f32.mrb[0].mxu0
      %v1602 = vadd.f32 %v1150, %v1601
      %v1603 = vpop.f32.mrb[0].mxu0
      %1604 = vmatprep.mubr.f32.mxu0 0.0
      %1605 = vmatmul.mubr.f32.gmra.mrb[0].mxu0 %v1271
      %v1606 = vpop.f32.mrb[0].mxu0
      %v1607 = vadd.f32 %v1150, %v1606
      %v1608 = vpop.f32.mrb[0].mxu0
      %1609 = vmatprep.mubr.f32.mxu0 0.0
      %1610 = vmatmul.mubr.f32.gmra.mrb[0].mxu0 %v1274
      %v1611 = vpop.f32.mrb[0].mxu0
      %v1612 = vadd.f32 %v1150, %v1611
      %v1613 = vpop.f32.mrb[0].mxu0
      %1614 = vmatprep.mubr.f32.mxu0 0.0
      %1615 = vmatmul.mubr.f32.gmra.mrb[0].mxu0 %v1277
      %v1616 = vpop.f32.mrb[0].mxu0
      %v1617 = vadd.f32 %v1150, %v1616
      %v1618 = vpop.f32.mrb[0].mxu0
      %1619 = vmatprep.mubr.f32.mxu0 0.0
      %1620 = vmatmul.mubr.f32.gmra.mrb[0].mxu0 %v1280
      %v1621 = vpop.f32.mrb[0].mxu0
      %v1622 = vadd.f32 %v1150, %v1621
      %v1623 = vpop.f32.mrb[0].mxu0
      %1624 = vmatprep.mubr.f32.mxu0 0.0
      %1625 = vmatmul.mubr.f32.gmra.mrb[0].mxu0 %v1283
      %v1626 = vpop.f32.mrb[0].mxu0
      %v1627 = vadd.f32 %v1150, %v1626
      %v1628 = vpop.f32.mrb[0].mxu0
      %1629 = vmatprep.mubr.f32.mxu0 0.0
      %1630 = vmatmul.mubr.f32.gmra.mrb[0].mxu0 %v1286
      %v1631 = vpop.f32.mrb[0].mxu0
      %v1632 = vadd.f32 %v1150, %v1631
      %v1633 = vpop.f32.mrb[0].mxu0
      %1634 = vmatprep.mubr.f32.mxu0 0.0
      %1635 = vmatmul.mubr.f32.gmra.mrb[0].mxu0 %v1289
      %v1636 = vpop.f32.mrb[0].mxu0
      %v1637 = vadd.f32 %v1150, %v1636
      %v1638 = vpop.f32.mrb[0].mxu0
      %1639 = vmatprep.mubr.f32.mxu0 0.0
      %1640 = vmatmul.mubr.f32.gmra.mrb[0].mxu0 %v1292
      %v1641 = vpop.f32.mrb[0].mxu0
      %v1642 = vadd.f32 %v1150, %v1641
      %v1643 = vpop.f32.mrb[0].mxu0
      %1644 = vmatprep.mubr.f32.mxu0 0.0
      %1645 = vmatmul.mubr.f32.gmra.mrb[0].mxu0 %v1295
      %v1646 = vpop.f32.mrb[0].mxu0
      %v1647 = vadd.f32 %v1150, %v1646
      %v1648 = vpop.f32.mrb[0].mxu0
      %1649 = vmatprep.mubr.f32.mxu0 0.0
      %1650 = vmatmul.mubr.f32.gmra.mrb[0].mxu0 %v1298
      %v1651 = vpop.f32.mrb[0].mxu0
      %v1652 = vadd.f32 %v1150, %v1651
      %v1653 = vpop.f32.mrb[0].mxu0
      %1654 = vmatprep.mubr.f32.mxu0 0.0
      %1655 = vmatmul.mubr.f32.gmra.mrb[0].mxu0 %v1301
      %v1656 = vpop.f32.mrb[0].mxu0
      %v1657 = vadd.f32 %v1150, %v1656
      %v1658 = vpop.f32.mrb[0].mxu0
      %1659 = vmatprep.mubr.f32.mxu0 0.0
      %1660 = vmatmul.mubr.f32.gmra.mrb[0].mxu0 %v1304
      %v1661 = vpop.f32.mrb[0].mxu0
      %v1662 = vadd.f32 %v1150, %v1661
      %v1663 = vpop.f32.mrb[0].mxu0
      %1664 = vmatprep.mubr.f32.mxu0 0.0
      %1665 = vmatmul.mubr.f32.gmra.mrb[0].mxu0 %v1307
      %v1666 = vpop.f32.mrb[0].mxu0
      %v1667 = vadd.f32 %v1150, %v1666
      %v1668 = vpop.f32.mrb[0].mxu0
      %1669 = vmatprep.mubr.f32.mxu0 0.0
      %1670 = vmatmul.mubr.f32.gmra.mrb[0].mxu0 %v1310
      %v1671 = vpop.f32.mrb[0].mxu0
      %v1672 = vadd.f32 %v1150, %v1671
      %v1673 = vpop.f32.mrb[0].mxu0
      %1674 = vmatprep.mubr.f32.mxu0 0.0
      %1675 = vmatmul.mubr.f32.gmra.mrb[0].mxu0 %v1313
      %v1676 = vpop.f32.mrb[0].mxu0
      %v1677 = vadd.f32 %v1150, %v1676
      %v1678 = vpop.f32.mrb[0].mxu0
      %1679 = vmatprep.mubr.f32.mxu0 0.0
      %1680 = vmatmul.mubr.f32.gmra.mrb[0].mxu0 %v1316
      %v1681 = vpop.f32.mrb[0].mxu0
      %v1682 = vadd.f32 %v1150, %v1681
      %v1683 = vpop.f32.mrb[0].mxu0
      %1684 = vmatprep.mubr.f32.mxu0 0.0
      %1685 = vmatmul.mubr.f32.gmra.mrb[0].mxu0 %v1319
      %v1686 = vpop.f32.mrb[0].mxu0
      %v1687 = vadd.f32 %v1150, %v1686
      %v1688 = vpop.f32.mrb[0].mxu0
      %1689 = vmatprep.mubr.f32.mxu0 0.0
      %1690 = vmatmul.mubr.f32.gmra.mrb[0].mxu0 %v1322
      %v1691 = vpop.f32.mrb[0].mxu0
      %v1692 = vadd.f32 %v1150, %v1691
      %v1693 = vpop.f32.mrb[0].mxu0
      %1694 = vmatprep.mubr.f32.mxu0 0.0
      %1695 = vmatmul.mubr.f32.gmra.mrb[0].mxu0 %v1325
      %v1696 = vpop.f32.mrb[0].mxu0
      %v1697 = vadd.f32 %v1150, %v1696
      %v1698 = vpop.f32.mrb[0].mxu0
      %1699 = vmatprep.mubr.f32.mxu0 0.0
      %1700 = vmatmul.mubr.f32.gmra.mrb[0].mxu0 %v1328
      %v1701 = vpop.f32.mrb[0].mxu0
      %v1702 = vadd.f32 %v1150, %v1701
      %v1703 = vpop.f32.mrb[0].mxu0
      %1704 = vmatprep.mubr.f32.mxu0 0.0
      %1705 = vmatmul.mubr.f32.gmra.mrb[0].mxu0 %v1331
      %v1706 = vpop.f32.mrb[0].mxu0
      %v1707 = vadd.f32 %v1150, %v1706
      %v1708 = vpop.f32.mrb[0].mxu0
      %1709 = vmatprep.mubr.f32.mxu0 0.0
      %1710 = vmatmul.mubr.f32.gmra.mrb[0].mxu0 %v1334
      %v1711 = vpop.f32.mrb[0].mxu0
      %v1712 = vadd.f32 %v1150, %v1711
      %v1713 = vpop.f32.mrb[0].mxu0
      %1714 = vmatprep.mubr.f32.mxu0 0.0
      %1715 = vmatmul.mubr.f32.gmra.mrb[0].mxu0 %v1337
      %v1716 = vpop.f32.mrb[0].mxu0
      %v1717 = vadd.f32 %v1150, %v1716
      %v1718 = vpop.f32.mrb[0].mxu0
      %1719 = vmatprep.mubr.f32.mxu0 0.0
      %1720 = vmatmul.mubr.f32.gmra.mrb[0].mxu0 %v1340
      %v1721 = vpop.f32.mrb[0].mxu0
      %v1722 = vadd.f32 %v1150, %v1721
      %v1723 = vpop.f32.mrb[0].mxu0
      %1724 = vmatprep.mubr.f32.mxu0 0.0
      %1725 = vmatmul.mubr.f32.gmra.mrb[0].mxu0 %v1343
      %v1726 = vpop.f32.mrb[0].mxu0
      %v1727 = vadd.f32 %v1150, %v1726
      %v1728 = vpop.f32.mrb[0].mxu0
      %1729 = vdwg.mxu0
      %v1730 = vmax.f32 %v1412, 0.0
      %v1731 = vmax.f32 %v1417, 0.0
      %v1732 = vmax.f32 %v1422, 0.0
      %v1733 = vmax.f32 %v1427, 0.0
      %v1734 = vmax.f32 %v1432, 0.0
      %v1735 = vmax.f32 %v1437, 0.0
      %v1736 = vmax.f32 %v1442, 0.0
      %v1737 = vmax.f32 %v1447, 0.0
      %v1738 = vmax.f32 %v1452, 0.0
      %v1739 = vmax.f32 %v1457, 0.0
      %v1740 = vmax.f32 %v1462, 0.0
      %v1741 = vmax.f32 %v1467, 0.0
      %v1742 = vmax.f32 %v1472, 0.0
      %v1743 = vmax.f32 %v1477, 0.0
      %v1744 = vmax.f32 %v1482, 0.0
      %v1745 = vmax.f32 %v1487, 0.0
      %v1746 = vmax.f32 %v1492, 0.0
      %v1747 = vmax.f32 %v1497, 0.0
      %v1748 = vmax.f32 %v1502, 0.0
      %v1749 = vmax.f32 %v1507, 0.0
      %v1750 = vmax.f32 %v1512, 0.0
      %v1751 = vmax.f32 %v1517, 0.0
      %v1752 = vmax.f32 %v1522, 0.0
      %v1753 = vmax.f32 %v1527, 0.0
      %v1754 = vmax.f32 %v1532, 0.0
      %v1755 = vmax.f32 %v1537, 0.0
      %v1756 = vmax.f32 %v1542, 0.0
      %v1757 = vmax.f32 %v1547, 0.0
      %v1758 = vmax.f32 %v1552, 0.0
      %v1759 = vmax.f32 %v1557, 0.0
      %v1760 = vmax.f32 %v1562, 0.0
      %v1761 = vmax.f32 %v1567, 0.0
      %v1762 = vmax.f32 %v1572, 0.0
      %v1763 = vmax.f32 %v1577, 0.0
      %v1764 = vmax.f32 %v1582, 0.0
      %v1765 = vmax.f32 %v1587, 0.0
      %v1766 = vmax.f32 %v1592, 0.0
      %v1767 = vmax.f32 %v1597, 0.0
      %v1768 = vmax.f32 %v1602, 0.0
      %v1769 = vmax.f32 %v1607, 0.0
      %v1770 = vmax.f32 %v1612, 0.0
      %v1771 = vmax.f32 %v1617, 0.0
      %v1772 = vmax.f32 %v1622, 0.0
      %v1773 = vmax.f32 %v1627, 0.0
      %v1774 = vmax.f32 %v1632, 0.0
      %v1775 = vmax.f32 %v1637, 0.0
      %v1776 = vmax.f32 %v1642, 0.0
      %v1777 = vmax.f32 %v1647, 0.0
      %v1778 = vmax.f32 %v1652, 0.0
      %v1779 = vmax.f32 %v1657, 0.0
      %v1780 = vmax.f32 %v1662, 0.0
      %v1781 = vmax.f32 %v1667, 0.0
      %v1782 = vmax.f32 %v1672, 0.0
      %v1783 = vmax.f32 %v1677, 0.0
      %v1784 = vmax.f32 %v1682, 0.0
      %v1785 = vmax.f32 %v1687, 0.0
      %v1786 = vmax.f32 %v1692, 0.0
      %v1787 = vmax.f32 %v1697, 0.0
      %v1788 = vmax.f32 %v1702, 0.0
      %v1789 = vmax.f32 %v1707, 0.0
      %v1790 = vmax.f32 %v1712, 0.0
      %v1791 = vmax.f32 %v1717, 0.0
      %v1792 = vmax.f32 %v1722, 0.0
      %v1793 = vmax.f32 %v1727, 0.0
      %v1794 = vld [vmem:[%s5] sm:$0xff]
      %v1795 = vld [vmem:[%s5 + $0x8] sm:$0xff]
      %v1796 = vld [vmem:[%s5 + $0x10] sm:$0xff]
      %v1797 = vld [vmem:[%s5 + $0x18] sm:$0xff]
      %v1798 = vld [vmem:[%s5 + $0x20] sm:$0xff]
      %v1799 = vld [vmem:[%s5 + $0x28] sm:$0xff]
      %v1800 = vld [vmem:[%s5 + $0x30] sm:$0xff]
      %v1801 = vld [vmem:[%s5 + $0x38] sm:$0xff]
      %v1802 = vld [vmem:[%s6] sm:$0x1]
      %v1804 = vlaneseq
      %v1805 = vshrl.u32 %v1804, 7
      %v1806 = vsub.s32 0, %v1805
      %v1807 = vrot.slane %v1802, %v1806
      %v1810 = vsel %vm1152, %v1730, 0
      %v1813 = vsel %vm1152, %v1731, 0
      %v1816 = vsel %vm1152, %v1732, 0
      %v1819 = vsel %vm1152, %v1733, 0
      %v1822 = vsel %vm1152, %v1734, 0
      %v1825 = vsel %vm1152, %v1735, 0
      %v1828 = vsel %vm1152, %v1736, 0
      %v1831 = vsel %vm1152, %v1737, 0
      %v1834 = vsel %vm1152, %v1738, 0
      %v1837 = vsel %vm1152, %v1739, 0
      %v1840 = vsel %vm1152, %v1740, 0
      %v1843 = vsel %vm1152, %v1741, 0
      %v1846 = vsel %vm1152, %v1742, 0
      %v1849 = vsel %vm1152, %v1743, 0
      %v1852 = vsel %vm1152, %v1744, 0
      %v1855 = vsel %vm1152, %v1745, 0
      %v1858 = vsel %vm1152, %v1746, 0
      %v1861 = vsel %vm1152, %v1747, 0
      %v1864 = vsel %vm1152, %v1748, 0
      %v1867 = vsel %vm1152, %v1749, 0
      %v1870 = vsel %vm1152, %v1750, 0
      %v1873 = vsel %vm1152, %v1751, 0
      %v1876 = vsel %vm1152, %v1752, 0
      %v1879 = vsel %vm1152, %v1753, 0
      %v1882 = vsel %vm1152, %v1754, 0
      %v1885 = vsel %vm1152, %v1755, 0
      %v1888 = vsel %vm1152, %v1756, 0
      %v1891 = vsel %vm1152, %v1757, 0
      %v1894 = vsel %vm1152, %v1758, 0
      %v1897 = vsel %vm1152, %v1759, 0
      %v1900 = vsel %vm1152, %v1760, 0
      %v1903 = vsel %vm1152, %v1761, 0
      %v1906 = vsel %vm1152, %v1762, 0
      %v1909 = vsel %vm1152, %v1763, 0
      %v1912 = vsel %vm1152, %v1764, 0
      %v1915 = vsel %vm1152, %v1765, 0
      %v1918 = vsel %vm1152, %v1766, 0
      %v1921 = vsel %vm1152, %v1767, 0
      %v1924 = vsel %vm1152, %v1768, 0
      %v1927 = vsel %vm1152, %v1769, 0
      %v1930 = vsel %vm1152, %v1770, 0
      %v1933 = vsel %vm1152, %v1771, 0
      %v1936 = vsel %vm1152, %v1772, 0
      %v1939 = vsel %vm1152, %v1773, 0
      %v1942 = vsel %vm1152, %v1774, 0
      %v1945 = vsel %vm1152, %v1775, 0
      %v1948 = vsel %vm1152, %v1776, 0
      %v1951 = vsel %vm1152, %v1777, 0
      %v1954 = vsel %vm1152, %v1778, 0
      %v1957 = vsel %vm1152, %v1779, 0
      %v1960 = vsel %vm1152, %v1780, 0
      %v1963 = vsel %vm1152, %v1781, 0
      %v1966 = vsel %vm1152, %v1782, 0
      %v1969 = vsel %vm1152, %v1783, 0
      %v1972 = vsel %vm1152, %v1784, 0
      %v1975 = vsel %vm1152, %v1785, 0
      %v1978 = vsel %vm1152, %v1786, 0
      %v1981 = vsel %vm1152, %v1787, 0
      %v1984 = vsel %vm1152, %v1788, 0
      %v1987 = vsel %vm1152, %v1789, 0
      %v1990 = vsel %vm1152, %v1790, 0
      %v1993 = vsel %vm1152, %v1791, 0
      %v1996 = vsel %vm1152, %v1792, 0
      %v1999 = vsel %vm1152, %v1793, 0
      %2001 = vmatprep.subr.mxu0 0.0
      %2002 = vmatpush1.msra.mxu0 %v1794
      %2003 = vmatprep.subr.mxu0 0.0
      %2004 = vmatpush1.msra.mxu0 %v1795
      %2005 = vmatprep.subr.mxu0 0.0
      %2006 = vmatpush1.msra.mxu0 %v1796
      %2007 = vmatprep.subr.mxu0 0.0
      %2008 = vmatpush1.msra.mxu0 %v1797
      %2009 = vmatprep.subr.mxu0 0.0
      %2010 = vmatpush1.msra.mxu0 %v1798
      %2011 = vmatprep.subr.mxu0 0.0
      %2012 = vmatpush1.msra.mxu0 %v1799
      %2013 = vmatprep.subr.mxu0 0.0
      %2014 = vmatpush1.msra.mxu0 %v1800
      %2015 = vmatprep.subr.mxu0 0.0
      %2016 = vmatpush1.msra.mxu0 %v1801
      %2017 = vmatprep.subr.mxu0 0.0
      %2018 = vmatpush1.msra.mxu0 0.0
      %2019 = vmatprep.subr.mxu0 0.0
      %2020 = vmatpush1.msra.mxu0 0.0
      %2021 = vmatprep.subr.mxu0 0.0
      %2022 = vmatpush1.msra.mxu0 0.0
      %2023 = vmatprep.subr.mxu0 0.0
      %2024 = vmatpush1.msra.mxu0 0.0
      %2025 = vmatprep.subr.mxu0 0.0
      %2026 = vmatpush1.msra.mxu0 0.0
      %2027 = vmatprep.subr.mxu0 0.0
      %2028 = vmatpush1.msra.mxu0 0.0
      %2029 = vmatprep.subr.mxu0 0.0
      %2030 = vmatpush1.msra.mxu0 0.0
      %2031 = vmatprep.subr.mxu0 0.0
      %2032 = vmatpush1.msra.mxu0 0.0
      %2033 = vmatprep.subr.mxu0 0.0
      %2034 = vmatpush1.msra.mxu0 0.0
      %2035 = vmatprep.subr.mxu0 0.0
      %2036 = vmatpush1.msra.mxu0 0.0
      %2037 = vmatprep.subr.mxu0 0.0
      %2038 = vmatpush1.msra.mxu0 0.0
      %2039 = vmatprep.subr.mxu0 0.0
      %2040 = vmatpush1.msra.mxu0 0.0
      %2041 = vmatprep.subr.mxu0 0.0
      %2042 = vmatpush1.msra.mxu0 0.0
      %2043 = vmatprep.subr.mxu0 0.0
      %2044 = vmatpush1.msra.mxu0 0.0
      %2045 = vmatprep.subr.mxu0 0.0
      %2046 = vmatpush1.msra.mxu0 0.0
      %2047 = vmatprep.subr.mxu0 0.0
      %2048 = vmatpush1.msra.mxu0 0.0
      %2049 = vmatprep.subr.mxu0 0.0
      %2050 = vmatpush1.msra.mxu0 0.0
      %2051 = vmatprep.subr.mxu0 0.0
      %2052 = vmatpush1.msra.mxu0 0.0
      %2053 = vmatprep.subr.mxu0 0.0
      %2054 = vmatpush1.msra.mxu0 0.0
      %2055 = vmatprep.subr.mxu0 0.0
      %2056 = vmatpush1.msra.mxu0 0.0
      %2057 = vmatprep.subr.mxu0 0.0
      %2058 = vmatpush1.msra.mxu0 0.0
      %2059 = vmatprep.subr.mxu0 0.0
      %2060 = vmatpush1.msra.mxu0 0.0
      %2061 = vmatprep.subr.mxu0 0.0
      %2062 = vmatpush1.msra.mxu0 0.0
      %2063 = vmatprep.subr.mxu0 0.0
      %2064 = vmatpush1.msra.mxu0 0.0
      %2065 = vmatprep.mubr.f32.mxu0 0.0
      %2066 = vmatmul.mubr.f32.gmra.mrb[0].mxu0 %v1810
      %v2067 = vpop.f32.mrb[0].mxu0
      %v2068 = vadd.f32 %v1807, %v2067
      %v2069 = vpop.f32.mrb[0].mxu0
      %2070 = vmatprep.mubr.f32.mxu0 0.0
      %2071 = vmatmul.mubr.f32.gmra.mrb[0].mxu0 %v1813
      %v2072 = vpop.f32.mrb[0].mxu0
      %v2073 = vadd.f32 %v1807, %v2072
      %v2074 = vpop.f32.mrb[0].mxu0
      %2075 = vmatprep.mubr.f32.mxu0 0.0
      %2076 = vmatmul.mubr.f32.gmra.mrb[0].mxu0 %v1816
      %v2077 = vpop.f32.mrb[0].mxu0
      %v2078 = vadd.f32 %v1807, %v2077
      %v2079 = vpop.f32.mrb[0].mxu0
      %2080 = vmatprep.mubr.f32.mxu0 0.0
      %2081 = vmatmul.mubr.f32.gmra.mrb[0].mxu0 %v1819
      %v2082 = vpop.f32.mrb[0].mxu0
      %v2083 = vadd.f32 %v1807, %v2082
      %v2084 = vpop.f32.mrb[0].mxu0
      %2085 = vmatprep.mubr.f32.mxu0 0.0
      %2086 = vmatmul.mubr.f32.gmra.mrb[0].mxu0 %v1822
      %v2087 = vpop.f32.mrb[0].mxu0
      %v2088 = vadd.f32 %v1807, %v2087
      %v2089 = vpop.f32.mrb[0].mxu0
      %2090 = vmatprep.mubr.f32.mxu0 0.0
      %2091 = vmatmul.mubr.f32.gmra.mrb[0].mxu0 %v1825
      %v2092 = vpop.f32.mrb[0].mxu0
      %v2093 = vadd.f32 %v1807, %v2092
      %v2094 = vpop.f32.mrb[0].mxu0
      %2095 = vmatprep.mubr.f32.mxu0 0.0
      %2096 = vmatmul.mubr.f32.gmra.mrb[0].mxu0 %v1828
      %v2097 = vpop.f32.mrb[0].mxu0
      %v2098 = vadd.f32 %v1807, %v2097
      %v2099 = vpop.f32.mrb[0].mxu0
      %2100 = vmatprep.mubr.f32.mxu0 0.0
      %2101 = vmatmul.mubr.f32.gmra.mrb[0].mxu0 %v1831
      %v2102 = vpop.f32.mrb[0].mxu0
      %v2103 = vadd.f32 %v1807, %v2102
      %v2104 = vpop.f32.mrb[0].mxu0
      %2105 = vmatprep.mubr.f32.mxu0 0.0
      %2106 = vmatmul.mubr.f32.gmra.mrb[0].mxu0 %v1834
      %v2107 = vpop.f32.mrb[0].mxu0
      %v2108 = vadd.f32 %v1807, %v2107
      %v2109 = vpop.f32.mrb[0].mxu0
      %2110 = vmatprep.mubr.f32.mxu0 0.0
      %2111 = vmatmul.mubr.f32.gmra.mrb[0].mxu0 %v1837
      %v2112 = vpop.f32.mrb[0].mxu0
      %v2113 = vadd.f32 %v1807, %v2112
      %v2114 = vpop.f32.mrb[0].mxu0
      %2115 = vmatprep.mubr.f32.mxu0 0.0
      %2116 = vmatmul.mubr.f32.gmra.mrb[0].mxu0 %v1840
      %v2117 = vpop.f32.mrb[0].mxu0
      %v2118 = vadd.f32 %v1807, %v2117
      %v2119 = vpop.f32.mrb[0].mxu0
      %2120 = vmatprep.mubr.f32.mxu0 0.0
      %2121 = vmatmul.mubr.f32.gmra.mrb[0].mxu0 %v1843
      %v2122 = vpop.f32.mrb[0].mxu0
      %v2123 = vadd.f32 %v1807, %v2122
      %v2124 = vpop.f32.mrb[0].mxu0
      %2125 = vmatprep.mubr.f32.mxu0 0.0
      %2126 = vmatmul.mubr.f32.gmra.mrb[0].mxu0 %v1846
      %v2127 = vpop.f32.mrb[0].mxu0
      %v2128 = vadd.f32 %v1807, %v2127
      %v2129 = vpop.f32.mrb[0].mxu0
      %2130 = vmatprep.mubr.f32.mxu0 0.0
      %2131 = vmatmul.mubr.f32.gmra.mrb[0].mxu0 %v1849
      %v2132 = vpop.f32.mrb[0].mxu0
      %v2133 = vadd.f32 %v1807, %v2132
      %v2134 = vpop.f32.mrb[0].mxu0
      %2135 = vmatprep.mubr.f32.mxu0 0.0
      %2136 = vmatmul.mubr.f32.gmra.mrb[0].mxu0 %v1852
      %v2137 = vpop.f32.mrb[0].mxu0
      %v2138 = vadd.f32 %v1807, %v2137
      %v2139 = vpop.f32.mrb[0].mxu0
      %2140 = vmatprep.mubr.f32.mxu0 0.0
      %2141 = vmatmul.mubr.f32.gmra.mrb[0].mxu0 %v1855
      %v2142 = vpop.f32.mrb[0].mxu0
      %v2143 = vadd.f32 %v1807, %v2142
      %v2144 = vpop.f32.mrb[0].mxu0
      %2145 = vmatprep.mubr.f32.mxu0 0.0
      %2146 = vmatmul.mubr.f32.gmra.mrb[0].mxu0 %v1858
      %v2147 = vpop.f32.mrb[0].mxu0
      %v2148 = vadd.f32 %v1807, %v2147
      %v2149 = vpop.f32.mrb[0].mxu0
      %2150 = vmatprep.mubr.f32.mxu0 0.0
      %2151 = vmatmul.mubr.f32.gmra.mrb[0].mxu0 %v1861
      %v2152 = vpop.f32.mrb[0].mxu0
      %v2153 = vadd.f32 %v1807, %v2152
      %v2154 = vpop.f32.mrb[0].mxu0
      %2155 = vmatprep.mubr.f32.mxu0 0.0
      %2156 = vmatmul.mubr.f32.gmra.mrb[0].mxu0 %v1864
      %v2157 = vpop.f32.mrb[0].mxu0
      %v2158 = vadd.f32 %v1807, %v2157
      %v2159 = vpop.f32.mrb[0].mxu0
      %2160 = vmatprep.mubr.f32.mxu0 0.0
      %2161 = vmatmul.mubr.f32.gmra.mrb[0].mxu0 %v1867
      %v2162 = vpop.f32.mrb[0].mxu0
      %v2163 = vadd.f32 %v1807, %v2162
      %v2164 = vpop.f32.mrb[0].mxu0
      %2165 = vmatprep.mubr.f32.mxu0 0.0
      %2166 = vmatmul.mubr.f32.gmra.mrb[0].mxu0 %v1870
      %v2167 = vpop.f32.mrb[0].mxu0
      %v2168 = vadd.f32 %v1807, %v2167
      %v2169 = vpop.f32.mrb[0].mxu0
      %2170 = vmatprep.mubr.f32.mxu0 0.0
      %2171 = vmatmul.mubr.f32.gmra.mrb[0].mxu0 %v1873
      %v2172 = vpop.f32.mrb[0].mxu0
      %v2173 = vadd.f32 %v1807, %v2172
      %v2174 = vpop.f32.mrb[0].mxu0
      %2175 = vmatprep.mubr.f32.mxu0 0.0
      %2176 = vmatmul.mubr.f32.gmra.mrb[0].mxu0 %v1876
      %v2177 = vpop.f32.mrb[0].mxu0
      %v2178 = vadd.f32 %v1807, %v2177
      %v2179 = vpop.f32.mrb[0].mxu0
      %2180 = vmatprep.mubr.f32.mxu0 0.0
      %2181 = vmatmul.mubr.f32.gmra.mrb[0].mxu0 %v1879
      %v2182 = vpop.f32.mrb[0].mxu0
      %v2183 = vadd.f32 %v1807, %v2182
      %v2184 = vpop.f32.mrb[0].mxu0
      %2185 = vmatprep.mubr.f32.mxu0 0.0
      %2186 = vmatmul.mubr.f32.gmra.mrb[0].mxu0 %v1882
      %v2187 = vpop.f32.mrb[0].mxu0
      %v2188 = vadd.f32 %v1807, %v2187
      %v2189 = vpop.f32.mrb[0].mxu0
      %2190 = vmatprep.mubr.f32.mxu0 0.0
      %2191 = vmatmul.mubr.f32.gmra.mrb[0].mxu0 %v1885
      %v2192 = vpop.f32.mrb[0].mxu0
      %v2193 = vadd.f32 %v1807, %v2192
      %v2194 = vpop.f32.mrb[0].mxu0
      %2195 = vmatprep.mubr.f32.mxu0 0.0
      %2196 = vmatmul.mubr.f32.gmra.mrb[0].mxu0 %v1888
      %v2197 = vpop.f32.mrb[0].mxu0
      %v2198 = vadd.f32 %v1807, %v2197
      %v2199 = vpop.f32.mrb[0].mxu0
      %2200 = vmatprep.mubr.f32.mxu0 0.0
      %2201 = vmatmul.mubr.f32.gmra.mrb[0].mxu0 %v1891
      %v2202 = vpop.f32.mrb[0].mxu0
      %v2203 = vadd.f32 %v1807, %v2202
      %v2204 = vpop.f32.mrb[0].mxu0
      %2205 = vmatprep.mubr.f32.mxu0 0.0
      %2206 = vmatmul.mubr.f32.gmra.mrb[0].mxu0 %v1894
      %v2207 = vpop.f32.mrb[0].mxu0
      %v2208 = vadd.f32 %v1807, %v2207
      %v2209 = vpop.f32.mrb[0].mxu0
      %2210 = vmatprep.mubr.f32.mxu0 0.0
      %2211 = vmatmul.mubr.f32.gmra.mrb[0].mxu0 %v1897
      %v2212 = vpop.f32.mrb[0].mxu0
      %v2213 = vadd.f32 %v1807, %v2212
      %v2214 = vpop.f32.mrb[0].mxu0
      %2215 = vmatprep.mubr.f32.mxu0 0.0
      %2216 = vmatmul.mubr.f32.gmra.mrb[0].mxu0 %v1900
      %v2217 = vpop.f32.mrb[0].mxu0
      %v2218 = vadd.f32 %v1807, %v2217
      %v2219 = vpop.f32.mrb[0].mxu0
      %2220 = vmatprep.mubr.f32.mxu0 0.0
      %2221 = vmatmul.mubr.f32.gmra.mrb[0].mxu0 %v1903
      %v2222 = vpop.f32.mrb[0].mxu0
      %v2223 = vadd.f32 %v1807, %v2222
      %v2224 = vpop.f32.mrb[0].mxu0
      %2225 = vmatprep.mubr.f32.mxu0 0.0
      %2226 = vmatmul.mubr.f32.gmra.mrb[0].mxu0 %v1906
      %v2227 = vpop.f32.mrb[0].mxu0
      %v2228 = vadd.f32 %v1807, %v2227
      %v2229 = vpop.f32.mrb[0].mxu0
      %2230 = vmatprep.mubr.f32.mxu0 0.0
      %2231 = vmatmul.mubr.f32.gmra.mrb[0].mxu0 %v1909
      %v2232 = vpop.f32.mrb[0].mxu0
      %v2233 = vadd.f32 %v1807, %v2232
      %v2234 = vpop.f32.mrb[0].mxu0
      %2235 = vmatprep.mubr.f32.mxu0 0.0
      %2236 = vmatmul.mubr.f32.gmra.mrb[0].mxu0 %v1912
      %v2237 = vpop.f32.mrb[0].mxu0
      %v2238 = vadd.f32 %v1807, %v2237
      %v2239 = vpop.f32.mrb[0].mxu0
      %2240 = vmatprep.mubr.f32.mxu0 0.0
      %2241 = vmatmul.mubr.f32.gmra.mrb[0].mxu0 %v1915
      %v2242 = vpop.f32.mrb[0].mxu0
      %v2243 = vadd.f32 %v1807, %v2242
      %v2244 = vpop.f32.mrb[0].mxu0
      %2245 = vmatprep.mubr.f32.mxu0 0.0
      %2246 = vmatmul.mubr.f32.gmra.mrb[0].mxu0 %v1918
      %v2247 = vpop.f32.mrb[0].mxu0
      %v2248 = vadd.f32 %v1807, %v2247
      %v2249 = vpop.f32.mrb[0].mxu0
      %2250 = vmatprep.mubr.f32.mxu0 0.0
      %2251 = vmatmul.mubr.f32.gmra.mrb[0].mxu0 %v1921
      %v2252 = vpop.f32.mrb[0].mxu0
      %v2253 = vadd.f32 %v1807, %v2252
      %v2254 = vpop.f32.mrb[0].mxu0
      %2255 = vmatprep.mubr.f32.mxu0 0.0
      %2256 = vmatmul.mubr.f32.gmra.mrb[0].mxu0 %v1924
      %v2257 = vpop.f32.mrb[0].mxu0
      %v2258 = vadd.f32 %v1807, %v2257
      %v2259 = vpop.f32.mrb[0].mxu0
      %2260 = vmatprep.mubr.f32.mxu0 0.0
      %2261 = vmatmul.mubr.f32.gmra.mrb[0].mxu0 %v1927
      %v2262 = vpop.f32.mrb[0].mxu0
      %v2263 = vadd.f32 %v1807, %v2262
      %v2264 = vpop.f32.mrb[0].mxu0
      %2265 = vmatprep.mubr.f32.mxu0 0.0
      %2266 = vmatmul.mubr.f32.gmra.mrb[0].mxu0 %v1930
      %v2267 = vpop.f32.mrb[0].mxu0
      %v2268 = vadd.f32 %v1807, %v2267
      %v2269 = vpop.f32.mrb[0].mxu0
      %2270 = vmatprep.mubr.f32.mxu0 0.0
      %2271 = vmatmul.mubr.f32.gmra.mrb[0].mxu0 %v1933
      %v2272 = vpop.f32.mrb[0].mxu0
      %v2273 = vadd.f32 %v1807, %v2272
      %v2274 = vpop.f32.mrb[0].mxu0
      %2275 = vmatprep.mubr.f32.mxu0 0.0
      %2276 = vmatmul.mubr.f32.gmra.mrb[0].mxu0 %v1936
      %v2277 = vpop.f32.mrb[0].mxu0
      %v2278 = vadd.f32 %v1807, %v2277
      %v2279 = vpop.f32.mrb[0].mxu0
      %2280 = vmatprep.mubr.f32.mxu0 0.0
      %2281 = vmatmul.mubr.f32.gmra.mrb[0].mxu0 %v1939
      %v2282 = vpop.f32.mrb[0].mxu0
      %v2283 = vadd.f32 %v1807, %v2282
      %v2284 = vpop.f32.mrb[0].mxu0
      %2285 = vmatprep.mubr.f32.mxu0 0.0
      %2286 = vmatmul.mubr.f32.gmra.mrb[0].mxu0 %v1942
      %v2287 = vpop.f32.mrb[0].mxu0
      %v2288 = vadd.f32 %v1807, %v2287
      %v2289 = vpop.f32.mrb[0].mxu0
      %2290 = vmatprep.mubr.f32.mxu0 0.0
      %2291 = vmatmul.mubr.f32.gmra.mrb[0].mxu0 %v1945
      %v2292 = vpop.f32.mrb[0].mxu0
      %v2293 = vadd.f32 %v1807, %v2292
      %v2294 = vpop.f32.mrb[0].mxu0
      %2295 = vmatprep.mubr.f32.mxu0 0.0
      %2296 = vmatmul.mubr.f32.gmra.mrb[0].mxu0 %v1948
      %v2297 = vpop.f32.mrb[0].mxu0
      %v2298 = vadd.f32 %v1807, %v2297
      %v2299 = vpop.f32.mrb[0].mxu0
      %2300 = vmatprep.mubr.f32.mxu0 0.0
      %2301 = vmatmul.mubr.f32.gmra.mrb[0].mxu0 %v1951
      %v2302 = vpop.f32.mrb[0].mxu0
      %v2303 = vadd.f32 %v1807, %v2302
      %v2304 = vpop.f32.mrb[0].mxu0
      %2305 = vmatprep.mubr.f32.mxu0 0.0
      %2306 = vmatmul.mubr.f32.gmra.mrb[0].mxu0 %v1954
      %v2307 = vpop.f32.mrb[0].mxu0
      %v2308 = vadd.f32 %v1807, %v2307
      %v2309 = vpop.f32.mrb[0].mxu0
      %2310 = vmatprep.mubr.f32.mxu0 0.0
      %2311 = vmatmul.mubr.f32.gmra.mrb[0].mxu0 %v1957
      %v2312 = vpop.f32.mrb[0].mxu0
      %v2313 = vadd.f32 %v1807, %v2312
      %v2314 = vpop.f32.mrb[0].mxu0
      %2315 = vmatprep.mubr.f32.mxu0 0.0
      %2316 = vmatmul.mubr.f32.gmra.mrb[0].mxu0 %v1960
      %v2317 = vpop.f32.mrb[0].mxu0
      %v2318 = vadd.f32 %v1807, %v2317
      %v2319 = vpop.f32.mrb[0].mxu0
      %2320 = vmatprep.mubr.f32.mxu0 0.0
      %2321 = vmatmul.mubr.f32.gmra.mrb[0].mxu0 %v1963
      %v2322 = vpop.f32.mrb[0].mxu0
      %v2323 = vadd.f32 %v1807, %v2322
      %v2324 = vpop.f32.mrb[0].mxu0
      %2325 = vmatprep.mubr.f32.mxu0 0.0
      %2326 = vmatmul.mubr.f32.gmra.mrb[0].mxu0 %v1966
      %v2327 = vpop.f32.mrb[0].mxu0
      %v2328 = vadd.f32 %v1807, %v2327
      %v2329 = vpop.f32.mrb[0].mxu0
      %2330 = vmatprep.mubr.f32.mxu0 0.0
      %2331 = vmatmul.mubr.f32.gmra.mrb[0].mxu0 %v1969
      %v2332 = vpop.f32.mrb[0].mxu0
      %v2333 = vadd.f32 %v1807, %v2332
      %v2334 = vpop.f32.mrb[0].mxu0
      %2335 = vmatprep.mubr.f32.mxu0 0.0
      %2336 = vmatmul.mubr.f32.gmra.mrb[0].mxu0 %v1972
      %v2337 = vpop.f32.mrb[0].mxu0
      %v2338 = vadd.f32 %v1807, %v2337
      %v2339 = vpop.f32.mrb[0].mxu0
      %2340 = vmatprep.mubr.f32.mxu0 0.0
      %2341 = vmatmul.mubr.f32.gmra.mrb[0].mxu0 %v1975
      %v2342 = vpop.f32.mrb[0].mxu0
      %v2343 = vadd.f32 %v1807, %v2342
      %v2344 = vpop.f32.mrb[0].mxu0
      %2345 = vmatprep.mubr.f32.mxu0 0.0
      %2346 = vmatmul.mubr.f32.gmra.mrb[0].mxu0 %v1978
      %v2347 = vpop.f32.mrb[0].mxu0
      %v2348 = vadd.f32 %v1807, %v2347
      %v2349 = vpop.f32.mrb[0].mxu0
      %2350 = vmatprep.mubr.f32.mxu0 0.0
      %2351 = vmatmul.mubr.f32.gmra.mrb[0].mxu0 %v1981
      %v2352 = vpop.f32.mrb[0].mxu0
      %v2353 = vadd.f32 %v1807, %v2352
      %v2354 = vpop.f32.mrb[0].mxu0
      %2355 = vmatprep.mubr.f32.mxu0 0.0
      %2356 = vmatmul.mubr.f32.gmra.mrb[0].mxu0 %v1984
      %v2357 = vpop.f32.mrb[0].mxu0
      %v2358 = vadd.f32 %v1807, %v2357
      %v2359 = vpop.f32.mrb[0].mxu0
      %2360 = vmatprep.mubr.f32.mxu0 0.0
      %2361 = vmatmul.mubr.f32.gmra.mrb[0].mxu0 %v1987
      %v2362 = vpop.f32.mrb[0].mxu0
      %v2363 = vadd.f32 %v1807, %v2362
      %v2364 = vpop.f32.mrb[0].mxu0
      %2365 = vmatprep.mubr.f32.mxu0 0.0
      %2366 = vmatmul.mubr.f32.gmra.mrb[0].mxu0 %v1990
      %v2367 = vpop.f32.mrb[0].mxu0
      %v2368 = vadd.f32 %v1807, %v2367
      %v2369 = vpop.f32.mrb[0].mxu0
      %2370 = vmatprep.mubr.f32.mxu0 0.0
      %2371 = vmatmul.mubr.f32.gmra.mrb[0].mxu0 %v1993
      %v2372 = vpop.f32.mrb[0].mxu0
      %v2373 = vadd.f32 %v1807, %v2372
      %v2374 = vpop.f32.mrb[0].mxu0
      %2375 = vmatprep.mubr.f32.mxu0 0.0
      %2376 = vmatmul.mubr.f32.gmra.mrb[0].mxu0 %v1996
      %v2377 = vpop.f32.mrb[0].mxu0
      %v2378 = vadd.f32 %v1807, %v2377
      %v2379 = vpop.f32.mrb[0].mxu0
      %2380 = vmatprep.mubr.f32.mxu0 0.0
      %2381 = vmatmul.mubr.f32.gmra.mrb[0].mxu0 %v1999
      %v2382 = vpop.f32.mrb[0].mxu0
      %v2383 = vadd.f32 %v1807, %v2382
      %v2384 = vpop.f32.mrb[0].mxu0
      %2385 = vdwg.mxu0
      %v2386 = vmax.f32 %v2068, 0.0
      %v2387 = vmax.f32 %v2073, 0.0
      %v2388 = vmax.f32 %v2078, 0.0
      %v2389 = vmax.f32 %v2083, 0.0
      %v2390 = vmax.f32 %v2088, 0.0
      %v2391 = vmax.f32 %v2093, 0.0
      %v2392 = vmax.f32 %v2098, 0.0
      %v2393 = vmax.f32 %v2103, 0.0
      %v2394 = vmax.f32 %v2108, 0.0
      %v2395 = vmax.f32 %v2113, 0.0
      %v2396 = vmax.f32 %v2118, 0.0
      %v2397 = vmax.f32 %v2123, 0.0
      %v2398 = vmax.f32 %v2128, 0.0
      %v2399 = vmax.f32 %v2133, 0.0
      %v2400 = vmax.f32 %v2138, 0.0
      %v2401 = vmax.f32 %v2143, 0.0
      %v2402 = vmax.f32 %v2148, 0.0
      %v2403 = vmax.f32 %v2153, 0.0
      %v2404 = vmax.f32 %v2158, 0.0
      %v2405 = vmax.f32 %v2163, 0.0
      %v2406 = vmax.f32 %v2168, 0.0
      %v2407 = vmax.f32 %v2173, 0.0
      %v2408 = vmax.f32 %v2178, 0.0
      %v2409 = vmax.f32 %v2183, 0.0
      %v2410 = vmax.f32 %v2188, 0.0
      %v2411 = vmax.f32 %v2193, 0.0
      %v2412 = vmax.f32 %v2198, 0.0
      %v2413 = vmax.f32 %v2203, 0.0
      %v2414 = vmax.f32 %v2208, 0.0
      %v2415 = vmax.f32 %v2213, 0.0
      %v2416 = vmax.f32 %v2218, 0.0
      %v2417 = vmax.f32 %v2223, 0.0
      %v2418 = vmax.f32 %v2228, 0.0
      %v2419 = vmax.f32 %v2233, 0.0
      %v2420 = vmax.f32 %v2238, 0.0
      %v2421 = vmax.f32 %v2243, 0.0
      %v2422 = vmax.f32 %v2248, 0.0
      %v2423 = vmax.f32 %v2253, 0.0
      %v2424 = vmax.f32 %v2258, 0.0
      %v2425 = vmax.f32 %v2263, 0.0
      %v2426 = vmax.f32 %v2268, 0.0
      %v2427 = vmax.f32 %v2273, 0.0
      %v2428 = vmax.f32 %v2278, 0.0
      %v2429 = vmax.f32 %v2283, 0.0
      %v2430 = vmax.f32 %v2288, 0.0
      %v2431 = vmax.f32 %v2293, 0.0
      %v2432 = vmax.f32 %v2298, 0.0
      %v2433 = vmax.f32 %v2303, 0.0
      %v2434 = vmax.f32 %v2308, 0.0
      %v2435 = vmax.f32 %v2313, 0.0
      %v2436 = vmax.f32 %v2318, 0.0
      %v2437 = vmax.f32 %v2323, 0.0
      %v2438 = vmax.f32 %v2328, 0.0
      %v2439 = vmax.f32 %v2333, 0.0
      %v2440 = vmax.f32 %v2338, 0.0
      %v2441 = vmax.f32 %v2343, 0.0
      %v2442 = vmax.f32 %v2348, 0.0
      %v2443 = vmax.f32 %v2353, 0.0
      %v2444 = vmax.f32 %v2358, 0.0
      %v2445 = vmax.f32 %v2363, 0.0
      %v2446 = vmax.f32 %v2368, 0.0
      %v2447 = vmax.f32 %v2373, 0.0
      %v2448 = vmax.f32 %v2378, 0.0
      %v2449 = vmax.f32 %v2383, 0.0
      %v2450 = vld [vmem:[%s7] sm:$0xff]
      %v2451 = vld [vmem:[%s7 + $0x8] sm:$0xff]
      %v2452 = vld [vmem:[%s7 + $0x10] sm:$0xff]
      %v2453 = vld [vmem:[%s7 + $0x18] sm:$0xff]
      %v2454 = vld [vmem:[%s7 + $0x20] sm:$0xff]
      %v2455 = vld [vmem:[%s7 + $0x28] sm:$0xff]
      %v2456 = vld [vmem:[%s7 + $0x30] sm:$0xff]
      %v2457 = vld [vmem:[%s7 + $0x38] sm:$0xff]
      %v2458 = vld [vmem:[%s8] sm:$0x1]
      %v2460 = vlaneseq
      %v2461 = vshrl.u32 %v2460, 7
      %v2462 = vsub.s32 0, %v2461
      %v2463 = vrot.slane %v2458, %v2462
      %v2466 = vsel %vm1152, %v2386, 0
      %v2469 = vsel %vm1152, %v2387, 0
      %v2472 = vsel %vm1152, %v2388, 0
      %v2475 = vsel %vm1152, %v2389, 0
      %v2478 = vsel %vm1152, %v2390, 0
      %v2481 = vsel %vm1152, %v2391, 0
      %v2484 = vsel %vm1152, %v2392, 0
      %v2487 = vsel %vm1152, %v2393, 0
      %v2490 = vsel %vm1152, %v2394, 0
      %v2493 = vsel %vm1152, %v2395, 0
      %v2496 = vsel %vm1152, %v2396, 0
      %v2499 = vsel %vm1152, %v2397, 0
      %v2502 = vsel %vm1152, %v2398, 0
      %v2505 = vsel %vm1152, %v2399, 0
      %v2508 = vsel %vm1152, %v2400, 0
      %v2511 = vsel %vm1152, %v2401, 0
      %v2514 = vsel %vm1152, %v2402, 0
      %v2517 = vsel %vm1152, %v2403, 0
      %v2520 = vsel %vm1152, %v2404, 0
      %v2523 = vsel %vm1152, %v2405, 0
      %v2526 = vsel %vm1152, %v2406, 0
      %v2529 = vsel %vm1152, %v2407, 0
      %v2532 = vsel %vm1152, %v2408, 0
      %v2535 = vsel %vm1152, %v2409, 0
      %v2538 = vsel %vm1152, %v2410, 0
      %v2541 = vsel %vm1152, %v2411, 0
      %v2544 = vsel %vm1152, %v2412, 0
      %v2547 = vsel %vm1152, %v2413, 0
      %v2550 = vsel %vm1152, %v2414, 0
      %v2553 = vsel %vm1152, %v2415, 0
      %v2556 = vsel %vm1152, %v2416, 0
      %v2559 = vsel %vm1152, %v2417, 0
      %v2562 = vsel %vm1152, %v2418, 0
      %v2565 = vsel %vm1152, %v2419, 0
      %v2568 = vsel %vm1152, %v2420, 0
      %v2571 = vsel %vm1152, %v2421, 0
      %v2574 = vsel %vm1152, %v2422, 0
      %v2577 = vsel %vm1152, %v2423, 0
      %v2580 = vsel %vm1152, %v2424, 0
      %v2583 = vsel %vm1152, %v2425, 0
      %v2586 = vsel %vm1152, %v2426, 0
      %v2589 = vsel %vm1152, %v2427, 0
      %v2592 = vsel %vm1152, %v2428, 0
      %v2595 = vsel %vm1152, %v2429, 0
      %v2598 = vsel %vm1152, %v2430, 0
      %v2601 = vsel %vm1152, %v2431, 0
      %v2604 = vsel %vm1152, %v2432, 0
      %v2607 = vsel %vm1152, %v2433, 0
      %v2610 = vsel %vm1152, %v2434, 0
      %v2613 = vsel %vm1152, %v2435, 0
      %v2616 = vsel %vm1152, %v2436, 0
      %v2619 = vsel %vm1152, %v2437, 0
      %v2622 = vsel %vm1152, %v2438, 0
      %v2625 = vsel %vm1152, %v2439, 0
      %v2628 = vsel %vm1152, %v2440, 0
      %v2631 = vsel %vm1152, %v2441, 0
      %v2634 = vsel %vm1152, %v2442, 0
      %v2637 = vsel %vm1152, %v2443, 0
      %v2640 = vsel %vm1152, %v2444, 0
      %v2643 = vsel %vm1152, %v2445, 0
      %v2646 = vsel %vm1152, %v2446, 0
      %v2649 = vsel %vm1152, %v2447, 0
      %v2652 = vsel %vm1152, %v2448, 0
      %v2655 = vsel %vm1152, %v2449, 0
      %2657 = vmatprep.subr.mxu0 0.0
      %2658 = vmatpush1.msra.mxu0 %v2450
      %2659 = vmatprep.subr.mxu0 0.0
      %2660 = vmatpush1.msra.mxu0 %v2451
      %2661 = vmatprep.subr.mxu0 0.0
      %2662 = vmatpush1.msra.mxu0 %v2452
      %2663 = vmatprep.subr.mxu0 0.0
      %2664 = vmatpush1.msra.mxu0 %v2453
      %2665 = vmatprep.subr.mxu0 0.0
      %2666 = vmatpush1.msra.mxu0 %v2454
      %2667 = vmatprep.subr.mxu0 0.0
      %2668 = vmatpush1.msra.mxu0 %v2455
      %2669 = vmatprep.subr.mxu0 0.0
      %2670 = vmatpush1.msra.mxu0 %v2456
      %2671 = vmatprep.subr.mxu0 0.0
      %2672 = vmatpush1.msra.mxu0 %v2457
      %2673 = vmatprep.subr.mxu0 0.0
      %2674 = vmatpush1.msra.mxu0 0.0
      %2675 = vmatprep.subr.mxu0 0.0
      %2676 = vmatpush1.msra.mxu0 0.0
      %2677 = vmatprep.subr.mxu0 0.0
      %2678 = vmatpush1.msra.mxu0 0.0
      %2679 = vmatprep.subr.mxu0 0.0
      %2680 = vmatpush1.msra.mxu0 0.0
      %2681 = vmatprep.subr.mxu0 0.0
      %2682 = vmatpush1.msra.mxu0 0.0
      %2683 = vmatprep.subr.mxu0 0.0
      %2684 = vmatpush1.msra.mxu0 0.0
      %2685 = vmatprep.subr.mxu0 0.0
      %2686 = vmatpush1.msra.mxu0 0.0
      %2687 = vmatprep.subr.mxu0 0.0
      %2688 = vmatpush1.msra.mxu0 0.0
      %2689 = vmatprep.subr.mxu0 0.0
      %2690 = vmatpush1.msra.mxu0 0.0
      %2691 = vmatprep.subr.mxu0 0.0
      %2692 = vmatpush1.msra.mxu0 0.0
      %2693 = vmatprep.subr.mxu0 0.0
      %2694 = vmatpush1.msra.mxu0 0.0
      %2695 = vmatprep.subr.mxu0 0.0
      %2696 = vmatpush1.msra.mxu0 0.0
      %2697 = vmatprep.subr.mxu0 0.0
      %2698 = vmatpush1.msra.mxu0 0.0
      %2699 = vmatprep.subr.mxu0 0.0
      %2700 = vmatpush1.msra.mxu0 0.0
      %2701 = vmatprep.subr.mxu0 0.0
      %2702 = vmatpush1.msra.mxu0 0.0
      %2703 = vmatprep.subr.mxu0 0.0
      %2704 = vmatpush1.msra.mxu0 0.0
      %2705 = vmatprep.subr.mxu0 0.0
      %2706 = vmatpush1.msra.mxu0 0.0
      %2707 = vmatprep.subr.mxu0 0.0
      %2708 = vmatpush1.msra.mxu0 0.0
      %2709 = vmatprep.subr.mxu0 0.0
      %2710 = vmatpush1.msra.mxu0 0.0
      %2711 = vmatprep.subr.mxu0 0.0
      %2712 = vmatpush1.msra.mxu0 0.0
      %2713 = vmatprep.subr.mxu0 0.0
      %2714 = vmatpush1.msra.mxu0 0.0
      %2715 = vmatprep.subr.mxu0 0.0
      %2716 = vmatpush1.msra.mxu0 0.0
      %2717 = vmatprep.subr.mxu0 0.0
      %2718 = vmatpush1.msra.mxu0 0.0
      %2719 = vmatprep.subr.mxu0 0.0
      %2720 = vmatpush1.msra.mxu0 0.0
      %2721 = vmatprep.mubr.f32.mxu0 0.0
      %2722 = vmatmul.mubr.f32.gmra.mrb[0].mxu0 %v2466
      %v2723 = vpop.f32.mrb[0].mxu0
      %v2724 = vadd.f32 %v2463, %v2723
      %v2725 = vpop.f32.mrb[0].mxu0
      %2726 = vmatprep.mubr.f32.mxu0 0.0
      %2727 = vmatmul.mubr.f32.gmra.mrb[0].mxu0 %v2469
      %v2728 = vpop.f32.mrb[0].mxu0
      %v2729 = vadd.f32 %v2463, %v2728
      %v2730 = vpop.f32.mrb[0].mxu0
      %2731 = vmatprep.mubr.f32.mxu0 0.0
      %2732 = vmatmul.mubr.f32.gmra.mrb[0].mxu0 %v2472
      %v2733 = vpop.f32.mrb[0].mxu0
      %v2734 = vadd.f32 %v2463, %v2733
      %v2735 = vpop.f32.mrb[0].mxu0
      %2736 = vmatprep.mubr.f32.mxu0 0.0
      %2737 = vmatmul.mubr.f32.gmra.mrb[0].mxu0 %v2475
      %v2738 = vpop.f32.mrb[0].mxu0
      %v2739 = vadd.f32 %v2463, %v2738
      %v2740 = vpop.f32.mrb[0].mxu0
      %2741 = vmatprep.mubr.f32.mxu0 0.0
      %2742 = vmatmul.mubr.f32.gmra.mrb[0].mxu0 %v2478
      %v2743 = vpop.f32.mrb[0].mxu0
      %v2744 = vadd.f32 %v2463, %v2743
      %v2745 = vpop.f32.mrb[0].mxu0
      %2746 = vmatprep.mubr.f32.mxu0 0.0
      %2747 = vmatmul.mubr.f32.gmra.mrb[0].mxu0 %v2481
      %v2748 = vpop.f32.mrb[0].mxu0
      %v2749 = vadd.f32 %v2463, %v2748
      %v2750 = vpop.f32.mrb[0].mxu0
      %2751 = vmatprep.mubr.f32.mxu0 0.0
      %2752 = vmatmul.mubr.f32.gmra.mrb[0].mxu0 %v2484
      %v2753 = vpop.f32.mrb[0].mxu0
      %v2754 = vadd.f32 %v2463, %v2753
      %v2755 = vpop.f32.mrb[0].mxu0
      %2756 = vmatprep.mubr.f32.mxu0 0.0
      %2757 = vmatmul.mubr.f32.gmra.mrb[0].mxu0 %v2487
      %v2758 = vpop.f32.mrb[0].mxu0
      %v2759 = vadd.f32 %v2463, %v2758
      %v2760 = vpop.f32.mrb[0].mxu0
      %2761 = vmatprep.mubr.f32.mxu0 0.0
      %2762 = vmatmul.mubr.f32.gmra.mrb[0].mxu0 %v2490
      %v2763 = vpop.f32.mrb[0].mxu0
      %v2764 = vadd.f32 %v2463, %v2763
      %v2765 = vpop.f32.mrb[0].mxu0
      %2766 = vmatprep.mubr.f32.mxu0 0.0
      %2767 = vmatmul.mubr.f32.gmra.mrb[0].mxu0 %v2493
      %v2768 = vpop.f32.mrb[0].mxu0
      %v2769 = vadd.f32 %v2463, %v2768
      %v2770 = vpop.f32.mrb[0].mxu0
      %2771 = vmatprep.mubr.f32.mxu0 0.0
      %2772 = vmatmul.mubr.f32.gmra.mrb[0].mxu0 %v2496
      %v2773 = vpop.f32.mrb[0].mxu0
      %v2774 = vadd.f32 %v2463, %v2773
      %v2775 = vpop.f32.mrb[0].mxu0
      %2776 = vmatprep.mubr.f32.mxu0 0.0
      %2777 = vmatmul.mubr.f32.gmra.mrb[0].mxu0 %v2499
      %v2778 = vpop.f32.mrb[0].mxu0
      %v2779 = vadd.f32 %v2463, %v2778
      %v2780 = vpop.f32.mrb[0].mxu0
      %2781 = vmatprep.mubr.f32.mxu0 0.0
      %2782 = vmatmul.mubr.f32.gmra.mrb[0].mxu0 %v2502
      %v2783 = vpop.f32.mrb[0].mxu0
      %v2784 = vadd.f32 %v2463, %v2783
      %v2785 = vpop.f32.mrb[0].mxu0
      %2786 = vmatprep.mubr.f32.mxu0 0.0
      %2787 = vmatmul.mubr.f32.gmra.mrb[0].mxu0 %v2505
      %v2788 = vpop.f32.mrb[0].mxu0
      %v2789 = vadd.f32 %v2463, %v2788
      %v2790 = vpop.f32.mrb[0].mxu0
      %2791 = vmatprep.mubr.f32.mxu0 0.0
      %2792 = vmatmul.mubr.f32.gmra.mrb[0].mxu0 %v2508
      %v2793 = vpop.f32.mrb[0].mxu0
      %v2794 = vadd.f32 %v2463, %v2793
      %v2795 = vpop.f32.mrb[0].mxu0
      %2796 = vmatprep.mubr.f32.mxu0 0.0
      %2797 = vmatmul.mubr.f32.gmra.mrb[0].mxu0 %v2511
      %v2798 = vpop.f32.mrb[0].mxu0
      %v2799 = vadd.f32 %v2463, %v2798
      %v2800 = vpop.f32.mrb[0].mxu0
      %2801 = vmatprep.mubr.f32.mxu0 0.0
      %2802 = vmatmul.mubr.f32.gmra.mrb[0].mxu0 %v2514
      %v2803 = vpop.f32.mrb[0].mxu0
      %v2804 = vadd.f32 %v2463, %v2803
      %v2805 = vpop.f32.mrb[0].mxu0
      %2806 = vmatprep.mubr.f32.mxu0 0.0
      %2807 = vmatmul.mubr.f32.gmra.mrb[0].mxu0 %v2517
      %v2808 = vpop.f32.mrb[0].mxu0
      %v2809 = vadd.f32 %v2463, %v2808
      %v2810 = vpop.f32.mrb[0].mxu0
      %2811 = vmatprep.mubr.f32.mxu0 0.0
      %2812 = vmatmul.mubr.f32.gmra.mrb[0].mxu0 %v2520
      %v2813 = vpop.f32.mrb[0].mxu0
      %v2814 = vadd.f32 %v2463, %v2813
      %v2815 = vpop.f32.mrb[0].mxu0
      %2816 = vmatprep.mubr.f32.mxu0 0.0
      %2817 = vmatmul.mubr.f32.gmra.mrb[0].mxu0 %v2523
      %v2818 = vpop.f32.mrb[0].mxu0
      %v2819 = vadd.f32 %v2463, %v2818
      %v2820 = vpop.f32.mrb[0].mxu0
      %2821 = vmatprep.mubr.f32.mxu0 0.0
      %2822 = vmatmul.mubr.f32.gmra.mrb[0].mxu0 %v2526
      %v2823 = vpop.f32.mrb[0].mxu0
      %v2824 = vadd.f32 %v2463, %v2823
      %v2825 = vpop.f32.mrb[0].mxu0
      %2826 = vmatprep.mubr.f32.mxu0 0.0
      %2827 = vmatmul.mubr.f32.gmra.mrb[0].mxu0 %v2529
      %v2828 = vpop.f32.mrb[0].mxu0
      %v2829 = vadd.f32 %v2463, %v2828
      %v2830 = vpop.f32.mrb[0].mxu0
      %2831 = vmatprep.mubr.f32.mxu0 0.0
      %2832 = vmatmul.mubr.f32.gmra.mrb[0].mxu0 %v2532
      %v2833 = vpop.f32.mrb[0].mxu0
      %v2834 = vadd.f32 %v2463, %v2833
      %v2835 = vpop.f32.mrb[0].mxu0
      %2836 = vmatprep.mubr.f32.mxu0 0.0
      %2837 = vmatmul.mubr.f32.gmra.mrb[0].mxu0 %v2535
      %v2838 = vpop.f32.mrb[0].mxu0
      %v2839 = vadd.f32 %v2463, %v2838
      %v2840 = vpop.f32.mrb[0].mxu0
      %2841 = vmatprep.mubr.f32.mxu0 0.0
      %2842 = vmatmul.mubr.f32.gmra.mrb[0].mxu0 %v2538
      %v2843 = vpop.f32.mrb[0].mxu0
      %v2844 = vadd.f32 %v2463, %v2843
      %v2845 = vpop.f32.mrb[0].mxu0
      %2846 = vmatprep.mubr.f32.mxu0 0.0
      %2847 = vmatmul.mubr.f32.gmra.mrb[0].mxu0 %v2541
      %v2848 = vpop.f32.mrb[0].mxu0
      %v2849 = vadd.f32 %v2463, %v2848
      %v2850 = vpop.f32.mrb[0].mxu0
      %2851 = vmatprep.mubr.f32.mxu0 0.0
      %2852 = vmatmul.mubr.f32.gmra.mrb[0].mxu0 %v2544
      %v2853 = vpop.f32.mrb[0].mxu0
      %v2854 = vadd.f32 %v2463, %v2853
      %v2855 = vpop.f32.mrb[0].mxu0
      %2856 = vmatprep.mubr.f32.mxu0 0.0
      %2857 = vmatmul.mubr.f32.gmra.mrb[0].mxu0 %v2547
      %v2858 = vpop.f32.mrb[0].mxu0
      %v2859 = vadd.f32 %v2463, %v2858
      %v2860 = vpop.f32.mrb[0].mxu0
      %2861 = vmatprep.mubr.f32.mxu0 0.0
      %2862 = vmatmul.mubr.f32.gmra.mrb[0].mxu0 %v2550
      %v2863 = vpop.f32.mrb[0].mxu0
      %v2864 = vadd.f32 %v2463, %v2863
      %v2865 = vpop.f32.mrb[0].mxu0
      %2866 = vmatprep.mubr.f32.mxu0 0.0
      %2867 = vmatmul.mubr.f32.gmra.mrb[0].mxu0 %v2553
      %v2868 = vpop.f32.mrb[0].mxu0
      %v2869 = vadd.f32 %v2463, %v2868
      %v2870 = vpop.f32.mrb[0].mxu0
      %2871 = vmatprep.mubr.f32.mxu0 0.0
      %2872 = vmatmul.mubr.f32.gmra.mrb[0].mxu0 %v2556
      %v2873 = vpop.f32.mrb[0].mxu0
      %v2874 = vadd.f32 %v2463, %v2873
      %v2875 = vpop.f32.mrb[0].mxu0
      %2876 = vmatprep.mubr.f32.mxu0 0.0
      %2877 = vmatmul.mubr.f32.gmra.mrb[0].mxu0 %v2559
      %v2878 = vpop.f32.mrb[0].mxu0
      %v2879 = vadd.f32 %v2463, %v2878
      %v2880 = vpop.f32.mrb[0].mxu0
      %2881 = vmatprep.mubr.f32.mxu0 0.0
      %2882 = vmatmul.mubr.f32.gmra.mrb[0].mxu0 %v2562
      %v2883 = vpop.f32.mrb[0].mxu0
      %v2884 = vadd.f32 %v2463, %v2883
      %v2885 = vpop.f32.mrb[0].mxu0
      %2886 = vmatprep.mubr.f32.mxu0 0.0
      %2887 = vmatmul.mubr.f32.gmra.mrb[0].mxu0 %v2565
      %v2888 = vpop.f32.mrb[0].mxu0
      %v2889 = vadd.f32 %v2463, %v2888
      %v2890 = vpop.f32.mrb[0].mxu0
      %2891 = vmatprep.mubr.f32.mxu0 0.0
      %2892 = vmatmul.mubr.f32.gmra.mrb[0].mxu0 %v2568
      %v2893 = vpop.f32.mrb[0].mxu0
      %v2894 = vadd.f32 %v2463, %v2893
      %v2895 = vpop.f32.mrb[0].mxu0
      %2896 = vmatprep.mubr.f32.mxu0 0.0
      %2897 = vmatmul.mubr.f32.gmra.mrb[0].mxu0 %v2571
      %v2898 = vpop.f32.mrb[0].mxu0
      %v2899 = vadd.f32 %v2463, %v2898
      %v2900 = vpop.f32.mrb[0].mxu0
      %2901 = vmatprep.mubr.f32.mxu0 0.0
      %2902 = vmatmul.mubr.f32.gmra.mrb[0].mxu0 %v2574
      %v2903 = vpop.f32.mrb[0].mxu0
      %v2904 = vadd.f32 %v2463, %v2903
      %v2905 = vpop.f32.mrb[0].mxu0
      %2906 = vmatprep.mubr.f32.mxu0 0.0
      %2907 = vmatmul.mubr.f32.gmra.mrb[0].mxu0 %v2577
      %v2908 = vpop.f32.mrb[0].mxu0
      %v2909 = vadd.f32 %v2463, %v2908
      %v2910 = vpop.f32.mrb[0].mxu0
      %2911 = vmatprep.mubr.f32.mxu0 0.0
      %2912 = vmatmul.mubr.f32.gmra.mrb[0].mxu0 %v2580
      %v2913 = vpop.f32.mrb[0].mxu0
      %v2914 = vadd.f32 %v2463, %v2913
      %v2915 = vpop.f32.mrb[0].mxu0
      %2916 = vmatprep.mubr.f32.mxu0 0.0
      %2917 = vmatmul.mubr.f32.gmra.mrb[0].mxu0 %v2583
      %v2918 = vpop.f32.mrb[0].mxu0
      %v2919 = vadd.f32 %v2463, %v2918
      %v2920 = vpop.f32.mrb[0].mxu0
      %2921 = vmatprep.mubr.f32.mxu0 0.0
      %2922 = vmatmul.mubr.f32.gmra.mrb[0].mxu0 %v2586
      %v2923 = vpop.f32.mrb[0].mxu0
      %v2924 = vadd.f32 %v2463, %v2923
      %v2925 = vpop.f32.mrb[0].mxu0
      %2926 = vmatprep.mubr.f32.mxu0 0.0
      %2927 = vmatmul.mubr.f32.gmra.mrb[0].mxu0 %v2589
      %v2928 = vpop.f32.mrb[0].mxu0
      %v2929 = vadd.f32 %v2463, %v2928
      %v2930 = vpop.f32.mrb[0].mxu0
      %2931 = vmatprep.mubr.f32.mxu0 0.0
      %2932 = vmatmul.mubr.f32.gmra.mrb[0].mxu0 %v2592
      %v2933 = vpop.f32.mrb[0].mxu0
      %v2934 = vadd.f32 %v2463, %v2933
      %v2935 = vpop.f32.mrb[0].mxu0
      %2936 = vmatprep.mubr.f32.mxu0 0.0
      %2937 = vmatmul.mubr.f32.gmra.mrb[0].mxu0 %v2595
      %v2938 = vpop.f32.mrb[0].mxu0
      %v2939 = vadd.f32 %v2463, %v2938
      %v2940 = vpop.f32.mrb[0].mxu0
      %2941 = vmatprep.mubr.f32.mxu0 0.0
      %2942 = vmatmul.mubr.f32.gmra.mrb[0].mxu0 %v2598
      %v2943 = vpop.f32.mrb[0].mxu0
      %v2944 = vadd.f32 %v2463, %v2943
      %v2945 = vpop.f32.mrb[0].mxu0
      %2946 = vmatprep.mubr.f32.mxu0 0.0
      %2947 = vmatmul.mubr.f32.gmra.mrb[0].mxu0 %v2601
      %v2948 = vpop.f32.mrb[0].mxu0
      %v2949 = vadd.f32 %v2463, %v2948
      %v2950 = vpop.f32.mrb[0].mxu0
      %2951 = vmatprep.mubr.f32.mxu0 0.0
      %2952 = vmatmul.mubr.f32.gmra.mrb[0].mxu0 %v2604
      %v2953 = vpop.f32.mrb[0].mxu0
      %v2954 = vadd.f32 %v2463, %v2953
      %v2955 = vpop.f32.mrb[0].mxu0
      %2956 = vmatprep.mubr.f32.mxu0 0.0
      %2957 = vmatmul.mubr.f32.gmra.mrb[0].mxu0 %v2607
      %v2958 = vpop.f32.mrb[0].mxu0
      %v2959 = vadd.f32 %v2463, %v2958
      %v2960 = vpop.f32.mrb[0].mxu0
      %2961 = vmatprep.mubr.f32.mxu0 0.0
      %2962 = vmatmul.mubr.f32.gmra.mrb[0].mxu0 %v2610
      %v2963 = vpop.f32.mrb[0].mxu0
      %v2964 = vadd.f32 %v2463, %v2963
      %v2965 = vpop.f32.mrb[0].mxu0
      %2966 = vmatprep.mubr.f32.mxu0 0.0
      %2967 = vmatmul.mubr.f32.gmra.mrb[0].mxu0 %v2613
      %v2968 = vpop.f32.mrb[0].mxu0
      %v2969 = vadd.f32 %v2463, %v2968
      %v2970 = vpop.f32.mrb[0].mxu0
      %2971 = vmatprep.mubr.f32.mxu0 0.0
      %2972 = vmatmul.mubr.f32.gmra.mrb[0].mxu0 %v2616
      %v2973 = vpop.f32.mrb[0].mxu0
      %v2974 = vadd.f32 %v2463, %v2973
      %v2975 = vpop.f32.mrb[0].mxu0
      %2976 = vmatprep.mubr.f32.mxu0 0.0
      %2977 = vmatmul.mubr.f32.gmra.mrb[0].mxu0 %v2619
      %v2978 = vpop.f32.mrb[0].mxu0
      %v2979 = vadd.f32 %v2463, %v2978
      %v2980 = vpop.f32.mrb[0].mxu0
      %2981 = vmatprep.mubr.f32.mxu0 0.0
      %2982 = vmatmul.mubr.f32.gmra.mrb[0].mxu0 %v2622
      %v2983 = vpop.f32.mrb[0].mxu0
      %v2984 = vadd.f32 %v2463, %v2983
      %v2985 = vpop.f32.mrb[0].mxu0
      %2986 = vmatprep.mubr.f32.mxu0 0.0
      %2987 = vmatmul.mubr.f32.gmra.mrb[0].mxu0 %v2625
      %v2988 = vpop.f32.mrb[0].mxu0
      %v2989 = vadd.f32 %v2463, %v2988
      %v2990 = vpop.f32.mrb[0].mxu0
      %2991 = vmatprep.mubr.f32.mxu0 0.0
      %2992 = vmatmul.mubr.f32.gmra.mrb[0].mxu0 %v2628
      %v2993 = vpop.f32.mrb[0].mxu0
      %v2994 = vadd.f32 %v2463, %v2993
      %v2995 = vpop.f32.mrb[0].mxu0
      %2996 = vmatprep.mubr.f32.mxu0 0.0
      %2997 = vmatmul.mubr.f32.gmra.mrb[0].mxu0 %v2631
      %v2998 = vpop.f32.mrb[0].mxu0
      %v2999 = vadd.f32 %v2463, %v2998
      %v3000 = vpop.f32.mrb[0].mxu0
      %3001 = vmatprep.mubr.f32.mxu0 0.0
      %3002 = vmatmul.mubr.f32.gmra.mrb[0].mxu0 %v2634
      %v3003 = vpop.f32.mrb[0].mxu0
      %v3004 = vadd.f32 %v2463, %v3003
      %v3005 = vpop.f32.mrb[0].mxu0
      %3006 = vmatprep.mubr.f32.mxu0 0.0
      %3007 = vmatmul.mubr.f32.gmra.mrb[0].mxu0 %v2637
      %v3008 = vpop.f32.mrb[0].mxu0
      %v3009 = vadd.f32 %v2463, %v3008
      %v3010 = vpop.f32.mrb[0].mxu0
      %3011 = vmatprep.mubr.f32.mxu0 0.0
      %3012 = vmatmul.mubr.f32.gmra.mrb[0].mxu0 %v2640
      %v3013 = vpop.f32.mrb[0].mxu0
      %v3014 = vadd.f32 %v2463, %v3013
      %v3015 = vpop.f32.mrb[0].mxu0
      %3016 = vmatprep.mubr.f32.mxu0 0.0
      %3017 = vmatmul.mubr.f32.gmra.mrb[0].mxu0 %v2643
      %v3018 = vpop.f32.mrb[0].mxu0
      %v3019 = vadd.f32 %v2463, %v3018
      %v3020 = vpop.f32.mrb[0].mxu0
      %3021 = vmatprep.mubr.f32.mxu0 0.0
      %3022 = vmatmul.mubr.f32.gmra.mrb[0].mxu0 %v2646
      %v3023 = vpop.f32.mrb[0].mxu0
      %v3024 = vadd.f32 %v2463, %v3023
      %v3025 = vpop.f32.mrb[0].mxu0
      %3026 = vmatprep.mubr.f32.mxu0 0.0
      %3027 = vmatmul.mubr.f32.gmra.mrb[0].mxu0 %v2649
      %v3028 = vpop.f32.mrb[0].mxu0
      %v3029 = vadd.f32 %v2463, %v3028
      %v3030 = vpop.f32.mrb[0].mxu0
      %3031 = vmatprep.mubr.f32.mxu0 0.0
      %3032 = vmatmul.mubr.f32.gmra.mrb[0].mxu0 %v2652
      %v3033 = vpop.f32.mrb[0].mxu0
      %v3034 = vadd.f32 %v2463, %v3033
      %v3035 = vpop.f32.mrb[0].mxu0
      %3036 = vmatprep.mubr.f32.mxu0 0.0
      %3037 = vmatmul.mubr.f32.gmra.mrb[0].mxu0 %v2655
      %v3038 = vpop.f32.mrb[0].mxu0
      %v3039 = vadd.f32 %v2463, %v3038
      %v3040 = vpop.f32.mrb[0].mxu0
      %3041 = vdwg.mxu0
      %v3042 = vmax.f32 %v2724, 0.0
      %v3043 = vmax.f32 %v2729, 0.0
      %v3044 = vmax.f32 %v2734, 0.0
      %v3045 = vmax.f32 %v2739, 0.0
      %v3046 = vmax.f32 %v2744, 0.0
      %v3047 = vmax.f32 %v2749, 0.0
      %v3048 = vmax.f32 %v2754, 0.0
      %v3049 = vmax.f32 %v2759, 0.0
      %v3050 = vmax.f32 %v2764, 0.0
      %v3051 = vmax.f32 %v2769, 0.0
      %v3052 = vmax.f32 %v2774, 0.0
      %v3053 = vmax.f32 %v2779, 0.0
      %v3054 = vmax.f32 %v2784, 0.0
      %v3055 = vmax.f32 %v2789, 0.0
      %v3056 = vmax.f32 %v2794, 0.0
      %v3057 = vmax.f32 %v2799, 0.0
      %v3058 = vmax.f32 %v2804, 0.0
      %v3059 = vmax.f32 %v2809, 0.0
      %v3060 = vmax.f32 %v2814, 0.0
      %v3061 = vmax.f32 %v2819, 0.0
      %v3062 = vmax.f32 %v2824, 0.0
      %v3063 = vmax.f32 %v2829, 0.0
      %v3064 = vmax.f32 %v2834, 0.0
      %v3065 = vmax.f32 %v2839, 0.0
      %v3066 = vmax.f32 %v2844, 0.0
      %v3067 = vmax.f32 %v2849, 0.0
      %v3068 = vmax.f32 %v2854, 0.0
      %v3069 = vmax.f32 %v2859, 0.0
      %v3070 = vmax.f32 %v2864, 0.0
      %v3071 = vmax.f32 %v2869, 0.0
      %v3072 = vmax.f32 %v2874, 0.0
      %v3073 = vmax.f32 %v2879, 0.0
      %v3074 = vmax.f32 %v2884, 0.0
      %v3075 = vmax.f32 %v2889, 0.0
      %v3076 = vmax.f32 %v2894, 0.0
      %v3077 = vmax.f32 %v2899, 0.0
      %v3078 = vmax.f32 %v2904, 0.0
      %v3079 = vmax.f32 %v2909, 0.0
      %v3080 = vmax.f32 %v2914, 0.0
      %v3081 = vmax.f32 %v2919, 0.0
      %v3082 = vmax.f32 %v2924, 0.0
      %v3083 = vmax.f32 %v2929, 0.0
      %v3084 = vmax.f32 %v2934, 0.0
      %v3085 = vmax.f32 %v2939, 0.0
      %v3086 = vmax.f32 %v2944, 0.0
      %v3087 = vmax.f32 %v2949, 0.0
      %v3088 = vmax.f32 %v2954, 0.0
      %v3089 = vmax.f32 %v2959, 0.0
      %v3090 = vmax.f32 %v2964, 0.0
      %v3091 = vmax.f32 %v2969, 0.0
      %v3092 = vmax.f32 %v2974, 0.0
      %v3093 = vmax.f32 %v2979, 0.0
      %v3094 = vmax.f32 %v2984, 0.0
      %v3095 = vmax.f32 %v2989, 0.0
      %v3096 = vmax.f32 %v2994, 0.0
      %v3097 = vmax.f32 %v2999, 0.0
      %v3098 = vmax.f32 %v3004, 0.0
      %v3099 = vmax.f32 %v3009, 0.0
      %v3100 = vmax.f32 %v3014, 0.0
      %v3101 = vmax.f32 %v3019, 0.0
      %v3102 = vmax.f32 %v3024, 0.0
      %v3103 = vmax.f32 %v3029, 0.0
      %v3104 = vmax.f32 %v3034, 0.0
      %v3105 = vmax.f32 %v3039, 0.0
      %v3106 = vpack.c.bf16 %v3043, %v3042
      %v3107 = vpack.c.bf16 %v3045, %v3044
      %v3108 = vpack.c.bf16 %v3047, %v3046
      %v3109 = vpack.c.bf16 %v3049, %v3048
      %v3110 = vpack.c.bf16 %v3051, %v3050
      %v3111 = vpack.c.bf16 %v3053, %v3052
      %v3112 = vpack.c.bf16 %v3055, %v3054
      %v3113 = vpack.c.bf16 %v3057, %v3056
      %v3114 = vpack.c.bf16 %v3059, %v3058
      %v3115 = vpack.c.bf16 %v3061, %v3060
      %v3116 = vpack.c.bf16 %v3063, %v3062
      %v3117 = vpack.c.bf16 %v3065, %v3064
      %v3118 = vpack.c.bf16 %v3067, %v3066
      %v3119 = vpack.c.bf16 %v3069, %v3068
      %v3120 = vpack.c.bf16 %v3071, %v3070
      %v3121 = vpack.c.bf16 %v3073, %v3072
      %v3122 = vpack.c.bf16 %v3075, %v3074
      %v3123 = vpack.c.bf16 %v3077, %v3076
      %v3124 = vpack.c.bf16 %v3079, %v3078
      %v3125 = vpack.c.bf16 %v3081, %v3080
      %v3126 = vpack.c.bf16 %v3083, %v3082
      %v3127 = vpack.c.bf16 %v3085, %v3084
      %v3128 = vpack.c.bf16 %v3087, %v3086
      %v3129 = vpack.c.bf16 %v3089, %v3088
      %v3130 = vpack.c.bf16 %v3091, %v3090
      %v3131 = vpack.c.bf16 %v3093, %v3092
      %v3132 = vpack.c.bf16 %v3095, %v3094
      %v3133 = vpack.c.bf16 %v3097, %v3096
      %v3134 = vpack.c.bf16 %v3099, %v3098
      %v3135 = vpack.c.bf16 %v3101, %v3100
      %v3136 = vpack.c.bf16 %v3103, %v3102
      %v3137 = vpack.c.bf16 %v3105, %v3104
      %v3138 = vld [vmem:[%s9] sm:$0xff]
      %v3139 = vld [vmem:[%s9 + $0x8] sm:$0xff]
      %v3140 = vld [vmem:[%s9 + $0x10] sm:$0xff]
      %v3141 = vld [vmem:[%s9 + $0x18] sm:$0xff]
      %v3142 = vld [vmem:[%s9 + $0x20] sm:$0xff]
      %v3143 = vld [vmem:[%s9 + $0x28] sm:$0xff]
      %v3144 = vld [vmem:[%s9 + $0x30] sm:$0xff]
      %v3145 = vld [vmem:[%s9 + $0x38] sm:$0xff]
      %v3146 = vld [vmem:[%s9 + $0x40] sm:$0xff]
      %v3147 = vld [vmem:[%s9 + $0x48] sm:$0xff]
      %v3148 = vld [vmem:[%s9 + $0x50] sm:$0xff]
      %v3149 = vld [vmem:[%s9 + $0x58] sm:$0xff]
      %v3150 = vld [vmem:[%s9 + $0x60] sm:$0xff]
      %v3151 = vld [vmem:[%s9 + $0x68] sm:$0xff]
      %v3152 = vld [vmem:[%s9 + $0x70] sm:$0xff]
      %v3153 = vld [vmem:[%s9 + $0x78] sm:$0xff]
      %v3154 = vld [vmem:[%s9 + $0x80] sm:$0xff]
      %v3155 = vld [vmem:[%s9 + $0x88] sm:$0xff]
      %v3156 = vld [vmem:[%s9 + $0x90] sm:$0xff]
      %v3157 = vld [vmem:[%s9 + $0x98] sm:$0xff]
      %v3158 = vld [vmem:[%s9 + $0xa0] sm:$0xff]
      %v3159 = vld [vmem:[%s9 + $0xa8] sm:$0xff]
      %v3160 = vld [vmem:[%s9 + $0xb0] sm:$0xff]
      %v3161 = vld [vmem:[%s9 + $0xb8] sm:$0xff]
      %v3162 = vld [vmem:[%s9 + $0xc0] sm:$0xff]
      %v3163 = vld [vmem:[%s9 + $0xc8] sm:$0xff]
      %v3164 = vld [vmem:[%s9 + $0xd0] sm:$0xff]
      %v3165 = vld [vmem:[%s9 + $0xd8] sm:$0xff]
      %v3166 = vld [vmem:[%s9 + $0xe0] sm:$0xff]
      %v3167 = vld [vmem:[%s9 + $0xe8] sm:$0xff]
      %v3168 = vld [vmem:[%s9 + $0xf0] sm:$0xff]
      %v3169 = vld [vmem:[%s9 + $0xf8] sm:$0xff]
      %v3170 = vld [vmem:[%s9 + $0x100] sm:$0xff]
      %v3171 = vld [vmem:[%s9 + $0x108] sm:$0xff]
      %v3172 = vld [vmem:[%s9 + $0x110] sm:$0xff]
      %v3173 = vld [vmem:[%s9 + $0x118] sm:$0xff]
      %v3174 = vld [vmem:[%s9 + $0x120] sm:$0xff]
      %v3175 = vld [vmem:[%s9 + $0x128] sm:$0xff]
      %v3176 = vld [vmem:[%s9 + $0x130] sm:$0xff]
      %v3177 = vld [vmem:[%s9 + $0x138] sm:$0xff]
      %v3178 = vld [vmem:[%s9 + $0x140] sm:$0xff]
      %v3179 = vld [vmem:[%s9 + $0x148] sm:$0xff]
      %v3180 = vld [vmem:[%s9 + $0x150] sm:$0xff]
      %v3181 = vld [vmem:[%s9 + $0x158] sm:$0xff]
      %v3182 = vld [vmem:[%s9 + $0x160] sm:$0xff]
      %v3183 = vld [vmem:[%s9 + $0x168] sm:$0xff]
      %v3184 = vld [vmem:[%s9 + $0x170] sm:$0xff]
      %v3185 = vld [vmem:[%s9 + $0x178] sm:$0xff]
      %v3186 = vld [vmem:[%s9 + $0x180] sm:$0xff]
      %v3187 = vld [vmem:[%s9 + $0x188] sm:$0xff]
      %v3188 = vld [vmem:[%s9 + $0x190] sm:$0xff]
      %v3189 = vld [vmem:[%s9 + $0x198] sm:$0xff]
      %v3190 = vld [vmem:[%s9 + $0x1a0] sm:$0xff]
      %v3191 = vld [vmem:[%s9 + $0x1a8] sm:$0xff]
      %v3192 = vld [vmem:[%s9 + $0x1b0] sm:$0xff]
      %v3193 = vld [vmem:[%s9 + $0x1b8] sm:$0xff]
      %v3194 = vld [vmem:[%s9 + $0x1c0] sm:$0xff]
      %v3195 = vld [vmem:[%s9 + $0x1c8] sm:$0xff]
      %v3196 = vld [vmem:[%s9 + $0x1d0] sm:$0xff]
      %v3197 = vld [vmem:[%s9 + $0x1d8] sm:$0xff]
      %v3198 = vld [vmem:[%s9 + $0x1e0] sm:$0xff]
      %v3199 = vld [vmem:[%s9 + $0x1e8] sm:$0xff]
      %v3200 = vld [vmem:[%s9 + $0x1f0] sm:$0xff]
      %v3201 = vld [vmem:[%s9 + $0x1f8] sm:$0xff]
      %v3202 = vld [vmem:[%s10] sm:$0xff]
      %v3204 = vlaneseq
      %v3205 = vshrl.u32 %v3204, 7
      %v3206 = vsub.s32 0, %v3205
      %v3207 = vrot.slane %v3202, %v3206
      %v3208 = vlaneseq
      %v3209 = vshrl.u32 %v3208, 7
      %v3210 = vsub.s32 1, %v3209
      %v3211 = vrot.slane %v3202, %v3210
      %v3212 = vlaneseq
      %v3213 = vshrl.u32 %v3212, 7
      %v3214 = vsub.s32 2, %v3213
      %v3215 = vrot.slane %v3202, %v3214
      %v3216 = vlaneseq
      %v3217 = vshrl.u32 %v3216, 7
      %v3218 = vsub.s32 3, %v3217
      %v3219 = vrot.slane %v3202, %v3218
      %v3220 = vlaneseq
      %v3221 = vshrl.u32 %v3220, 7
      %v3222 = vsub.s32 4, %v3221
      %v3223 = vrot.slane %v3202, %v3222
      %v3224 = vlaneseq
      %v3225 = vshrl.u32 %v3224, 7
      %v3226 = vsub.s32 5, %v3225
      %v3227 = vrot.slane %v3202, %v3226
      %v3228 = vlaneseq
      %v3229 = vshrl.u32 %v3228, 7
      %v3230 = vsub.s32 6, %v3229
      %v3231 = vrot.slane %v3202, %v3230
      %v3232 = vlaneseq
      %v3233 = vshrl.u32 %v3232, 7
      %v3234 = vsub.s32 7, %v3233
      %v3235 = vrot.slane %v3202, %v3234
      %v3308 = vunpack.c.l.b16 %v3138
      %v3309 = vunpack.c.h.b16 %v3138
      %v3310 = vunpack.c.l.b16 %v3139
      %v3311 = vunpack.c.h.b16 %v3139
      %v3312 = vunpack.c.l.b16 %v3140
      %v3313 = vunpack.c.h.b16 %v3140
      %v3314 = vunpack.c.l.b16 %v3141
      %v3315 = vunpack.c.h.b16 %v3141
      %v3316 = vunpack.c.l.b16 %v3142
      %v3317 = vunpack.c.h.b16 %v3142
      %v3318 = vunpack.c.l.b16 %v3143
      %v3319 = vunpack.c.h.b16 %v3143
      %v3320 = vunpack.c.l.b16 %v3144
      %v3321 = vunpack.c.h.b16 %v3144
      %v3322 = vunpack.c.l.b16 %v3145
      %v3323 = vunpack.c.h.b16 %v3145
      %v3324 = vunpack.c.l.b16 %v3146
      %v3325 = vunpack.c.h.b16 %v3146
      %v3326 = vunpack.c.l.b16 %v3147
      %v3327 = vunpack.c.h.b16 %v3147
      %v3328 = vunpack.c.l.b16 %v3148
      %v3329 = vunpack.c.h.b16 %v3148
      %v3330 = vunpack.c.l.b16 %v3149
      %v3331 = vunpack.c.h.b16 %v3149
      %v3332 = vunpack.c.l.b16 %v3150
      %v3333 = vunpack.c.h.b16 %v3150
      %v3334 = vunpack.c.l.b16 %v3151
      %v3335 = vunpack.c.h.b16 %v3151
      %v3336 = vunpack.c.l.b16 %v3152
      %v3337 = vunpack.c.h.b16 %v3152
      %v3338 = vunpack.c.l.b16 %v3153
      %v3339 = vunpack.c.h.b16 %v3153
      %v3340 = vunpack.c.l.b16 %v3154
      %v3341 = vunpack.c.h.b16 %v3154
      %v3342 = vunpack.c.l.b16 %v3155
      %v3343 = vunpack.c.h.b16 %v3155
      %v3344 = vunpack.c.l.b16 %v3156
      %v3345 = vunpack.c.h.b16 %v3156
      %v3346 = vunpack.c.l.b16 %v3157
      %v3347 = vunpack.c.h.b16 %v3157
      %v3348 = vunpack.c.l.b16 %v3158
      %v3349 = vunpack.c.h.b16 %v3158
      %v3350 = vunpack.c.l.b16 %v3159
      %v3351 = vunpack.c.h.b16 %v3159
      %v3352 = vunpack.c.l.b16 %v3160
      %v3353 = vunpack.c.h.b16 %v3160
      %v3354 = vunpack.c.l.b16 %v3161
      %v3355 = vunpack.c.h.b16 %v3161
      %v3356 = vunpack.c.l.b16 %v3162
      %v3357 = vunpack.c.h.b16 %v3162
      %v3358 = vunpack.c.l.b16 %v3163
      %v3359 = vunpack.c.h.b16 %v3163
      %v3360 = vunpack.c.l.b16 %v3164
      %v3361 = vunpack.c.h.b16 %v3164
      %v3362 = vunpack.c.l.b16 %v3165
      %v3363 = vunpack.c.h.b16 %v3165
      %v3364 = vunpack.c.l.b16 %v3166
      %v3365 = vunpack.c.h.b16 %v3166
      %v3366 = vunpack.c.l.b16 %v3167
      %v3367 = vunpack.c.h.b16 %v3167
      %v3368 = vunpack.c.l.b16 %v3168
      %v3369 = vunpack.c.h.b16 %v3168
      %v3370 = vunpack.c.l.b16 %v3169
      %v3371 = vunpack.c.h.b16 %v3169
      %v3372 = vunpack.c.l.b16 %v3170
      %v3373 = vunpack.c.h.b16 %v3170
      %v3374 = vunpack.c.l.b16 %v3171
      %v3375 = vunpack.c.h.b16 %v3171
      %v3376 = vunpack.c.l.b16 %v3172
      %v3377 = vunpack.c.h.b16 %v3172
      %v3378 = vunpack.c.l.b16 %v3173
      %v3379 = vunpack.c.h.b16 %v3173
      %v3380 = vunpack.c.l.b16 %v3174
      %v3381 = vunpack.c.h.b16 %v3174
      %v3382 = vunpack.c.l.b16 %v3175
      %v3383 = vunpack.c.h.b16 %v3175
      %v3384 = vunpack.c.l.b16 %v3176
      %v3385 = vunpack.c.h.b16 %v3176
      %v3386 = vunpack.c.l.b16 %v3177
      %v3387 = vunpack.c.h.b16 %v3177
      %v3388 = vunpack.c.l.b16 %v3178
      %v3389 = vunpack.c.h.b16 %v3178
      %v3390 = vunpack.c.l.b16 %v3179
      %v3391 = vunpack.c.h.b16 %v3179
      %v3392 = vunpack.c.l.b16 %v3180
      %v3393 = vunpack.c.h.b16 %v3180
      %v3394 = vunpack.c.l.b16 %v3181
      %v3395 = vunpack.c.h.b16 %v3181
      %v3396 = vunpack.c.l.b16 %v3182
      %v3397 = vunpack.c.h.b16 %v3182
      %v3398 = vunpack.c.l.b16 %v3183
      %v3399 = vunpack.c.h.b16 %v3183
      %v3400 = vunpack.c.l.b16 %v3184
      %v3401 = vunpack.c.h.b16 %v3184
      %v3402 = vunpack.c.l.b16 %v3185
      %v3403 = vunpack.c.h.b16 %v3185
      %v3404 = vunpack.c.l.b16 %v3186
      %v3405 = vunpack.c.h.b16 %v3186
      %v3406 = vunpack.c.l.b16 %v3187
      %v3407 = vunpack.c.h.b16 %v3187
      %v3408 = vunpack.c.l.b16 %v3188
      %v3409 = vunpack.c.h.b16 %v3188
      %v3410 = vunpack.c.l.b16 %v3189
      %v3411 = vunpack.c.h.b16 %v3189
      %v3412 = vunpack.c.l.b16 %v3190
      %v3413 = vunpack.c.h.b16 %v3190
      %v3414 = vunpack.c.l.b16 %v3191
      %v3415 = vunpack.c.h.b16 %v3191
      %v3416 = vunpack.c.l.b16 %v3192
      %v3417 = vunpack.c.h.b16 %v3192
      %v3418 = vunpack.c.l.b16 %v3193
      %v3419 = vunpack.c.h.b16 %v3193
      %v3420 = vunpack.c.l.b16 %v3194
      %v3421 = vunpack.c.h.b16 %v3194
      %v3422 = vunpack.c.l.b16 %v3195
      %v3423 = vunpack.c.h.b16 %v3195
      %v3424 = vunpack.c.l.b16 %v3196
      %v3425 = vunpack.c.h.b16 %v3196
      %v3426 = vunpack.c.l.b16 %v3197
      %v3427 = vunpack.c.h.b16 %v3197
      %v3428 = vunpack.c.l.b16 %v3198
      %v3429 = vunpack.c.h.b16 %v3198
      %v3430 = vunpack.c.l.b16 %v3199
      %v3431 = vunpack.c.h.b16 %v3199
      %v3432 = vunpack.c.l.b16 %v3200
      %v3433 = vunpack.c.h.b16 %v3200
      %v3434 = vunpack.c.l.b16 %v3201
      %v3435 = vunpack.c.h.b16 %v3201
      %v3436 = vpack.c.b16 %v3316, %v3308
      %v3437 = vpack.c.b16 %v3317, %v3309
      %v3438 = vpack.c.b16 %v3318, %v3310
      %v3439 = vpack.c.b16 %v3319, %v3311
      %v3440 = vpack.c.b16 %v3320, %v3312
      %v3441 = vpack.c.b16 %v3321, %v3313
      %v3442 = vpack.c.b16 %v3322, %v3314
      %v3443 = vpack.c.b16 %v3323, %v3315
      %v3444 = vpack.c.b16 %v3332, %v3324
      %v3445 = vpack.c.b16 %v3333, %v3325
      %v3446 = vpack.c.b16 %v3334, %v3326
      %v3447 = vpack.c.b16 %v3335, %v3327
      %v3448 = vpack.c.b16 %v3336, %v3328
      %v3449 = vpack.c.b16 %v3337, %v3329
      %v3450 = vpack.c.b16 %v3338, %v3330
      %v3451 = vpack.c.b16 %v3339, %v3331
      %v3452 = vpack.c.b16 %v3348, %v3340
      %v3453 = vpack.c.b16 %v3349, %v3341
      %v3454 = vpack.c.b16 %v3350, %v3342
      %v3455 = vpack.c.b16 %v3351, %v3343
      %v3456 = vpack.c.b16 %v3352, %v3344
      %v3457 = vpack.c.b16 %v3353, %v3345
      %v3458 = vpack.c.b16 %v3354, %v3346
      %v3459 = vpack.c.b16 %v3355, %v3347
      %v3460 = vpack.c.b16 %v3364, %v3356
      %v3461 = vpack.c.b16 %v3365, %v3357
      %v3462 = vpack.c.b16 %v3366, %v3358
      %v3463 = vpack.c.b16 %v3367, %v3359
      %v3464 = vpack.c.b16 %v3368, %v3360
      %v3465 = vpack.c.b16 %v3369, %v3361
      %v3466 = vpack.c.b16 %v3370, %v3362
      %v3467 = vpack.c.b16 %v3371, %v3363
      %v3468 = vpack.c.b16 %v3380, %v3372
      %v3469 = vpack.c.b16 %v3381, %v3373
      %v3470 = vpack.c.b16 %v3382, %v3374
      %v3471 = vpack.c.b16 %v3383, %v3375
      %v3472 = vpack.c.b16 %v3384, %v3376
      %v3473 = vpack.c.b16 %v3385, %v3377
      %v3474 = vpack.c.b16 %v3386, %v3378
      %v3475 = vpack.c.b16 %v3387, %v3379
      %v3476 = vpack.c.b16 %v3396, %v3388
      %v3477 = vpack.c.b16 %v3397, %v3389
      %v3478 = vpack.c.b16 %v3398, %v3390
      %v3479 = vpack.c.b16 %v3399, %v3391
      %v3480 = vpack.c.b16 %v3400, %v3392
      %v3481 = vpack.c.b16 %v3401, %v3393
      %v3482 = vpack.c.b16 %v3402, %v3394
      %v3483 = vpack.c.b16 %v3403, %v3395
      %v3484 = vpack.c.b16 %v3412, %v3404
      %v3485 = vpack.c.b16 %v3413, %v3405
      %v3486 = vpack.c.b16 %v3414, %v3406
      %v3487 = vpack.c.b16 %v3415, %v3407
      %v3488 = vpack.c.b16 %v3416, %v3408
      %v3489 = vpack.c.b16 %v3417, %v3409
      %v3490 = vpack.c.b16 %v3418, %v3410
      %v3491 = vpack.c.b16 %v3419, %v3411
      %v3492 = vpack.c.b16 %v3428, %v3420
      %v3493 = vpack.c.b16 %v3429, %v3421
      %v3494 = vpack.c.b16 %v3430, %v3422
      %v3495 = vpack.c.b16 %v3431, %v3423
      %v3496 = vpack.c.b16 %v3432, %v3424
      %v3497 = vpack.c.b16 %v3433, %v3425
      %v3498 = vpack.c.b16 %v3434, %v3426
      %v3499 = vpack.c.b16 %v3435, %v3427
      %3564 = vmatprep.subr.bf16.mxu0 %v3437
      %3565 = vmatpush1.bf16.msra.mxu0 %v3436
      %3566 = vmatprep.subr.bf16.mxu0 %v3445
      %3567 = vmatpush1.bf16.msra.mxu0 %v3444
      %3568 = vmatprep.subr.bf16.mxu0 %v3453
      %3569 = vmatpush1.bf16.msra.mxu0 %v3452
      %3570 = vmatprep.subr.bf16.mxu0 %v3461
      %3571 = vmatpush1.bf16.msra.mxu0 %v3460
      %3572 = vmatprep.subr.bf16.mxu0 %v3469
      %3573 = vmatpush1.bf16.msra.mxu0 %v3468
      %3574 = vmatprep.subr.bf16.mxu0 %v3477
      %3575 = vmatpush1.bf16.msra.mxu0 %v3476
      %3576 = vmatprep.subr.bf16.mxu0 %v3485
      %3577 = vmatpush1.bf16.msra.mxu0 %v3484
      %3578 = vmatprep.subr.bf16.mxu0 %v3493
      %3579 = vmatpush1.bf16.msra.mxu0 %v3492
      %3580 = vmatprep.subr.bf16.mxu0 0
      %3581 = vmatpush1.bf16.msra.mxu0 0
      %3582 = vmatprep.subr.bf16.mxu0 0
      %3583 = vmatpush1.bf16.msra.mxu0 0
      %3584 = vmatprep.subr.bf16.mxu0 0
      %3585 = vmatpush1.bf16.msra.mxu0 0
      %3586 = vmatprep.subr.bf16.mxu0 0
      %3587 = vmatpush1.bf16.msra.mxu0 0
      %3588 = vmatprep.subr.bf16.mxu0 0
      %3589 = vmatpush1.bf16.msra.mxu0 0
      %3590 = vmatprep.subr.bf16.mxu0 0
      %3591 = vmatpush1.bf16.msra.mxu0 0
      %3592 = vmatprep.subr.bf16.mxu0 0
      %3593 = vmatpush1.bf16.msra.mxu0 0
      %3594 = vmatprep.subr.bf16.mxu0 0
      %3595 = vmatpush1.bf16.msra.mxu0 0
      %3596 = vmatprep.mubr.bf16.mxu0 0
      %3597 = vmatmul.mubr.bf16.gmra.mrb[0].mxu0 %v3106
      %v3598 = vpop.f32.mrb[0].mxu0
      %v3599 = vadd.f32 %v3207, %v3598
      %v3600 = vpop.f32.mrb[0].mxu0
      %v3601 = vadd.f32 %v3211, %v3600
      %v3602 = vpop.f32.mrb[0].mxu0
      %v3603 = vadd.f32 %v3207, %v3602
      %v3604 = vpop.f32.mrb[0].mxu0
      %v3605 = vadd.f32 %v3211, %v3604
      %3606 = vmatprep.mubr.bf16.mxu0 0
      %3607 = vmatmul.mubr.bf16.gmra.mrb[0].mxu0 %v3107
      %v3608 = vpop.f32.mrb[0].mxu0
      %v3609 = vadd.f32 %v3207, %v3608
      %v3610 = vpop.f32.mrb[0].mxu0
      %v3611 = vadd.f32 %v3211, %v3610
      %v3612 = vpop.f32.mrb[0].mxu0
      %v3613 = vadd.f32 %v3207, %v3612
      %v3614 = vpop.f32.mrb[0].mxu0
      %v3615 = vadd.f32 %v3211, %v3614
      %3616 = vmatprep.mubr.bf16.mxu0 0
      %3617 = vmatmul.mubr.bf16.gmra.mrb[0].mxu0 %v3108
      %v3618 = vpop.f32.mrb[0].mxu0
      %v3619 = vadd.f32 %v3207, %v3618
      %v3620 = vpop.f32.mrb[0].mxu0
      %v3621 = vadd.f32 %v3211, %v3620
      %v3622 = vpop.f32.mrb[0].mxu0
      %v3623 = vadd.f32 %v3207, %v3622
      %v3624 = vpop.f32.mrb[0].mxu0
      %v3625 = vadd.f32 %v3211, %v3624
      %3626 = vmatprep.mubr.bf16.mxu0 0
      %3627 = vmatmul.mubr.bf16.gmra.mrb[0].mxu0 %v3109
      %v3628 = vpop.f32.mrb[0].mxu0
      %v3629 = vadd.f32 %v3207, %v3628
      %v3630 = vpop.f32.mrb[0].mxu0
      %v3631 = vadd.f32 %v3211, %v3630
      %v3632 = vpop.f32.mrb[0].mxu0
      %v3633 = vadd.f32 %v3207, %v3632
      %v3634 = vpop.f32.mrb[0].mxu0
      %v3635 = vadd.f32 %v3211, %v3634
      %3636 = vmatprep.mubr.bf16.mxu0 0
      %3637 = vmatmul.mubr.bf16.gmra.mrb[0].mxu0 %v3110
      %v3638 = vpop.f32.mrb[0].mxu0
      %v3639 = vadd.f32 %v3207, %v3638
      %v3640 = vpop.f32.mrb[0].mxu0
      %v3641 = vadd.f32 %v3211, %v3640
      %v3642 = vpop.f32.mrb[0].mxu0
      %v3643 = vadd.f32 %v3207, %v3642
      %v3644 = vpop.f32.mrb[0].mxu0
      %v3645 = vadd.f32 %v3211, %v3644
      %3646 = vmatprep.mubr.bf16.mxu0 0
      %3647 = vmatmul.mubr.bf16.gmra.mrb[0].mxu0 %v3111
      %v3648 = vpop.f32.mrb[0].mxu0
      %v3649 = vadd.f32 %v3207, %v3648
      %v3650 = vpop.f32.mrb[0].mxu0
      %v3651 = vadd.f32 %v3211, %v3650
      %v3652 = vpop.f32.mrb[0].mxu0
      %v3653 = vadd.f32 %v3207, %v3652
      %v3654 = vpop.f32.mrb[0].mxu0
      %v3655 = vadd.f32 %v3211, %v3654
      %3656 = vmatprep.mubr.bf16.mxu0 0
      %3657 = vmatmul.mubr.bf16.gmra.mrb[0].mxu0 %v3112
      %v3658 = vpop.f32.mrb[0].mxu0
      %v3659 = vadd.f32 %v3207, %v3658
      %v3660 = vpop.f32.mrb[0].mxu0
      %v3661 = vadd.f32 %v3211, %v3660
      %v3662 = vpop.f32.mrb[0].mxu0
      %v3663 = vadd.f32 %v3207, %v3662
      %v3664 = vpop.f32.mrb[0].mxu0
      %v3665 = vadd.f32 %v3211, %v3664
      %3666 = vmatprep.mubr.bf16.mxu0 0
      %3667 = vmatmul.mubr.bf16.gmra.mrb[0].mxu0 %v3113
      %v3668 = vpop.f32.mrb[0].mxu0
      %v3669 = vadd.f32 %v3207, %v3668
      %v3670 = vpop.f32.mrb[0].mxu0
      %v3671 = vadd.f32 %v3211, %v3670
      %v3672 = vpop.f32.mrb[0].mxu0
      %v3673 = vadd.f32 %v3207, %v3672
      %v3674 = vpop.f32.mrb[0].mxu0
      %v3675 = vadd.f32 %v3211, %v3674
      %3676 = vmatprep.mubr.bf16.mxu0 0
      %3677 = vmatmul.mubr.bf16.gmra.mrb[0].mxu0 %v3114
      %v3678 = vpop.f32.mrb[0].mxu0
      %v3679 = vadd.f32 %v3207, %v3678
      %v3680 = vpop.f32.mrb[0].mxu0
      %v3681 = vadd.f32 %v3211, %v3680
      %v3682 = vpop.f32.mrb[0].mxu0
      %v3683 = vadd.f32 %v3207, %v3682
      %v3684 = vpop.f32.mrb[0].mxu0
      %v3685 = vadd.f32 %v3211, %v3684
      %3686 = vmatprep.mubr.bf16.mxu0 0
      %3687 = vmatmul.mubr.bf16.gmra.mrb[0].mxu0 %v3115
      %v3688 = vpop.f32.mrb[0].mxu0
      %v3689 = vadd.f32 %v3207, %v3688
      %v3690 = vpop.f32.mrb[0].mxu0
      %v3691 = vadd.f32 %v3211, %v3690
      %v3692 = vpop.f32.mrb[0].mxu0
      %v3693 = vadd.f32 %v3207, %v3692
      %v3694 = vpop.f32.mrb[0].mxu0
      %v3695 = vadd.f32 %v3211, %v3694
      %3696 = vmatprep.mubr.bf16.mxu0 0
      %3697 = vmatmul.mubr.bf16.gmra.mrb[0].mxu0 %v3116
      %v3698 = vpop.f32.mrb[0].mxu0
      %v3699 = vadd.f32 %v3207, %v3698
      %v3700 = vpop.f32.mrb[0].mxu0
      %v3701 = vadd.f32 %v3211, %v3700
      %v3702 = vpop.f32.mrb[0].mxu0
      %v3703 = vadd.f32 %v3207, %v3702
      %v3704 = vpop.f32.mrb[0].mxu0
      %v3705 = vadd.f32 %v3211, %v3704
      %3706 = vmatprep.mubr.bf16.mxu0 0
      %3707 = vmatmul.mubr.bf16.gmra.mrb[0].mxu0 %v3117
      %v3708 = vpop.f32.mrb[0].mxu0
      %v3709 = vadd.f32 %v3207, %v3708
      %v3710 = vpop.f32.mrb[0].mxu0
      %v3711 = vadd.f32 %v3211, %v3710
      %v3712 = vpop.f32.mrb[0].mxu0
      %v3713 = vadd.f32 %v3207, %v3712
      %v3714 = vpop.f32.mrb[0].mxu0
      %v3715 = vadd.f32 %v3211, %v3714
      %3716 = vmatprep.mubr.bf16.mxu0 0
      %3717 = vmatmul.mubr.bf16.gmra.mrb[0].mxu0 %v3118
      %v3718 = vpop.f32.mrb[0].mxu0
      %v3719 = vadd.f32 %v3207, %v3718
      %v3720 = vpop.f32.mrb[0].mxu0
      %v3721 = vadd.f32 %v3211, %v3720
      %v3722 = vpop.f32.mrb[0].mxu0
      %v3723 = vadd.f32 %v3207, %v3722
      %v3724 = vpop.f32.mrb[0].mxu0
      %v3725 = vadd.f32 %v3211, %v3724
      %3726 = vmatprep.mubr.bf16.mxu0 0
      %3727 = vmatmul.mubr.bf16.gmra.mrb[0].mxu0 %v3119
      %v3728 = vpop.f32.mrb[0].mxu0
      %v3729 = vadd.f32 %v3207, %v3728
      %v3730 = vpop.f32.mrb[0].mxu0
      %v3731 = vadd.f32 %v3211, %v3730
      %v3732 = vpop.f32.mrb[0].mxu0
      %v3733 = vadd.f32 %v3207, %v3732
      %v3734 = vpop.f32.mrb[0].mxu0
      %v3735 = vadd.f32 %v3211, %v3734
      %3736 = vmatprep.mubr.bf16.mxu0 0
      %3737 = vmatmul.mubr.bf16.gmra.mrb[0].mxu0 %v3120
      %v3738 = vpop.f32.mrb[0].mxu0
      %v3739 = vadd.f32 %v3207, %v3738
      %v3740 = vpop.f32.mrb[0].mxu0
      %v3741 = vadd.f32 %v3211, %v3740
      %v3742 = vpop.f32.mrb[0].mxu0
      %v3743 = vadd.f32 %v3207, %v3742
      %v3744 = vpop.f32.mrb[0].mxu0
      %v3745 = vadd.f32 %v3211, %v3744
      %3746 = vmatprep.mubr.bf16.mxu0 0
      %3747 = vmatmul.mubr.bf16.gmra.mrb[0].mxu0 %v3121
      %v3748 = vpop.f32.mrb[0].mxu0
      %v3749 = vadd.f32 %v3207, %v3748
      %v3750 = vpop.f32.mrb[0].mxu0
      %v3751 = vadd.f32 %v3211, %v3750
      %v3752 = vpop.f32.mrb[0].mxu0
      %v3753 = vadd.f32 %v3207, %v3752
      %v3754 = vpop.f32.mrb[0].mxu0
      %v3755 = vadd.f32 %v3211, %v3754
      %3756 = vmatprep.mubr.bf16.mxu0 0
      %3757 = vmatmul.mubr.bf16.gmra.mrb[0].mxu0 %v3122
      %v3758 = vpop.f32.mrb[0].mxu0
      %v3759 = vadd.f32 %v3207, %v3758
      %v3760 = vpop.f32.mrb[0].mxu0
      %v3761 = vadd.f32 %v3211, %v3760
      %v3762 = vpop.f32.mrb[0].mxu0
      %v3763 = vadd.f32 %v3207, %v3762
      %v3764 = vpop.f32.mrb[0].mxu0
      %v3765 = vadd.f32 %v3211, %v3764
      %3766 = vmatprep.mubr.bf16.mxu0 0
      %3767 = vmatmul.mubr.bf16.gmra.mrb[0].mxu0 %v3123
      %v3768 = vpop.f32.mrb[0].mxu0
      %v3769 = vadd.f32 %v3207, %v3768
      %v3770 = vpop.f32.mrb[0].mxu0
      %v3771 = vadd.f32 %v3211, %v3770
      %v3772 = vpop.f32.mrb[0].mxu0
      %v3773 = vadd.f32 %v3207, %v3772
      %v3774 = vpop.f32.mrb[0].mxu0
      %v3775 = vadd.f32 %v3211, %v3774
      %3776 = vmatprep.mubr.bf16.mxu0 0
      %3777 = vmatmul.mubr.bf16.gmra.mrb[0].mxu0 %v3124
      %v3778 = vpop.f32.mrb[0].mxu0
      %v3779 = vadd.f32 %v3207, %v3778
      %v3780 = vpop.f32.mrb[0].mxu0
      %v3781 = vadd.f32 %v3211, %v3780
      %v3782 = vpop.f32.mrb[0].mxu0
      %v3783 = vadd.f32 %v3207, %v3782
      %v3784 = vpop.f32.mrb[0].mxu0
      %v3785 = vadd.f32 %v3211, %v3784
      %3786 = vmatprep.mubr.bf16.mxu0 0
      %3787 = vmatmul.mubr.bf16.gmra.mrb[0].mxu0 %v3125
      %v3788 = vpop.f32.mrb[0].mxu0
      %v3789 = vadd.f32 %v3207, %v3788
      %v3790 = vpop.f32.mrb[0].mxu0
      %v3791 = vadd.f32 %v3211, %v3790
      %v3792 = vpop.f32.mrb[0].mxu0
      %v3793 = vadd.f32 %v3207, %v3792
      %v3794 = vpop.f32.mrb[0].mxu0
      %v3795 = vadd.f32 %v3211, %v3794
      %3796 = vmatprep.mubr.bf16.mxu0 0
      %3797 = vmatmul.mubr.bf16.gmra.mrb[0].mxu0 %v3126
      %v3798 = vpop.f32.mrb[0].mxu0
      %v3799 = vadd.f32 %v3207, %v3798
      %v3800 = vpop.f32.mrb[0].mxu0
      %v3801 = vadd.f32 %v3211, %v3800
      %v3802 = vpop.f32.mrb[0].mxu0
      %v3803 = vadd.f32 %v3207, %v3802
      %v3804 = vpop.f32.mrb[0].mxu0
      %v3805 = vadd.f32 %v3211, %v3804
      %3806 = vmatprep.mubr.bf16.mxu0 0
      %3807 = vmatmul.mubr.bf16.gmra.mrb[0].mxu0 %v3127
      %v3808 = vpop.f32.mrb[0].mxu0
      %v3809 = vadd.f32 %v3207, %v3808
      %v3810 = vpop.f32.mrb[0].mxu0
      %v3811 = vadd.f32 %v3211, %v3810
      %v3812 = vpop.f32.mrb[0].mxu0
      %v3813 = vadd.f32 %v3207, %v3812
      %v3814 = vpop.f32.mrb[0].mxu0
      %v3815 = vadd.f32 %v3211, %v3814
      %3816 = vmatprep.mubr.bf16.mxu0 0
      %3817 = vmatmul.mubr.bf16.gmra.mrb[0].mxu0 %v3128
      %v3818 = vpop.f32.mrb[0].mxu0
      %v3819 = vadd.f32 %v3207, %v3818
      %v3820 = vpop.f32.mrb[0].mxu0
      %v3821 = vadd.f32 %v3211, %v3820
      %v3822 = vpop.f32.mrb[0].mxu0
      %v3823 = vadd.f32 %v3207, %v3822
      %v3824 = vpop.f32.mrb[0].mxu0
      %v3825 = vadd.f32 %v3211, %v3824
      %3826 = vmatprep.mubr.bf16.mxu0 0
      %3827 = vmatmul.mubr.bf16.gmra.mrb[0].mxu0 %v3129
      %v3828 = vpop.f32.mrb[0].mxu0
      %v3829 = vadd.f32 %v3207, %v3828
      %v3830 = vpop.f32.mrb[0].mxu0
      %v3831 = vadd.f32 %v3211, %v3830
      %v3832 = vpop.f32.mrb[0].mxu0
      %v3833 = vadd.f32 %v3207, %v3832
      %v3834 = vpop.f32.mrb[0].mxu0
      %v3835 = vadd.f32 %v3211, %v3834
      %3836 = vmatprep.mubr.bf16.mxu0 0
      %3837 = vmatmul.mubr.bf16.gmra.mrb[0].mxu0 %v3130
      %v3838 = vpop.f32.mrb[0].mxu0
      %v3839 = vadd.f32 %v3207, %v3838
      %v3840 = vpop.f32.mrb[0].mxu0
      %v3841 = vadd.f32 %v3211, %v3840
      %v3842 = vpop.f32.mrb[0].mxu0
      %v3843 = vadd.f32 %v3207, %v3842
      %v3844 = vpop.f32.mrb[0].mxu0
      %v3845 = vadd.f32 %v3211, %v3844
      %3846 = vmatprep.mubr.bf16.mxu0 0
      %3847 = vmatmul.mubr.bf16.gmra.mrb[0].mxu0 %v3131
      %v3848 = vpop.f32.mrb[0].mxu0
      %v3849 = vadd.f32 %v3207, %v3848
      %v3850 = vpop.f32.mrb[0].mxu0
      %v3851 = vadd.f32 %v3211, %v3850
      %v3852 = vpop.f32.mrb[0].mxu0
      %v3853 = vadd.f32 %v3207, %v3852
      %v3854 = vpop.f32.mrb[0].mxu0
      %v3855 = vadd.f32 %v3211, %v3854
      %3856 = vmatprep.mubr.bf16.mxu0 0
      %3857 = vmatmul.mubr.bf16.gmra.mrb[0].mxu0 %v3132
      %v3858 = vpop.f32.mrb[0].mxu0
      %v3859 = vadd.f32 %v3207, %v3858
      %v3860 = vpop.f32.mrb[0].mxu0
      %v3861 = vadd.f32 %v3211, %v3860
      %v3862 = vpop.f32.mrb[0].mxu0
      %v3863 = vadd.f32 %v3207, %v3862
      %v3864 = vpop.f32.mrb[0].mxu0
      %v3865 = vadd.f32 %v3211, %v3864
      %3866 = vmatprep.mubr.bf16.mxu0 0
      %3867 = vmatmul.mubr.bf16.gmra.mrb[0].mxu0 %v3133
      %v3868 = vpop.f32.mrb[0].mxu0
      %v3869 = vadd.f32 %v3207, %v3868
      %v3870 = vpop.f32.mrb[0].mxu0
      %v3871 = vadd.f32 %v3211, %v3870
      %v3872 = vpop.f32.mrb[0].mxu0
      %v3873 = vadd.f32 %v3207, %v3872
      %v3874 = vpop.f32.mrb[0].mxu0
      %v3875 = vadd.f32 %v3211, %v3874
      %3876 = vmatprep.mubr.bf16.mxu0 0
      %3877 = vmatmul.mubr.bf16.gmra.mrb[0].mxu0 %v3134
      %v3878 = vpop.f32.mrb[0].mxu0
      %v3879 = vadd.f32 %v3207, %v3878
      %v3880 = vpop.f32.mrb[0].mxu0
      %v3881 = vadd.f32 %v3211, %v3880
      %v3882 = vpop.f32.mrb[0].mxu0
      %v3883 = vadd.f32 %v3207, %v3882
      %v3884 = vpop.f32.mrb[0].mxu0
      %v3885 = vadd.f32 %v3211, %v3884
      %3886 = vmatprep.mubr.bf16.mxu0 0
      %3887 = vmatmul.mubr.bf16.gmra.mrb[0].mxu0 %v3135
      %v3888 = vpop.f32.mrb[0].mxu0
      %v3889 = vadd.f32 %v3207, %v3888
      %v3890 = vpop.f32.mrb[0].mxu0
      %v3891 = vadd.f32 %v3211, %v3890
      %v3892 = vpop.f32.mrb[0].mxu0
      %v3893 = vadd.f32 %v3207, %v3892
      %v3894 = vpop.f32.mrb[0].mxu0
      %v3895 = vadd.f32 %v3211, %v3894
      %3896 = vmatprep.mubr.bf16.mxu0 0
      %3897 = vmatmul.mubr.bf16.gmra.mrb[0].mxu0 %v3136
      %v3898 = vpop.f32.mrb[0].mxu0
      %v3899 = vadd.f32 %v3207, %v3898
      %v3900 = vpop.f32.mrb[0].mxu0
      %v3901 = vadd.f32 %v3211, %v3900
      %v3902 = vpop.f32.mrb[0].mxu0
      %v3903 = vadd.f32 %v3207, %v3902
      %v3904 = vpop.f32.mrb[0].mxu0
      %v3905 = vadd.f32 %v3211, %v3904
      %3906 = vmatprep.mubr.bf16.mxu0 0
      %3907 = vmatmul.mubr.bf16.gmra.mrb[0].mxu0 %v3137
      %v3908 = vpop.f32.mrb[0].mxu0
      %v3909 = vadd.f32 %v3207, %v3908
      %v3910 = vpop.f32.mrb[0].mxu0
      %v3911 = vadd.f32 %v3211, %v3910
      %v3912 = vpop.f32.mrb[0].mxu0
      %v3913 = vadd.f32 %v3207, %v3912
      %v3914 = vpop.f32.mrb[0].mxu0
      %v3915 = vadd.f32 %v3211, %v3914
      %3916 = vdwg.mxu0
      %3917 = vmatprep.subr.bf16.mxu0 %v3439
      %3918 = vmatpush1.bf16.msra.mxu0 %v3438
      %3919 = vmatprep.subr.bf16.mxu0 %v3447
      %3920 = vmatpush1.bf16.msra.mxu0 %v3446
      %3921 = vmatprep.subr.bf16.mxu0 %v3455
      %3922 = vmatpush1.bf16.msra.mxu0 %v3454
      %3923 = vmatprep.subr.bf16.mxu0 %v3463
      %3924 = vmatpush1.bf16.msra.mxu0 %v3462
      %3925 = vmatprep.subr.bf16.mxu0 %v3471
      %3926 = vmatpush1.bf16.msra.mxu0 %v3470
      %3927 = vmatprep.subr.bf16.mxu0 %v3479
      %3928 = vmatpush1.bf16.msra.mxu0 %v3478
      %3929 = vmatprep.subr.bf16.mxu0 %v3487
      %3930 = vmatpush1.bf16.msra.mxu0 %v3486
      %3931 = vmatprep.subr.bf16.mxu0 %v3495
      %3932 = vmatpush1.bf16.msra.mxu0 %v3494
      %3933 = vmatprep.subr.bf16.mxu0 0
      %3934 = vmatpush1.bf16.msra.mxu0 0
      %3935 = vmatprep.subr.bf16.mxu0 0
      %3936 = vmatpush1.bf16.msra.mxu0 0
      %3937 = vmatprep.subr.bf16.mxu0 0
      %3938 = vmatpush1.bf16.msra.mxu0 0
      %3939 = vmatprep.subr.bf16.mxu0 0
      %3940 = vmatpush1.bf16.msra.mxu0 0
      %3941 = vmatprep.subr.bf16.mxu0 0
      %3942 = vmatpush1.bf16.msra.mxu0 0
      %3943 = vmatprep.subr.bf16.mxu0 0
      %3944 = vmatpush1.bf16.msra.mxu0 0
      %3945 = vmatprep.subr.bf16.mxu0 0
      %3946 = vmatpush1.bf16.msra.mxu0 0
      %3947 = vmatprep.subr.bf16.mxu0 0
      %3948 = vmatpush1.bf16.msra.mxu0 0
      %3949 = vmatprep.mubr.bf16.mxu0 0
      %3950 = vmatmul.mubr.bf16.gmra.mrb[0].mxu0 %v3106
      %v3951 = vpop.f32.mrb[0].mxu0
      %v3952 = vadd.f32 %v3215, %v3951
      %v3953 = vpop.f32.mrb[0].mxu0
      %v3954 = vadd.f32 %v3219, %v3953
      %v3955 = vpop.f32.mrb[0].mxu0
      %v3956 = vadd.f32 %v3215, %v3955
      %v3957 = vpop.f32.mrb[0].mxu0
      %v3958 = vadd.f32 %v3219, %v3957
      %3959 = vmatprep.mubr.bf16.mxu0 0
      %3960 = vmatmul.mubr.bf16.gmra.mrb[0].mxu0 %v3107
      %v3961 = vpop.f32.mrb[0].mxu0
      %v3962 = vadd.f32 %v3215, %v3961
      %v3963 = vpop.f32.mrb[0].mxu0
      %v3964 = vadd.f32 %v3219, %v3963
      %v3965 = vpop.f32.mrb[0].mxu0
      %v3966 = vadd.f32 %v3215, %v3965
      %v3967 = vpop.f32.mrb[0].mxu0
      %v3968 = vadd.f32 %v3219, %v3967
      %3969 = vmatprep.mubr.bf16.mxu0 0
      %3970 = vmatmul.mubr.bf16.gmra.mrb[0].mxu0 %v3108
      %v3971 = vpop.f32.mrb[0].mxu0
      %v3972 = vadd.f32 %v3215, %v3971
      %v3973 = vpop.f32.mrb[0].mxu0
      %v3974 = vadd.f32 %v3219, %v3973
      %v3975 = vpop.f32.mrb[0].mxu0
      %v3976 = vadd.f32 %v3215, %v3975
      %v3977 = vpop.f32.mrb[0].mxu0
      %v3978 = vadd.f32 %v3219, %v3977
      %3979 = vmatprep.mubr.bf16.mxu0 0
      %3980 = vmatmul.mubr.bf16.gmra.mrb[0].mxu0 %v3109
      %v3981 = vpop.f32.mrb[0].mxu0
      %v3982 = vadd.f32 %v3215, %v3981
      %v3983 = vpop.f32.mrb[0].mxu0
      %v3984 = vadd.f32 %v3219, %v3983
      %v3985 = vpop.f32.mrb[0].mxu0
      %v3986 = vadd.f32 %v3215, %v3985
      %v3987 = vpop.f32.mrb[0].mxu0
      %v3988 = vadd.f32 %v3219, %v3987
      %3989 = vmatprep.mubr.bf16.mxu0 0
      %3990 = vmatmul.mubr.bf16.gmra.mrb[0].mxu0 %v3110
      %v3991 = vpop.f32.mrb[0].mxu0
      %v3992 = vadd.f32 %v3215, %v3991
      %v3993 = vpop.f32.mrb[0].mxu0
      %v3994 = vadd.f32 %v3219, %v3993
      %v3995 = vpop.f32.mrb[0].mxu0
      %v3996 = vadd.f32 %v3215, %v3995
      %v3997 = vpop.f32.mrb[0].mxu0
      %v3998 = vadd.f32 %v3219, %v3997
      %3999 = vmatprep.mubr.bf16.mxu0 0
      %4000 = vmatmul.mubr.bf16.gmra.mrb[0].mxu0 %v3111
      %v4001 = vpop.f32.mrb[0].mxu0
      %v4002 = vadd.f32 %v3215, %v4001
      %v4003 = vpop.f32.mrb[0].mxu0
      %v4004 = vadd.f32 %v3219, %v4003
      %v4005 = vpop.f32.mrb[0].mxu0
      %v4006 = vadd.f32 %v3215, %v4005
      %v4007 = vpop.f32.mrb[0].mxu0
      %v4008 = vadd.f32 %v3219, %v4007
      %4009 = vmatprep.mubr.bf16.mxu0 0
      %4010 = vmatmul.mubr.bf16.gmra.mrb[0].mxu0 %v3112
      %v4011 = vpop.f32.mrb[0].mxu0
      %v4012 = vadd.f32 %v3215, %v4011
      %v4013 = vpop.f32.mrb[0].mxu0
      %v4014 = vadd.f32 %v3219, %v4013
      %v4015 = vpop.f32.mrb[0].mxu0
      %v4016 = vadd.f32 %v3215, %v4015
      %v4017 = vpop.f32.mrb[0].mxu0
      %v4018 = vadd.f32 %v3219, %v4017
      %4019 = vmatprep.mubr.bf16.mxu0 0
      %4020 = vmatmul.mubr.bf16.gmra.mrb[0].mxu0 %v3113
      %v4021 = vpop.f32.mrb[0].mxu0
      %v4022 = vadd.f32 %v3215, %v4021
      %v4023 = vpop.f32.mrb[0].mxu0
      %v4024 = vadd.f32 %v3219, %v4023
      %v4025 = vpop.f32.mrb[0].mxu0
      %v4026 = vadd.f32 %v3215, %v4025
      %v4027 = vpop.f32.mrb[0].mxu0
      %v4028 = vadd.f32 %v3219, %v4027
      %4029 = vmatprep.mubr.bf16.mxu0 0
      %4030 = vmatmul.mubr.bf16.gmra.mrb[0].mxu0 %v3114
      %v4031 = vpop.f32.mrb[0].mxu0
      %v4032 = vadd.f32 %v3215, %v4031
      %v4033 = vpop.f32.mrb[0].mxu0
      %v4034 = vadd.f32 %v3219, %v4033
      %v4035 = vpop.f32.mrb[0].mxu0
      %v4036 = vadd.f32 %v3215, %v4035
      %v4037 = vpop.f32.mrb[0].mxu0
      %v4038 = vadd.f32 %v3219, %v4037
      %4039 = vmatprep.mubr.bf16.mxu0 0
      %4040 = vmatmul.mubr.bf16.gmra.mrb[0].mxu0 %v3115
      %v4041 = vpop.f32.mrb[0].mxu0
      %v4042 = vadd.f32 %v3215, %v4041
      %v4043 = vpop.f32.mrb[0].mxu0
      %v4044 = vadd.f32 %v3219, %v4043
      %v4045 = vpop.f32.mrb[0].mxu0
      %v4046 = vadd.f32 %v3215, %v4045
      %v4047 = vpop.f32.mrb[0].mxu0
      %v4048 = vadd.f32 %v3219, %v4047
      %4049 = vmatprep.mubr.bf16.mxu0 0
      %4050 = vmatmul.mubr.bf16.gmra.mrb[0].mxu0 %v3116
      %v4051 = vpop.f32.mrb[0].mxu0
      %v4052 = vadd.f32 %v3215, %v4051
      %v4053 = vpop.f32.mrb[0].mxu0
      %v4054 = vadd.f32 %v3219, %v4053
      %v4055 = vpop.f32.mrb[0].mxu0
      %v4056 = vadd.f32 %v3215, %v4055
      %v4057 = vpop.f32.mrb[0].mxu0
      %v4058 = vadd.f32 %v3219, %v4057
      %4059 = vmatprep.mubr.bf16.mxu0 0
      %4060 = vmatmul.mubr.bf16.gmra.mrb[0].mxu0 %v3117
      %v4061 = vpop.f32.mrb[0].mxu0
      %v4062 = vadd.f32 %v3215, %v4061
      %v4063 = vpop.f32.mrb[0].mxu0
      %v4064 = vadd.f32 %v3219, %v4063
      %v4065 = vpop.f32.mrb[0].mxu0
      %v4066 = vadd.f32 %v3215, %v4065
      %v4067 = vpop.f32.mrb[0].mxu0
      %v4068 = vadd.f32 %v3219, %v4067
      %4069 = vmatprep.mubr.bf16.mxu0 0
      %4070 = vmatmul.mubr.bf16.gmra.mrb[0].mxu0 %v3118
      %v4071 = vpop.f32.mrb[0].mxu0
      %v4072 = vadd.f32 %v3215, %v4071
      %v4073 = vpop.f32.mrb[0].mxu0
      %v4074 = vadd.f32 %v3219, %v4073
      %v4075 = vpop.f32.mrb[0].mxu0
      %v4076 = vadd.f32 %v3215, %v4075
      %v4077 = vpop.f32.mrb[0].mxu0
      %v4078 = vadd.f32 %v3219, %v4077
      %4079 = vmatprep.mubr.bf16.mxu0 0
      %4080 = vmatmul.mubr.bf16.gmra.mrb[0].mxu0 %v3119
      %v4081 = vpop.f32.mrb[0].mxu0
      %v4082 = vadd.f32 %v3215, %v4081
      %v4083 = vpop.f32.mrb[0].mxu0
      %v4084 = vadd.f32 %v3219, %v4083
      %v4085 = vpop.f32.mrb[0].mxu0
      %v4086 = vadd.f32 %v3215, %v4085
      %v4087 = vpop.f32.mrb[0].mxu0
      %v4088 = vadd.f32 %v3219, %v4087
      %4089 = vmatprep.mubr.bf16.mxu0 0
      %4090 = vmatmul.mubr.bf16.gmra.mrb[0].mxu0 %v3120
      %v4091 = vpop.f32.mrb[0].mxu0
      %v4092 = vadd.f32 %v3215, %v4091
      %v4093 = vpop.f32.mrb[0].mxu0
      %v4094 = vadd.f32 %v3219, %v4093
      %v4095 = vpop.f32.mrb[0].mxu0
      %v4096 = vadd.f32 %v3215, %v4095
      %v4097 = vpop.f32.mrb[0].mxu0
      %v4098 = vadd.f32 %v3219, %v4097
      %4099 = vmatprep.mubr.bf16.mxu0 0
      %4100 = vmatmul.mubr.bf16.gmra.mrb[0].mxu0 %v3121
      %v4101 = vpop.f32.mrb[0].mxu0
      %v4102 = vadd.f32 %v3215, %v4101
      %v4103 = vpop.f32.mrb[0].mxu0
      %v4104 = vadd.f32 %v3219, %v4103
      %v4105 = vpop.f32.mrb[0].mxu0
      %v4106 = vadd.f32 %v3215, %v4105
      %v4107 = vpop.f32.mrb[0].mxu0
      %v4108 = vadd.f32 %v3219, %v4107
      %4109 = vmatprep.mubr.bf16.mxu0 0
      %4110 = vmatmul.mubr.bf16.gmra.mrb[0].mxu0 %v3122
      %v4111 = vpop.f32.mrb[0].mxu0
      %v4112 = vadd.f32 %v3215, %v4111
      %v4113 = vpop.f32.mrb[0].mxu0
      %v4114 = vadd.f32 %v3219, %v4113
      %v4115 = vpop.f32.mrb[0].mxu0
      %v4116 = vadd.f32 %v3215, %v4115
      %v4117 = vpop.f32.mrb[0].mxu0
      %v4118 = vadd.f32 %v3219, %v4117
      %4119 = vmatprep.mubr.bf16.mxu0 0
      %4120 = vmatmul.mubr.bf16.gmra.mrb[0].mxu0 %v3123
      %v4121 = vpop.f32.mrb[0].mxu0
      %v4122 = vadd.f32 %v3215, %v4121
      %v4123 = vpop.f32.mrb[0].mxu0
      %v4124 = vadd.f32 %v3219, %v4123
      %v4125 = vpop.f32.mrb[0].mxu0
      %v4126 = vadd.f32 %v3215, %v4125
      %v4127 = vpop.f32.mrb[0].mxu0
      %v4128 = vadd.f32 %v3219, %v4127
      %4129 = vmatprep.mubr.bf16.mxu0 0
      %4130 = vmatmul.mubr.bf16.gmra.mrb[0].mxu0 %v3124
      %v4131 = vpop.f32.mrb[0].mxu0
      %v4132 = vadd.f32 %v3215, %v4131
      %v4133 = vpop.f32.mrb[0].mxu0
      %v4134 = vadd.f32 %v3219, %v4133
      %v4135 = vpop.f32.mrb[0].mxu0
      %v4136 = vadd.f32 %v3215, %v4135
      %v4137 = vpop.f32.mrb[0].mxu0
      %v4138 = vadd.f32 %v3219, %v4137
      %4139 = vmatprep.mubr.bf16.mxu0 0
      %4140 = vmatmul.mubr.bf16.gmra.mrb[0].mxu0 %v3125
      %v4141 = vpop.f32.mrb[0].mxu0
      %v4142 = vadd.f32 %v3215, %v4141
      %v4143 = vpop.f32.mrb[0].mxu0
      %v4144 = vadd.f32 %v3219, %v4143
      %v4145 = vpop.f32.mrb[0].mxu0
      %v4146 = vadd.f32 %v3215, %v4145
      %v4147 = vpop.f32.mrb[0].mxu0
      %v4148 = vadd.f32 %v3219, %v4147
      %4149 = vmatprep.mubr.bf16.mxu0 0
      %4150 = vmatmul.mubr.bf16.gmra.mrb[0].mxu0 %v3126
      %v4151 = vpop.f32.mrb[0].mxu0
      %v4152 = vadd.f32 %v3215, %v4151
      %v4153 = vpop.f32.mrb[0].mxu0
      %v4154 = vadd.f32 %v3219, %v4153
      %v4155 = vpop.f32.mrb[0].mxu0
      %v4156 = vadd.f32 %v3215, %v4155
      %v4157 = vpop.f32.mrb[0].mxu0
      %v4158 = vadd.f32 %v3219, %v4157
      %4159 = vmatprep.mubr.bf16.mxu0 0
      %4160 = vmatmul.mubr.bf16.gmra.mrb[0].mxu0 %v3127
      %v4161 = vpop.f32.mrb[0].mxu0
      %v4162 = vadd.f32 %v3215, %v4161
      %v4163 = vpop.f32.mrb[0].mxu0
      %v4164 = vadd.f32 %v3219, %v4163
      %v4165 = vpop.f32.mrb[0].mxu0
      %v4166 = vadd.f32 %v3215, %v4165
      %v4167 = vpop.f32.mrb[0].mxu0
      %v4168 = vadd.f32 %v3219, %v4167
      %4169 = vmatprep.mubr.bf16.mxu0 0
      %4170 = vmatmul.mubr.bf16.gmra.mrb[0].mxu0 %v3128
      %v4171 = vpop.f32.mrb[0].mxu0
      %v4172 = vadd.f32 %v3215, %v4171
      %v4173 = vpop.f32.mrb[0].mxu0
      %v4174 = vadd.f32 %v3219, %v4173
      %v4175 = vpop.f32.mrb[0].mxu0
      %v4176 = vadd.f32 %v3215, %v4175
      %v4177 = vpop.f32.mrb[0].mxu0
      %v4178 = vadd.f32 %v3219, %v4177
      %4179 = vmatprep.mubr.bf16.mxu0 0
      %4180 = vmatmul.mubr.bf16.gmra.mrb[0].mxu0 %v3129
      %v4181 = vpop.f32.mrb[0].mxu0
      %v4182 = vadd.f32 %v3215, %v4181
      %v4183 = vpop.f32.mrb[0].mxu0
      %v4184 = vadd.f32 %v3219, %v4183
      %v4185 = vpop.f32.mrb[0].mxu0
      %v4186 = vadd.f32 %v3215, %v4185
      %v4187 = vpop.f32.mrb[0].mxu0
      %v4188 = vadd.f32 %v3219, %v4187
      %4189 = vmatprep.mubr.bf16.mxu0 0
      %4190 = vmatmul.mubr.bf16.gmra.mrb[0].mxu0 %v3130
      %v4191 = vpop.f32.mrb[0].mxu0
      %v4192 = vadd.f32 %v3215, %v4191
      %v4193 = vpop.f32.mrb[0].mxu0
      %v4194 = vadd.f32 %v3219, %v4193
      %v4195 = vpop.f32.mrb[0].mxu0
      %v4196 = vadd.f32 %v3215, %v4195
      %v4197 = vpop.f32.mrb[0].mxu0
      %v4198 = vadd.f32 %v3219, %v4197
      %4199 = vmatprep.mubr.bf16.mxu0 0
      %4200 = vmatmul.mubr.bf16.gmra.mrb[0].mxu0 %v3131
      %v4201 = vpop.f32.mrb[0].mxu0
      %v4202 = vadd.f32 %v3215, %v4201
      %v4203 = vpop.f32.mrb[0].mxu0
      %v4204 = vadd.f32 %v3219, %v4203
      %v4205 = vpop.f32.mrb[0].mxu0
      %v4206 = vadd.f32 %v3215, %v4205
      %v4207 = vpop.f32.mrb[0].mxu0
      %v4208 = vadd.f32 %v3219, %v4207
      %4209 = vmatprep.mubr.bf16.mxu0 0
      %4210 = vmatmul.mubr.bf16.gmra.mrb[0].mxu0 %v3132
      %v4211 = vpop.f32.mrb[0].mxu0
      %v4212 = vadd.f32 %v3215, %v4211
      %v4213 = vpop.f32.mrb[0].mxu0
      %v4214 = vadd.f32 %v3219, %v4213
      %v4215 = vpop.f32.mrb[0].mxu0
      %v4216 = vadd.f32 %v3215, %v4215
      %v4217 = vpop.f32.mrb[0].mxu0
      %v4218 = vadd.f32 %v3219, %v4217
      %4219 = vmatprep.mubr.bf16.mxu0 0
      %4220 = vmatmul.mubr.bf16.gmra.mrb[0].mxu0 %v3133
      %v4221 = vpop.f32.mrb[0].mxu0
      %v4222 = vadd.f32 %v3215, %v4221
      %v4223 = vpop.f32.mrb[0].mxu0
      %v4224 = vadd.f32 %v3219, %v4223
      %v4225 = vpop.f32.mrb[0].mxu0
      %v4226 = vadd.f32 %v3215, %v4225
      %v4227 = vpop.f32.mrb[0].mxu0
      %v4228 = vadd.f32 %v3219, %v4227
      %4229 = vmatprep.mubr.bf16.mxu0 0
      %4230 = vmatmul.mubr.bf16.gmra.mrb[0].mxu0 %v3134
      %v4231 = vpop.f32.mrb[0].mxu0
      %v4232 = vadd.f32 %v3215, %v4231
      %v4233 = vpop.f32.mrb[0].mxu0
      %v4234 = vadd.f32 %v3219, %v4233
      %v4235 = vpop.f32.mrb[0].mxu0
      %v4236 = vadd.f32 %v3215, %v4235
      %v4237 = vpop.f32.mrb[0].mxu0
      %v4238 = vadd.f32 %v3219, %v4237
      %4239 = vmatprep.mubr.bf16.mxu0 0
      %4240 = vmatmul.mubr.bf16.gmra.mrb[0].mxu0 %v3135
      %v4241 = vpop.f32.mrb[0].mxu0
      %v4242 = vadd.f32 %v3215, %v4241
      %v4243 = vpop.f32.mrb[0].mxu0
      %v4244 = vadd.f32 %v3219, %v4243
      %v4245 = vpop.f32.mrb[0].mxu0
      %v4246 = vadd.f32 %v3215, %v4245
      %v4247 = vpop.f32.mrb[0].mxu0
      %v4248 = vadd.f32 %v3219, %v4247
      %4249 = vmatprep.mubr.bf16.mxu0 0
      %4250 = vmatmul.mubr.bf16.gmra.mrb[0].mxu0 %v3136
      %v4251 = vpop.f32.mrb[0].mxu0
      %v4252 = vadd.f32 %v3215, %v4251
      %v4253 = vpop.f32.mrb[0].mxu0
      %v4254 = vadd.f32 %v3219, %v4253
      %v4255 = vpop.f32.mrb[0].mxu0
      %v4256 = vadd.f32 %v3215, %v4255
      %v4257 = vpop.f32.mrb[0].mxu0
      %v4258 = vadd.f32 %v3219, %v4257
      %4259 = vmatprep.mubr.bf16.mxu0 0
      %4260 = vmatmul.mubr.bf16.gmra.mrb[0].mxu0 %v3137
      %v4261 = vpop.f32.mrb[0].mxu0
      %v4262 = vadd.f32 %v3215, %v4261
      %v4263 = vpop.f32.mrb[0].mxu0
      %v4264 = vadd.f32 %v3219, %v4263
      %v4265 = vpop.f32.mrb[0].mxu0
      %v4266 = vadd.f32 %v3215, %v4265
      %v4267 = vpop.f32.mrb[0].mxu0
      %v4268 = vadd.f32 %v3219, %v4267
      %4269 = vdwg.mxu0
      %4270 = vmatprep.subr.bf16.mxu0 %v3441
      %4271 = vmatpush1.bf16.msra.mxu0 %v3440
      %4272 = vmatprep.subr.bf16.mxu0 %v3449
      %4273 = vmatpush1.bf16.msra.mxu0 %v3448
      %4274 = vmatprep.subr.bf16.mxu0 %v3457
      %4275 = vmatpush1.bf16.msra.mxu0 %v3456
      %4276 = vmatprep.subr.bf16.mxu0 %v3465
      %4277 = vmatpush1.bf16.msra.mxu0 %v3464
      %4278 = vmatprep.subr.bf16.mxu0 %v3473
      %4279 = vmatpush1.bf16.msra.mxu0 %v3472
      %4280 = vmatprep.subr.bf16.mxu0 %v3481
      %4281 = vmatpush1.bf16.msra.mxu0 %v3480
      %4282 = vmatprep.subr.bf16.mxu0 %v3489
      %4283 = vmatpush1.bf16.msra.mxu0 %v3488
      %4284 = vmatprep.subr.bf16.mxu0 %v3497
      %4285 = vmatpush1.bf16.msra.mxu0 %v3496
      %4286 = vmatprep.subr.bf16.mxu0 0
      %4287 = vmatpush1.bf16.msra.mxu0 0
      %4288 = vmatprep.subr.bf16.mxu0 0
      %4289 = vmatpush1.bf16.msra.mxu0 0
      %4290 = vmatprep.subr.bf16.mxu0 0
      %4291 = vmatpush1.bf16.msra.mxu0 0
      %4292 = vmatprep.subr.bf16.mxu0 0
      %4293 = vmatpush1.bf16.msra.mxu0 0
      %4294 = vmatprep.subr.bf16.mxu0 0
      %4295 = vmatpush1.bf16.msra.mxu0 0
      %4296 = vmatprep.subr.bf16.mxu0 0
      %4297 = vmatpush1.bf16.msra.mxu0 0
      %4298 = vmatprep.subr.bf16.mxu0 0
      %4299 = vmatpush1.bf16.msra.mxu0 0
      %4300 = vmatprep.subr.bf16.mxu0 0
      %4301 = vmatpush1.bf16.msra.mxu0 0
      %4302 = vmatprep.mubr.bf16.mxu0 0
      %4303 = vmatmul.mubr.bf16.gmra.mrb[0].mxu0 %v3106
      %v4304 = vpop.f32.mrb[0].mxu0
      %v4305 = vadd.f32 %v3223, %v4304
      %v4306 = vpop.f32.mrb[0].mxu0
      %v4307 = vadd.f32 %v3227, %v4306
      %v4308 = vpop.f32.mrb[0].mxu0
      %v4309 = vadd.f32 %v3223, %v4308
      %v4310 = vpop.f32.mrb[0].mxu0
      %v4311 = vadd.f32 %v3227, %v4310
      %4312 = vmatprep.mubr.bf16.mxu0 0
      %4313 = vmatmul.mubr.bf16.gmra.mrb[0].mxu0 %v3107
      %v4314 = vpop.f32.mrb[0].mxu0
      %v4315 = vadd.f32 %v3223, %v4314
      %v4316 = vpop.f32.mrb[0].mxu0
      %v4317 = vadd.f32 %v3227, %v4316
      %v4318 = vpop.f32.mrb[0].mxu0
      %v4319 = vadd.f32 %v3223, %v4318
      %v4320 = vpop.f32.mrb[0].mxu0
      %v4321 = vadd.f32 %v3227, %v4320
      %4322 = vmatprep.mubr.bf16.mxu0 0
      %4323 = vmatmul.mubr.bf16.gmra.mrb[0].mxu0 %v3108
      %v4324 = vpop.f32.mrb[0].mxu0
      %v4325 = vadd.f32 %v3223, %v4324
      %v4326 = vpop.f32.mrb[0].mxu0
      %v4327 = vadd.f32 %v3227, %v4326
      %v4328 = vpop.f32.mrb[0].mxu0
      %v4329 = vadd.f32 %v3223, %v4328
      %v4330 = vpop.f32.mrb[0].mxu0
      %v4331 = vadd.f32 %v3227, %v4330
      %4332 = vmatprep.mubr.bf16.mxu0 0
      %4333 = vmatmul.mubr.bf16.gmra.mrb[0].mxu0 %v3109
      %v4334 = vpop.f32.mrb[0].mxu0
      %v4335 = vadd.f32 %v3223, %v4334
      %v4336 = vpop.f32.mrb[0].mxu0
      %v4337 = vadd.f32 %v3227, %v4336
      %v4338 = vpop.f32.mrb[0].mxu0
      %v4339 = vadd.f32 %v3223, %v4338
      %v4340 = vpop.f32.mrb[0].mxu0
      %v4341 = vadd.f32 %v3227, %v4340
      %4342 = vmatprep.mubr.bf16.mxu0 0
      %4343 = vmatmul.mubr.bf16.gmra.mrb[0].mxu0 %v3110
      %v4344 = vpop.f32.mrb[0].mxu0
      %v4345 = vadd.f32 %v3223, %v4344
      %v4346 = vpop.f32.mrb[0].mxu0
      %v4347 = vadd.f32 %v3227, %v4346
      %v4348 = vpop.f32.mrb[0].mxu0
      %v4349 = vadd.f32 %v3223, %v4348
      %v4350 = vpop.f32.mrb[0].mxu0
      %v4351 = vadd.f32 %v3227, %v4350
      %4352 = vmatprep.mubr.bf16.mxu0 0
      %4353 = vmatmul.mubr.bf16.gmra.mrb[0].mxu0 %v3111
      %v4354 = vpop.f32.mrb[0].mxu0
      %v4355 = vadd.f32 %v3223, %v4354
      %v4356 = vpop.f32.mrb[0].mxu0
      %v4357 = vadd.f32 %v3227, %v4356
      %v4358 = vpop.f32.mrb[0].mxu0
      %v4359 = vadd.f32 %v3223, %v4358
      %v4360 = vpop.f32.mrb[0].mxu0
      %v4361 = vadd.f32 %v3227, %v4360
      %4362 = vmatprep.mubr.bf16.mxu0 0
      %4363 = vmatmul.mubr.bf16.gmra.mrb[0].mxu0 %v3112
      %v4364 = vpop.f32.mrb[0].mxu0
      %v4365 = vadd.f32 %v3223, %v4364
      %v4366 = vpop.f32.mrb[0].mxu0
      %v4367 = vadd.f32 %v3227, %v4366
      %v4368 = vpop.f32.mrb[0].mxu0
      %v4369 = vadd.f32 %v3223, %v4368
      %v4370 = vpop.f32.mrb[0].mxu0
      %v4371 = vadd.f32 %v3227, %v4370
      %4372 = vmatprep.mubr.bf16.mxu0 0
      %4373 = vmatmul.mubr.bf16.gmra.mrb[0].mxu0 %v3113
      %v4374 = vpop.f32.mrb[0].mxu0
      %v4375 = vadd.f32 %v3223, %v4374
      %v4376 = vpop.f32.mrb[0].mxu0
      %v4377 = vadd.f32 %v3227, %v4376
      %v4378 = vpop.f32.mrb[0].mxu0
      %v4379 = vadd.f32 %v3223, %v4378
      %v4380 = vpop.f32.mrb[0].mxu0
      %v4381 = vadd.f32 %v3227, %v4380
      %4382 = vmatprep.mubr.bf16.mxu0 0
      %4383 = vmatmul.mubr.bf16.gmra.mrb[0].mxu0 %v3114
      %v4384 = vpop.f32.mrb[0].mxu0
      %v4385 = vadd.f32 %v3223, %v4384
      %v4386 = vpop.f32.mrb[0].mxu0
      %v4387 = vadd.f32 %v3227, %v4386
      %v4388 = vpop.f32.mrb[0].mxu0
      %v4389 = vadd.f32 %v3223, %v4388
      %v4390 = vpop.f32.mrb[0].mxu0
      %v4391 = vadd.f32 %v3227, %v4390
      %4392 = vmatprep.mubr.bf16.mxu0 0
      %4393 = vmatmul.mubr.bf16.gmra.mrb[0].mxu0 %v3115
      %v4394 = vpop.f32.mrb[0].mxu0
      %v4395 = vadd.f32 %v3223, %v4394
      %v4396 = vpop.f32.mrb[0].mxu0
      %v4397 = vadd.f32 %v3227, %v4396
      %v4398 = vpop.f32.mrb[0].mxu0
      %v4399 = vadd.f32 %v3223, %v4398
      %v4400 = vpop.f32.mrb[0].mxu0
      %v4401 = vadd.f32 %v3227, %v4400
      %4402 = vmatprep.mubr.bf16.mxu0 0
      %4403 = vmatmul.mubr.bf16.gmra.mrb[0].mxu0 %v3116
      %v4404 = vpop.f32.mrb[0].mxu0
      %v4405 = vadd.f32 %v3223, %v4404
      %v4406 = vpop.f32.mrb[0].mxu0
      %v4407 = vadd.f32 %v3227, %v4406
      %v4408 = vpop.f32.mrb[0].mxu0
      %v4409 = vadd.f32 %v3223, %v4408
      %v4410 = vpop.f32.mrb[0].mxu0
      %v4411 = vadd.f32 %v3227, %v4410
      %4412 = vmatprep.mubr.bf16.mxu0 0
      %4413 = vmatmul.mubr.bf16.gmra.mrb[0].mxu0 %v3117
      %v4414 = vpop.f32.mrb[0].mxu0
      %v4415 = vadd.f32 %v3223, %v4414
      %v4416 = vpop.f32.mrb[0].mxu0
      %v4417 = vadd.f32 %v3227, %v4416
      %v4418 = vpop.f32.mrb[0].mxu0
      %v4419 = vadd.f32 %v3223, %v4418
      %v4420 = vpop.f32.mrb[0].mxu0
      %v4421 = vadd.f32 %v3227, %v4420
      %4422 = vmatprep.mubr.bf16.mxu0 0
      %4423 = vmatmul.mubr.bf16.gmra.mrb[0].mxu0 %v3118
      %v4424 = vpop.f32.mrb[0].mxu0
      %v4425 = vadd.f32 %v3223, %v4424
      %v4426 = vpop.f32.mrb[0].mxu0
      %v4427 = vadd.f32 %v3227, %v4426
      %v4428 = vpop.f32.mrb[0].mxu0
      %v4429 = vadd.f32 %v3223, %v4428
      %v4430 = vpop.f32.mrb[0].mxu0
      %v4431 = vadd.f32 %v3227, %v4430
      %4432 = vmatprep.mubr.bf16.mxu0 0
      %4433 = vmatmul.mubr.bf16.gmra.mrb[0].mxu0 %v3119
      %v4434 = vpop.f32.mrb[0].mxu0
      %v4435 = vadd.f32 %v3223, %v4434
      %v4436 = vpop.f32.mrb[0].mxu0
      %v4437 = vadd.f32 %v3227, %v4436
      %v4438 = vpop.f32.mrb[0].mxu0
      %v4439 = vadd.f32 %v3223, %v4438
      %v4440 = vpop.f32.mrb[0].mxu0
      %v4441 = vadd.f32 %v3227, %v4440
      %4442 = vmatprep.mubr.bf16.mxu0 0
      %4443 = vmatmul.mubr.bf16.gmra.mrb[0].mxu0 %v3120
      %v4444 = vpop.f32.mrb[0].mxu0
      %v4445 = vadd.f32 %v3223, %v4444
      %v4446 = vpop.f32.mrb[0].mxu0
      %v4447 = vadd.f32 %v3227, %v4446
      %v4448 = vpop.f32.mrb[0].mxu0
      %v4449 = vadd.f32 %v3223, %v4448
      %v4450 = vpop.f32.mrb[0].mxu0
      %v4451 = vadd.f32 %v3227, %v4450
      %4452 = vmatprep.mubr.bf16.mxu0 0
      %4453 = vmatmul.mubr.bf16.gmra.mrb[0].mxu0 %v3121
      %v4454 = vpop.f32.mrb[0].mxu0
      %v4455 = vadd.f32 %v3223, %v4454
      %v4456 = vpop.f32.mrb[0].mxu0
      %v4457 = vadd.f32 %v3227, %v4456
      %v4458 = vpop.f32.mrb[0].mxu0
      %v4459 = vadd.f32 %v3223, %v4458
      %v4460 = vpop.f32.mrb[0].mxu0
      %v4461 = vadd.f32 %v3227, %v4460
      %4462 = vmatprep.mubr.bf16.mxu0 0
      %4463 = vmatmul.mubr.bf16.gmra.mrb[0].mxu0 %v3122
      %v4464 = vpop.f32.mrb[0].mxu0
      %v4465 = vadd.f32 %v3223, %v4464
      %v4466 = vpop.f32.mrb[0].mxu0
      %v4467 = vadd.f32 %v3227, %v4466
      %v4468 = vpop.f32.mrb[0].mxu0
      %v4469 = vadd.f32 %v3223, %v4468
      %v4470 = vpop.f32.mrb[0].mxu0
      %v4471 = vadd.f32 %v3227, %v4470
      %4472 = vmatprep.mubr.bf16.mxu0 0
      %4473 = vmatmul.mubr.bf16.gmra.mrb[0].mxu0 %v3123
      %v4474 = vpop.f32.mrb[0].mxu0
      %v4475 = vadd.f32 %v3223, %v4474
      %v4476 = vpop.f32.mrb[0].mxu0
      %v4477 = vadd.f32 %v3227, %v4476
      %v4478 = vpop.f32.mrb[0].mxu0
      %v4479 = vadd.f32 %v3223, %v4478
      %v4480 = vpop.f32.mrb[0].mxu0
      %v4481 = vadd.f32 %v3227, %v4480
      %4482 = vmatprep.mubr.bf16.mxu0 0
      %4483 = vmatmul.mubr.bf16.gmra.mrb[0].mxu0 %v3124
      %v4484 = vpop.f32.mrb[0].mxu0
      %v4485 = vadd.f32 %v3223, %v4484
      %v4486 = vpop.f32.mrb[0].mxu0
      %v4487 = vadd.f32 %v3227, %v4486
      %v4488 = vpop.f32.mrb[0].mxu0
      %v4489 = vadd.f32 %v3223, %v4488
      %v4490 = vpop.f32.mrb[0].mxu0
      %v4491 = vadd.f32 %v3227, %v4490
      %4492 = vmatprep.mubr.bf16.mxu0 0
      %4493 = vmatmul.mubr.bf16.gmra.mrb[0].mxu0 %v3125
      %v4494 = vpop.f32.mrb[0].mxu0
      %v4495 = vadd.f32 %v3223, %v4494
      %v4496 = vpop.f32.mrb[0].mxu0
      %v4497 = vadd.f32 %v3227, %v4496
      %v4498 = vpop.f32.mrb[0].mxu0
      %v4499 = vadd.f32 %v3223, %v4498
      %v4500 = vpop.f32.mrb[0].mxu0
      %v4501 = vadd.f32 %v3227, %v4500
      %4502 = vmatprep.mubr.bf16.mxu0 0
      %4503 = vmatmul.mubr.bf16.gmra.mrb[0].mxu0 %v3126
      %v4504 = vpop.f32.mrb[0].mxu0
      %v4505 = vadd.f32 %v3223, %v4504
      %v4506 = vpop.f32.mrb[0].mxu0
      %v4507 = vadd.f32 %v3227, %v4506
      %v4508 = vpop.f32.mrb[0].mxu0
      %v4509 = vadd.f32 %v3223, %v4508
      %v4510 = vpop.f32.mrb[0].mxu0
      %v4511 = vadd.f32 %v3227, %v4510
      %4512 = vmatprep.mubr.bf16.mxu0 0
      %4513 = vmatmul.mubr.bf16.gmra.mrb[0].mxu0 %v3127
      %v4514 = vpop.f32.mrb[0].mxu0
      %v4515 = vadd.f32 %v3223, %v4514
      %v4516 = vpop.f32.mrb[0].mxu0
      %v4517 = vadd.f32 %v3227, %v4516
      %v4518 = vpop.f32.mrb[0].mxu0
      %v4519 = vadd.f32 %v3223, %v4518
      %v4520 = vpop.f32.mrb[0].mxu0
      %v4521 = vadd.f32 %v3227, %v4520
      %4522 = vmatprep.mubr.bf16.mxu0 0
      %4523 = vmatmul.mubr.bf16.gmra.mrb[0].mxu0 %v3128
      %v4524 = vpop.f32.mrb[0].mxu0
      %v4525 = vadd.f32 %v3223, %v4524
      %v4526 = vpop.f32.mrb[0].mxu0
      %v4527 = vadd.f32 %v3227, %v4526
      %v4528 = vpop.f32.mrb[0].mxu0
      %v4529 = vadd.f32 %v3223, %v4528
      %v4530 = vpop.f32.mrb[0].mxu0
      %v4531 = vadd.f32 %v3227, %v4530
      %4532 = vmatprep.mubr.bf16.mxu0 0
      %4533 = vmatmul.mubr.bf16.gmra.mrb[0].mxu0 %v3129
      %v4534 = vpop.f32.mrb[0].mxu0
      %v4535 = vadd.f32 %v3223, %v4534
      %v4536 = vpop.f32.mrb[0].mxu0
      %v4537 = vadd.f32 %v3227, %v4536
      %v4538 = vpop.f32.mrb[0].mxu0
      %v4539 = vadd.f32 %v3223, %v4538
      %v4540 = vpop.f32.mrb[0].mxu0
      %v4541 = vadd.f32 %v3227, %v4540
      %4542 = vmatprep.mubr.bf16.mxu0 0
      %4543 = vmatmul.mubr.bf16.gmra.mrb[0].mxu0 %v3130
      %v4544 = vpop.f32.mrb[0].mxu0
      %v4545 = vadd.f32 %v3223, %v4544
      %v4546 = vpop.f32.mrb[0].mxu0
      %v4547 = vadd.f32 %v3227, %v4546
      %v4548 = vpop.f32.mrb[0].mxu0
      %v4549 = vadd.f32 %v3223, %v4548
      %v4550 = vpop.f32.mrb[0].mxu0
      %v4551 = vadd.f32 %v3227, %v4550
      %4552 = vmatprep.mubr.bf16.mxu0 0
      %4553 = vmatmul.mubr.bf16.gmra.mrb[0].mxu0 %v3131
      %v4554 = vpop.f32.mrb[0].mxu0
      %v4555 = vadd.f32 %v3223, %v4554
      %v4556 = vpop.f32.mrb[0].mxu0
      %v4557 = vadd.f32 %v3227, %v4556
      %v4558 = vpop.f32.mrb[0].mxu0
      %v4559 = vadd.f32 %v3223, %v4558
      %v4560 = vpop.f32.mrb[0].mxu0
      %v4561 = vadd.f32 %v3227, %v4560
      %4562 = vmatprep.mubr.bf16.mxu0 0
      %4563 = vmatmul.mubr.bf16.gmra.mrb[0].mxu0 %v3132
      %v4564 = vpop.f32.mrb[0].mxu0
      %v4565 = vadd.f32 %v3223, %v4564
      %v4566 = vpop.f32.mrb[0].mxu0
      %v4567 = vadd.f32 %v3227, %v4566
      %v4568 = vpop.f32.mrb[0].mxu0
      %v4569 = vadd.f32 %v3223, %v4568
      %v4570 = vpop.f32.mrb[0].mxu0
      %v4571 = vadd.f32 %v3227, %v4570
      %4572 = vmatprep.mubr.bf16.mxu0 0
      %4573 = vmatmul.mubr.bf16.gmra.mrb[0].mxu0 %v3133
      %v4574 = vpop.f32.mrb[0].mxu0
      %v4575 = vadd.f32 %v3223, %v4574
      %v4576 = vpop.f32.mrb[0].mxu0
      %v4577 = vadd.f32 %v3227, %v4576
      %v4578 = vpop.f32.mrb[0].mxu0
      %v4579 = vadd.f32 %v3223, %v4578
      %v4580 = vpop.f32.mrb[0].mxu0
      %v4581 = vadd.f32 %v3227, %v4580
      %4582 = vmatprep.mubr.bf16.mxu0 0
      %4583 = vmatmul.mubr.bf16.gmra.mrb[0].mxu0 %v3134
      %v4584 = vpop.f32.mrb[0].mxu0
      %v4585 = vadd.f32 %v3223, %v4584
      %v4586 = vpop.f32.mrb[0].mxu0
      %v4587 = vadd.f32 %v3227, %v4586
      %v4588 = vpop.f32.mrb[0].mxu0
      %v4589 = vadd.f32 %v3223, %v4588
      %v4590 = vpop.f32.mrb[0].mxu0
      %v4591 = vadd.f32 %v3227, %v4590
      %4592 = vmatprep.mubr.bf16.mxu0 0
      %4593 = vmatmul.mubr.bf16.gmra.mrb[0].mxu0 %v3135
      %v4594 = vpop.f32.mrb[0].mxu0
      %v4595 = vadd.f32 %v3223, %v4594
      %v4596 = vpop.f32.mrb[0].mxu0
      %v4597 = vadd.f32 %v3227, %v4596
      %v4598 = vpop.f32.mrb[0].mxu0
      %v4599 = vadd.f32 %v3223, %v4598
      %v4600 = vpop.f32.mrb[0].mxu0
      %v4601 = vadd.f32 %v3227, %v4600
      %4602 = vmatprep.mubr.bf16.mxu0 0
      %4603 = vmatmul.mubr.bf16.gmra.mrb[0].mxu0 %v3136
      %v4604 = vpop.f32.mrb[0].mxu0
      %v4605 = vadd.f32 %v3223, %v4604
      %v4606 = vpop.f32.mrb[0].mxu0
      %v4607 = vadd.f32 %v3227, %v4606
      %v4608 = vpop.f32.mrb[0].mxu0
      %v4609 = vadd.f32 %v3223, %v4608
      %v4610 = vpop.f32.mrb[0].mxu0
      %v4611 = vadd.f32 %v3227, %v4610
      %4612 = vmatprep.mubr.bf16.mxu0 0
      %4613 = vmatmul.mubr.bf16.gmra.mrb[0].mxu0 %v3137
      %v4614 = vpop.f32.mrb[0].mxu0
      %v4615 = vadd.f32 %v3223, %v4614
      %v4616 = vpop.f32.mrb[0].mxu0
      %v4617 = vadd.f32 %v3227, %v4616
      %v4618 = vpop.f32.mrb[0].mxu0
      %v4619 = vadd.f32 %v3223, %v4618
      %v4620 = vpop.f32.mrb[0].mxu0
      %v4621 = vadd.f32 %v3227, %v4620
      %4622 = vdwg.mxu0
      %4623 = vmatprep.subr.bf16.mxu0 %v3443
      %4624 = vmatpush1.bf16.msra.mxu0 %v3442
      %4625 = vmatprep.subr.bf16.mxu0 %v3451
      %4626 = vmatpush1.bf16.msra.mxu0 %v3450
      %4627 = vmatprep.subr.bf16.mxu0 %v3459
      %4628 = vmatpush1.bf16.msra.mxu0 %v3458
      %4629 = vmatprep.subr.bf16.mxu0 %v3467
      %4630 = vmatpush1.bf16.msra.mxu0 %v3466
      %4631 = vmatprep.subr.bf16.mxu0 %v3475
      %4632 = vmatpush1.bf16.msra.mxu0 %v3474
      %4633 = vmatprep.subr.bf16.mxu0 %v3483
      %4634 = vmatpush1.bf16.msra.mxu0 %v3482
      %4635 = vmatprep.subr.bf16.mxu0 %v3491
      %4636 = vmatpush1.bf16.msra.mxu0 %v3490
      %4637 = vmatprep.subr.bf16.mxu0 %v3499
      %4638 = vmatpush1.bf16.msra.mxu0 %v3498
      %4639 = vmatprep.subr.bf16.mxu0 0
      %4640 = vmatpush1.bf16.msra.mxu0 0
      %4641 = vmatprep.subr.bf16.mxu0 0
      %4642 = vmatpush1.bf16.msra.mxu0 0
      %4643 = vmatprep.subr.bf16.mxu0 0
      %4644 = vmatpush1.bf16.msra.mxu0 0
      %4645 = vmatprep.subr.bf16.mxu0 0
      %4646 = vmatpush1.bf16.msra.mxu0 0
      %4647 = vmatprep.subr.bf16.mxu0 0
      %4648 = vmatpush1.bf16.msra.mxu0 0
      %4649 = vmatprep.subr.bf16.mxu0 0
      %4650 = vmatpush1.bf16.msra.mxu0 0
      %4651 = vmatprep.subr.bf16.mxu0 0
      %4652 = vmatpush1.bf16.msra.mxu0 0
      %4653 = vmatprep.subr.bf16.mxu0 0
      %4654 = vmatpush1.bf16.msra.mxu0 0
      %4655 = vmatprep.mubr.bf16.mxu0 0
      %4656 = vmatmul.mubr.bf16.gmra.mrb[0].mxu0 %v3106
      %v4657 = vpop.f32.mrb[0].mxu0
      %v4658 = vadd.f32 %v3231, %v4657
      %v4659 = vpop.f32.mrb[0].mxu0
      %v4660 = vadd.f32 %v3235, %v4659
      %v4661 = vpop.f32.mrb[0].mxu0
      %v4662 = vadd.f32 %v3231, %v4661
      %v4663 = vpop.f32.mrb[0].mxu0
      %v4664 = vadd.f32 %v3235, %v4663
      %4665 = vmatprep.mubr.bf16.mxu0 0
      %4666 = vmatmul.mubr.bf16.gmra.mrb[0].mxu0 %v3107
      %v4667 = vpop.f32.mrb[0].mxu0
      %v4668 = vadd.f32 %v3231, %v4667
      %v4669 = vpop.f32.mrb[0].mxu0
      %v4670 = vadd.f32 %v3235, %v4669
      %v4671 = vpop.f32.mrb[0].mxu0
      %v4672 = vadd.f32 %v3231, %v4671
      %v4673 = vpop.f32.mrb[0].mxu0
      %v4674 = vadd.f32 %v3235, %v4673
      %4675 = vmatprep.mubr.bf16.mxu0 0
      %4676 = vmatmul.mubr.bf16.gmra.mrb[0].mxu0 %v3108
      %v4677 = vpop.f32.mrb[0].mxu0
      %v4678 = vadd.f32 %v3231, %v4677
      %v4679 = vpop.f32.mrb[0].mxu0
      %v4680 = vadd.f32 %v3235, %v4679
      %v4681 = vpop.f32.mrb[0].mxu0
      %v4682 = vadd.f32 %v3231, %v4681
      %v4683 = vpop.f32.mrb[0].mxu0
      %v4684 = vadd.f32 %v3235, %v4683
      %4685 = vmatprep.mubr.bf16.mxu0 0
      %4686 = vmatmul.mubr.bf16.gmra.mrb[0].mxu0 %v3109
      %v4687 = vpop.f32.mrb[0].mxu0
      %v4688 = vadd.f32 %v3231, %v4687
      %v4689 = vpop.f32.mrb[0].mxu0
      %v4690 = vadd.f32 %v3235, %v4689
      %v4691 = vpop.f32.mrb[0].mxu0
      %v4692 = vadd.f32 %v3231, %v4691
      %v4693 = vpop.f32.mrb[0].mxu0
      %v4694 = vadd.f32 %v3235, %v4693
      %4695 = vmatprep.mubr.bf16.mxu0 0
      %4696 = vmatmul.mubr.bf16.gmra.mrb[0].mxu0 %v3110
      %v4697 = vpop.f32.mrb[0].mxu0
      %v4698 = vadd.f32 %v3231, %v4697
      %v4699 = vpop.f32.mrb[0].mxu0
      %v4700 = vadd.f32 %v3235, %v4699
      %v4701 = vpop.f32.mrb[0].mxu0
      %v4702 = vadd.f32 %v3231, %v4701
      %v4703 = vpop.f32.mrb[0].mxu0
      %v4704 = vadd.f32 %v3235, %v4703
      %4705 = vmatprep.mubr.bf16.mxu0 0
      %4706 = vmatmul.mubr.bf16.gmra.mrb[0].mxu0 %v3111
      %v4707 = vpop.f32.mrb[0].mxu0
      %v4708 = vadd.f32 %v3231, %v4707
      %v4709 = vpop.f32.mrb[0].mxu0
      %v4710 = vadd.f32 %v3235, %v4709
      %v4711 = vpop.f32.mrb[0].mxu0
      %v4712 = vadd.f32 %v3231, %v4711
      %v4713 = vpop.f32.mrb[0].mxu0
      %v4714 = vadd.f32 %v3235, %v4713
      %4715 = vmatprep.mubr.bf16.mxu0 0
      %4716 = vmatmul.mubr.bf16.gmra.mrb[0].mxu0 %v3112
      %v4717 = vpop.f32.mrb[0].mxu0
      %v4718 = vadd.f32 %v3231, %v4717
      %v4719 = vpop.f32.mrb[0].mxu0
      %v4720 = vadd.f32 %v3235, %v4719
      %v4721 = vpop.f32.mrb[0].mxu0
      %v4722 = vadd.f32 %v3231, %v4721
      %v4723 = vpop.f32.mrb[0].mxu0
      %v4724 = vadd.f32 %v3235, %v4723
      %4725 = vmatprep.mubr.bf16.mxu0 0
      %4726 = vmatmul.mubr.bf16.gmra.mrb[0].mxu0 %v3113
      %v4727 = vpop.f32.mrb[0].mxu0
      %v4728 = vadd.f32 %v3231, %v4727
      %v4729 = vpop.f32.mrb[0].mxu0
      %v4730 = vadd.f32 %v3235, %v4729
      %v4731 = vpop.f32.mrb[0].mxu0
      %v4732 = vadd.f32 %v3231, %v4731
      %v4733 = vpop.f32.mrb[0].mxu0
      %v4734 = vadd.f32 %v3235, %v4733
      %4735 = vmatprep.mubr.bf16.mxu0 0
      %4736 = vmatmul.mubr.bf16.gmra.mrb[0].mxu0 %v3114
      %v4737 = vpop.f32.mrb[0].mxu0
      %v4738 = vadd.f32 %v3231, %v4737
      %v4739 = vpop.f32.mrb[0].mxu0
      %v4740 = vadd.f32 %v3235, %v4739
      %v4741 = vpop.f32.mrb[0].mxu0
      %v4742 = vadd.f32 %v3231, %v4741
      %v4743 = vpop.f32.mrb[0].mxu0
      %v4744 = vadd.f32 %v3235, %v4743
      %4745 = vmatprep.mubr.bf16.mxu0 0
      %4746 = vmatmul.mubr.bf16.gmra.mrb[0].mxu0 %v3115
      %v4747 = vpop.f32.mrb[0].mxu0
      %v4748 = vadd.f32 %v3231, %v4747
      %v4749 = vpop.f32.mrb[0].mxu0
      %v4750 = vadd.f32 %v3235, %v4749
      %v4751 = vpop.f32.mrb[0].mxu0
      %v4752 = vadd.f32 %v3231, %v4751
      %v4753 = vpop.f32.mrb[0].mxu0
      %v4754 = vadd.f32 %v3235, %v4753
      %4755 = vmatprep.mubr.bf16.mxu0 0
      %4756 = vmatmul.mubr.bf16.gmra.mrb[0].mxu0 %v3116
      %v4757 = vpop.f32.mrb[0].mxu0
      %v4758 = vadd.f32 %v3231, %v4757
      %v4759 = vpop.f32.mrb[0].mxu0
      %v4760 = vadd.f32 %v3235, %v4759
      %v4761 = vpop.f32.mrb[0].mxu0
      %v4762 = vadd.f32 %v3231, %v4761
      %v4763 = vpop.f32.mrb[0].mxu0
      %v4764 = vadd.f32 %v3235, %v4763
      %4765 = vmatprep.mubr.bf16.mxu0 0
      %4766 = vmatmul.mubr.bf16.gmra.mrb[0].mxu0 %v3117
      %v4767 = vpop.f32.mrb[0].mxu0
      %v4768 = vadd.f32 %v3231, %v4767
      %v4769 = vpop.f32.mrb[0].mxu0
      %v4770 = vadd.f32 %v3235, %v4769
      %v4771 = vpop.f32.mrb[0].mxu0
      %v4772 = vadd.f32 %v3231, %v4771
      %v4773 = vpop.f32.mrb[0].mxu0
      %v4774 = vadd.f32 %v3235, %v4773
      %4775 = vmatprep.mubr.bf16.mxu0 0
      %4776 = vmatmul.mubr.bf16.gmra.mrb[0].mxu0 %v3118
      %v4777 = vpop.f32.mrb[0].mxu0
      %v4778 = vadd.f32 %v3231, %v4777
      %v4779 = vpop.f32.mrb[0].mxu0
      %v4780 = vadd.f32 %v3235, %v4779
      %v4781 = vpop.f32.mrb[0].mxu0
      %v4782 = vadd.f32 %v3231, %v4781
      %v4783 = vpop.f32.mrb[0].mxu0
      %v4784 = vadd.f32 %v3235, %v4783
      %4785 = vmatprep.mubr.bf16.mxu0 0
      %4786 = vmatmul.mubr.bf16.gmra.mrb[0].mxu0 %v3119
      %v4787 = vpop.f32.mrb[0].mxu0
      %v4788 = vadd.f32 %v3231, %v4787
      %v4789 = vpop.f32.mrb[0].mxu0
      %v4790 = vadd.f32 %v3235, %v4789
      %v4791 = vpop.f32.mrb[0].mxu0
      %v4792 = vadd.f32 %v3231, %v4791
      %v4793 = vpop.f32.mrb[0].mxu0
      %v4794 = vadd.f32 %v3235, %v4793
      %4795 = vmatprep.mubr.bf16.mxu0 0
      %4796 = vmatmul.mubr.bf16.gmra.mrb[0].mxu0 %v3120
      %v4797 = vpop.f32.mrb[0].mxu0
      %v4798 = vadd.f32 %v3231, %v4797
      %v4799 = vpop.f32.mrb[0].mxu0
      %v4800 = vadd.f32 %v3235, %v4799
      %v4801 = vpop.f32.mrb[0].mxu0
      %v4802 = vadd.f32 %v3231, %v4801
      %v4803 = vpop.f32.mrb[0].mxu0
      %v4804 = vadd.f32 %v3235, %v4803
      %4805 = vmatprep.mubr.bf16.mxu0 0
      %4806 = vmatmul.mubr.bf16.gmra.mrb[0].mxu0 %v3121
      %v4807 = vpop.f32.mrb[0].mxu0
      %v4808 = vadd.f32 %v3231, %v4807
      %v4809 = vpop.f32.mrb[0].mxu0
      %v4810 = vadd.f32 %v3235, %v4809
      %v4811 = vpop.f32.mrb[0].mxu0
      %v4812 = vadd.f32 %v3231, %v4811
      %v4813 = vpop.f32.mrb[0].mxu0
      %v4814 = vadd.f32 %v3235, %v4813
      %4815 = vmatprep.mubr.bf16.mxu0 0
      %4816 = vmatmul.mubr.bf16.gmra.mrb[0].mxu0 %v3122
      %v4817 = vpop.f32.mrb[0].mxu0
      %v4818 = vadd.f32 %v3231, %v4817
      %v4819 = vpop.f32.mrb[0].mxu0
      %v4820 = vadd.f32 %v3235, %v4819
      %v4821 = vpop.f32.mrb[0].mxu0
      %v4822 = vadd.f32 %v3231, %v4821
      %v4823 = vpop.f32.mrb[0].mxu0
      %v4824 = vadd.f32 %v3235, %v4823
      %4825 = vmatprep.mubr.bf16.mxu0 0
      %4826 = vmatmul.mubr.bf16.gmra.mrb[0].mxu0 %v3123
      %v4827 = vpop.f32.mrb[0].mxu0
      %v4828 = vadd.f32 %v3231, %v4827
      %v4829 = vpop.f32.mrb[0].mxu0
      %v4830 = vadd.f32 %v3235, %v4829
      %v4831 = vpop.f32.mrb[0].mxu0
      %v4832 = vadd.f32 %v3231, %v4831
      %v4833 = vpop.f32.mrb[0].mxu0
      %v4834 = vadd.f32 %v3235, %v4833
      %4835 = vmatprep.mubr.bf16.mxu0 0
      %4836 = vmatmul.mubr.bf16.gmra.mrb[0].mxu0 %v3124
      %v4837 = vpop.f32.mrb[0].mxu0
      %v4838 = vadd.f32 %v3231, %v4837
      %v4839 = vpop.f32.mrb[0].mxu0
      %v4840 = vadd.f32 %v3235, %v4839
      %v4841 = vpop.f32.mrb[0].mxu0
      %v4842 = vadd.f32 %v3231, %v4841
      %v4843 = vpop.f32.mrb[0].mxu0
      %v4844 = vadd.f32 %v3235, %v4843
      %4845 = vmatprep.mubr.bf16.mxu0 0
      %4846 = vmatmul.mubr.bf16.gmra.mrb[0].mxu0 %v3125
      %v4847 = vpop.f32.mrb[0].mxu0
      %v4848 = vadd.f32 %v3231, %v4847
      %v4849 = vpop.f32.mrb[0].mxu0
      %v4850 = vadd.f32 %v3235, %v4849
      %v4851 = vpop.f32.mrb[0].mxu0
      %v4852 = vadd.f32 %v3231, %v4851
      %v4853 = vpop.f32.mrb[0].mxu0
      %v4854 = vadd.f32 %v3235, %v4853
      %4855 = vmatprep.mubr.bf16.mxu0 0
      %4856 = vmatmul.mubr.bf16.gmra.mrb[0].mxu0 %v3126
      %v4857 = vpop.f32.mrb[0].mxu0
      %v4858 = vadd.f32 %v3231, %v4857
      %v4859 = vpop.f32.mrb[0].mxu0
      %v4860 = vadd.f32 %v3235, %v4859
      %v4861 = vpop.f32.mrb[0].mxu0
      %v4862 = vadd.f32 %v3231, %v4861
      %v4863 = vpop.f32.mrb[0].mxu0
      %v4864 = vadd.f32 %v3235, %v4863
      %4865 = vmatprep.mubr.bf16.mxu0 0
      %4866 = vmatmul.mubr.bf16.gmra.mrb[0].mxu0 %v3127
      %v4867 = vpop.f32.mrb[0].mxu0
      %v4868 = vadd.f32 %v3231, %v4867
      %v4869 = vpop.f32.mrb[0].mxu0
      %v4870 = vadd.f32 %v3235, %v4869
      %v4871 = vpop.f32.mrb[0].mxu0
      %v4872 = vadd.f32 %v3231, %v4871
      %v4873 = vpop.f32.mrb[0].mxu0
      %v4874 = vadd.f32 %v3235, %v4873
      %4875 = vmatprep.mubr.bf16.mxu0 0
      %4876 = vmatmul.mubr.bf16.gmra.mrb[0].mxu0 %v3128
      %v4877 = vpop.f32.mrb[0].mxu0
      %v4878 = vadd.f32 %v3231, %v4877
      %v4879 = vpop.f32.mrb[0].mxu0
      %v4880 = vadd.f32 %v3235, %v4879
      %v4881 = vpop.f32.mrb[0].mxu0
      %v4882 = vadd.f32 %v3231, %v4881
      %v4883 = vpop.f32.mrb[0].mxu0
      %v4884 = vadd.f32 %v3235, %v4883
      %4885 = vmatprep.mubr.bf16.mxu0 0
      %4886 = vmatmul.mubr.bf16.gmra.mrb[0].mxu0 %v3129
      %v4887 = vpop.f32.mrb[0].mxu0
      %v4888 = vadd.f32 %v3231, %v4887
      %v4889 = vpop.f32.mrb[0].mxu0
      %v4890 = vadd.f32 %v3235, %v4889
      %v4891 = vpop.f32.mrb[0].mxu0
      %v4892 = vadd.f32 %v3231, %v4891
      %v4893 = vpop.f32.mrb[0].mxu0
      %v4894 = vadd.f32 %v3235, %v4893
      %4895 = vmatprep.mubr.bf16.mxu0 0
      %4896 = vmatmul.mubr.bf16.gmra.mrb[0].mxu0 %v3130
      %v4897 = vpop.f32.mrb[0].mxu0
      %v4898 = vadd.f32 %v3231, %v4897
      %v4899 = vpop.f32.mrb[0].mxu0
      %v4900 = vadd.f32 %v3235, %v4899
      %v4901 = vpop.f32.mrb[0].mxu0
      %v4902 = vadd.f32 %v3231, %v4901
      %v4903 = vpop.f32.mrb[0].mxu0
      %v4904 = vadd.f32 %v3235, %v4903
      %4905 = vmatprep.mubr.bf16.mxu0 0
      %4906 = vmatmul.mubr.bf16.gmra.mrb[0].mxu0 %v3131
      %v4907 = vpop.f32.mrb[0].mxu0
      %v4908 = vadd.f32 %v3231, %v4907
      %v4909 = vpop.f32.mrb[0].mxu0
      %v4910 = vadd.f32 %v3235, %v4909
      %v4911 = vpop.f32.mrb[0].mxu0
      %v4912 = vadd.f32 %v3231, %v4911
      %v4913 = vpop.f32.mrb[0].mxu0
      %v4914 = vadd.f32 %v3235, %v4913
      %4915 = vmatprep.mubr.bf16.mxu0 0
      %4916 = vmatmul.mubr.bf16.gmra.mrb[0].mxu0 %v3132
      %v4917 = vpop.f32.mrb[0].mxu0
      %v4918 = vadd.f32 %v3231, %v4917
      %v4919 = vpop.f32.mrb[0].mxu0
      %v4920 = vadd.f32 %v3235, %v4919
      %v4921 = vpop.f32.mrb[0].mxu0
      %v4922 = vadd.f32 %v3231, %v4921
      %v4923 = vpop.f32.mrb[0].mxu0
      %v4924 = vadd.f32 %v3235, %v4923
      %4925 = vmatprep.mubr.bf16.mxu0 0
      %4926 = vmatmul.mubr.bf16.gmra.mrb[0].mxu0 %v3133
      %v4927 = vpop.f32.mrb[0].mxu0
      %v4928 = vadd.f32 %v3231, %v4927
      %v4929 = vpop.f32.mrb[0].mxu0
      %v4930 = vadd.f32 %v3235, %v4929
      %v4931 = vpop.f32.mrb[0].mxu0
      %v4932 = vadd.f32 %v3231, %v4931
      %v4933 = vpop.f32.mrb[0].mxu0
      %v4934 = vadd.f32 %v3235, %v4933
      %4935 = vmatprep.mubr.bf16.mxu0 0
      %4936 = vmatmul.mubr.bf16.gmra.mrb[0].mxu0 %v3134
      %v4937 = vpop.f32.mrb[0].mxu0
      %v4938 = vadd.f32 %v3231, %v4937
      %v4939 = vpop.f32.mrb[0].mxu0
      %v4940 = vadd.f32 %v3235, %v4939
      %v4941 = vpop.f32.mrb[0].mxu0
      %v4942 = vadd.f32 %v3231, %v4941
      %v4943 = vpop.f32.mrb[0].mxu0
      %v4944 = vadd.f32 %v3235, %v4943
      %4945 = vmatprep.mubr.bf16.mxu0 0
      %4946 = vmatmul.mubr.bf16.gmra.mrb[0].mxu0 %v3135
      %v4947 = vpop.f32.mrb[0].mxu0
      %v4948 = vadd.f32 %v3231, %v4947
      %v4949 = vpop.f32.mrb[0].mxu0
      %v4950 = vadd.f32 %v3235, %v4949
      %v4951 = vpop.f32.mrb[0].mxu0
      %v4952 = vadd.f32 %v3231, %v4951
      %v4953 = vpop.f32.mrb[0].mxu0
      %v4954 = vadd.f32 %v3235, %v4953
      %4955 = vmatprep.mubr.bf16.mxu0 0
      %4956 = vmatmul.mubr.bf16.gmra.mrb[0].mxu0 %v3136
      %v4957 = vpop.f32.mrb[0].mxu0
      %v4958 = vadd.f32 %v3231, %v4957
      %v4959 = vpop.f32.mrb[0].mxu0
      %v4960 = vadd.f32 %v3235, %v4959
      %v4961 = vpop.f32.mrb[0].mxu0
      %v4962 = vadd.f32 %v3231, %v4961
      %v4963 = vpop.f32.mrb[0].mxu0
      %v4964 = vadd.f32 %v3235, %v4963
      %4965 = vmatprep.mubr.bf16.mxu0 0
      %4966 = vmatmul.mubr.bf16.gmra.mrb[0].mxu0 %v3137
      %v4967 = vpop.f32.mrb[0].mxu0
      %v4968 = vadd.f32 %v3231, %v4967
      %v4969 = vpop.f32.mrb[0].mxu0
      %v4970 = vadd.f32 %v3235, %v4969
      %v4971 = vpop.f32.mrb[0].mxu0
      %v4972 = vadd.f32 %v3231, %v4971
      %v4973 = vpop.f32.mrb[0].mxu0
      %v4974 = vadd.f32 %v3235, %v4973
      %4975 = vdwg.mxu0
      %v4976 = vmax.f32 %v3599, 0.0
      %v4977 = vmax.f32 %v3601, 0.0
      %v4978 = vmax.f32 %v3952, 0.0
      %v4979 = vmax.f32 %v3954, 0.0
      %v4980 = vmax.f32 %v4305, 0.0
      %v4981 = vmax.f32 %v4307, 0.0
      %v4982 = vmax.f32 %v4658, 0.0
      %v4983 = vmax.f32 %v4660, 0.0
      %v4984 = vmax.f32 %v3603, 0.0
      %v4985 = vmax.f32 %v3605, 0.0
      %v4986 = vmax.f32 %v3956, 0.0
      %v4987 = vmax.f32 %v3958, 0.0
      %v4988 = vmax.f32 %v4309, 0.0
      %v4989 = vmax.f32 %v4311, 0.0
      %v4990 = vmax.f32 %v4662, 0.0
      %v4991 = vmax.f32 %v4664, 0.0
      %v4992 = vmax.f32 %v3609, 0.0
      %v4993 = vmax.f32 %v3611, 0.0
      %v4994 = vmax.f32 %v3962, 0.0
      %v4995 = vmax.f32 %v3964, 0.0
      %v4996 = vmax.f32 %v4315, 0.0
      %v4997 = vmax.f32 %v4317, 0.0
      %v4998 = vmax.f32 %v4668, 0.0
      %v4999 = vmax.f32 %v4670, 0.0
      %v5000 = vmax.f32 %v3613, 0.0
      %v5001 = vmax.f32 %v3615, 0.0
      %v5002 = vmax.f32 %v3966, 0.0
      %v5003 = vmax.f32 %v3968, 0.0
      %v5004 = vmax.f32 %v4319, 0.0
      %v5005 = vmax.f32 %v4321, 0.0
      %v5006 = vmax.f32 %v4672, 0.0
      %v5007 = vmax.f32 %v4674, 0.0
      %v5008 = vmax.f32 %v3619, 0.0
      %v5009 = vmax.f32 %v3621, 0.0
      %v5010 = vmax.f32 %v3972, 0.0
      %v5011 = vmax.f32 %v3974, 0.0
      %v5012 = vmax.f32 %v4325, 0.0
      %v5013 = vmax.f32 %v4327, 0.0
      %v5014 = vmax.f32 %v4678, 0.0
      %v5015 = vmax.f32 %v4680, 0.0
      %v5016 = vmax.f32 %v3623, 0.0
      %v5017 = vmax.f32 %v3625, 0.0
      %v5018 = vmax.f32 %v3976, 0.0
      %v5019 = vmax.f32 %v3978, 0.0
      %v5020 = vmax.f32 %v4329, 0.0
      %v5021 = vmax.f32 %v4331, 0.0
      %v5022 = vmax.f32 %v4682, 0.0
      %v5023 = vmax.f32 %v4684, 0.0
      %v5024 = vmax.f32 %v3629, 0.0
      %v5025 = vmax.f32 %v3631, 0.0
      %v5026 = vmax.f32 %v3982, 0.0
      %v5027 = vmax.f32 %v3984, 0.0
      %v5028 = vmax.f32 %v4335, 0.0
      %v5029 = vmax.f32 %v4337, 0.0
      %v5030 = vmax.f32 %v4688, 0.0
      %v5031 = vmax.f32 %v4690, 0.0
      %v5032 = vmax.f32 %v3633, 0.0
      %v5033 = vmax.f32 %v3635, 0.0
      %v5034 = vmax.f32 %v3986, 0.0
      %v5035 = vmax.f32 %v3988, 0.0
      %v5036 = vmax.f32 %v4339, 0.0
      %v5037 = vmax.f32 %v4341, 0.0
      %v5038 = vmax.f32 %v4692, 0.0
      %v5039 = vmax.f32 %v4694, 0.0
      %v5040 = vmax.f32 %v3639, 0.0
      %v5041 = vmax.f32 %v3641, 0.0
      %v5042 = vmax.f32 %v3992, 0.0
      %v5043 = vmax.f32 %v3994, 0.0
      %v5044 = vmax.f32 %v4345, 0.0
      %v5045 = vmax.f32 %v4347, 0.0
      %v5046 = vmax.f32 %v4698, 0.0
      %v5047 = vmax.f32 %v4700, 0.0
      %v5048 = vmax.f32 %v3643, 0.0
      %v5049 = vmax.f32 %v3645, 0.0
      %v5050 = vmax.f32 %v3996, 0.0
      %v5051 = vmax.f32 %v3998, 0.0
      %v5052 = vmax.f32 %v4349, 0.0
      %v5053 = vmax.f32 %v4351, 0.0
      %v5054 = vmax.f32 %v4702, 0.0
      %v5055 = vmax.f32 %v4704, 0.0
      %v5056 = vmax.f32 %v3649, 0.0
      %v5057 = vmax.f32 %v3651, 0.0
      %v5058 = vmax.f32 %v4002, 0.0
      %v5059 = vmax.f32 %v4004, 0.0
      %v5060 = vmax.f32 %v4355, 0.0
      %v5061 = vmax.f32 %v4357, 0.0
      %v5062 = vmax.f32 %v4708, 0.0
      %v5063 = vmax.f32 %v4710, 0.0
      %v5064 = vmax.f32 %v3653, 0.0
      %v5065 = vmax.f32 %v3655, 0.0
      %v5066 = vmax.f32 %v4006, 0.0
      %v5067 = vmax.f32 %v4008, 0.0
      %v5068 = vmax.f32 %v4359, 0.0
      %v5069 = vmax.f32 %v4361, 0.0
      %v5070 = vmax.f32 %v4712, 0.0
      %v5071 = vmax.f32 %v4714, 0.0
      %v5072 = vmax.f32 %v3659, 0.0
      %v5073 = vmax.f32 %v3661, 0.0
      %v5074 = vmax.f32 %v4012, 0.0
      %v5075 = vmax.f32 %v4014, 0.0
      %v5076 = vmax.f32 %v4365, 0.0
      %v5077 = vmax.f32 %v4367, 0.0
      %v5078 = vmax.f32 %v4718, 0.0
      %v5079 = vmax.f32 %v4720, 0.0
      %v5080 = vmax.f32 %v3663, 0.0
      %v5081 = vmax.f32 %v3665, 0.0
      %v5082 = vmax.f32 %v4016, 0.0
      %v5083 = vmax.f32 %v4018, 0.0
      %v5084 = vmax.f32 %v4369, 0.0
      %v5085 = vmax.f32 %v4371, 0.0
      %v5086 = vmax.f32 %v4722, 0.0
      %v5087 = vmax.f32 %v4724, 0.0
      %v5088 = vmax.f32 %v3669, 0.0
      %v5089 = vmax.f32 %v3671, 0.0
      %v5090 = vmax.f32 %v4022, 0.0
      %v5091 = vmax.f32 %v4024, 0.0
      %v5092 = vmax.f32 %v4375, 0.0
      %v5093 = vmax.f32 %v4377, 0.0
      %v5094 = vmax.f32 %v4728, 0.0
      %v5095 = vmax.f32 %v4730, 0.0
      %v5096 = vmax.f32 %v3673, 0.0
      %v5097 = vmax.f32 %v3675, 0.0
      %v5098 = vmax.f32 %v4026, 0.0
      %v5099 = vmax.f32 %v4028, 0.0
      %v5100 = vmax.f32 %v4379, 0.0
      %v5101 = vmax.f32 %v4381, 0.0
      %v5102 = vmax.f32 %v4732, 0.0
      %v5103 = vmax.f32 %v4734, 0.0
      %v5104 = vmax.f32 %v3679, 0.0
      %v5105 = vmax.f32 %v3681, 0.0
      %v5106 = vmax.f32 %v4032, 0.0
      %v5107 = vmax.f32 %v4034, 0.0
      %v5108 = vmax.f32 %v4385, 0.0
      %v5109 = vmax.f32 %v4387, 0.0
      %v5110 = vmax.f32 %v4738, 0.0
      %v5111 = vmax.f32 %v4740, 0.0
      %v5112 = vmax.f32 %v3683, 0.0
      %v5113 = vmax.f32 %v3685, 0.0
      %v5114 = vmax.f32 %v4036, 0.0
      %v5115 = vmax.f32 %v4038, 0.0
      %v5116 = vmax.f32 %v4389, 0.0
      %v5117 = vmax.f32 %v4391, 0.0
      %v5118 = vmax.f32 %v4742, 0.0
      %v5119 = vmax.f32 %v4744, 0.0
      %v5120 = vmax.f32 %v3689, 0.0
      %v5121 = vmax.f32 %v3691, 0.0
      %v5122 = vmax.f32 %v4042, 0.0
      %v5123 = vmax.f32 %v4044, 0.0
      %v5124 = vmax.f32 %v4395, 0.0
      %v5125 = vmax.f32 %v4397, 0.0
      %v5126 = vmax.f32 %v4748, 0.0
      %v5127 = vmax.f32 %v4750, 0.0
      %v5128 = vmax.f32 %v3693, 0.0
      %v5129 = vmax.f32 %v3695, 0.0
      %v5130 = vmax.f32 %v4046, 0.0
      %v5131 = vmax.f32 %v4048, 0.0
      %v5132 = vmax.f32 %v4399, 0.0
      %v5133 = vmax.f32 %v4401, 0.0
      %v5134 = vmax.f32 %v4752, 0.0
      %v5135 = vmax.f32 %v4754, 0.0
      %v5136 = vmax.f32 %v3699, 0.0
      %v5137 = vmax.f32 %v3701, 0.0
      %v5138 = vmax.f32 %v4052, 0.0
      %v5139 = vmax.f32 %v4054, 0.0
      %v5140 = vmax.f32 %v4405, 0.0
      %v5141 = vmax.f32 %v4407, 0.0
      %v5142 = vmax.f32 %v4758, 0.0
      %v5143 = vmax.f32 %v4760, 0.0
      %v5144 = vmax.f32 %v3703, 0.0
      %v5145 = vmax.f32 %v3705, 0.0
      %v5146 = vmax.f32 %v4056, 0.0
      %v5147 = vmax.f32 %v4058, 0.0
      %v5148 = vmax.f32 %v4409, 0.0
      %v5149 = vmax.f32 %v4411, 0.0
      %v5150 = vmax.f32 %v4762, 0.0
      %v5151 = vmax.f32 %v4764, 0.0
      %v5152 = vmax.f32 %v3709, 0.0
      %v5153 = vmax.f32 %v3711, 0.0
      %v5154 = vmax.f32 %v4062, 0.0
      %v5155 = vmax.f32 %v4064, 0.0
      %v5156 = vmax.f32 %v4415, 0.0
      %v5157 = vmax.f32 %v4417, 0.0
      %v5158 = vmax.f32 %v4768, 0.0
      %v5159 = vmax.f32 %v4770, 0.0
      %v5160 = vmax.f32 %v3713, 0.0
      %v5161 = vmax.f32 %v3715, 0.0
      %v5162 = vmax.f32 %v4066, 0.0
      %v5163 = vmax.f32 %v4068, 0.0
      %v5164 = vmax.f32 %v4419, 0.0
      %v5165 = vmax.f32 %v4421, 0.0
      %v5166 = vmax.f32 %v4772, 0.0
      %v5167 = vmax.f32 %v4774, 0.0
      %v5168 = vmax.f32 %v3719, 0.0
      %v5169 = vmax.f32 %v3721, 0.0
      %v5170 = vmax.f32 %v4072, 0.0
      %v5171 = vmax.f32 %v4074, 0.0
      %v5172 = vmax.f32 %v4425, 0.0
      %v5173 = vmax.f32 %v4427, 0.0
      %v5174 = vmax.f32 %v4778, 0.0
      %v5175 = vmax.f32 %v4780, 0.0
      %v5176 = vmax.f32 %v3723, 0.0
      %v5177 = vmax.f32 %v3725, 0.0
      %v5178 = vmax.f32 %v4076, 0.0
      %v5179 = vmax.f32 %v4078, 0.0
      %v5180 = vmax.f32 %v4429, 0.0
      %v5181 = vmax.f32 %v4431, 0.0
      %v5182 = vmax.f32 %v4782, 0.0
      %v5183 = vmax.f32 %v4784, 0.0
      %v5184 = vmax.f32 %v3729, 0.0
      %v5185 = vmax.f32 %v3731, 0.0
      %v5186 = vmax.f32 %v4082, 0.0
      %v5187 = vmax.f32 %v4084, 0.0
      %v5188 = vmax.f32 %v4435, 0.0
      %v5189 = vmax.f32 %v4437, 0.0
      %v5190 = vmax.f32 %v4788, 0.0
      %v5191 = vmax.f32 %v4790, 0.0
      %v5192 = vmax.f32 %v3733, 0.0
      %v5193 = vmax.f32 %v3735, 0.0
      %v5194 = vmax.f32 %v4086, 0.0
      %v5195 = vmax.f32 %v4088, 0.0
      %v5196 = vmax.f32 %v4439, 0.0
      %v5197 = vmax.f32 %v4441, 0.0
      %v5198 = vmax.f32 %v4792, 0.0
      %v5199 = vmax.f32 %v4794, 0.0
      %v5200 = vmax.f32 %v3739, 0.0
      %v5201 = vmax.f32 %v3741, 0.0
      %v5202 = vmax.f32 %v4092, 0.0
      %v5203 = vmax.f32 %v4094, 0.0
      %v5204 = vmax.f32 %v4445, 0.0
      %v5205 = vmax.f32 %v4447, 0.0
      %v5206 = vmax.f32 %v4798, 0.0
      %v5207 = vmax.f32 %v4800, 0.0
      %v5208 = vmax.f32 %v3743, 0.0
      %v5209 = vmax.f32 %v3745, 0.0
      %v5210 = vmax.f32 %v4096, 0.0
      %v5211 = vmax.f32 %v4098, 0.0
      %v5212 = vmax.f32 %v4449, 0.0
      %v5213 = vmax.f32 %v4451, 0.0
      %v5214 = vmax.f32 %v4802, 0.0
      %v5215 = vmax.f32 %v4804, 0.0
      %v5216 = vmax.f32 %v3749, 0.0
      %v5217 = vmax.f32 %v3751, 0.0
      %v5218 = vmax.f32 %v4102, 0.0
      %v5219 = vmax.f32 %v4104, 0.0
      %v5220 = vmax.f32 %v4455, 0.0
      %v5221 = vmax.f32 %v4457, 0.0
      %v5222 = vmax.f32 %v4808, 0.0
      %v5223 = vmax.f32 %v4810, 0.0
      %v5224 = vmax.f32 %v3753, 0.0
      %v5225 = vmax.f32 %v3755, 0.0
      %v5226 = vmax.f32 %v4106, 0.0
      %v5227 = vmax.f32 %v4108, 0.0
      %v5228 = vmax.f32 %v4459, 0.0
      %v5229 = vmax.f32 %v4461, 0.0
      %v5230 = vmax.f32 %v4812, 0.0
      %v5231 = vmax.f32 %v4814, 0.0
      %v5232 = vmax.f32 %v3759, 0.0
      %v5233 = vmax.f32 %v3761, 0.0
      %v5234 = vmax.f32 %v4112, 0.0
      %v5235 = vmax.f32 %v4114, 0.0
      %v5236 = vmax.f32 %v4465, 0.0
      %v5237 = vmax.f32 %v4467, 0.0
      %v5238 = vmax.f32 %v4818, 0.0
      %v5239 = vmax.f32 %v4820, 0.0
      %v5240 = vmax.f32 %v3763, 0.0
      %v5241 = vmax.f32 %v3765, 0.0
      %v5242 = vmax.f32 %v4116, 0.0
      %v5243 = vmax.f32 %v4118, 0.0
      %v5244 = vmax.f32 %v4469, 0.0
      %v5245 = vmax.f32 %v4471, 0.0
      %v5246 = vmax.f32 %v4822, 0.0
      %v5247 = vmax.f32 %v4824, 0.0
      %v5248 = vmax.f32 %v3769, 0.0
      %v5249 = vmax.f32 %v3771, 0.0
      %v5250 = vmax.f32 %v4122, 0.0
      %v5251 = vmax.f32 %v4124, 0.0
      %v5252 = vmax.f32 %v4475, 0.0
      %v5253 = vmax.f32 %v4477, 0.0
      %v5254 = vmax.f32 %v4828, 0.0
      %v5255 = vmax.f32 %v4830, 0.0
      %v5256 = vmax.f32 %v3773, 0.0
      %v5257 = vmax.f32 %v3775, 0.0
      %v5258 = vmax.f32 %v4126, 0.0
      %v5259 = vmax.f32 %v4128, 0.0
      %v5260 = vmax.f32 %v4479, 0.0
      %v5261 = vmax.f32 %v4481, 0.0
      %v5262 = vmax.f32 %v4832, 0.0
      %v5263 = vmax.f32 %v4834, 0.0
      %v5264 = vmax.f32 %v3779, 0.0
      %v5265 = vmax.f32 %v3781, 0.0
      %v5266 = vmax.f32 %v4132, 0.0
      %v5267 = vmax.f32 %v4134, 0.0
      %v5268 = vmax.f32 %v4485, 0.0
      %v5269 = vmax.f32 %v4487, 0.0
      %v5270 = vmax.f32 %v4838, 0.0
      %v5271 = vmax.f32 %v4840, 0.0
      %v5272 = vmax.f32 %v3783, 0.0
      %v5273 = vmax.f32 %v3785, 0.0
      %v5274 = vmax.f32 %v4136, 0.0
      %v5275 = vmax.f32 %v4138, 0.0
      %v5276 = vmax.f32 %v4489, 0.0
      %v5277 = vmax.f32 %v4491, 0.0
      %v5278 = vmax.f32 %v4842, 0.0
      %v5279 = vmax.f32 %v4844, 0.0
      %v5280 = vmax.f32 %v3789, 0.0
      %v5281 = vmax.f32 %v3791, 0.0
      %v5282 = vmax.f32 %v4142, 0.0
      %v5283 = vmax.f32 %v4144, 0.0
      %v5284 = vmax.f32 %v4495, 0.0
      %v5285 = vmax.f32 %v4497, 0.0
      %v5286 = vmax.f32 %v4848, 0.0
      %v5287 = vmax.f32 %v4850, 0.0
      %v5288 = vmax.f32 %v3793, 0.0
      %v5289 = vmax.f32 %v3795, 0.0
      %v5290 = vmax.f32 %v4146, 0.0
      %v5291 = vmax.f32 %v4148, 0.0
      %v5292 = vmax.f32 %v4499, 0.0
      %v5293 = vmax.f32 %v4501, 0.0
      %v5294 = vmax.f32 %v4852, 0.0
      %v5295 = vmax.f32 %v4854, 0.0
      %v5296 = vmax.f32 %v3799, 0.0
      %v5297 = vmax.f32 %v3801, 0.0
      %v5298 = vmax.f32 %v4152, 0.0
      %v5299 = vmax.f32 %v4154, 0.0
      %v5300 = vmax.f32 %v4505, 0.0
      %v5301 = vmax.f32 %v4507, 0.0
      %v5302 = vmax.f32 %v4858, 0.0
      %v5303 = vmax.f32 %v4860, 0.0
      %v5304 = vmax.f32 %v3803, 0.0
      %v5305 = vmax.f32 %v3805, 0.0
      %v5306 = vmax.f32 %v4156, 0.0
      %v5307 = vmax.f32 %v4158, 0.0
      %v5308 = vmax.f32 %v4509, 0.0
      %v5309 = vmax.f32 %v4511, 0.0
      %v5310 = vmax.f32 %v4862, 0.0
      %v5311 = vmax.f32 %v4864, 0.0
      %v5312 = vmax.f32 %v3809, 0.0
      %v5313 = vmax.f32 %v3811, 0.0
      %v5314 = vmax.f32 %v4162, 0.0
      %v5315 = vmax.f32 %v4164, 0.0
      %v5316 = vmax.f32 %v4515, 0.0
      %v5317 = vmax.f32 %v4517, 0.0
      %v5318 = vmax.f32 %v4868, 0.0
      %v5319 = vmax.f32 %v4870, 0.0
      %v5320 = vmax.f32 %v3813, 0.0
      %v5321 = vmax.f32 %v3815, 0.0
      %v5322 = vmax.f32 %v4166, 0.0
      %v5323 = vmax.f32 %v4168, 0.0
      %v5324 = vmax.f32 %v4519, 0.0
      %v5325 = vmax.f32 %v4521, 0.0
      %v5326 = vmax.f32 %v4872, 0.0
      %v5327 = vmax.f32 %v4874, 0.0
      %v5328 = vmax.f32 %v3819, 0.0
      %v5329 = vmax.f32 %v3821, 0.0
      %v5330 = vmax.f32 %v4172, 0.0
      %v5331 = vmax.f32 %v4174, 0.0
      %v5332 = vmax.f32 %v4525, 0.0
      %v5333 = vmax.f32 %v4527, 0.0
      %v5334 = vmax.f32 %v4878, 0.0
      %v5335 = vmax.f32 %v4880, 0.0
      %v5336 = vmax.f32 %v3823, 0.0
      %v5337 = vmax.f32 %v3825, 0.0
      %v5338 = vmax.f32 %v4176, 0.0
      %v5339 = vmax.f32 %v4178, 0.0
      %v5340 = vmax.f32 %v4529, 0.0
      %v5341 = vmax.f32 %v4531, 0.0
      %v5342 = vmax.f32 %v4882, 0.0
      %v5343 = vmax.f32 %v4884, 0.0
      %v5344 = vmax.f32 %v3829, 0.0
      %v5345 = vmax.f32 %v3831, 0.0
      %v5346 = vmax.f32 %v4182, 0.0
      %v5347 = vmax.f32 %v4184, 0.0
      %v5348 = vmax.f32 %v4535, 0.0
      %v5349 = vmax.f32 %v4537, 0.0
      %v5350 = vmax.f32 %v4888, 0.0
      %v5351 = vmax.f32 %v4890, 0.0
      %v5352 = vmax.f32 %v3833, 0.0
      %v5353 = vmax.f32 %v3835, 0.0
      %v5354 = vmax.f32 %v4186, 0.0
      %v5355 = vmax.f32 %v4188, 0.0
      %v5356 = vmax.f32 %v4539, 0.0
      %v5357 = vmax.f32 %v4541, 0.0
      %v5358 = vmax.f32 %v4892, 0.0
      %v5359 = vmax.f32 %v4894, 0.0
      %v5360 = vmax.f32 %v3839, 0.0
      %v5361 = vmax.f32 %v3841, 0.0
      %v5362 = vmax.f32 %v4192, 0.0
      %v5363 = vmax.f32 %v4194, 0.0
      %v5364 = vmax.f32 %v4545, 0.0
      %v5365 = vmax.f32 %v4547, 0.0
      %v5366 = vmax.f32 %v4898, 0.0
      %v5367 = vmax.f32 %v4900, 0.0
      %v5368 = vmax.f32 %v3843, 0.0
      %v5369 = vmax.f32 %v3845, 0.0
      %v5370 = vmax.f32 %v4196, 0.0
      %v5371 = vmax.f32 %v4198, 0.0
      %v5372 = vmax.f32 %v4549, 0.0
      %v5373 = vmax.f32 %v4551, 0.0
      %v5374 = vmax.f32 %v4902, 0.0
      %v5375 = vmax.f32 %v4904, 0.0
      %v5376 = vmax.f32 %v3849, 0.0
      %v5377 = vmax.f32 %v3851, 0.0
      %v5378 = vmax.f32 %v4202, 0.0
      %v5379 = vmax.f32 %v4204, 0.0
      %v5380 = vmax.f32 %v4555, 0.0
      %v5381 = vmax.f32 %v4557, 0.0
      %v5382 = vmax.f32 %v4908, 0.0
      %v5383 = vmax.f32 %v4910, 0.0
      %v5384 = vmax.f32 %v3853, 0.0
      %v5385 = vmax.f32 %v3855, 0.0
      %v5386 = vmax.f32 %v4206, 0.0
      %v5387 = vmax.f32 %v4208, 0.0
      %v5388 = vmax.f32 %v4559, 0.0
      %v5389 = vmax.f32 %v4561, 0.0
      %v5390 = vmax.f32 %v4912, 0.0
      %v5391 = vmax.f32 %v4914, 0.0
      %v5392 = vmax.f32 %v3859, 0.0
      %v5393 = vmax.f32 %v3861, 0.0
      %v5394 = vmax.f32 %v4212, 0.0
      %v5395 = vmax.f32 %v4214, 0.0
      %v5396 = vmax.f32 %v4565, 0.0
      %v5397 = vmax.f32 %v4567, 0.0
      %v5398 = vmax.f32 %v4918, 0.0
      %v5399 = vmax.f32 %v4920, 0.0
      %v5400 = vmax.f32 %v3863, 0.0
      %v5401 = vmax.f32 %v3865, 0.0
      %v5402 = vmax.f32 %v4216, 0.0
      %v5403 = vmax.f32 %v4218, 0.0
      %v5404 = vmax.f32 %v4569, 0.0
      %v5405 = vmax.f32 %v4571, 0.0
      %v5406 = vmax.f32 %v4922, 0.0
      %v5407 = vmax.f32 %v4924, 0.0
      %v5408 = vmax.f32 %v3869, 0.0
      %v5409 = vmax.f32 %v3871, 0.0
      %v5410 = vmax.f32 %v4222, 0.0
      %v5411 = vmax.f32 %v4224, 0.0
      %v5412 = vmax.f32 %v4575, 0.0
      %v5413 = vmax.f32 %v4577, 0.0
      %v5414 = vmax.f32 %v4928, 0.0
      %v5415 = vmax.f32 %v4930, 0.0
      %v5416 = vmax.f32 %v3873, 0.0
      %v5417 = vmax.f32 %v3875, 0.0
      %v5418 = vmax.f32 %v4226, 0.0
      %v5419 = vmax.f32 %v4228, 0.0
      %v5420 = vmax.f32 %v4579, 0.0
      %v5421 = vmax.f32 %v4581, 0.0
      %v5422 = vmax.f32 %v4932, 0.0
      %v5423 = vmax.f32 %v4934, 0.0
      %v5424 = vmax.f32 %v3879, 0.0
      %v5425 = vmax.f32 %v3881, 0.0
      %v5426 = vmax.f32 %v4232, 0.0
      %v5427 = vmax.f32 %v4234, 0.0
      %v5428 = vmax.f32 %v4585, 0.0
      %v5429 = vmax.f32 %v4587, 0.0
      %v5430 = vmax.f32 %v4938, 0.0
      %v5431 = vmax.f32 %v4940, 0.0
      %v5432 = vmax.f32 %v3883, 0.0
      %v5433 = vmax.f32 %v3885, 0.0
      %v5434 = vmax.f32 %v4236, 0.0
      %v5435 = vmax.f32 %v4238, 0.0
      %v5436 = vmax.f32 %v4589, 0.0
      %v5437 = vmax.f32 %v4591, 0.0
      %v5438 = vmax.f32 %v4942, 0.0
      %v5439 = vmax.f32 %v4944, 0.0
      %v5440 = vmax.f32 %v3889, 0.0
      %v5441 = vmax.f32 %v3891, 0.0
      %v5442 = vmax.f32 %v4242, 0.0
      %v5443 = vmax.f32 %v4244, 0.0
      %v5444 = vmax.f32 %v4595, 0.0
      %v5445 = vmax.f32 %v4597, 0.0
      %v5446 = vmax.f32 %v4948, 0.0
      %v5447 = vmax.f32 %v4950, 0.0
      %v5448 = vmax.f32 %v3893, 0.0
      %v5449 = vmax.f32 %v3895, 0.0
      %v5450 = vmax.f32 %v4246, 0.0
      %v5451 = vmax.f32 %v4248, 0.0
      %v5452 = vmax.f32 %v4599, 0.0
      %v5453 = vmax.f32 %v4601, 0.0
      %v5454 = vmax.f32 %v4952, 0.0
      %v5455 = vmax.f32 %v4954, 0.0
      %v5456 = vmax.f32 %v3899, 0.0
      %v5457 = vmax.f32 %v3901, 0.0
      %v5458 = vmax.f32 %v4252, 0.0
      %v5459 = vmax.f32 %v4254, 0.0
      %v5460 = vmax.f32 %v4605, 0.0
      %v5461 = vmax.f32 %v4607, 0.0
      %v5462 = vmax.f32 %v4958, 0.0
      %v5463 = vmax.f32 %v4960, 0.0
      %v5464 = vmax.f32 %v3903, 0.0
      %v5465 = vmax.f32 %v3905, 0.0
      %v5466 = vmax.f32 %v4256, 0.0
      %v5467 = vmax.f32 %v4258, 0.0
      %v5468 = vmax.f32 %v4609, 0.0
      %v5469 = vmax.f32 %v4611, 0.0
      %v5470 = vmax.f32 %v4962, 0.0
      %v5471 = vmax.f32 %v4964, 0.0
      %v5472 = vmax.f32 %v3909, 0.0
      %v5473 = vmax.f32 %v3911, 0.0
      %v5474 = vmax.f32 %v4262, 0.0
      %v5475 = vmax.f32 %v4264, 0.0
      %v5476 = vmax.f32 %v4615, 0.0
      %v5477 = vmax.f32 %v4617, 0.0
      %v5478 = vmax.f32 %v4968, 0.0
      %v5479 = vmax.f32 %v4970, 0.0
      %v5480 = vmax.f32 %v3913, 0.0
      %v5481 = vmax.f32 %v3915, 0.0
      %v5482 = vmax.f32 %v4266, 0.0
      %v5483 = vmax.f32 %v4268, 0.0
      %v5484 = vmax.f32 %v4619, 0.0
      %v5485 = vmax.f32 %v4621, 0.0
      %v5486 = vmax.f32 %v4972, 0.0
      %v5487 = vmax.f32 %v4974, 0.0
      %v5488 = vmax.f32 %v4976, %v4984
      %v5489 = vmax.f32 %v5488, %v4992
      %v5490 = vmax.f32 %v5489, %v5000
      %v5491 = vmax.f32 %v5490, %v5008
      %v5492 = vmax.f32 %v5491, %v5016
      %v5493 = vmax.f32 %v5492, %v5024
      %v5494 = vmax.f32 %v5493, %v5032
      %v5495 = vmax.f32 %v5494, %v5040
      %v5496 = vmax.f32 %v5495, %v5048
      %v5497 = vmax.f32 %v5496, %v5056
      %v5498 = vmax.f32 %v5497, %v5064
      %v5499 = vmax.f32 %v5498, %v5072
      %v5500 = vmax.f32 %v5499, %v5080
      %v5501 = vmax.f32 %v5500, %v5088
      %v5502 = vmax.f32 %v5501, %v5096
      %v5503 = vmax.f32 %v5502, %v5104
      %v5504 = vmax.f32 %v5503, %v5112
      %v5505 = vmax.f32 %v5504, %v5120
      %v5506 = vmax.f32 %v5505, %v5128
      %v5507 = vmax.f32 %v5506, %v5136
      %v5508 = vmax.f32 %v5507, %v5144
      %v5509 = vmax.f32 %v5508, %v5152
      %v5510 = vmax.f32 %v5509, %v5160
      %v5511 = vmax.f32 %v5510, %v5168
      %v5512 = vmax.f32 %v5511, %v5176
      %v5513 = vmax.f32 %v5512, %v5184
      %v5514 = vmax.f32 %v5513, %v5192
      %v5515 = vmax.f32 %v5514, %v5200
      %v5516 = vmax.f32 %v5515, %v5208
      %v5517 = vmax.f32 %v5516, %v5216
      %v5518 = vmax.f32 %v5517, %v5224
      %v5519 = vmax.f32 %v5518, %v5232
      %v5520 = vmax.f32 %v5519, %v5240
      %v5521 = vmax.f32 %v5520, %v5248
      %v5522 = vmax.f32 %v5521, %v5256
      %v5523 = vmax.f32 %v5522, %v5264
      %v5524 = vmax.f32 %v5523, %v5272
      %v5525 = vmax.f32 %v5524, %v5280
      %v5526 = vmax.f32 %v5525, %v5288
      %v5527 = vmax.f32 %v5526, %v5296
      %v5528 = vmax.f32 %v5527, %v5304
      %v5529 = vmax.f32 %v5528, %v5312
      %v5530 = vmax.f32 %v5529, %v5320
      %v5531 = vmax.f32 %v5530, %v5328
      %v5532 = vmax.f32 %v5531, %v5336
      %v5533 = vmax.f32 %v5532, %v5344
      %v5534 = vmax.f32 %v5533, %v5352
      %v5535 = vmax.f32 %v5534, %v5360
      %v5536 = vmax.f32 %v5535, %v5368
      %v5537 = vmax.f32 %v5536, %v5376
      %v5538 = vmax.f32 %v5537, %v5384
      %v5539 = vmax.f32 %v5538, %v5392
      %v5540 = vmax.f32 %v5539, %v5400
      %v5541 = vmax.f32 %v5540, %v5408
      %v5542 = vmax.f32 %v5541, %v5416
      %v5543 = vmax.f32 %v5542, %v5424
      %v5544 = vmax.f32 %v5543, %v5432
      %v5545 = vmax.f32 %v5544, %v5440
      %v5546 = vmax.f32 %v5545, %v5448
      %v5547 = vmax.f32 %v5546, %v5456
      %v5548 = vmax.f32 %v5547, %v5464
      %v5549 = vmax.f32 %v5548, %v5472
      %v5550 = vmax.f32 %v5549, %v5480
      %v5551 = vrot.slane %v5550, 4
      %v5552 = vmax.f32 %v5550, %v5551
      %v5553 = vrot.slane %v5552, 2
      %v5554 = vmax.f32 %v5552, %v5553
      %v5555 = vrot.slane %v5554, 1
      %v5556 = vmax.f32 %v5554, %v5555
      %v5557 = vmax.f32 %v4977, %v4985
      %v5558 = vmax.f32 %v5557, %v4993
      %v5559 = vmax.f32 %v5558, %v5001
      %v5560 = vmax.f32 %v5559, %v5009
      %v5561 = vmax.f32 %v5560, %v5017
      %v5562 = vmax.f32 %v5561, %v5025
      %v5563 = vmax.f32 %v5562, %v5033
      %v5564 = vmax.f32 %v5563, %v5041
      %v5565 = vmax.f32 %v5564, %v5049
      %v5566 = vmax.f32 %v5565, %v5057
      %v5567 = vmax.f32 %v5566, %v5065
      %v5568 = vmax.f32 %v5567, %v5073
      %v5569 = vmax.f32 %v5568, %v5081
      %v5570 = vmax.f32 %v5569, %v5089
      %v5571 = vmax.f32 %v5570, %v5097
      %v5572 = vmax.f32 %v5571, %v5105
      %v5573 = vmax.f32 %v5572, %v5113
      %v5574 = vmax.f32 %v5573, %v5121
      %v5575 = vmax.f32 %v5574, %v5129
      %v5576 = vmax.f32 %v5575, %v5137
      %v5577 = vmax.f32 %v5576, %v5145
      %v5578 = vmax.f32 %v5577, %v5153
      %v5579 = vmax.f32 %v5578, %v5161
      %v5580 = vmax.f32 %v5579, %v5169
      %v5581 = vmax.f32 %v5580, %v5177
      %v5582 = vmax.f32 %v5581, %v5185
      %v5583 = vmax.f32 %v5582, %v5193
      %v5584 = vmax.f32 %v5583, %v5201
      %v5585 = vmax.f32 %v5584, %v5209
      %v5586 = vmax.f32 %v5585, %v5217
      %v5587 = vmax.f32 %v5586, %v5225
      %v5588 = vmax.f32 %v5587, %v5233
      %v5589 = vmax.f32 %v5588, %v5241
      %v5590 = vmax.f32 %v5589, %v5249
      %v5591 = vmax.f32 %v5590, %v5257
      %v5592 = vmax.f32 %v5591, %v5265
      %v5593 = vmax.f32 %v5592, %v5273
      %v5594 = vmax.f32 %v5593, %v5281
      %v5595 = vmax.f32 %v5594, %v5289
      %v5596 = vmax.f32 %v5595, %v5297
      %v5597 = vmax.f32 %v5596, %v5305
      %v5598 = vmax.f32 %v5597, %v5313
      %v5599 = vmax.f32 %v5598, %v5321
      %v5600 = vmax.f32 %v5599, %v5329
      %v5601 = vmax.f32 %v5600, %v5337
      %v5602 = vmax.f32 %v5601, %v5345
      %v5603 = vmax.f32 %v5602, %v5353
      %v5604 = vmax.f32 %v5603, %v5361
      %v5605 = vmax.f32 %v5604, %v5369
      %v5606 = vmax.f32 %v5605, %v5377
      %v5607 = vmax.f32 %v5606, %v5385
      %v5608 = vmax.f32 %v5607, %v5393
      %v5609 = vmax.f32 %v5608, %v5401
      %v5610 = vmax.f32 %v5609, %v5409
      %v5611 = vmax.f32 %v5610, %v5417
      %v5612 = vmax.f32 %v5611, %v5425
      %v5613 = vmax.f32 %v5612, %v5433
      %v5614 = vmax.f32 %v5613, %v5441
      %v5615 = vmax.f32 %v5614, %v5449
      %v5616 = vmax.f32 %v5615, %v5457
      %v5617 = vmax.f32 %v5616, %v5465
      %v5618 = vmax.f32 %v5617, %v5473
      %v5619 = vmax.f32 %v5618, %v5481
      %v5620 = vrot.slane %v5619, 4
      %v5621 = vmax.f32 %v5619, %v5620
      %v5622 = vrot.slane %v5621, 2
      %v5623 = vmax.f32 %v5621, %v5622
      %v5624 = vrot.slane %v5623, 1
      %v5625 = vmax.f32 %v5623, %v5624
      %v5626 = vmax.f32 %v4978, %v4986
      %v5627 = vmax.f32 %v5626, %v4994
      %v5628 = vmax.f32 %v5627, %v5002
      %v5629 = vmax.f32 %v5628, %v5010
      %v5630 = vmax.f32 %v5629, %v5018
      %v5631 = vmax.f32 %v5630, %v5026
      %v5632 = vmax.f32 %v5631, %v5034
      %v5633 = vmax.f32 %v5632, %v5042
      %v5634 = vmax.f32 %v5633, %v5050
      %v5635 = vmax.f32 %v5634, %v5058
      %v5636 = vmax.f32 %v5635, %v5066
      %v5637 = vmax.f32 %v5636, %v5074
      %v5638 = vmax.f32 %v5637, %v5082
      %v5639 = vmax.f32 %v5638, %v5090
      %v5640 = vmax.f32 %v5639, %v5098
      %v5641 = vmax.f32 %v5640, %v5106
      %v5642 = vmax.f32 %v5641, %v5114
      %v5643 = vmax.f32 %v5642, %v5122
      %v5644 = vmax.f32 %v5643, %v5130
      %v5645 = vmax.f32 %v5644, %v5138
      %v5646 = vmax.f32 %v5645, %v5146
      %v5647 = vmax.f32 %v5646, %v5154
      %v5648 = vmax.f32 %v5647, %v5162
      %v5649 = vmax.f32 %v5648, %v5170
      %v5650 = vmax.f32 %v5649, %v5178
      %v5651 = vmax.f32 %v5650, %v5186
      %v5652 = vmax.f32 %v5651, %v5194
      %v5653 = vmax.f32 %v5652, %v5202
      %v5654 = vmax.f32 %v5653, %v5210
      %v5655 = vmax.f32 %v5654, %v5218
      %v5656 = vmax.f32 %v5655, %v5226
      %v5657 = vmax.f32 %v5656, %v5234
      %v5658 = vmax.f32 %v5657, %v5242
      %v5659 = vmax.f32 %v5658, %v5250
      %v5660 = vmax.f32 %v5659, %v5258
      %v5661 = vmax.f32 %v5660, %v5266
      %v5662 = vmax.f32 %v5661, %v5274
      %v5663 = vmax.f32 %v5662, %v5282
      %v5664 = vmax.f32 %v5663, %v5290
      %v5665 = vmax.f32 %v5664, %v5298
      %v5666 = vmax.f32 %v5665, %v5306
      %v5667 = vmax.f32 %v5666, %v5314
      %v5668 = vmax.f32 %v5667, %v5322
      %v5669 = vmax.f32 %v5668, %v5330
      %v5670 = vmax.f32 %v5669, %v5338
      %v5671 = vmax.f32 %v5670, %v5346
      %v5672 = vmax.f32 %v5671, %v5354
      %v5673 = vmax.f32 %v5672, %v5362
      %v5674 = vmax.f32 %v5673, %v5370
      %v5675 = vmax.f32 %v5674, %v5378
      %v5676 = vmax.f32 %v5675, %v5386
      %v5677 = vmax.f32 %v5676, %v5394
      %v5678 = vmax.f32 %v5677, %v5402
      %v5679 = vmax.f32 %v5678, %v5410
      %v5680 = vmax.f32 %v5679, %v5418
      %v5681 = vmax.f32 %v5680, %v5426
      %v5682 = vmax.f32 %v5681, %v5434
      %v5683 = vmax.f32 %v5682, %v5442
      %v5684 = vmax.f32 %v5683, %v5450
      %v5685 = vmax.f32 %v5684, %v5458
      %v5686 = vmax.f32 %v5685, %v5466
      %v5687 = vmax.f32 %v5686, %v5474
      %v5688 = vmax.f32 %v5687, %v5482
      %v5689 = vrot.slane %v5688, 4
      %v5690 = vmax.f32 %v5688, %v5689
      %v5691 = vrot.slane %v5690, 2
      %v5692 = vmax.f32 %v5690, %v5691
      %v5693 = vrot.slane %v5692, 1
      %v5694 = vmax.f32 %v5692, %v5693
      %v5695 = vmax.f32 %v4979, %v4987
      %v5696 = vmax.f32 %v5695, %v4995
      %v5697 = vmax.f32 %v5696, %v5003
      %v5698 = vmax.f32 %v5697, %v5011
      %v5699 = vmax.f32 %v5698, %v5019
      %v5700 = vmax.f32 %v5699, %v5027
      %v5701 = vmax.f32 %v5700, %v5035
      %v5702 = vmax.f32 %v5701, %v5043
      %v5703 = vmax.f32 %v5702, %v5051
      %v5704 = vmax.f32 %v5703, %v5059
      %v5705 = vmax.f32 %v5704, %v5067
      %v5706 = vmax.f32 %v5705, %v5075
      %v5707 = vmax.f32 %v5706, %v5083
      %v5708 = vmax.f32 %v5707, %v5091
      %v5709 = vmax.f32 %v5708, %v5099
      %v5710 = vmax.f32 %v5709, %v5107
      %v5711 = vmax.f32 %v5710, %v5115
      %v5712 = vmax.f32 %v5711, %v5123
      %v5713 = vmax.f32 %v5712, %v5131
      %v5714 = vmax.f32 %v5713, %v5139
      %v5715 = vmax.f32 %v5714, %v5147
      %v5716 = vmax.f32 %v5715, %v5155
      %v5717 = vmax.f32 %v5716, %v5163
      %v5718 = vmax.f32 %v5717, %v5171
      %v5719 = vmax.f32 %v5718, %v5179
      %v5720 = vmax.f32 %v5719, %v5187
      %v5721 = vmax.f32 %v5720, %v5195
      %v5722 = vmax.f32 %v5721, %v5203
      %v5723 = vmax.f32 %v5722, %v5211
      %v5724 = vmax.f32 %v5723, %v5219
      %v5725 = vmax.f32 %v5724, %v5227
      %v5726 = vmax.f32 %v5725, %v5235
      %v5727 = vmax.f32 %v5726, %v5243
      %v5728 = vmax.f32 %v5727, %v5251
      %v5729 = vmax.f32 %v5728, %v5259
      %v5730 = vmax.f32 %v5729, %v5267
      %v5731 = vmax.f32 %v5730, %v5275
      %v5732 = vmax.f32 %v5731, %v5283
      %v5733 = vmax.f32 %v5732, %v5291
      %v5734 = vmax.f32 %v5733, %v5299
      %v5735 = vmax.f32 %v5734, %v5307
      %v5736 = vmax.f32 %v5735, %v5315
      %v5737 = vmax.f32 %v5736, %v5323
      %v5738 = vmax.f32 %v5737, %v5331
      %v5739 = vmax.f32 %v5738, %v5339
      %v5740 = vmax.f32 %v5739, %v5347
      %v5741 = vmax.f32 %v5740, %v5355
      %v5742 = vmax.f32 %v5741, %v5363
      %v5743 = vmax.f32 %v5742, %v5371
      %v5744 = vmax.f32 %v5743, %v5379
      %v5745 = vmax.f32 %v5744, %v5387
      %v5746 = vmax.f32 %v5745, %v5395
      %v5747 = vmax.f32 %v5746, %v5403
      %v5748 = vmax.f32 %v5747, %v5411
      %v5749 = vmax.f32 %v5748, %v5419
      %v5750 = vmax.f32 %v5749, %v5427
      %v5751 = vmax.f32 %v5750, %v5435
      %v5752 = vmax.f32 %v5751, %v5443
      %v5753 = vmax.f32 %v5752, %v5451
      %v5754 = vmax.f32 %v5753, %v5459
      %v5755 = vmax.f32 %v5754, %v5467
      %v5756 = vmax.f32 %v5755, %v5475
      %v5757 = vmax.f32 %v5756, %v5483
      %v5758 = vrot.slane %v5757, 4
      %v5759 = vmax.f32 %v5757, %v5758
      %v5760 = vrot.slane %v5759, 2
      %v5761 = vmax.f32 %v5759, %v5760
      %v5762 = vrot.slane %v5761, 1
      %v5763 = vmax.f32 %v5761, %v5762
      %v5764 = vmax.f32 %v4980, %v4988
      %v5765 = vmax.f32 %v5764, %v4996
      %v5766 = vmax.f32 %v5765, %v5004
      %v5767 = vmax.f32 %v5766, %v5012
      %v5768 = vmax.f32 %v5767, %v5020
      %v5769 = vmax.f32 %v5768, %v5028
      %v5770 = vmax.f32 %v5769, %v5036
      %v5771 = vmax.f32 %v5770, %v5044
      %v5772 = vmax.f32 %v5771, %v5052
      %v5773 = vmax.f32 %v5772, %v5060
      %v5774 = vmax.f32 %v5773, %v5068
      %v5775 = vmax.f32 %v5774, %v5076
      %v5776 = vmax.f32 %v5775, %v5084
      %v5777 = vmax.f32 %v5776, %v5092
      %v5778 = vmax.f32 %v5777, %v5100
      %v5779 = vmax.f32 %v5778, %v5108
      %v5780 = vmax.f32 %v5779, %v5116
      %v5781 = vmax.f32 %v5780, %v5124
      %v5782 = vmax.f32 %v5781, %v5132
      %v5783 = vmax.f32 %v5782, %v5140
      %v5784 = vmax.f32 %v5783, %v5148
      %v5785 = vmax.f32 %v5784, %v5156
      %v5786 = vmax.f32 %v5785, %v5164
      %v5787 = vmax.f32 %v5786, %v5172
      %v5788 = vmax.f32 %v5787, %v5180
      %v5789 = vmax.f32 %v5788, %v5188
      %v5790 = vmax.f32 %v5789, %v5196
      %v5791 = vmax.f32 %v5790, %v5204
      %v5792 = vmax.f32 %v5791, %v5212
      %v5793 = vmax.f32 %v5792, %v5220
      %v5794 = vmax.f32 %v5793, %v5228
      %v5795 = vmax.f32 %v5794, %v5236
      %v5796 = vmax.f32 %v5795, %v5244
      %v5797 = vmax.f32 %v5796, %v5252
      %v5798 = vmax.f32 %v5797, %v5260
      %v5799 = vmax.f32 %v5798, %v5268
      %v5800 = vmax.f32 %v5799, %v5276
      %v5801 = vmax.f32 %v5800, %v5284
      %v5802 = vmax.f32 %v5801, %v5292
      %v5803 = vmax.f32 %v5802, %v5300
      %v5804 = vmax.f32 %v5803, %v5308
      %v5805 = vmax.f32 %v5804, %v5316
      %v5806 = vmax.f32 %v5805, %v5324
      %v5807 = vmax.f32 %v5806, %v5332
      %v5808 = vmax.f32 %v5807, %v5340
      %v5809 = vmax.f32 %v5808, %v5348
      %v5810 = vmax.f32 %v5809, %v5356
      %v5811 = vmax.f32 %v5810, %v5364
      %v5812 = vmax.f32 %v5811, %v5372
      %v5813 = vmax.f32 %v5812, %v5380
      %v5814 = vmax.f32 %v5813, %v5388
      %v5815 = vmax.f32 %v5814, %v5396
      %v5816 = vmax.f32 %v5815, %v5404
      %v5817 = vmax.f32 %v5816, %v5412
      %v5818 = vmax.f32 %v5817, %v5420
      %v5819 = vmax.f32 %v5818, %v5428
      %v5820 = vmax.f32 %v5819, %v5436
      %v5821 = vmax.f32 %v5820, %v5444
      %v5822 = vmax.f32 %v5821, %v5452
      %v5823 = vmax.f32 %v5822, %v5460
      %v5824 = vmax.f32 %v5823, %v5468
      %v5825 = vmax.f32 %v5824, %v5476
      %v5826 = vmax.f32 %v5825, %v5484
      %v5827 = vrot.slane %v5826, 4
      %v5828 = vmax.f32 %v5826, %v5827
      %v5829 = vrot.slane %v5828, 2
      %v5830 = vmax.f32 %v5828, %v5829
      %v5831 = vrot.slane %v5830, 1
      %v5832 = vmax.f32 %v5830, %v5831
      %v5833 = vmax.f32 %v4981, %v4989
      %v5834 = vmax.f32 %v5833, %v4997
      %v5835 = vmax.f32 %v5834, %v5005
      %v5836 = vmax.f32 %v5835, %v5013
      %v5837 = vmax.f32 %v5836, %v5021
      %v5838 = vmax.f32 %v5837, %v5029
      %v5839 = vmax.f32 %v5838, %v5037
      %v5840 = vmax.f32 %v5839, %v5045
      %v5841 = vmax.f32 %v5840, %v5053
      %v5842 = vmax.f32 %v5841, %v5061
      %v5843 = vmax.f32 %v5842, %v5069
      %v5844 = vmax.f32 %v5843, %v5077
      %v5845 = vmax.f32 %v5844, %v5085
      %v5846 = vmax.f32 %v5845, %v5093
      %v5847 = vmax.f32 %v5846, %v5101
      %v5848 = vmax.f32 %v5847, %v5109
      %v5849 = vmax.f32 %v5848, %v5117
      %v5850 = vmax.f32 %v5849, %v5125
      %v5851 = vmax.f32 %v5850, %v5133
      %v5852 = vmax.f32 %v5851, %v5141
      %v5853 = vmax.f32 %v5852, %v5149
      %v5854 = vmax.f32 %v5853, %v5157
      %v5855 = vmax.f32 %v5854, %v5165
      %v5856 = vmax.f32 %v5855, %v5173
      %v5857 = vmax.f32 %v5856, %v5181
      %v5858 = vmax.f32 %v5857, %v5189
      %v5859 = vmax.f32 %v5858, %v5197
      %v5860 = vmax.f32 %v5859, %v5205
      %v5861 = vmax.f32 %v5860, %v5213
      %v5862 = vmax.f32 %v5861, %v5221
      %v5863 = vmax.f32 %v5862, %v5229
      %v5864 = vmax.f32 %v5863, %v5237
      %v5865 = vmax.f32 %v5864, %v5245
      %v5866 = vmax.f32 %v5865, %v5253
      %v5867 = vmax.f32 %v5866, %v5261
      %v5868 = vmax.f32 %v5867, %v5269
      %v5869 = vmax.f32 %v5868, %v5277
      %v5870 = vmax.f32 %v5869, %v5285
      %v5871 = vmax.f32 %v5870, %v5293
      %v5872 = vmax.f32 %v5871, %v5301
      %v5873 = vmax.f32 %v5872, %v5309
      %v5874 = vmax.f32 %v5873, %v5317
      %v5875 = vmax.f32 %v5874, %v5325
      %v5876 = vmax.f32 %v5875, %v5333
      %v5877 = vmax.f32 %v5876, %v5341
      %v5878 = vmax.f32 %v5877, %v5349
      %v5879 = vmax.f32 %v5878, %v5357
      %v5880 = vmax.f32 %v5879, %v5365
      %v5881 = vmax.f32 %v5880, %v5373
      %v5882 = vmax.f32 %v5881, %v5381
      %v5883 = vmax.f32 %v5882, %v5389
      %v5884 = vmax.f32 %v5883, %v5397
      %v5885 = vmax.f32 %v5884, %v5405
      %v5886 = vmax.f32 %v5885, %v5413
      %v5887 = vmax.f32 %v5886, %v5421
      %v5888 = vmax.f32 %v5887, %v5429
      %v5889 = vmax.f32 %v5888, %v5437
      %v5890 = vmax.f32 %v5889, %v5445
      %v5891 = vmax.f32 %v5890, %v5453
      %v5892 = vmax.f32 %v5891, %v5461
      %v5893 = vmax.f32 %v5892, %v5469
      %v5894 = vmax.f32 %v5893, %v5477
      %v5895 = vmax.f32 %v5894, %v5485
      %v5896 = vrot.slane %v5895, 4
      %v5897 = vmax.f32 %v5895, %v5896
      %v5898 = vrot.slane %v5897, 2
      %v5899 = vmax.f32 %v5897, %v5898
      %v5900 = vrot.slane %v5899, 1
      %v5901 = vmax.f32 %v5899, %v5900
      %v5902 = vmax.f32 %v4982, %v4990
      %v5903 = vmax.f32 %v5902, %v4998
      %v5904 = vmax.f32 %v5903, %v5006
      %v5905 = vmax.f32 %v5904, %v5014
      %v5906 = vmax.f32 %v5905, %v5022
      %v5907 = vmax.f32 %v5906, %v5030
      %v5908 = vmax.f32 %v5907, %v5038
      %v5909 = vmax.f32 %v5908, %v5046
      %v5910 = vmax.f32 %v5909, %v5054
      %v5911 = vmax.f32 %v5910, %v5062
      %v5912 = vmax.f32 %v5911, %v5070
      %v5913 = vmax.f32 %v5912, %v5078
      %v5914 = vmax.f32 %v5913, %v5086
      %v5915 = vmax.f32 %v5914, %v5094
      %v5916 = vmax.f32 %v5915, %v5102
      %v5917 = vmax.f32 %v5916, %v5110
      %v5918 = vmax.f32 %v5917, %v5118
      %v5919 = vmax.f32 %v5918, %v5126
      %v5920 = vmax.f32 %v5919, %v5134
      %v5921 = vmax.f32 %v5920, %v5142
      %v5922 = vmax.f32 %v5921, %v5150
      %v5923 = vmax.f32 %v5922, %v5158
      %v5924 = vmax.f32 %v5923, %v5166
      %v5925 = vmax.f32 %v5924, %v5174
      %v5926 = vmax.f32 %v5925, %v5182
      %v5927 = vmax.f32 %v5926, %v5190
      %v5928 = vmax.f32 %v5927, %v5198
      %v5929 = vmax.f32 %v5928, %v5206
      %v5930 = vmax.f32 %v5929, %v5214
      %v5931 = vmax.f32 %v5930, %v5222
      %v5932 = vmax.f32 %v5931, %v5230
      %v5933 = vmax.f32 %v5932, %v5238
      %v5934 = vmax.f32 %v5933, %v5246
      %v5935 = vmax.f32 %v5934, %v5254
      %v5936 = vmax.f32 %v5935, %v5262
      %v5937 = vmax.f32 %v5936, %v5270
      %v5938 = vmax.f32 %v5937, %v5278
      %v5939 = vmax.f32 %v5938, %v5286
      %v5940 = vmax.f32 %v5939, %v5294
      %v5941 = vmax.f32 %v5940, %v5302
      %v5942 = vmax.f32 %v5941, %v5310
      %v5943 = vmax.f32 %v5942, %v5318
      %v5944 = vmax.f32 %v5943, %v5326
      %v5945 = vmax.f32 %v5944, %v5334
      %v5946 = vmax.f32 %v5945, %v5342
      %v5947 = vmax.f32 %v5946, %v5350
      %v5948 = vmax.f32 %v5947, %v5358
      %v5949 = vmax.f32 %v5948, %v5366
      %v5950 = vmax.f32 %v5949, %v5374
      %v5951 = vmax.f32 %v5950, %v5382
      %v5952 = vmax.f32 %v5951, %v5390
      %v5953 = vmax.f32 %v5952, %v5398
      %v5954 = vmax.f32 %v5953, %v5406
      %v5955 = vmax.f32 %v5954, %v5414
      %v5956 = vmax.f32 %v5955, %v5422
      %v5957 = vmax.f32 %v5956, %v5430
      %v5958 = vmax.f32 %v5957, %v5438
      %v5959 = vmax.f32 %v5958, %v5446
      %v5960 = vmax.f32 %v5959, %v5454
      %v5961 = vmax.f32 %v5960, %v5462
      %v5962 = vmax.f32 %v5961, %v5470
      %v5963 = vmax.f32 %v5962, %v5478
      %v5964 = vmax.f32 %v5963, %v5486
      %v5965 = vrot.slane %v5964, 4
      %v5966 = vmax.f32 %v5964, %v5965
      %v5967 = vrot.slane %v5966, 2
      %v5968 = vmax.f32 %v5966, %v5967
      %v5969 = vrot.slane %v5968, 1
      %v5970 = vmax.f32 %v5968, %v5969
      %v5971 = vmax.f32 %v4983, %v4991
      %v5972 = vmax.f32 %v5971, %v4999
      %v5973 = vmax.f32 %v5972, %v5007
      %v5974 = vmax.f32 %v5973, %v5015
      %v5975 = vmax.f32 %v5974, %v5023
      %v5976 = vmax.f32 %v5975, %v5031
      %v5977 = vmax.f32 %v5976, %v5039
      %v5978 = vmax.f32 %v5977, %v5047
      %v5979 = vmax.f32 %v5978, %v5055
      %v5980 = vmax.f32 %v5979, %v5063
      %v5981 = vmax.f32 %v5980, %v5071
      %v5982 = vmax.f32 %v5981, %v5079
      %v5983 = vmax.f32 %v5982, %v5087
      %v5984 = vmax.f32 %v5983, %v5095
      %v5985 = vmax.f32 %v5984, %v5103
      %v5986 = vmax.f32 %v5985, %v5111
      %v5987 = vmax.f32 %v5986, %v5119
      %v5988 = vmax.f32 %v5987, %v5127
      %v5989 = vmax.f32 %v5988, %v5135
      %v5990 = vmax.f32 %v5989, %v5143
      %v5991 = vmax.f32 %v5990, %v5151
      %v5992 = vmax.f32 %v5991, %v5159
      %v5993 = vmax.f32 %v5992, %v5167
      %v5994 = vmax.f32 %v5993, %v5175
      %v5995 = vmax.f32 %v5994, %v5183
      %v5996 = vmax.f32 %v5995, %v5191
      %v5997 = vmax.f32 %v5996, %v5199
      %v5998 = vmax.f32 %v5997, %v5207
      %v5999 = vmax.f32 %v5998, %v5215
      %v6000 = vmax.f32 %v5999, %v5223
      %v6001 = vmax.f32 %v6000, %v5231
      %v6002 = vmax.f32 %v6001, %v5239
      %v6003 = vmax.f32 %v6002, %v5247
      %v6004 = vmax.f32 %v6003, %v5255
      %v6005 = vmax.f32 %v6004, %v5263
      %v6006 = vmax.f32 %v6005, %v5271
      %v6007 = vmax.f32 %v6006, %v5279
      %v6008 = vmax.f32 %v6007, %v5287
      %v6009 = vmax.f32 %v6008, %v5295
      %v6010 = vmax.f32 %v6009, %v5303
      %v6011 = vmax.f32 %v6010, %v5311
      %v6012 = vmax.f32 %v6011, %v5319
      %v6013 = vmax.f32 %v6012, %v5327
      %v6014 = vmax.f32 %v6013, %v5335
      %v6015 = vmax.f32 %v6014, %v5343
      %v6016 = vmax.f32 %v6015, %v5351
      %v6017 = vmax.f32 %v6016, %v5359
      %v6018 = vmax.f32 %v6017, %v5367
      %v6019 = vmax.f32 %v6018, %v5375
      %v6020 = vmax.f32 %v6019, %v5383
      %v6021 = vmax.f32 %v6020, %v5391
      %v6022 = vmax.f32 %v6021, %v5399
      %v6023 = vmax.f32 %v6022, %v5407
      %v6024 = vmax.f32 %v6023, %v5415
      %v6025 = vmax.f32 %v6024, %v5423
      %v6026 = vmax.f32 %v6025, %v5431
      %v6027 = vmax.f32 %v6026, %v5439
      %v6028 = vmax.f32 %v6027, %v5447
      %v6029 = vmax.f32 %v6028, %v5455
      %v6030 = vmax.f32 %v6029, %v5463
      %v6031 = vmax.f32 %v6030, %v5471
      %v6032 = vmax.f32 %v6031, %v5479
      %v6033 = vmax.f32 %v6032, %v5487
      %v6034 = vrot.slane %v6033, 4
      %v6035 = vmax.f32 %v6033, %v6034
      %v6036 = vrot.slane %v6035, 2
      %v6037 = vmax.f32 %v6035, %v6036
      %v6038 = vrot.slane %v6037, 1
      %v6039 = vmax.f32 %v6037, %v6038
      %v6040 = vld [vmem:[%s412] sm:$0xff]
      %v6049 = vcombine.low %v5556, %v5625
      %v6050 = vcombine.low %v5694, %v5763
      %v6051 = vcombine.low %v5832, %v5901
      %v6052 = vcombine.low %v5970, %v6039
      %v6054 = vunpack.c.l.s4 1966171168
      %v6055 = vunpack.c.0.s8 %v6054
      %v6056 = vlaneseq
      %v6057 = vshrl.u32 %v6056, 7
      %v6058 = vsub.s32 %v6055, %v6057
      %v6059 = vrot.slane %v6049, %v6058
      %v6061 = vunpack.c.l.s4 1966171168
      %v6062 = vunpack.c.0.s8 %v6061
      %v6063 = vlaneseq
      %v6064 = vshrl.u32 %v6063, 7
      %v6065 = vsub.s32 %v6062, %v6064
      %v6066 = vrot.slane %v6050, %v6065
      %v6068 = vunpack.c.l.s4 1966171168
      %v6069 = vunpack.c.0.s8 %v6068
      %v6070 = vlaneseq
      %v6071 = vshrl.u32 %v6070, 7
      %v6072 = vsub.s32 %v6069, %v6071
      %v6073 = vrot.slane %v6051, %v6072
      %v6075 = vunpack.c.l.s4 1966171168
      %v6076 = vunpack.c.0.s8 %v6075
      %v6077 = vlaneseq
      %v6078 = vshrl.u32 %v6077, 7
      %v6079 = vsub.s32 %v6076, %v6078
      %v6080 = vrot.slane %v6052, %v6079
      %v6081 = vcombine.low %v6059, %v6066
      %v6082 = vcombine.low %v6073, %v6080
      %v6084 = vunpack.c.l.s4 1966171168
      %v6085 = vunpack.c.0.s8 %v6084
      %v6086 = vlaneseq
      %v6087 = vshrl.u32 %v6086, 7
      %v6088 = vsub.s32 %v6085, %v6087
      %v6089 = vrot.slane %v6081, %v6088
      %v6091 = vunpack.c.l.s4 1966171168
      %v6092 = vunpack.c.0.s8 %v6091
      %v6093 = vlaneseq
      %v6094 = vshrl.u32 %v6093, 7
      %v6095 = vsub.s32 %v6092, %v6094
      %v6096 = vrot.slane %v6082, %v6095
      %v6097 = vcombine.low %v6089, %v6096
      %v6099 = vmax.f32 %v6040, %v6097
      %6100 = vst [vmem:[%s412] sm:$0xff] %v6099
      %p6101 = scmp.lt.s32.totalorder %s26, 1
      %s6102 = scalar_select %p6101, %s26, 1
      %s6103 = smul.addr %s6102, 8
      %s6104 = scalar_lea.vmem %s11, %s6103
      // Predicated region
      $region69: #{pointnet_basic_forward.2} parent=63 // pred_check
        %p6105 = pneg %p290
      $region70: #{pointnet_basic_forward.2} parent=63 // pred_check_branch
        %6107 = sbr.rel (%p6105) target = $region72
      $region71: #{pointnet_basic_forward.2} parent=63 // pred_region
        _
      $region72: #{pointnet_basic_forward.2} parent=63 // pred_fallthru
        _
    $region64: #{pointnet_basic_forward.2} parent=5 // pred_fallthru
      _
    %p6108 = scmp.le.s32.totalorder 2, %s17
    // Predicated region
    $region73: #{pointnet_basic_forward.2} parent=5 // pred_check
      %p6109 = pneg %p6108
    $region74: #{pointnet_basic_forward.2} parent=5 // pred_check_branch
      %6111 = sbr.rel (%p6109) target = $region76
    $region75: #{pointnet_basic_forward.2} parent=5 // pred_region
      %s6112 = ssub.s32 %s17, 2
      // Predicated region
      $region77: #{pointnet_basic_forward.2} parent=75 // pred_check
        %p6113 = pneg %p296
      $region78: #{pointnet_basic_forward.2} parent=75 // pred_check_branch
        %6115 = sbr.rel (%p6113) target = $region80
      $region79: #{pointnet_basic_forward.2} parent=75 // pred_region
        %p6116 = scmp.lt.s32.totalorder %s28, 1
        %s6117 = scalar_select %p6116, %s28, 1
        %s6118 = smul.addr %s6117, 8
        %s6119 = scalar_lea.vmem %s11, %s6118
      $region80: #{pointnet_basic_forward.2} parent=75 // pred_fallthru
        _
    $region76: #{pointnet_basic_forward.2} parent=5 // pred_fallthru
      _
  $region6: #{pointnet_basic_forward.2} parent=0 // loop_footer
    %s21 = sadd.s32 1, %s17
  $region7: #{pointnet_basic_forward.2} parent=0 // loop_footer_branch
    %16 = sbr.rel target = $region3
  $region8: #{pointnet_basic_forward.2} parent=0 // loop_exit
    _

</llo_original>
